<compile_context>
chip_gen: v6e
topology: v6e:2x2x1
jax: 0.10.0
libtpu: 0.0.40
codegen_flags: <defaults>
</compile_context>

<pallas_src>
import functools

import jax
import jax.numpy as jnp
from jax.experimental import pallas as pl
from jax.experimental.pallas import tpu as pltpu

LEAKY_SLOPE = 0.2
BN_EPS = 1e-5

# Double-buffered per-step VMEM tile budget: fits v7x's 64 MiB physical VMEM
# with headroom; v5e/v6e have 128 MiB.
_TILE_VMEM_BUDGET = 22 * 1024 * 1024
_VMEM_LIMIT_BYTES = 48 * 1024 * 1024


def _cdiv(a, b):
    return (a + b - 1) // b


def _round_up(x, m):
    return _cdiv(x, m) * m


def _pad_to(x, shape):
    pads = [(0, s - d) for s, d in zip(shape, x.shape)]
    if any(p[1] for p in pads):
        return jnp.pad(x, pads)
    return x


# ----------------------------------------------------------------------------
# Pallas kernel: tiled matmul (bf16 MXU operands, f32 accumulate)
#   prologue : optional per-K-column scale/shift (+ LeakyReLU)  [deferred BN]
#   epilogue : bias add, optional LeakyReLU, per-channel BN partial statistics
# ----------------------------------------------------------------------------
def _conv_matmul_kernel(x_ref, w_ref, s_ref, t_ref, b_ref, y_ref, stats_ref,
                        acc_ref, *, apply_pre, act_epilogue, emit_stats, alpha,
                        valid_m, tm):
    # NOTE: program_id / num_programs are read ONLY at the top level of the
    # kernel body -- never inside a pl.when body (interpret/lowering safety).
    i = pl.program_id(0)
    k = pl.program_id(2)
    last_k = pl.num_programs(2) - 1
    row0 = i * tm

    @pl.when(k == 0)
    def _():
        acc_ref[...] = jnp.zeros_like(acc_ref)

    x = x_ref[...]
    if apply_pre:
        # Previous layer's BatchNorm + LeakyReLU, deferred into this matmul's
        # prologue. Columns that came from spatial padding were pre-filled with
        # -shift/scale, so they map back to exactly 0 here; zero-padded K
        # columns multiply against zero weight rows, so they never contribute.
        xf = x.astype(jnp.float32) * s_ref[...] + t_ref[...]
        xf = jnp.where(xf >= 0, xf, alpha * xf)
        x = xf.astype(jnp.bfloat16)

    acc_ref[...] += jnp.dot(x, w_ref[...], preferred_element_type=jnp.float32)

    @pl.when(k == last_k)
    def _():
        y = acc_ref[...] + b_ref[...]                       # (tm, tn) f32
        if emit_stats:
            # Per-channel partial sums for train-mode BatchNorm, taken from the
            # f32 accumulator; rows beyond the true M are masked out.
            # TODO(synk): E[x^2]-E[x]^2 in f32 partials; a Welford/two-pass
            # variance would be safer for very large M.
            if valid_m % tm == 0:
                ym = y
            else:
                rows = jax.lax.broadcasted_iota(jnp.int32, y.shape, 0) + row0
                ym = jnp.where(rows < valid_m, y, 0.0)
            stats_ref[0:1, :] = jnp.sum(ym, axis=0, keepdims=True)
            stats_ref[1:2, :] = jnp.sum(ym * ym, axis=0, keepdims=True)
            stats_ref[2:8, :] = jnp.zeros((6, y.shape[1]), jnp.float32)
        else:
            stats_ref[...] = jnp.zeros_like(stats_ref)
        if act_epilogue:
            y = jnp.where(y >= 0, y, alpha * y)
        y_ref[...] = y.astype(y_ref.dtype)


def _pick_tiles(M, K, N, out_bytes):
    """Generation-aware-ish tile selection under a fixed VMEM budget."""
    Mp128 = _round_up(M, 128)
    Np128 = _round_up(N, 128)
    Kp128 = _round_up(K, 128)

    # N tiles: up to 512 wide so cols are streamed from HBM only once for every
    # PatchGAN layer (Cout <= 512); stays lane-dense.
    gn = _cdiv(Np128, 512)
    tn = _round_up(_cdiv(Np128, gn), 128)

    # M tiles: small-K layers are bandwidth/overhead bound -> big tm; big-K
    # layers are MXU bound -> tm=512 keeps the footprint small and leaves >=2
    # parallel tiles for v7x's two TensorCores at realistic sizes.
    tm_cap = 2048 if K <= 1024 else 512
    gm = _cdiv(Mp128, tm_cap)
    tm = _round_up(_cdiv(Mp128, gm), 128)

    def footprint(tk):
        inputs = 2 * 2 * (tm * tk + tk * tn)          # bf16 x/w, double-buffered
        rows = 2 * 4 * (2 * tk + tn)                  # f32 scale/shift/bias rows
        acc = 4 * tm * tn                             # f32 accumulator scratch
        outs = 2 * (tm * tn * out_bytes + 8 * tn * 4)
        return inputs + rows + acc + outs

    # K tiles: full-K block (no extra accumulator round trips, no zero-padded
    # reduction passes) whenever it fits the budget; covers K up to 8192.
    if K <= 8192 and footprint(Kp128) <= _TILE_VMEM_BUDGET:
        tk = Kp128
    else:
        tk = min(4096, Kp128)
        while footprint(tk) > _TILE_VMEM_BUDGET and tk > 512:
            tk //= 2
    return tm, tn, tk


def pallas_conv_matmul(cols, wmat, b, *, pre=None, emit_stats=False,
                       act_epilogue=False, alpha=LEAKY_SLOPE,
                       out_dtype=jnp.bfloat16):
    """cols (M,K) @ wmat (K,N) + b with fused prologue/epilogue (see header)."""
    M, K = cols.shape
    K2, N = wmat.shape
    assert K == K2

    tm, tn, tk = _pick_tiles(M, K, N, jnp.dtype(out_dtype).itemsize)
    Mp, Np, Kp = _round_up(M, tm), _round_up(N, tn), _round_up(K, tk)
    gm, gn, gk = Mp // tm, Np // tn, Kp // tk

    xp = _pad_to(cols.astype(jnp.bfloat16), (Mp, Kp))
    wp = _pad_to(wmat.astype(jnp.bfloat16), (Kp, Np))
    bp = _pad_to(b.astype(jnp.float32).reshape(1, N), (1, Np))
    if pre is not None:
        s_k, t_k = pre
        sp = _pad_to(s_k.astype(jnp.float32).reshape(1, K), (1, Kp))
        tp = _pad_to(t_k.astype(jnp.float32).reshape(1, K), (1, Kp))
    else:  # identity prologue; refs are passed but statically unused
        sp = jnp.ones((1, Kp), jnp.float32)
        tp = jnp.zeros((1, Kp), jnp.float32)

    kernel = functools.partial(
        _conv_matmul_kernel, apply_pre=pre is not None,
        act_epilogue=act_epilogue, emit_stats=emit_stats, alpha=alpha,
        valid_m=M, tm=tm)

    y, stats = pl.pallas_call(
        kernel,
        out_shape=(jax.ShapeDtypeStruct((Mp, Np), out_dtype),
                   jax.ShapeDtypeStruct((gm * 8, Np), jnp.float32)),
        grid_spec=pltpu.PrefetchScalarGridSpec(
            num_scalar_prefetch=0,
            grid=(gm, gn, gk),
            in_specs=[
                pl.BlockSpec((tm, tk), lambda i, j, k: (i, k)),   # cols
                pl.BlockSpec((tk, tn), lambda i, j, k: (k, j)),   # weights
                pl.BlockSpec((1, tk), lambda i, j, k: (0, k)),    # pre-scale
                pl.BlockSpec((1, tk), lambda i, j, k: (0, k)),    # pre-shift
                pl.BlockSpec((1, tn), lambda i, j, k: (0, j)),    # bias
            ],
            out_specs=(
                pl.BlockSpec((tm, tn), lambda i, j, k: (i, j)),
                pl.BlockSpec((8, tn), lambda i, j, k: (i, j)),
            ),
            scratch_shapes=[pltpu.VMEM((tm, tn), jnp.float32)],
        ),
        compiler_params=pltpu.CompilerParams(
            dimension_semantics=("parallel", "parallel", "arbitrary"),
            vmem_limit_bytes=_VMEM_LIMIT_BYTES),
    )(xp, wp, sp, tp, bp)

    stats = stats.reshape(gm, 8, Np)[:, :2, :N]        # (gm, 2, N) partials
    return y[:M, :N], stats


# ----------------------------------------------------------------------------
# Conv layer = im2col (XLA glue) + one Pallas matmul kernel
# ----------------------------------------------------------------------------
def _im2col(x_nhwc, ksize, stride, pad, pad_value=None):
    n, h, w, c = x_nhwc.shape
    if pad_value is None:
        xp = jnp.pad(x_nhwc, ((0, 0), (pad, pad), (pad, pad), (0, 0)))
    else:
        # Per-channel pad value (= -shift/scale of the deferred BN), so padded
        # taps map to exactly 0 after the fused scale/shift/LeakyReLU prologue.
        xp = jnp.zeros((n, h + 2 * pad, w + 2 * pad, c), x_nhwc.dtype)
        xp = xp + pad_value.astype(x_nhwc.dtype)
        xp = xp.at[:, pad:pad + h, pad:pad + w, :].set(x_nhwc)
    hp, wp = h + 2 * pad, w + 2 * pad
    ho = (hp - ksize) // stride + 1
    wo = (wp - ksize) // stride + 1
    taps = []
    for kh in range(ksize):
        for kw in range(ksize):
            taps.append(xp[:, kh:kh + stride * ho:stride,
                           kw:kw + stride * wo:stride, :])
    patches = jnp.concatenate(taps, axis=-1)           # (N, Ho, Wo, k*k*Cin)
    return patches.reshape(n * ho * wo, ksize * ksize * c), (n, ho, wo)


def conv_layer(x_nhwc, p, *, pre, emit_stats, act_epilogue, out_dtype):
    w, b, stride = p["w"], p["b"], p["stride"]
    cout, cin, kh, kw = w.shape
    if pre is None:
        pad_value, pre_kt = None, None
    else:
        scale_c, shift_c = pre
        safe = jnp.where(scale_c == 0, 1.0, scale_c)
        pad_value = jnp.where(scale_c == 0, 0.0, -shift_c / safe)
        # K ordering from im2col is tap-major / channel-minor.
        pre_kt = (jnp.tile(scale_c, kh * kw), jnp.tile(shift_c, kh * kw))
    cols, (n, ho, wo) = _im2col(x_nhwc, kh, stride, 1, pad_value)
    # weight (Cout,Cin,kh,kw) -> (kh*kw*Cin, Cout), matching im2col ordering
    wmat = jnp.transpose(w, (2, 3, 1, 0)).reshape(kh * kw * cin, cout)
    y, stats = pallas_conv_matmul(cols, wmat, b, pre=pre_kt,
                                  emit_stats=emit_stats,
                                  act_epilogue=act_epilogue,
                                  out_dtype=out_dtype)
    return y.reshape(n, ho, wo, cout), stats, n * ho * wo


# ----------------------------------------------------------------------------
# PatchGANDiscriminator: parameter construction + forward
# ----------------------------------------------------------------------------
def init_params(key, input_nc=2, ndf=64, n_layers=3):
    cfgs = [(input_nc, ndf, 2, False, True)]            # conv1 (no norm)
    nf_mult = 1
    for n in range(1, n_layers):
        nf_prev, nf_mult = nf_mult, min(2 ** n, 8)
        cfgs.append((ndf * nf_prev, ndf * nf_mult, 2, True, True))
    nf_prev, nf_mult = nf_mult, min(2 ** n_layers, 8)
    cfgs.append((ndf * nf_prev, ndf * nf_mult, 1, True, True))
    cfgs.append((ndf * nf_mult, 1, 1, False, False))     # final 1-channel conv

    params = []
    for cin, cout, stride, bn, act in cfgs:
        key, k_w, k_b = jax.random.split(key, 3)
        w = 0.05 * jax.random.normal(k_w, (cout, cin, 4, 4), jnp.float32)
        b = 0.01 * jax.random.normal(k_b, (cout,), jnp.float32)
        bn_p = (jnp.ones((cout,), jnp.float32),
                jnp.zeros((cout,), jnp.float32)) if bn else None
        params.append(dict(w=w, b=b, stride=stride, bn=bn_p, act=act))
    return params


def patchgan_forward(x_nchw, params):
    x = jnp.transpose(x_nchw, (0, 2, 3, 1))              # NCHW -> NHWC
    pending = None                                       # deferred (scale, shift)
    for li, p in enumerate(params):
        last = li == len(params) - 1
        has_bn = p["bn"] is not None
        y, stats, count = conv_layer(
            x, p, pre=pending,
            emit_stats=has_bn,
            act_epilogue=(p["act"] and not has_bn),      # layer 1 only
            out_dtype=jnp.float32 if last else jnp.bfloat16)
        if has_bn:
            gamma, beta = p["bn"]
            # train-mode BatchNorm from the fused in-kernel partial sums
            s = jnp.sum(stats[:, 0, :], axis=0)
            sq = jnp.sum(stats[:, 1, :], axis=0)
            mean = s / count
            var = jnp.maximum(sq / count - mean * mean, 0.0)   # biased variance
            scale = gamma / jnp.sqrt(var + BN_EPS)
            shift = beta - mean * scale
            pending = (scale, shift)   # applied (+LeakyReLU) in next layer's prologue
        else:
            pending = None
        x = y
    assert pending is None             # PatchGAN's final conv has no norm
    return jnp.transpose(x, (0, 3, 1, 2)).astype(jnp.float32)  # NHWC -> NCHW


# ----------------------------------------------------------------------------
# Pure-JAX reference (lax conv, NCHW, PyTorch semantics) for correctness check
# ----------------------------------------------------------------------------
def reference_forward(x, params):
    for p in params:
        y = jax.lax.conv_general_dilated(
            x, p["w"], window_strides=(p["stride"],) * 2,
            padding=((1, 1), (1, 1)),
            dimension_numbers=("NCHW", "OIHW", "NCHW"))
        y = y + p["b"][None, :, None, None]
        if p["bn"] is not None:
            gamma, beta = p["bn"]
            mean = jnp.mean(y, axis=(0, 2, 3), keepdims=True)
            var = jnp.mean((y - mean) ** 2, axis=(0, 2, 3), keepdims=True)
            y = (y - mean) / jnp.sqrt(var + BN_EPS)
            y = y * gamma[None, :, None, None] + beta[None, :, None, None]
        if p["act"]:
            y = jnp.where(y >= 0, y, LEAKY_SLOPE * y)
        x = y
    return x


if __name__ == "__main__":
    key = jax.random.PRNGKey(0)
    k_params, k_x = jax.random.split(key)

    # small but architecture-consistent config: input_nc=2, ndf=16, n_layers=3
    params = init_params(k_params, input_nc=2, ndf=16, n_layers=3)

    x = jax.random.normal(k_x, (2, 2, 32, 32), jnp.float32)   # NCHW, like PyTorch

    fwd = jax.jit(lambda inp: patchgan_forward(inp, params))
    out = jax.block_until_ready(fwd(x))

    # spatial chain (k=4, p=1): 32 -s2-> 16 -s2-> 8 -s2-> 4 -s1-> 3 -s1-> 2
    assert out.shape == (2, 1, 2, 2), out.shape

    ref = jax.block_until_ready(reference_forward(x, params))
    ref_scale = float(jnp.max(jnp.abs(ref))) + 1e-6
    err = float(jnp.max(jnp.abs(out - ref)))
    # bf16 MXU operands + bf16 activation carry -> compare with relative tol
    assert err <= 5e-2 * ref_scale + 5e-3, (err, ref_scale)

    print("KERNEL_OK")
</pallas_src>

<mosaic_0001>
module attributes {stable_mosaic.version = 11 : i64} {
  func.func @_conv_matmul_kernel(%arg0: i32, %arg1: i32, %arg2: i32, %arg3: memref<512x128xbf16, #tpu.memory_space<vmem>>, %arg4: memref<128x128xbf16, #tpu.memory_space<vmem>>, %arg5: memref<1x128xf32, #tpu.memory_space<vmem>>, %arg6: memref<1x128xf32, #tpu.memory_space<vmem>>, %arg7: memref<1x128xf32, #tpu.memory_space<vmem>>, %arg8: memref<512x128xbf16, #tpu.memory_space<vmem>>, %arg9: memref<8x128xf32, #tpu.memory_space<vmem>>, %arg10: memref<512x128xf32, #tpu.memory_space<vmem>>) attributes {dimension_semantics = [#tpu.dimension_semantics<parallel>, #tpu.dimension_semantics<parallel>, #tpu.dimension_semantics<arbitrary>], iteration_bounds = array<i64: 1, 1, 1>, scalar_prefetch = 0 : i64, scratch_operands = 1 : i64, tpu.core_type = #tpu.core_type<tc>, window_params = [{transform_indices = @transform_0, window_bounds = array<i64: 512, 128>}, {transform_indices = @transform_1, window_bounds = array<i64: 128, 128>}, {transform_indices = @transform_2, window_bounds = array<i64: 1, 128>}, {transform_indices = @transform_3, window_bounds = array<i64: 1, 128>}, {transform_indices = @transform_4, window_bounds = array<i64: 1, 128>}, {transform_indices = @transform_5, window_bounds = array<i64: 512, 128>}, {transform_indices = @transform_6, window_bounds = array<i64: 8, 128>}]} {
    %c0_i32 = arith.constant 0 : i32
    %0 = arith.cmpi eq, %arg2, %c0_i32 : i32
    %1 = arith.extui %0 : i1 to i32
    %c0_i32_0 = arith.constant 0 : i32
    %2 = arith.cmpi ne, %1, %c0_i32_0 : i32
    scf.if %2 {
      %cst_10 = arith.constant 0.000000e+00 : f32
      %12 = vector.broadcast %cst_10 : f32 to vector<512x128xf32>
      %c0_11 = arith.constant 0 : index
      %c0_12 = arith.constant 0 : index
      %13 = vector.load %arg10[%c0_11, %c0_12] : memref<512x128xf32, #tpu.memory_space<vmem>>, vector<512x128xf32>
      tpu.vector_store %arg10[%c0_11, %c0_12], %12 {strides = array<i32>} : memref<512x128xf32, #tpu.memory_space<vmem>>, vector<512x128xf32>,
    } else {
    }
    %c0 = arith.constant 0 : index
    %c0_1 = arith.constant 0 : index
    %3 = vector.load %arg3[%c0, %c0_1] : memref<512x128xbf16, #tpu.memory_space<vmem>>, vector<512x128xbf16>
    %c0_2 = arith.constant 0 : index
    %c0_3 = arith.constant 0 : index
    %4 = vector.load %arg10[%c0_2, %c0_3] : memref<512x128xf32, #tpu.memory_space<vmem>>, vector<512x128xf32>
    %c0_4 = arith.constant 0 : index
    %c0_5 = arith.constant 0 : index
    %5 = vector.load %arg4[%c0_4, %c0_5] : memref<128x128xbf16, #tpu.memory_space<vmem>>, vector<128x128xbf16>
    %cst = arith.constant dense<0.000000e+00> : vector<512x128xf32>
    %6 = tpu.matmul %3, %5, %cst {dimension_numbers = #tpu.dot_dimension_numbers<[1], [0], [0], [1], [0, 0, 1, 1], [], []>} : vector<512x128xbf16>, vector<128x128xbf16>, vector<512x128xf32> -> vector<512x128xf32>
    %7 = arith.addf %4, %6 : vector<512x128xf32>
    %c0_6 = arith.constant 0 : index
    %c0_7 = arith.constant 0 : index
    %8 = vector.load %arg10[%c0_6, %c0_7] : memref<512x128xf32, #tpu.memory_space<vmem>>, vector<512x128xf32>
    tpu.vector_store %arg10[%c0_6, %c0_7], %7 {strides = array<i32>} : memref<512x128xf32, #tpu.memory_space<vmem>>, vector<512x128xf32>,
    %c0_i32_8 = arith.constant 0 : i32
    %9 = arith.cmpi eq, %arg2, %c0_i32_8 : i32
    %10 = arith.extui %9 : i1 to i32
    %c0_i32_9 = arith.constant 0 : i32
    %11 = arith.cmpi ne, %10, %c0_i32_9 : i32
    scf.if %11 {
      %c0_10 = arith.constant 0 : index
      %c0_11 = arith.constant 0 : index
      %12 = vector.load %arg10[%c0_10, %c0_11] : memref<512x128xf32, #tpu.memory_space<vmem>>, vector<512x128xf32>
      %c0_12 = arith.constant 0 : index
      %c0_13 = arith.constant 0 : index
      %13 = vector.load %arg7[%c0_12, %c0_13] : memref<1x128xf32, #tpu.memory_space<vmem>>, vector<1x128xf32>
      %14 = vector.broadcast %13 : vector<1x128xf32> to vector<512x128xf32>
      %15 = arith.addf %12, %14 : vector<512x128xf32>
      %cst_14 = arith.constant 0.000000e+00 : f32
      %16 = vector.broadcast %cst_14 : f32 to vector<8x128xf32>
      %c0_15 = arith.constant 0 : index
      %c0_16 = arith.constant 0 : index
      %17 = vector.load %arg9[%c0_15, %c0_16] : memref<8x128xf32, #tpu.memory_space<vmem>>, vector<8x128xf32>
      tpu.vector_store %arg9[%c0_15, %c0_16], %16 {strides = array<i32>} : memref<8x128xf32, #tpu.memory_space<vmem>>, vector<8x128xf32>,
      %cst_17 = arith.constant 0.000000e+00 : f32
      %18 = vector.broadcast %cst_17 : f32 to vector<512x128xf32>
      %19 = arith.cmpf oge, %15, %18 : vector<512x128xf32>
      %cst_18 = arith.constant 2.000000e-01 : f32
      %20 = vector.broadcast %cst_18 : f32 to vector<512x128xf32>
      %21 = arith.mulf %20, %15 : vector<512x128xf32>
      %22 = arith.select %19, %15, %21 : vector<512x128xi1>, vector<512x128xf32>
      %23 = arith.truncf %22 : vector<512x128xf32> to vector<512x128xbf16>
      %c0_19 = arith.constant 0 : index
      %c0_20 = arith.constant 0 : index
      %24 = vector.load %arg8[%c0_19, %c0_20] : memref<512x128xbf16, #tpu.memory_space<vmem>>, vector<512x128xbf16>
      tpu.vector_store %arg8[%c0_19, %c0_20], %23 {strides = array<i32>} : memref<512x128xbf16, #tpu.memory_space<vmem>>, vector<512x128xbf16>,
    } else {
    }
    return
  }
  func.func @transform_0(%arg0: i32, %arg1: i32, %arg2: i32) -> (i32, i32) {
    %c0_i32 = arith.constant 0 : i32
    return %arg0, %arg2 : i32, i32
  }
  func.func @transform_1(%arg0: i32, %arg1: i32, %arg2: i32) -> (i32, i32) {
    %c0_i32 = arith.constant 0 : i32
    return %arg2, %arg1 : i32, i32
  }
  func.func @transform_2(%arg0: i32, %arg1: i32, %arg2: i32) -> (i32, i32) {
    %c0_i32 = arith.constant 0 : i32
    %c0_i32_0 = arith.constant 0 : i32
    return %c0_i32, %arg2 : i32, i32
  }
  func.func @transform_3(%arg0: i32, %arg1: i32, %arg2: i32) -> (i32, i32) {
    %c0_i32 = arith.constant 0 : i32
    %c0_i32_0 = arith.constant 0 : i32
    return %c0_i32, %arg2 : i32, i32
  }
  func.func @transform_4(%arg0: i32, %arg1: i32, %arg2: i32) -> (i32, i32) {
    %c0_i32 = arith.constant 0 : i32
    %c0_i32_0 = arith.constant 0 : i32
    return %c0_i32, %arg1 : i32, i32
  }
  func.func @transform_5(%arg0: i32, %arg1: i32, %arg2: i32) -> (i32, i32) {
    %c0_i32 = arith.constant 0 : i32
    return %arg0, %arg1 : i32, i32
  }
  func.func @transform_6(%arg0: i32, %arg1: i32, %arg2: i32) -> (i32, i32) {
    %c0_i32 = arith.constant 0 : i32
    return %arg0, %arg1 : i32, i32
  }
}

module attributes {stable_mosaic.version = 11 : i64} {
  func.func @_conv_matmul_kernel(%arg0: i32, %arg1: i32, %arg2: i32, %arg3: memref<128x256xbf16, #tpu.memory_space<vmem>>, %arg4: memref<256x128xbf16, #tpu.memory_space<vmem>>, %arg5: memref<1x256xf32, #tpu.memory_space<vmem>>, %arg6: memref<1x256xf32, #tpu.memory_space<vmem>>, %arg7: memref<1x128xf32, #tpu.memory_space<vmem>>, %arg8: memref<128x128xbf16, #tpu.memory_space<vmem>>, %arg9: memref<8x128xf32, #tpu.memory_space<vmem>>, %arg10: memref<128x128xf32, #tpu.memory_space<vmem>>) attributes {dimension_semantics = [#tpu.dimension_semantics<parallel>, #tpu.dimension_semantics<parallel>, #tpu.dimension_semantics<arbitrary>], iteration_bounds = array<i64: 1, 1, 1>, scalar_prefetch = 0 : i64, scratch_operands = 1 : i64, tpu.core_type = #tpu.core_type<tc>, window_params = [{transform_indices = @transform_0, window_bounds = array<i64: 128, 256>}, {transform_indices = @transform_1, window_bounds = array<i64: 256, 128>}, {transform_indices = @transform_2, window_bounds = array<i64: 1, 256>}, {transform_indices = @transform_3, window_bounds = array<i64: 1, 256>}, {transform_indices = @transform_4, window_bounds = array<i64: 1, 128>}, {transform_indices = @transform_5, window_bounds = array<i64: 128, 128>}, {transform_indices = @transform_6, window_bounds = array<i64: 8, 128>}]} {
    %c0_i32 = arith.constant 0 : i32
    %0 = arith.cmpi eq, %arg2, %c0_i32 : i32
    %1 = arith.extui %0 : i1 to i32
    %c0_i32_0 = arith.constant 0 : i32
    %2 = arith.cmpi ne, %1, %c0_i32_0 : i32
    scf.if %2 {
      %cst_10 = arith.constant 0.000000e+00 : f32
      %12 = vector.broadcast %cst_10 : f32 to vector<128x128xf32>
      %c0_11 = arith.constant 0 : index
      %c0_12 = arith.constant 0 : index
      %13 = vector.load %arg10[%c0_11, %c0_12] : memref<128x128xf32, #tpu.memory_space<vmem>>, vector<128x128xf32>
      tpu.vector_store %arg10[%c0_11, %c0_12], %12 {strides = array<i32>} : memref<128x128xf32, #tpu.memory_space<vmem>>, vector<128x128xf32>,
    } else {
    }
    %c0 = arith.constant 0 : index
    %c0_1 = arith.constant 0 : index
    %3 = vector.load %arg3[%c0, %c0_1] : memref<128x256xbf16, #tpu.memory_space<vmem>>, vector<128x256xbf16>
    %c0_2 = arith.constant 0 : index
    %c0_3 = arith.constant 0 : index
    %4 = vector.load %arg10[%c0_2, %c0_3] : memref<128x128xf32, #tpu.memory_space<vmem>>, vector<128x128xf32>
    %c0_4 = arith.constant 0 : index
    %c0_5 = arith.constant 0 : index
    %5 = vector.load %arg4[%c0_4, %c0_5] : memref<256x128xbf16, #tpu.memory_space<vmem>>, vector<256x128xbf16>
    %cst = arith.constant dense<0.000000e+00> : vector<128x128xf32>
    %6 = tpu.matmul %3, %5, %cst {dimension_numbers = #tpu.dot_dimension_numbers<[1], [0], [0], [1], [0, 0, 1, 1], [], []>} : vector<128x256xbf16>, vector<256x128xbf16>, vector<128x128xf32> -> vector<128x128xf32>
    %7 = arith.addf %4, %6 : vector<128x128xf32>
    %c0_6 = arith.constant 0 : index
    %c0_7 = arith.constant 0 : index
    %8 = vector.load %arg10[%c0_6, %c0_7] : memref<128x128xf32, #tpu.memory_space<vmem>>, vector<128x128xf32>
    tpu.vector_store %arg10[%c0_6, %c0_7], %7 {strides = array<i32>} : memref<128x128xf32, #tpu.memory_space<vmem>>, vector<128x128xf32>,
    %c0_i32_8 = arith.constant 0 : i32
    %9 = arith.cmpi eq, %arg2, %c0_i32_8 : i32
    %10 = arith.extui %9 : i1 to i32
    %c0_i32_9 = arith.constant 0 : i32
    %11 = arith.cmpi ne, %10, %c0_i32_9 : i32
    scf.if %11 {
      %c0_10 = arith.constant 0 : index
      %c0_11 = arith.constant 0 : index
      %12 = vector.load %arg10[%c0_10, %c0_11] : memref<128x128xf32, #tpu.memory_space<vmem>>, vector<128x128xf32>
      %c0_12 = arith.constant 0 : index
      %c0_13 = arith.constant 0 : index
      %13 = vector.load %arg7[%c0_12, %c0_13] : memref<1x128xf32, #tpu.memory_space<vmem>>, vector<1x128xf32>
      %14 = vector.broadcast %13 : vector<1x128xf32> to vector<128x128xf32>
      %15 = arith.addf %12, %14 : vector<128x128xf32>
      %cst_14 = arith.constant dense<0.000000e+00> : vector<128xf32>
      %16 = vector.multi_reduction <add>, %15, %cst_14 [0] : vector<128x128xf32> to vector<128xf32>
      %17 = vector.shape_cast %16 : vector<128xf32> to vector<1x128xf32>
      %c0_15 = arith.constant 0 : index
      %c0_16 = arith.constant 0 : index
      %18 = vector.load %arg9[%c0_15, %c0_16] : memref<8x128xf32, #tpu.memory_space<vmem>>, vector<1x128xf32>
      tpu.vector_store %arg9[%c0_15, %c0_16], %17 {strides = array<i32>} : memref<8x128xf32, #tpu.memory_space<vmem>>, vector<1x128xf32>,
      %19 = arith.mulf %15, %15 : vector<128x128xf32>
      %cst_17 = arith.constant dense<0.000000e+00> : vector<128xf32>
      %20 = vector.multi_reduction <add>, %19, %cst_17 [0] : vector<128x128xf32> to vector<128xf32>
      %21 = vector.shape_cast %20 : vector<128xf32> to vector<1x128xf32>
      %c1 = arith.constant 1 : index
      %c0_18 = arith.constant 0 : index
      %22 = vector.load %arg9[%c1, %c0_18] : memref<8x128xf32, #tpu.memory_space<vmem>>, vector<1x128xf32>
      tpu.vector_store %arg9[%c1, %c0_18], %21 {strides = array<i32>} : memref<8x128xf32, #tpu.memory_space<vmem>>, vector<1x128xf32>,
      %cst_19 = arith.constant 0.000000e+00 : f32
      %23 = vector.broadcast %cst_19 : f32 to vector<6x128xf32>
      %c2 = arith.constant 2 : index
      %c0_20 = arith.constant 0 : index
      %24 = vector.load %arg9[%c2, %c0_20] : memref<8x128xf32, #tpu.memory_space<vmem>>, vector<6x128xf32>
      tpu.vector_store %arg9[%c2, %c0_20], %23 {strides = array<i32>} : memref<8x128xf32, #tpu.memory_space<vmem>>, vector<6x128xf32>,
      %25 = arith.truncf %15 : vector<128x128xf32> to vector<128x128xbf16>
      %c0_21 = arith.constant 0 : index
      %c0_22 = arith.constant 0 : index
      %26 = vector.load %arg8[%c0_21, %c0_22] : memref<128x128xbf16, #tpu.memory_space<vmem>>, vector<128x128xbf16>
      tpu.vector_store %arg8[%c0_21, %c0_22], %25 {strides = array<i32>} : memref<128x128xbf16, #tpu.memory_space<vmem>>, vector<128x128xbf16>,
    } else {
    }
    return
  }
  func.func @transform_0(%arg0: i32, %arg1: i32, %arg2: i32) -> (i32, i32) {
    %c0_i32 = arith.constant 0 : i32
    return %arg0, %arg2 : i32, i32
  }
  func.func @transform_1(%arg0: i32, %arg1: i32, %arg2: i32) -> (i32, i32) {
    %c0_i32 = arith.constant 0 : i32
    return %arg2, %arg1 : i32, i32
  }
  func.func @transform_2(%arg0: i32, %arg1: i32, %arg2: i32) -> (i32, i32) {
    %c0_i32 = arith.constant 0 : i32
    %c0_i32_0 = arith.constant 0 : i32
    return %c0_i32, %arg2 : i32, i32
  }
  func.func @transform_3(%arg0: i32, %arg1: i32, %arg2: i32) -> (i32, i32) {
    %c0_i32 = arith.constant 0 : i32
    %c0_i32_0 = arith.constant 0 : i32
    return %c0_i32, %arg2 : i32, i32
  }
  func.func @transform_4(%arg0: i32, %arg1: i32, %arg2: i32) -> (i32, i32) {
    %c0_i32 = arith.constant 0 : i32
    %c0_i32_0 = arith.constant 0 : i32
    return %c0_i32, %arg1 : i32, i32
  }
  func.func @transform_5(%arg0: i32, %arg1: i32, %arg2: i32) -> (i32, i32) {
    %c0_i32 = arith.constant 0 : i32
    return %arg0, %arg1 : i32, i32
  }
  func.func @transform_6(%arg0: i32, %arg1: i32, %arg2: i32) -> (i32, i32) {
    %c0_i32 = arith.constant 0 : i32
    return %arg0, %arg1 : i32, i32
  }
}

module attributes {stable_mosaic.version = 11 : i64} {
  func.func @_conv_matmul_kernel(%arg0: i32, %arg1: i32, %arg2: i32, %arg3: memref<128x512xbf16, #tpu.memory_space<vmem>>, %arg4: memref<512x128xbf16, #tpu.memory_space<vmem>>, %arg5: memref<1x512xf32, #tpu.memory_space<vmem>>, %arg6: memref<1x512xf32, #tpu.memory_space<vmem>>, %arg7: memref<1x128xf32, #tpu.memory_space<vmem>>, %arg8: memref<128x128xbf16, #tpu.memory_space<vmem>>, %arg9: memref<8x128xf32, #tpu.memory_space<vmem>>, %arg10: memref<128x128xf32, #tpu.memory_space<vmem>>) attributes {dimension_semantics = [#tpu.dimension_semantics<parallel>, #tpu.dimension_semantics<parallel>, #tpu.dimension_semantics<arbitrary>], iteration_bounds = array<i64: 1, 1, 1>, scalar_prefetch = 0 : i64, scratch_operands = 1 : i64, tpu.core_type = #tpu.core_type<tc>, window_params = [{transform_indices = @transform_0, window_bounds = array<i64: 128, 512>}, {transform_indices = @transform_1, window_bounds = array<i64: 512, 128>}, {transform_indices = @transform_2, window_bounds = array<i64: 1, 512>}, {transform_indices = @transform_3, window_bounds = array<i64: 1, 512>}, {transform_indices = @transform_4, window_bounds = array<i64: 1, 128>}, {transform_indices = @transform_5, window_bounds = array<i64: 128, 128>}, {transform_indices = @transform_6, window_bounds = array<i64: 8, 128>}]} {
    %c128_i32 = arith.constant 128 : i32
    %0 = arith.muli %arg0, %c128_i32 : i32
    %c0_i32 = arith.constant 0 : i32
    %1 = arith.cmpi eq, %arg2, %c0_i32 : i32
    %2 = arith.extui %1 : i1 to i32
    %c0_i32_0 = arith.constant 0 : i32
    %3 = arith.cmpi ne, %2, %c0_i32_0 : i32
    scf.if %3 {
      %cst_16 = arith.constant 0.000000e+00 : f32
      %26 = vector.broadcast %cst_16 : f32 to vector<128x128xf32>
      %c0_17 = arith.constant 0 : index
      %c0_18 = arith.constant 0 : index
      %27 = vector.load %arg10[%c0_17, %c0_18] : memref<128x128xf32, #tpu.memory_space<vmem>>, vector<128x128xf32>
      tpu.vector_store %arg10[%c0_17, %c0_18], %26 {strides = array<i32>} : memref<128x128xf32, #tpu.memory_space<vmem>>, vector<128x128xf32>,
    } else {
    }
    %c0 = arith.constant 0 : index
    %c0_1 = arith.constant 0 : index
    %4 = vector.load %arg3[%c0, %c0_1] : memref<128x512xbf16, #tpu.memory_space<vmem>>, vector<128x512xbf16>
    %5 = arith.extf %4 : vector<128x512xbf16> to vector<128x512xf32>
    %c0_2 = arith.constant 0 : index
    %c0_3 = arith.constant 0 : index
    %6 = vector.load %arg5[%c0_2, %c0_3] : memref<1x512xf32, #tpu.memory_space<vmem>>, vector<1x512xf32>
    %7 = vector.broadcast %6 : vector<1x512xf32> to vector<128x512xf32>
    %8 = arith.mulf %5, %7 : vector<128x512xf32>
    %c0_4 = arith.constant 0 : index
    %c0_5 = arith.constant 0 : index
    %9 = vector.load %arg6[%c0_4, %c0_5] : memref<1x512xf32, #tpu.memory_space<vmem>>, vector<1x512xf32>
    %10 = vector.broadcast %9 : vector<1x512xf32> to vector<128x512xf32>
    %11 = arith.addf %8, %10 : vector<128x512xf32>
    %cst = arith.constant 0.000000e+00 : f32
    %12 = vector.broadcast %cst : f32 to vector<128x512xf32>
    %13 = arith.cmpf oge, %11, %12 : vector<128x512xf32>
    %cst_6 = arith.constant 2.000000e-01 : f32
    %14 = vector.broadcast %cst_6 : f32 to vector<128x512xf32>
    %15 = arith.mulf %14, %11 : vector<128x512xf32>
    %16 = arith.select %13, %11, %15 : vector<128x512xi1>, vector<128x512xf32>
    %17 = arith.truncf %16 : vector<128x512xf32> to vector<128x512xbf16>
    %c0_7 = arith.constant 0 : index
    %c0_8 = arith.constant 0 : index
    %18 = vector.load %arg10[%c0_7, %c0_8] : memref<128x128xf32, #tpu.memory_space<vmem>>, vector<128x128xf32>
    %c0_9 = arith.constant 0 : index
    %c0_10 = arith.constant 0 : index
    %19 = vector.load %arg4[%c0_9, %c0_10] : memref<512x128xbf16, #tpu.memory_space<vmem>>, vector<512x128xbf16>
    %cst_11 = arith.constant dense<0.000000e+00> : vector<128x128xf32>
    %20 = tpu.matmul %17, %19, %cst_11 {dimension_numbers = #tpu.dot_dimension_numbers<[1], [0], [0], [1], [0, 0, 1, 1], [], []>} : vector<128x512xbf16>, vector<512x128xbf16>, vector<128x128xf32> -> vector<128x128xf32>
    %21 = arith.addf %18, %20 : vector<128x128xf32>
    %c0_12 = arith.constant 0 : index
    %c0_13 = arith.constant 0 : index
    %22 = vector.load %arg10[%c0_12, %c0_13] : memref<128x128xf32, #tpu.memory_space<vmem>>, vector<128x128xf32>
    tpu.vector_store %arg10[%c0_12, %c0_13], %21 {strides = array<i32>} : memref<128x128xf32, #tpu.memory_space<vmem>>, vector<128x128xf32>,
    %c0_i32_14 = arith.constant 0 : i32
    %23 = arith.cmpi eq, %arg2, %c0_i32_14 : i32
    %24 = arith.extui %23 : i1 to i32
    %c0_i32_15 = arith.constant 0 : i32
    %25 = arith.cmpi ne, %24, %c0_i32_15 : i32
    scf.if %25 {
      %c0_16 = arith.constant 0 : index
      %c0_17 = arith.constant 0 : index
      %26 = vector.load %arg10[%c0_16, %c0_17] : memref<128x128xf32, #tpu.memory_space<vmem>>, vector<128x128xf32>
      %c0_18 = arith.constant 0 : index
      %c0_19 = arith.constant 0 : index
      %27 = vector.load %arg7[%c0_18, %c0_19] : memref<1x128xf32, #tpu.memory_space<vmem>>, vector<1x128xf32>
      %28 = vector.broadcast %27 : vector<1x128xf32> to vector<128x128xf32>
      %29 = arith.addf %26, %28 : vector<128x128xf32>
      %30 = tpu.iota {dimensions = array<i32: 0>} : vector<128x128xi32>
      %31 = vector.broadcast %0 : i32 to vector<128x128xi32>
      %32 = arith.addi %30, %31 : vector<128x128xi32>
      %c32_i32 = arith.constant 32 : i32
      %33 = vector.broadcast %c32_i32 : i32 to vector<128x128xi32>
      %34 = arith.cmpi slt, %32, %33 : vector<128x128xi32>
      %cst_20 = arith.constant 0.000000e+00 : f32
      %35 = vector.broadcast %cst_20 : f32 to vector<128x128xf32>
      %36 = arith.select %34, %29, %35 : vector<128x128xi1>, vector<128x128xf32>
      %cst_21 = arith.constant dense<0.000000e+00> : vector<128xf32>
      %37 = vector.multi_reduction <add>, %36, %cst_21 [0] : vector<128x128xf32> to vector<128xf32>
      %38 = vector.shape_cast %37 : vector<128xf32> to vector<1x128xf32>
      %c0_22 = arith.constant 0 : index
      %c0_23 = arith.constant 0 : index
      %39 = vector.load %arg9[%c0_22, %c0_23] : memref<8x128xf32, #tpu.memory_space<vmem>>, vector<1x128xf32>
      tpu.vector_store %arg9[%c0_22, %c0_23], %38 {strides = array<i32>} : memref<8x128xf32, #tpu.memory_space<vmem>>, vector<1x128xf32>,
      %40 = arith.mulf %36, %36 : vector<128x128xf32>
      %cst_24 = arith.constant dense<0.000000e+00> : vector<128xf32>
      %41 = vector.multi_reduction <add>, %40, %cst_24 [0] : vector<128x128xf32> to vector<128xf32>
      %42 = vector.shape_cast %41 : vector<128xf32> to vector<1x128xf32>
      %c1 = arith.constant 1 : index
      %c0_25 = arith.constant 0 : index
      %43 = vector.load %arg9[%c1, %c0_25] : memref<8x128xf32, #tpu.memory_space<vmem>>, vector<1x128xf32>
      tpu.vector_store %arg9[%c1, %c0_25], %42 {strides = array<i32>} : memref<8x128xf32, #tpu.memory_space<vmem>>, vector<1x128xf32>,
      %cst_26 = arith.constant 0.000000e+00 : f32
      %44 = vector.broadcast %cst_26 : f32 to vector<6x128xf32>
      %c2 = arith.constant 2 : index
      %c0_27 = arith.constant 0 : index
      %45 = vector.load %arg9[%c2, %c0_27] : memref<8x128xf32, #tpu.memory_space<vmem>>, vector<6x128xf32>
      tpu.vector_store %arg9[%c2, %c0_27], %44 {strides = array<i32>} : memref<8x128xf32, #tpu.memory_space<vmem>>, vector<6x128xf32>,
      %46 = arith.truncf %29 : vector<128x128xf32> to vector<128x128xbf16>
      %c0_28 = arith.constant 0 : index
      %c0_29 = arith.constant 0 : index
      %47 = vector.load %arg8[%c0_28, %c0_29] : memref<128x128xbf16, #tpu.memory_space<vmem>>, vector<128x128xbf16>
      tpu.vector_store %arg8[%c0_28, %c0_29], %46 {strides = array<i32>} : memref<128x128xbf16, #tpu.memory_space<vmem>>, vector<128x128xbf16>,
    } else {
    }
    return
  }
  func.func @transform_0(%arg0: i32, %arg1: i32, %arg2: i32) -> (i32, i32) {
    %c0_i32 = arith.constant 0 : i32
    return %arg0, %arg2 : i32, i32
  }
  func.func @transform_1(%arg0: i32, %arg1: i32, %arg2: i32) -> (i32, i32) {
    %c0_i32 = arith.constant 0 : i32
    return %arg2, %arg1 : i32, i32
  }
  func.func @transform_2(%arg0: i32, %arg1: i32, %arg2: i32) -> (i32, i32) {
    %c0_i32 = arith.constant 0 : i32
    %c0_i32_0 = arith.constant 0 : i32
    return %c0_i32, %arg2 : i32, i32
  }
  func.func @transform_3(%arg0: i32, %arg1: i32, %arg2: i32) -> (i32, i32) {
    %c0_i32 = arith.constant 0 : i32
    %c0_i32_0 = arith.constant 0 : i32
    return %c0_i32, %arg2 : i32, i32
  }
  func.func @transform_4(%arg0: i32, %arg1: i32, %arg2: i32) -> (i32, i32) {
    %c0_i32 = arith.constant 0 : i32
    %c0_i32_0 = arith.constant 0 : i32
    return %c0_i32, %arg1 : i32, i32
  }
  func.func @transform_5(%arg0: i32, %arg1: i32, %arg2: i32) -> (i32, i32) {
    %c0_i32 = arith.constant 0 : i32
    return %arg0, %arg1 : i32, i32
  }
  func.func @transform_6(%arg0: i32, %arg1: i32, %arg2: i32) -> (i32, i32) {
    %c0_i32 = arith.constant 0 : i32
    return %arg0, %arg1 : i32, i32
  }
}

module attributes {stable_mosaic.version = 11 : i64} {
  func.func @_conv_matmul_kernel(%arg0: i32, %arg1: i32, %arg2: i32, %arg3: memref<128x1024xbf16, #tpu.memory_space<vmem>>, %arg4: memref<1024x128xbf16, #tpu.memory_space<vmem>>, %arg5: memref<1x1024xf32, #tpu.memory_space<vmem>>, %arg6: memref<1x1024xf32, #tpu.memory_space<vmem>>, %arg7: memref<1x128xf32, #tpu.memory_space<vmem>>, %arg8: memref<128x128xbf16, #tpu.memory_space<vmem>>, %arg9: memref<8x128xf32, #tpu.memory_space<vmem>>, %arg10: memref<128x128xf32, #tpu.memory_space<vmem>>) attributes {dimension_semantics = [#tpu.dimension_semantics<parallel>, #tpu.dimension_semantics<parallel>, #tpu.dimension_semantics<arbitrary>], iteration_bounds = array<i64: 1, 1, 1>, scalar_prefetch = 0 : i64, scratch_operands = 1 : i64, tpu.core_type = #tpu.core_type<tc>, window_params = [{transform_indices = @transform_0, window_bounds = array<i64: 128, 1024>}, {transform_indices = @transform_1, window_bounds = array<i64: 1024, 128>}, {transform_indices = @transform_2, window_bounds = array<i64: 1, 1024>}, {transform_indices = @transform_3, window_bounds = array<i64: 1, 1024>}, {transform_indices = @transform_4, window_bounds = array<i64: 1, 128>}, {transform_indices = @transform_5, window_bounds = array<i64: 128, 128>}, {transform_indices = @transform_6, window_bounds = array<i64: 8, 128>}]} {
    %c128_i32 = arith.constant 128 : i32
    %0 = arith.muli %arg0, %c128_i32 : i32
    %c0_i32 = arith.constant 0 : i32
    %1 = arith.cmpi eq, %arg2, %c0_i32 : i32
    %2 = arith.extui %1 : i1 to i32
    %c0_i32_0 = arith.constant 0 : i32
    %3 = arith.cmpi ne, %2, %c0_i32_0 : i32
    scf.if %3 {
      %cst_16 = arith.constant 0.000000e+00 : f32
      %26 = vector.broadcast %cst_16 : f32 to vector<128x128xf32>
      %c0_17 = arith.constant 0 : index
      %c0_18 = arith.constant 0 : index
      %27 = vector.load %arg10[%c0_17, %c0_18] : memref<128x128xf32, #tpu.memory_space<vmem>>, vector<128x128xf32>
      tpu.vector_store %arg10[%c0_17, %c0_18], %26 {strides = array<i32>} : memref<128x128xf32, #tpu.memory_space<vmem>>, vector<128x128xf32>,
    } else {
    }
    %c0 = arith.constant 0 : index
    %c0_1 = arith.constant 0 : index
    %4 = vector.load %arg3[%c0, %c0_1] : memref<128x1024xbf16, #tpu.memory_space<vmem>>, vector<128x1024xbf16>
    %5 = arith.extf %4 : vector<128x1024xbf16> to vector<128x1024xf32>
    %c0_2 = arith.constant 0 : index
    %c0_3 = arith.constant 0 : index
    %6 = vector.load %arg5[%c0_2, %c0_3] : memref<1x1024xf32, #tpu.memory_space<vmem>>, vector<1x1024xf32>
    %7 = vector.broadcast %6 : vector<1x1024xf32> to vector<128x1024xf32>
    %8 = arith.mulf %5, %7 : vector<128x1024xf32>
    %c0_4 = arith.constant 0 : index
    %c0_5 = arith.constant 0 : index
    %9 = vector.load %arg6[%c0_4, %c0_5] : memref<1x1024xf32, #tpu.memory_space<vmem>>, vector<1x1024xf32>
    %10 = vector.broadcast %9 : vector<1x1024xf32> to vector<128x1024xf32>
    %11 = arith.addf %8, %10 : vector<128x1024xf32>
    %cst = arith.constant 0.000000e+00 : f32
    %12 = vector.broadcast %cst : f32 to vector<128x1024xf32>
    %13 = arith.cmpf oge, %11, %12 : vector<128x1024xf32>
    %cst_6 = arith.constant 2.000000e-01 : f32
    %14 = vector.broadcast %cst_6 : f32 to vector<128x1024xf32>
    %15 = arith.mulf %14, %11 : vector<128x1024xf32>
    %16 = arith.select %13, %11, %15 : vector<128x1024xi1>, vector<128x1024xf32>
    %17 = arith.truncf %16 : vector<128x1024xf32> to vector<128x1024xbf16>
    %c0_7 = arith.constant 0 : index
    %c0_8 = arith.constant 0 : index
    %18 = vector.load %arg10[%c0_7, %c0_8] : memref<128x128xf32, #tpu.memory_space<vmem>>, vector<128x128xf32>
    %c0_9 = arith.constant 0 : index
    %c0_10 = arith.constant 0 : index
    %19 = vector.load %arg4[%c0_9, %c0_10] : memref<1024x128xbf16, #tpu.memory_space<vmem>>, vector<1024x128xbf16>
    %cst_11 = arith.constant dense<0.000000e+00> : vector<128x128xf32>
    %20 = tpu.matmul %17, %19, %cst_11 {dimension_numbers = #tpu.dot_dimension_numbers<[1], [0], [0], [1], [0, 0, 1, 1], [], []>} : vector<128x1024xbf16>, vector<1024x128xbf16>, vector<128x128xf32> -> vector<128x128xf32>
    %21 = arith.addf %18, %20 : vector<128x128xf32>
    %c0_12 = arith.constant 0 : index
    %c0_13 = arith.constant 0 : index
    %22 = vector.load %arg10[%c0_12, %c0_13] : memref<128x128xf32, #tpu.memory_space<vmem>>, vector<128x128xf32>
    tpu.vector_store %arg10[%c0_12, %c0_13], %21 {strides = array<i32>} : memref<128x128xf32, #tpu.memory_space<vmem>>, vector<128x128xf32>,
    %c0_i32_14 = arith.constant 0 : i32
    %23 = arith.cmpi eq, %arg2, %c0_i32_14 : i32
    %24 = arith.extui %23 : i1 to i32
    %c0_i32_15 = arith.constant 0 : i32
    %25 = arith.cmpi ne, %24, %c0_i32_15 : i32
    scf.if %25 {
      %c0_16 = arith.constant 0 : index
      %c0_17 = arith.constant 0 : index
      %26 = vector.load %arg10[%c0_16, %c0_17] : memref<128x128xf32, #tpu.memory_space<vmem>>, vector<128x128xf32>
      %c0_18 = arith.constant 0 : index
      %c0_19 = arith.constant 0 : index
      %27 = vector.load %arg7[%c0_18, %c0_19] : memref<1x128xf32, #tpu.memory_space<vmem>>, vector<1x128xf32>
      %28 = vector.broadcast %27 : vector<1x128xf32> to vector<128x128xf32>
      %29 = arith.addf %26, %28 : vector<128x128xf32>
      %30 = tpu.iota {dimensions = array<i32: 0>} : vector<128x128xi32>
      %31 = vector.broadcast %0 : i32 to vector<128x128xi32>
      %32 = arith.addi %30, %31 : vector<128x128xi32>
      %c18_i32 = arith.constant 18 : i32
      %33 = vector.broadcast %c18_i32 : i32 to vector<128x128xi32>
      %34 = arith.cmpi slt, %32, %33 : vector<128x128xi32>
      %cst_20 = arith.constant 0.000000e+00 : f32
      %35 = vector.broadcast %cst_20 : f32 to vector<128x128xf32>
      %36 = arith.select %34, %29, %35 : vector<128x128xi1>, vector<128x128xf32>
      %cst_21 = arith.constant dense<0.000000e+00> : vector<128xf32>
      %37 = vector.multi_reduction <add>, %36, %cst_21 [0] : vector<128x128xf32> to vector<128xf32>
      %38 = vector.shape_cast %37 : vector<128xf32> to vector<1x128xf32>
      %c0_22 = arith.constant 0 : index
      %c0_23 = arith.constant 0 : index
      %39 = vector.load %arg9[%c0_22, %c0_23] : memref<8x128xf32, #tpu.memory_space<vmem>>, vector<1x128xf32>
      tpu.vector_store %arg9[%c0_22, %c0_23], %38 {strides = array<i32>} : memref<8x128xf32, #tpu.memory_space<vmem>>, vector<1x128xf32>,
      %40 = arith.mulf %36, %36 : vector<128x128xf32>
      %cst_24 = arith.constant dense<0.000000e+00> : vector<128xf32>
      %41 = vector.multi_reduction <add>, %40, %cst_24 [0] : vector<128x128xf32> to vector<128xf32>
      %42 = vector.shape_cast %41 : vector<128xf32> to vector<1x128xf32>
      %c1 = arith.constant 1 : index
      %c0_25 = arith.constant 0 : index
      %43 = vector.load %arg9[%c1, %c0_25] : memref<8x128xf32, #tpu.memory_space<vmem>>, vector<1x128xf32>
      tpu.vector_store %arg9[%c1, %c0_25], %42 {strides = array<i32>} : memref<8x128xf32, #tpu.memory_space<vmem>>, vector<1x128xf32>,
      %cst_26 = arith.constant 0.000000e+00 : f32
      %44 = vector.broadcast %cst_26 : f32 to vector<6x128xf32>
      %c2 = arith.constant 2 : index
      %c0_27 = arith.constant 0 : index
      %45 = vector.load %arg9[%c2, %c0_27] : memref<8x128xf32, #tpu.memory_space<vmem>>, vector<6x128xf32>
      tpu.vector_store %arg9[%c2, %c0_27], %44 {strides = array<i32>} : memref<8x128xf32, #tpu.memory_space<vmem>>, vector<6x128xf32>,
      %46 = arith.truncf %29 : vector<128x128xf32> to vector<128x128xbf16>
      %c0_28 = arith.constant 0 : index
      %c0_29 = arith.constant 0 : index
      %47 = vector.load %arg8[%c0_28, %c0_29] : memref<128x128xbf16, #tpu.memory_space<vmem>>, vector<128x128xbf16>
      tpu.vector_store %arg8[%c0_28, %c0_29], %46 {strides = array<i32>} : memref<128x128xbf16, #tpu.memory_space<vmem>>, vector<128x128xbf16>,
    } else {
    }
    return
  }
  func.func @transform_0(%arg0: i32, %arg1: i32, %arg2: i32) -> (i32, i32) {
    %c0_i32 = arith.constant 0 : i32
    return %arg0, %arg2 : i32, i32
  }
  func.func @transform_1(%arg0: i32, %arg1: i32, %arg2: i32) -> (i32, i32) {
    %c0_i32 = arith.constant 0 : i32
    return %arg2, %arg1 : i32, i32
  }
  func.func @transform_2(%arg0: i32, %arg1: i32, %arg2: i32) -> (i32, i32) {
    %c0_i32 = arith.constant 0 : i32
    %c0_i32_0 = arith.constant 0 : i32
    return %c0_i32, %arg2 : i32, i32
  }
  func.func @transform_3(%arg0: i32, %arg1: i32, %arg2: i32) -> (i32, i32) {
    %c0_i32 = arith.constant 0 : i32
    %c0_i32_0 = arith.constant 0 : i32
    return %c0_i32, %arg2 : i32, i32
  }
  func.func @transform_4(%arg0: i32, %arg1: i32, %arg2: i32) -> (i32, i32) {
    %c0_i32 = arith.constant 0 : i32
    %c0_i32_0 = arith.constant 0 : i32
    return %c0_i32, %arg1 : i32, i32
  }
  func.func @transform_5(%arg0: i32, %arg1: i32, %arg2: i32) -> (i32, i32) {
    %c0_i32 = arith.constant 0 : i32
    return %arg0, %arg1 : i32, i32
  }
  func.func @transform_6(%arg0: i32, %arg1: i32, %arg2: i32) -> (i32, i32) {
    %c0_i32 = arith.constant 0 : i32
    return %arg0, %arg1 : i32, i32
  }
}

module attributes {stable_mosaic.version = 11 : i64} {
  func.func @_conv_matmul_kernel(%arg0: i32, %arg1: i32, %arg2: i32, %arg3: memref<128x2048xbf16, #tpu.memory_space<vmem>>, %arg4: memref<2048x128xbf16, #tpu.memory_space<vmem>>, %arg5: memref<1x2048xf32, #tpu.memory_space<vmem>>, %arg6: memref<1x2048xf32, #tpu.memory_space<vmem>>, %arg7: memref<1x128xf32, #tpu.memory_space<vmem>>, %arg8: memref<128x128xf32, #tpu.memory_space<vmem>>, %arg9: memref<8x128xf32, #tpu.memory_space<vmem>>, %arg10: memref<128x128xf32, #tpu.memory_space<vmem>>) attributes {dimension_semantics = [#tpu.dimension_semantics<parallel>, #tpu.dimension_semantics<parallel>, #tpu.dimension_semantics<arbitrary>], iteration_bounds = array<i64: 1, 1, 1>, scalar_prefetch = 0 : i64, scratch_operands = 1 : i64, tpu.core_type = #tpu.core_type<tc>, window_params = [{transform_indices = @transform_0, window_bounds = array<i64: 128, 2048>}, {transform_indices = @transform_1, window_bounds = array<i64: 2048, 128>}, {transform_indices = @transform_2, window_bounds = array<i64: 1, 2048>}, {transform_indices = @transform_3, window_bounds = array<i64: 1, 2048>}, {transform_indices = @transform_4, window_bounds = array<i64: 1, 128>}, {transform_indices = @transform_5, window_bounds = array<i64: 128, 128>}, {transform_indices = @transform_6, window_bounds = array<i64: 8, 128>}]} {
    %c0_i32 = arith.constant 0 : i32
    %0 = arith.cmpi eq, %arg2, %c0_i32 : i32
    %1 = arith.extui %0 : i1 to i32
    %c0_i32_0 = arith.constant 0 : i32
    %2 = arith.cmpi ne, %1, %c0_i32_0 : i32
    scf.if %2 {
      %cst_16 = arith.constant 0.000000e+00 : f32
      %25 = vector.broadcast %cst_16 : f32 to vector<128x128xf32>
      %c0_17 = arith.constant 0 : index
      %c0_18 = arith.constant 0 : index
      %26 = vector.load %arg10[%c0_17, %c0_18] : memref<128x128xf32, #tpu.memory_space<vmem>>, vector<128x128xf32>
      tpu.vector_store %arg10[%c0_17, %c0_18], %25 {strides = array<i32>} : memref<128x128xf32, #tpu.memory_space<vmem>>, vector<128x128xf32>,
    } else {
    }
    %c0 = arith.constant 0 : index
    %c0_1 = arith.constant 0 : index
    %3 = vector.load %arg3[%c0, %c0_1] : memref<128x2048xbf16, #tpu.memory_space<vmem>>, vector<128x2048xbf16>
    %4 = arith.extf %3 : vector<128x2048xbf16> to vector<128x2048xf32>
    %c0_2 = arith.constant 0 : index
    %c0_3 = arith.constant 0 : index
    %5 = vector.load %arg5[%c0_2, %c0_3] : memref<1x2048xf32, #tpu.memory_space<vmem>>, vector<1x2048xf32>
    %6 = vector.broadcast %5 : vector<1x2048xf32> to vector<128x2048xf32>
    %7 = arith.mulf %4, %6 : vector<128x2048xf32>
    %c0_4 = arith.constant 0 : index
    %c0_5 = arith.constant 0 : index
    %8 = vector.load %arg6[%c0_4, %c0_5] : memref<1x2048xf32, #tpu.memory_space<vmem>>, vector<1x2048xf32>
    %9 = vector.broadcast %8 : vector<1x2048xf32> to vector<128x2048xf32>
    %10 = arith.addf %7, %9 : vector<128x2048xf32>
    %cst = arith.constant 0.000000e+00 : f32
    %11 = vector.broadcast %cst : f32 to vector<128x2048xf32>
    %12 = arith.cmpf oge, %10, %11 : vector<128x2048xf32>
    %cst_6 = arith.constant 2.000000e-01 : f32
    %13 = vector.broadcast %cst_6 : f32 to vector<128x2048xf32>
    %14 = arith.mulf %13, %10 : vector<128x2048xf32>
    %15 = arith.select %12, %10, %14 : vector<128x2048xi1>, vector<128x2048xf32>
    %16 = arith.truncf %15 : vector<128x2048xf32> to vector<128x2048xbf16>
    %c0_7 = arith.constant 0 : index
    %c0_8 = arith.constant 0 : index
    %17 = vector.load %arg10[%c0_7, %c0_8] : memref<128x128xf32, #tpu.memory_space<vmem>>, vector<128x128xf32>
    %c0_9 = arith.constant 0 : index
    %c0_10 = arith.constant 0 : index
    %18 = vector.load %arg4[%c0_9, %c0_10] : memref<2048x128xbf16, #tpu.memory_space<vmem>>, vector<2048x128xbf16>
    %cst_11 = arith.constant dense<0.000000e+00> : vector<128x128xf32>
    %19 = tpu.matmul %16, %18, %cst_11 {dimension_numbers = #tpu.dot_dimension_numbers<[1], [0], [0], [1], [0, 0, 1, 1], [], []>} : vector<128x2048xbf16>, vector<2048x128xbf16>, vector<128x128xf32> -> vector<128x128xf32>
    %20 = arith.addf %17, %19 : vector<128x128xf32>
    %c0_12 = arith.constant 0 : index
    %c0_13 = arith.constant 0 : index
    %21 = vector.load %arg10[%c0_12, %c0_13] : memref<128x128xf32, #tpu.memory_space<vmem>>, vector<128x128xf32>
    tpu.vector_store %arg10[%c0_12, %c0_13], %20 {strides = array<i32>} : memref<128x128xf32, #tpu.memory_space<vmem>>, vector<128x128xf32>,
    %c0_i32_14 = arith.constant 0 : i32
    %22 = arith.cmpi eq, %arg2, %c0_i32_14 : i32
    %23 = arith.extui %22 : i1 to i32
    %c0_i32_15 = arith.constant 0 : i32
    %24 = arith.cmpi ne, %23, %c0_i32_15 : i32
    scf.if %24 {
      %c0_16 = arith.constant 0 : index
      %c0_17 = arith.constant 0 : index
      %25 = vector.load %arg10[%c0_16, %c0_17] : memref<128x128xf32, #tpu.memory_space<vmem>>, vector<128x128xf32>
      %c0_18 = arith.constant 0 : index
      %c0_19 = arith.constant 0 : index
      %26 = vector.load %arg7[%c0_18, %c0_19] : memref<1x128xf32, #tpu.memory_space<vmem>>, vector<1x128xf32>
      %27 = vector.broadcast %26 : vector<1x128xf32> to vector<128x128xf32>
      %28 = arith.addf %25, %27 : vector<128x128xf32>
      %cst_20 = arith.constant 0.000000e+00 : f32
      %29 = vector.broadcast %cst_20 : f32 to vector<8x128xf32>
      %c0_21 = arith.constant 0 : index
      %c0_22 = arith.constant 0 : index
      %30 = vector.load %arg9[%c0_21, %c0_22] : memref<8x128xf32, #tpu.memory_space<vmem>>, vector<8x128xf32>
      tpu.vector_store %arg9[%c0_21, %c0_22], %29 {strides = array<i32>} : memref<8x128xf32, #tpu.memory_space<vmem>>, vector<8x128xf32>,
      %c0_23 = arith.constant 0 : index
      %c0_24 = arith.constant 0 : index
      %31 = vector.load %arg8[%c0_23, %c0_24] : memref<128x128xf32, #tpu.memory_space<vmem>>, vector<128x128xf32>
      tpu.vector_store %arg8[%c0_23, %c0_24], %28 {strides = array<i32>} : memref<128x128xf32, #tpu.memory_space<vmem>>, vector<128x128xf32>,
    } else {
    }
    return
  }
  func.func @transform_0(%arg0: i32, %arg1: i32, %arg2: i32) -> (i32, i32) {
    %c0_i32 = arith.constant 0 : i32
    return %arg0, %arg2 : i32, i32
  }
  func.func @transform_1(%arg0: i32, %arg1: i32, %arg2: i32) -> (i32, i32) {
    %c0_i32 = arith.constant 0 : i32
    return %arg2, %arg1 : i32, i32
  }
  func.func @transform_2(%arg0: i32, %arg1: i32, %arg2: i32) -> (i32, i32) {
    %c0_i32 = arith.constant 0 : i32
    %c0_i32_0 = arith.constant 0 : i32
    return %c0_i32, %arg2 : i32, i32
  }
  func.func @transform_3(%arg0: i32, %arg1: i32, %arg2: i32) -> (i32, i32) {
    %c0_i32 = arith.constant 0 : i32
    %c0_i32_0 = arith.constant 0 : i32
    return %c0_i32, %arg2 : i32, i32
  }
  func.func @transform_4(%arg0: i32, %arg1: i32, %arg2: i32) -> (i32, i32) {
    %c0_i32 = arith.constant 0 : i32
    %c0_i32_0 = arith.constant 0 : i32
    return %c0_i32, %arg1 : i32, i32
  }
  func.func @transform_5(%arg0: i32, %arg1: i32, %arg2: i32) -> (i32, i32) {
    %c0_i32 = arith.constant 0 : i32
    return %arg0, %arg1 : i32, i32
  }
  func.func @transform_6(%arg0: i32, %arg1: i32, %arg2: i32) -> (i32, i32) {
    %c0_i32 = arith.constant 0 : i32
    return %arg0, %arg1 : i32, i32
  }
}

</mosaic_0001>

<llo_original>
// kernel: _lambda_.5
$region0: #{_lambda_.5}
  #allocation0 [shape = 'u32[]', space=smem, size = 0x4, offset = 0x4, fixed_abs, tag = 'smem constant byte address 0x4 - core index']
  #allocation1 [shape = 'u32[144,128]{1,0:T(1,128)}', space=vmem, size = 0x12000, scoped, tag = 'internal scratch']
  #allocation2 [shape = 'f32[512,128]{1,0:T(8,128)}', space=vmem, size = 0x40000, scoped, tag = 'scratch operand']
  %s0 = inlined_call_operand.vmem [shape: bf16[512,128], index: 0, kind: input, shape index: {}]
  %s1 = inlined_call_operand.vmem [shape: bf16[128,128], index: 1, kind: input, shape index: {}]
  %s2 = inlined_call_operand.vmem [shape: f32[1,128], index: 2, kind: input, shape index: {}]
  %s3 = inlined_call_operand.vmem [shape: f32[1,128], index: 3, kind: input, shape index: {}]
  %s4 = inlined_call_operand.vmem [shape: f32[1,128], index: 4, kind: input, shape index: {}]
  %s5 = inlined_call_operand.vmem [shape: bf16[512,128], index: 5, kind: output, shape index: {0}]
  %s6 = inlined_call_operand.hbm [shape: f32[8,128], index: 6, kind: output, shape index: {1}]
  %7 = xla_tuple %s5, %s6
  %s8 = sld [smem:[#allocation0]]
  $region46: #{_lambda_.5} parent=0
    _
  %s10 = ssub.s32 1, %s8
  %s11 = scalar_select 0, %s10, %s8
  $region1: #{_lambda_.5} parent=0
    #allocation3 [shape = 'u8[4096]{0}', space=vmem, size = 0x1000, scoped, tag = 'output window, operand 1, single buffered']
    #allocation4 [shape = 's32[1]{0}', space=sflag, size = 0x4, scoped, tag = 'scoped memory for _lambda_.5']
    %12 = vsyncpa [#allocation4], 0
    // Predicated region
    $region2: #{_lambda_.5} parent=1 // pred_check
      _
    $region3: #{_lambda_.5} parent=1 // pred_check_branch
      %14 = sbr.rel (0) target = $region5
    $region4: #{_lambda_.5} parent=1 // pred_region
      _
    $region5: #{_lambda_.5} parent=1 // pred_fallthru
      _
    // Predicated region
    $region6: #{_lambda_.5} parent=1 // pred_check
      _
    $region7: #{_lambda_.5} parent=1 // pred_check_branch
      %16 = sbr.rel (0) target = $region9
    $region8: #{_lambda_.5} parent=1 // pred_region
      _
    $region9: #{_lambda_.5} parent=1 // pred_fallthru
      _
    // Predicated region
    $region10: #{_lambda_.5} parent=1 // pred_check
      _
    $region11: #{_lambda_.5} parent=1 // pred_check_branch
      %18 = sbr.rel (0) target = $region13
    $region12: #{_lambda_.5} parent=1 // pred_region
      _
    $region13: #{_lambda_.5} parent=1 // pred_fallthru
      _
    // Predicated region
    $region14: #{_lambda_.5} parent=1 // pred_check
      _
    $region15: #{_lambda_.5} parent=1 // pred_check_branch
      %20 = sbr.rel (0) target = $region17
    $region16: #{_lambda_.5} parent=1 // pred_region
      _
    $region17: #{_lambda_.5} parent=1 // pred_fallthru
      _
    // Predicated region
    $region18: #{_lambda_.5} parent=1 // pred_check
      _
    $region19: #{_lambda_.5} parent=1 // pred_check_branch
      %22 = sbr.rel (0) target = $region21
    $region20: #{_lambda_.5} parent=1 // pred_region
      _
    $region21: #{_lambda_.5} parent=1 // pred_fallthru
      _
    %p24 = scmp.eq.s32.totalorder 0, 0
    // Predicated region
    $region22: #{_lambda_.5} parent=1 // pred_check
      %p25 = pneg %p24
    $region23: #{_lambda_.5} parent=1 // pred_check_branch
      %27 = sbr.rel (%p25) target = $region25
    $region24: #{_lambda_.5} parent=1 // pred_region
      %28 = vst [vmem:[#allocation2] sm:$0xff] 0.0
      %29 = vst [vmem:[#allocation2 + $0x8] sm:$0xff] 0.0
      %30 = vst [vmem:[#allocation2 + $0x10] sm:$0xff] 0.0
      %31 = vst [vmem:[#allocation2 + $0x18] sm:$0xff] 0.0
      %32 = vst [vmem:[#allocation2 + $0x20] sm:$0xff] 0.0
      %33 = vst [vmem:[#allocation2 + $0x28] sm:$0xff] 0.0
      %34 = vst [vmem:[#allocation2 + $0x30] sm:$0xff] 0.0
      %35 = vst [vmem:[#allocation2 + $0x38] sm:$0xff] 0.0
      %36 = vst [vmem:[#allocation2 + $0x40] sm:$0xff] 0.0
      %37 = vst [vmem:[#allocation2 + $0x48] sm:$0xff] 0.0
      %38 = vst [vmem:[#allocation2 + $0x50] sm:$0xff] 0.0
      %39 = vst [vmem:[#allocation2 + $0x58] sm:$0xff] 0.0
      %40 = vst [vmem:[#allocation2 + $0x60] sm:$0xff] 0.0
      %41 = vst [vmem:[#allocation2 + $0x68] sm:$0xff] 0.0
      %42 = vst [vmem:[#allocation2 + $0x70] sm:$0xff] 0.0
      %43 = vst [vmem:[#allocation2 + $0x78] sm:$0xff] 0.0
      %44 = vst [vmem:[#allocation2 + $0x80] sm:$0xff] 0.0
      %45 = vst [vmem:[#allocation2 + $0x88] sm:$0xff] 0.0
      %46 = vst [vmem:[#allocation2 + $0x90] sm:$0xff] 0.0
      %47 = vst [vmem:[#allocation2 + $0x98] sm:$0xff] 0.0
      %48 = vst [vmem:[#allocation2 + $0xa0] sm:$0xff] 0.0
      %49 = vst [vmem:[#allocation2 + $0xa8] sm:$0xff] 0.0
      %50 = vst [vmem:[#allocation2 + $0xb0] sm:$0xff] 0.0
      %51 = vst [vmem:[#allocation2 + $0xb8] sm:$0xff] 0.0
      %52 = vst [vmem:[#allocation2 + $0xc0] sm:$0xff] 0.0
      %53 = vst [vmem:[#allocation2 + $0xc8] sm:$0xff] 0.0
      %54 = vst [vmem:[#allocation2 + $0xd0] sm:$0xff] 0.0
      %55 = vst [vmem:[#allocation2 + $0xd8] sm:$0xff] 0.0
      %56 = vst [vmem:[#allocation2 + $0xe0] sm:$0xff] 0.0
      %57 = vst [vmem:[#allocation2 + $0xe8] sm:$0xff] 0.0
      %58 = vst [vmem:[#allocation2 + $0xf0] sm:$0xff] 0.0
      %59 = vst [vmem:[#allocation2 + $0xf8] sm:$0xff] 0.0
      %60 = vst [vmem:[#allocation2 + $0x100] sm:$0xff] 0.0
      %61 = vst [vmem:[#allocation2 + $0x108] sm:$0xff] 0.0
      %62 = vst [vmem:[#allocation2 + $0x110] sm:$0xff] 0.0
      %63 = vst [vmem:[#allocation2 + $0x118] sm:$0xff] 0.0
      %64 = vst [vmem:[#allocation2 + $0x120] sm:$0xff] 0.0
      %65 = vst [vmem:[#allocation2 + $0x128] sm:$0xff] 0.0
      %66 = vst [vmem:[#allocation2 + $0x130] sm:$0xff] 0.0
      %67 = vst [vmem:[#allocation2 + $0x138] sm:$0xff] 0.0
      %68 = vst [vmem:[#allocation2 + $0x140] sm:$0xff] 0.0
      %69 = vst [vmem:[#allocation2 + $0x148] sm:$0xff] 0.0
      %70 = vst [vmem:[#allocation2 + $0x150] sm:$0xff] 0.0
      %71 = vst [vmem:[#allocation2 + $0x158] sm:$0xff] 0.0
      %72 = vst [vmem:[#allocation2 + $0x160] sm:$0xff] 0.0
      %73 = vst [vmem:[#allocation2 + $0x168] sm:$0xff] 0.0
      %74 = vst [vmem:[#allocation2 + $0x170] sm:$0xff] 0.0
      %75 = vst [vmem:[#allocation2 + $0x178] sm:$0xff] 0.0
      %76 = vst [vmem:[#allocation2 + $0x180] sm:$0xff] 0.0
      %77 = vst [vmem:[#allocation2 + $0x188] sm:$0xff] 0.0
      %78 = vst [vmem:[#allocation2 + $0x190] sm:$0xff] 0.0
      %79 = vst [vmem:[#allocation2 + $0x198] sm:$0xff] 0.0
      %80 = vst [vmem:[#allocation2 + $0x1a0] sm:$0xff] 0.0
      %81 = vst [vmem:[#allocation2 + $0x1a8] sm:$0xff] 0.0
      %82 = vst [vmem:[#allocation2 + $0x1b0] sm:$0xff] 0.0
      %83 = vst [vmem:[#allocation2 + $0x1b8] sm:$0xff] 0.0
      %84 = vst [vmem:[#allocation2 + $0x1c0] sm:$0xff] 0.0
      %85 = vst [vmem:[#allocation2 + $0x1c8] sm:$0xff] 0.0
      %86 = vst [vmem:[#allocation2 + $0x1d0] sm:$0xff] 0.0
      %87 = vst [vmem:[#allocation2 + $0x1d8] sm:$0xff] 0.0
      %88 = vst [vmem:[#allocation2 + $0x1e0] sm:$0xff] 0.0
      %89 = vst [vmem:[#allocation2 + $0x1e8] sm:$0xff] 0.0
      %90 = vst [vmem:[#allocation2 + $0x1f0] sm:$0xff] 0.0
      %91 = vst [vmem:[#allocation2 + $0x1f8] sm:$0xff] 0.0
    $region25: #{_lambda_.5} parent=1 // pred_fallthru
      _
    %v92 = vld [vmem:[%s0] sm:$0xf]
    %v93 = vld [vmem:[%s0 + $0x4] sm:$0xf]
    %v94 = vld [vmem:[%s0 + $0x8] sm:$0xf]
    %v95 = vld [vmem:[%s0 + $0xc] sm:$0xf]
    %v96 = vld [vmem:[%s0 + $0x10] sm:$0xf]
    %v97 = vld [vmem:[%s0 + $0x14] sm:$0xf]
    %v98 = vld [vmem:[%s0 + $0x18] sm:$0xf]
    %v99 = vld [vmem:[%s0 + $0x1c] sm:$0xf]
    %v100 = vld [vmem:[%s0 + $0x20] sm:$0xf]
    %v101 = vld [vmem:[%s0 + $0x24] sm:$0xf]
    %v102 = vld [vmem:[%s0 + $0x28] sm:$0xf]
    %v103 = vld [vmem:[%s0 + $0x2c] sm:$0xf]
    %v104 = vld [vmem:[%s0 + $0x30] sm:$0xf]
    %v105 = vld [vmem:[%s0 + $0x34] sm:$0xf]
    %v106 = vld [vmem:[%s0 + $0x38] sm:$0xf]
    %v107 = vld [vmem:[%s0 + $0x3c] sm:$0xf]
    %v108 = vld [vmem:[%s0 + $0x40] sm:$0xf]
    %v109 = vld [vmem:[%s0 + $0x44] sm:$0xf]
    %v110 = vld [vmem:[%s0 + $0x48] sm:$0xf]
    %v111 = vld [vmem:[%s0 + $0x4c] sm:$0xf]
    %v112 = vld [vmem:[%s0 + $0x50] sm:$0xf]
    %v113 = vld [vmem:[%s0 + $0x54] sm:$0xf]
    %v114 = vld [vmem:[%s0 + $0x58] sm:$0xf]
    %v115 = vld [vmem:[%s0 + $0x5c] sm:$0xf]
    %v116 = vld [vmem:[%s0 + $0x60] sm:$0xf]
    %v117 = vld [vmem:[%s0 + $0x64] sm:$0xf]
    %v118 = vld [vmem:[%s0 + $0x68] sm:$0xf]
    %v119 = vld [vmem:[%s0 + $0x6c] sm:$0xf]
    %v120 = vld [vmem:[%s0 + $0x70] sm:$0xf]
    %v121 = vld [vmem:[%s0 + $0x74] sm:$0xf]
    %v122 = vld [vmem:[%s0 + $0x78] sm:$0xf]
    %v123 = vld [vmem:[%s0 + $0x7c] sm:$0xf]
    %v124 = vld [vmem:[%s0 + $0x80] sm:$0xf]
    %v125 = vld [vmem:[%s0 + $0x84] sm:$0xf]
    %v126 = vld [vmem:[%s0 + $0x88] sm:$0xf]
    %v127 = vld [vmem:[%s0 + $0x8c] sm:$0xf]
    %v128 = vld [vmem:[%s0 + $0x90] sm:$0xf]
    %v129 = vld [vmem:[%s0 + $0x94] sm:$0xf]
    %v130 = vld [vmem:[%s0 + $0x98] sm:$0xf]
    %v131 = vld [vmem:[%s0 + $0x9c] sm:$0xf]
    %v132 = vld [vmem:[%s0 + $0xa0] sm:$0xf]
    %v133 = vld [vmem:[%s0 + $0xa4] sm:$0xf]
    %v134 = vld [vmem:[%s0 + $0xa8] sm:$0xf]
    %v135 = vld [vmem:[%s0 + $0xac] sm:$0xf]
    %v136 = vld [vmem:[%s0 + $0xb0] sm:$0xf]
    %v137 = vld [vmem:[%s0 + $0xb4] sm:$0xf]
    %v138 = vld [vmem:[%s0 + $0xb8] sm:$0xf]
    %v139 = vld [vmem:[%s0 + $0xbc] sm:$0xf]
    %v140 = vld [vmem:[%s0 + $0xc0] sm:$0xf]
    %v141 = vld [vmem:[%s0 + $0xc4] sm:$0xf]
    %v142 = vld [vmem:[%s0 + $0xc8] sm:$0xf]
    %v143 = vld [vmem:[%s0 + $0xcc] sm:$0xf]
    %v144 = vld [vmem:[%s0 + $0xd0] sm:$0xf]
    %v145 = vld [vmem:[%s0 + $0xd4] sm:$0xf]
    %v146 = vld [vmem:[%s0 + $0xd8] sm:$0xf]
    %v147 = vld [vmem:[%s0 + $0xdc] sm:$0xf]
    %v148 = vld [vmem:[%s0 + $0xe0] sm:$0xf]
    %v149 = vld [vmem:[%s0 + $0xe4] sm:$0xf]
    %v150 = vld [vmem:[%s0 + $0xe8] sm:$0xf]
    %v151 = vld [vmem:[%s0 + $0xec] sm:$0xf]
    %v152 = vld [vmem:[%s0 + $0xf0] sm:$0xf]
    %v153 = vld [vmem:[%s0 + $0xf4] sm:$0xf]
    %v154 = vld [vmem:[%s0 + $0xf8] sm:$0xf]
    %v155 = vld [vmem:[%s0 + $0xfc] sm:$0xf]
    %v156 = vld [vmem:[#allocation2] sm:$0xff]
    %v157 = vld [vmem:[#allocation2 + $0x8] sm:$0xff]
    %v158 = vld [vmem:[#allocation2 + $0x10] sm:$0xff]
    %v159 = vld [vmem:[#allocation2 + $0x18] sm:$0xff]
    %v160 = vld [vmem:[#allocation2 + $0x20] sm:$0xff]
    %v161 = vld [vmem:[#allocation2 + $0x28] sm:$0xff]
    %v162 = vld [vmem:[#allocation2 + $0x30] sm:$0xff]
    %v163 = vld [vmem:[#allocation2 + $0x38] sm:$0xff]
    %v164 = vld [vmem:[#allocation2 + $0x40] sm:$0xff]
    %v165 = vld [vmem:[#allocation2 + $0x48] sm:$0xff]
    %v166 = vld [vmem:[#allocation2 + $0x50] sm:$0xff]
    %v167 = vld [vmem:[#allocation2 + $0x58] sm:$0xff]
    %v168 = vld [vmem:[#allocation2 + $0x60] sm:$0xff]
    %v169 = vld [vmem:[#allocation2 + $0x68] sm:$0xff]
    %v170 = vld [vmem:[#allocation2 + $0x70] sm:$0xff]
    %v171 = vld [vmem:[#allocation2 + $0x78] sm:$0xff]
    %v172 = vld [vmem:[#allocation2 + $0x80] sm:$0xff]
    %v173 = vld [vmem:[#allocation2 + $0x88] sm:$0xff]
    %v174 = vld [vmem:[#allocation2 + $0x90] sm:$0xff]
    %v175 = vld [vmem:[#allocation2 + $0x98] sm:$0xff]
    %v176 = vld [vmem:[#allocation2 + $0xa0] sm:$0xff]
    %v177 = vld [vmem:[#allocation2 + $0xa8] sm:$0xff]
    %v178 = vld [vmem:[#allocation2 + $0xb0] sm:$0xff]
    %v179 = vld [vmem:[#allocation2 + $0xb8] sm:$0xff]
    %v180 = vld [vmem:[#allocation2 + $0xc0] sm:$0xff]
    %v181 = vld [vmem:[#allocation2 + $0xc8] sm:$0xff]
    %v182 = vld [vmem:[#allocation2 + $0xd0] sm:$0xff]
    %v183 = vld [vmem:[#allocation2 + $0xd8] sm:$0xff]
    %v184 = vld [vmem:[#allocation2 + $0xe0] sm:$0xff]
    %v185 = vld [vmem:[#allocation2 + $0xe8] sm:$0xff]
    %v186 = vld [vmem:[#allocation2 + $0xf0] sm:$0xff]
    %v187 = vld [vmem:[#allocation2 + $0xf8] sm:$0xff]
    %v188 = vld [vmem:[#allocation2 + $0x100] sm:$0xff]
    %v189 = vld [vmem:[#allocation2 + $0x108] sm:$0xff]
    %v190 = vld [vmem:[#allocation2 + $0x110] sm:$0xff]
    %v191 = vld [vmem:[#allocation2 + $0x118] sm:$0xff]
    %v192 = vld [vmem:[#allocation2 + $0x120] sm:$0xff]
    %v193 = vld [vmem:[#allocation2 + $0x128] sm:$0xff]
    %v194 = vld [vmem:[#allocation2 + $0x130] sm:$0xff]
    %v195 = vld [vmem:[#allocation2 + $0x138] sm:$0xff]
    %v196 = vld [vmem:[#allocation2 + $0x140] sm:$0xff]
    %v197 = vld [vmem:[#allocation2 + $0x148] sm:$0xff]
    %v198 = vld [vmem:[#allocation2 + $0x150] sm:$0xff]
    %v199 = vld [vmem:[#allocation2 + $0x158] sm:$0xff]
    %v200 = vld [vmem:[#allocation2 + $0x160] sm:$0xff]
    %v201 = vld [vmem:[#allocation2 + $0x168] sm:$0xff]
    %v202 = vld [vmem:[#allocation2 + $0x170] sm:$0xff]
    %v203 = vld [vmem:[#allocation2 + $0x178] sm:$0xff]
    %v204 = vld [vmem:[#allocation2 + $0x180] sm:$0xff]
    %v205 = vld [vmem:[#allocation2 + $0x188] sm:$0xff]
    %v206 = vld [vmem:[#allocation2 + $0x190] sm:$0xff]
    %v207 = vld [vmem:[#allocation2 + $0x198] sm:$0xff]
    %v208 = vld [vmem:[#allocation2 + $0x1a0] sm:$0xff]
    %v209 = vld [vmem:[#allocation2 + $0x1a8] sm:$0xff]
    %v210 = vld [vmem:[#allocation2 + $0x1b0] sm:$0xff]
    %v211 = vld [vmem:[#allocation2 + $0x1b8] sm:$0xff]
    %v212 = vld [vmem:[#allocation2 + $0x1c0] sm:$0xff]
    %v213 = vld [vmem:[#allocation2 + $0x1c8] sm:$0xff]
    %v214 = vld [vmem:[#allocation2 + $0x1d0] sm:$0xff]
    %v215 = vld [vmem:[#allocation2 + $0x1d8] sm:$0xff]
    %v216 = vld [vmem:[#allocation2 + $0x1e0] sm:$0xff]
    %v217 = vld [vmem:[#allocation2 + $0x1e8] sm:$0xff]
    %v218 = vld [vmem:[#allocation2 + $0x1f0] sm:$0xff]
    %v219 = vld [vmem:[#allocation2 + $0x1f8] sm:$0xff]
    %v220 = vld [vmem:[%s1] sm:$0xf]
    %v221 = vld [vmem:[%s1 + $0x4] sm:$0xf]
    %v222 = vld [vmem:[%s1 + $0x8] sm:$0xf]
    %v223 = vld [vmem:[%s1 + $0xc] sm:$0xf]
    %v224 = vld [vmem:[%s1 + $0x10] sm:$0xf]
    %v225 = vld [vmem:[%s1 + $0x14] sm:$0xf]
    %v226 = vld [vmem:[%s1 + $0x18] sm:$0xf]
    %v227 = vld [vmem:[%s1 + $0x1c] sm:$0xf]
    %v228 = vld [vmem:[%s1 + $0x20] sm:$0xf]
    %v229 = vld [vmem:[%s1 + $0x24] sm:$0xf]
    %v230 = vld [vmem:[%s1 + $0x28] sm:$0xf]
    %v231 = vld [vmem:[%s1 + $0x2c] sm:$0xf]
    %v232 = vld [vmem:[%s1 + $0x30] sm:$0xf]
    %v233 = vld [vmem:[%s1 + $0x34] sm:$0xf]
    %v234 = vld [vmem:[%s1 + $0x38] sm:$0xf]
    %v235 = vld [vmem:[%s1 + $0x3c] sm:$0xf]
    %v300 = vunpack.c.l.b16 %v92
    %v301 = vunpack.c.l.b16 %v93
    %v302 = vunpack.c.l.b16 %v94
    %v303 = vunpack.c.l.b16 %v95
    %v304 = vunpack.c.l.b16 %v96
    %v305 = vunpack.c.l.b16 %v97
    %v306 = vunpack.c.l.b16 %v98
    %v307 = vunpack.c.l.b16 %v99
    %v308 = vunpack.c.l.b16 %v100
    %v309 = vunpack.c.l.b16 %v101
    %v310 = vunpack.c.l.b16 %v102
    %v311 = vunpack.c.l.b16 %v103
    %v312 = vunpack.c.l.b16 %v104
    %v313 = vunpack.c.l.b16 %v105
    %v314 = vunpack.c.l.b16 %v106
    %v315 = vunpack.c.l.b16 %v107
    %v316 = vunpack.c.l.b16 %v108
    %v317 = vunpack.c.l.b16 %v109
    %v318 = vunpack.c.l.b16 %v110
    %v319 = vunpack.c.l.b16 %v111
    %v320 = vunpack.c.l.b16 %v112
    %v321 = vunpack.c.l.b16 %v113
    %v322 = vunpack.c.l.b16 %v114
    %v323 = vunpack.c.l.b16 %v115
    %v324 = vunpack.c.l.b16 %v116
    %v325 = vunpack.c.l.b16 %v117
    %v326 = vunpack.c.l.b16 %v118
    %v327 = vunpack.c.l.b16 %v119
    %v328 = vunpack.c.l.b16 %v120
    %v329 = vunpack.c.l.b16 %v121
    %v330 = vunpack.c.l.b16 %v122
    %v331 = vunpack.c.l.b16 %v123
    %v332 = vunpack.c.l.b16 %v124
    %v333 = vunpack.c.l.b16 %v125
    %v334 = vunpack.c.l.b16 %v126
    %v335 = vunpack.c.l.b16 %v127
    %v336 = vunpack.c.l.b16 %v128
    %v337 = vunpack.c.l.b16 %v129
    %v338 = vunpack.c.l.b16 %v130
    %v339 = vunpack.c.l.b16 %v131
    %v340 = vunpack.c.l.b16 %v132
    %v341 = vunpack.c.l.b16 %v133
    %v342 = vunpack.c.l.b16 %v134
    %v343 = vunpack.c.l.b16 %v135
    %v344 = vunpack.c.l.b16 %v136
    %v345 = vunpack.c.l.b16 %v137
    %v346 = vunpack.c.l.b16 %v138
    %v347 = vunpack.c.l.b16 %v139
    %v348 = vunpack.c.l.b16 %v140
    %v349 = vunpack.c.l.b16 %v141
    %v350 = vunpack.c.l.b16 %v142
    %v351 = vunpack.c.l.b16 %v143
    %v352 = vunpack.c.l.b16 %v144
    %v353 = vunpack.c.l.b16 %v145
    %v354 = vunpack.c.l.b16 %v146
    %v355 = vunpack.c.l.b16 %v147
    %v356 = vunpack.c.l.b16 %v148
    %v357 = vunpack.c.l.b16 %v149
    %v358 = vunpack.c.l.b16 %v150
    %v359 = vunpack.c.l.b16 %v151
    %v360 = vunpack.c.l.b16 %v152
    %v361 = vunpack.c.l.b16 %v153
    %v362 = vunpack.c.l.b16 %v154
    %v363 = vunpack.c.l.b16 %v155
    %v364 = vpack.c.b16 %v301, %v300
    %v365 = vpack.c.b16 %v303, %v302
    %v366 = vpack.c.b16 %v305, %v304
    %v367 = vpack.c.b16 %v307, %v306
    %v368 = vpack.c.b16 %v309, %v308
    %v369 = vpack.c.b16 %v311, %v310
    %v370 = vpack.c.b16 %v313, %v312
    %v371 = vpack.c.b16 %v315, %v314
    %v372 = vpack.c.b16 %v317, %v316
    %v373 = vpack.c.b16 %v319, %v318
    %v374 = vpack.c.b16 %v321, %v320
    %v375 = vpack.c.b16 %v323, %v322
    %v376 = vpack.c.b16 %v325, %v324
    %v377 = vpack.c.b16 %v327, %v326
    %v378 = vpack.c.b16 %v329, %v328
    %v379 = vpack.c.b16 %v331, %v330
    %v380 = vpack.c.b16 %v333, %v332
    %v381 = vpack.c.b16 %v335, %v334
    %v382 = vpack.c.b16 %v337, %v336
    %v383 = vpack.c.b16 %v339, %v338
    %v384 = vpack.c.b16 %v341, %v340
    %v385 = vpack.c.b16 %v343, %v342
    %v386 = vpack.c.b16 %v345, %v344
    %v387 = vpack.c.b16 %v347, %v346
    %v388 = vpack.c.b16 %v349, %v348
    %v389 = vpack.c.b16 %v351, %v350
    %v390 = vpack.c.b16 %v353, %v352
    %v391 = vpack.c.b16 %v355, %v354
    %v392 = vpack.c.b16 %v357, %v356
    %v393 = vpack.c.b16 %v359, %v358
    %v394 = vpack.c.b16 %v361, %v360
    %v395 = vpack.c.b16 %v363, %v362
    %v444 = vunpack.c.l.b16 %v220
    %v445 = vunpack.c.l.b16 %v221
    %v446 = vunpack.c.l.b16 %v222
    %v447 = vunpack.c.l.b16 %v223
    %v448 = vunpack.c.l.b16 %v224
    %v449 = vunpack.c.l.b16 %v225
    %v450 = vunpack.c.l.b16 %v226
    %v451 = vunpack.c.l.b16 %v227
    %v452 = vunpack.c.l.b16 %v228
    %v453 = vunpack.c.l.b16 %v229
    %v454 = vunpack.c.l.b16 %v230
    %v455 = vunpack.c.l.b16 %v231
    %v456 = vunpack.c.l.b16 %v232
    %v457 = vunpack.c.l.b16 %v233
    %v458 = vunpack.c.l.b16 %v234
    %v459 = vunpack.c.l.b16 %v235
    %v460 = vpack.c.b16 %v445, %v444
    %v461 = vpack.c.b16 %v447, %v446
    %v462 = vpack.c.b16 %v449, %v448
    %v463 = vpack.c.b16 %v451, %v450
    %v464 = vpack.c.b16 %v453, %v452
    %v465 = vpack.c.b16 %v455, %v454
    %v466 = vpack.c.b16 %v457, %v456
    %v467 = vpack.c.b16 %v459, %v458
    %476 = vmatprep.subr.bf16.mxu0 0
    %477 = vmatpush1.bf16.msra.mxu0 %v467
    %478 = vmatprep.subr.bf16.mxu0 0
    %479 = vmatpush1.bf16.msra.mxu0 %v466
    %480 = vmatprep.subr.bf16.mxu0 0
    %481 = vmatpush1.bf16.msra.mxu0 %v465
    %482 = vmatprep.subr.bf16.mxu0 0
    %483 = vmatpush1.bf16.msra.mxu0 %v464
    %484 = vmatprep.subr.bf16.mxu0 0
    %485 = vmatpush1.bf16.msra.mxu0 %v463
    %486 = vmatprep.subr.bf16.mxu0 0
    %487 = vmatpush1.bf16.msra.mxu0 %v462
    %488 = vmatprep.subr.bf16.mxu0 0
    %489 = vmatpush1.bf16.msra.mxu0 %v461
    %490 = vmatprep.subr.bf16.mxu0 0
    %491 = vmatpush1.bf16.msra.mxu0 %v460
    %492 = vmatprep.subr.bf16.mxu0 0
    %493 = vmatpush2.bf16.msra.mxu0 0
    %494 = vmatprep.subr.bf16.mxu0 0
    %495 = vmatpush2.bf16.msra.mxu0 0
    %496 = vmatprep.subr.bf16.mxu0 0
    %497 = vmatpush2.bf16.msra.mxu0 0
    %498 = vmatprep.subr.bf16.mxu0 0
    %499 = vmatpush2.bf16.msra.mxu0 0
    %500 = vmatprep.subr.bf16.mxu0 0
    %501 = vmatpush2.bf16.msra.mxu0 0
    %502 = vmatprep.subr.bf16.mxu0 0
    %503 = vmatpush2.bf16.msra.mxu0 0
    %504 = vmatprep.subr.bf16.mxu0 0
    %505 = vmatpush2.bf16.msra.mxu0 0
    %506 = vmatprep.subr.bf16.mxu0 0
    %507 = vmatpush2.bf16.msra.mxu0 0
    %508 = vmatprep.mubr.bf16.mxu0 0
    %509 = vmatmul.mubr.bf16.gmra.mxu0 %v364
    %v510 = vpop.f32.mrf.mxu0
    %v511 = vadd.f32 0.0, %v510
    %v512 = vpop.f32.mrf.mxu0
    %v513 = vpop.f32.mrf.mxu0
    %v514 = vadd.f32 0.0, %v513
    %v515 = vpop.f32.mrf.mxu0
    %516 = vmatprep.mubr.bf16.mxu0 0
    %517 = vmatmul.mubr.bf16.gmra.mxu0 %v365
    %v518 = vpop.f32.mrf.mxu0
    %v519 = vadd.f32 0.0, %v518
    %v520 = vpop.f32.mrf.mxu0
    %v521 = vpop.f32.mrf.mxu0
    %v522 = vadd.f32 0.0, %v521
    %v523 = vpop.f32.mrf.mxu0
    %524 = vmatprep.mubr.bf16.mxu0 0
    %525 = vmatmul.mubr.bf16.gmra.mxu0 %v366
    %v526 = vpop.f32.mrf.mxu0
    %v527 = vadd.f32 0.0, %v526
    %v528 = vpop.f32.mrf.mxu0
    %v529 = vpop.f32.mrf.mxu0
    %v530 = vadd.f32 0.0, %v529
    %v531 = vpop.f32.mrf.mxu0
    %532 = vmatprep.mubr.bf16.mxu0 0
    %533 = vmatmul.mubr.bf16.gmra.mxu0 %v367
    %v534 = vpop.f32.mrf.mxu0
    %v535 = vadd.f32 0.0, %v534
    %v536 = vpop.f32.mrf.mxu0
    %v537 = vpop.f32.mrf.mxu0
    %v538 = vadd.f32 0.0, %v537
    %v539 = vpop.f32.mrf.mxu0
    %540 = vmatprep.mubr.bf16.mxu0 0
    %541 = vmatmul.mubr.bf16.gmra.mxu0 %v368
    %v542 = vpop.f32.mrf.mxu0
    %v543 = vadd.f32 0.0, %v542
    %v544 = vpop.f32.mrf.mxu0
    %v545 = vpop.f32.mrf.mxu0
    %v546 = vadd.f32 0.0, %v545
    %v547 = vpop.f32.mrf.mxu0
    %548 = vmatprep.mubr.bf16.mxu0 0
    %549 = vmatmul.mubr.bf16.gmra.mxu0 %v369
    %v550 = vpop.f32.mrf.mxu0
    %v551 = vadd.f32 0.0, %v550
    %v552 = vpop.f32.mrf.mxu0
    %v553 = vpop.f32.mrf.mxu0
    %v554 = vadd.f32 0.0, %v553
    %v555 = vpop.f32.mrf.mxu0
    %556 = vmatprep.mubr.bf16.mxu0 0
    %557 = vmatmul.mubr.bf16.gmra.mxu0 %v370
    %v558 = vpop.f32.mrf.mxu0
    %v559 = vadd.f32 0.0, %v558
    %v560 = vpop.f32.mrf.mxu0
    %v561 = vpop.f32.mrf.mxu0
    %v562 = vadd.f32 0.0, %v561
    %v563 = vpop.f32.mrf.mxu0
    %564 = vmatprep.mubr.bf16.mxu0 0
    %565 = vmatmul.mubr.bf16.gmra.mxu0 %v371
    %v566 = vpop.f32.mrf.mxu0
    %v567 = vadd.f32 0.0, %v566
    %v568 = vpop.f32.mrf.mxu0
    %v569 = vpop.f32.mrf.mxu0
    %v570 = vadd.f32 0.0, %v569
    %v571 = vpop.f32.mrf.mxu0
    %572 = vmatprep.mubr.bf16.mxu0 0
    %573 = vmatmul.mubr.bf16.gmra.mxu0 %v372
    %v574 = vpop.f32.mrf.mxu0
    %v575 = vadd.f32 0.0, %v574
    %v576 = vpop.f32.mrf.mxu0
    %v577 = vpop.f32.mrf.mxu0
    %v578 = vadd.f32 0.0, %v577
    %v579 = vpop.f32.mrf.mxu0
    %580 = vmatprep.mubr.bf16.mxu0 0
    %581 = vmatmul.mubr.bf16.gmra.mxu0 %v373
    %v582 = vpop.f32.mrf.mxu0
    %v583 = vadd.f32 0.0, %v582
    %v584 = vpop.f32.mrf.mxu0
    %v585 = vpop.f32.mrf.mxu0
    %v586 = vadd.f32 0.0, %v585
    %v587 = vpop.f32.mrf.mxu0
    %588 = vmatprep.mubr.bf16.mxu0 0
    %589 = vmatmul.mubr.bf16.gmra.mxu0 %v374
    %v590 = vpop.f32.mrf.mxu0
    %v591 = vadd.f32 0.0, %v590
    %v592 = vpop.f32.mrf.mxu0
    %v593 = vpop.f32.mrf.mxu0
    %v594 = vadd.f32 0.0, %v593
    %v595 = vpop.f32.mrf.mxu0
    %596 = vmatprep.mubr.bf16.mxu0 0
    %597 = vmatmul.mubr.bf16.gmra.mxu0 %v375
    %v598 = vpop.f32.mrf.mxu0
    %v599 = vadd.f32 0.0, %v598
    %v600 = vpop.f32.mrf.mxu0
    %v601 = vpop.f32.mrf.mxu0
    %v602 = vadd.f32 0.0, %v601
    %v603 = vpop.f32.mrf.mxu0
    %604 = vmatprep.mubr.bf16.mxu0 0
    %605 = vmatmul.mubr.bf16.gmra.mxu0 %v376
    %v606 = vpop.f32.mrf.mxu0
    %v607 = vadd.f32 0.0, %v606
    %v608 = vpop.f32.mrf.mxu0
    %v609 = vpop.f32.mrf.mxu0
    %v610 = vadd.f32 0.0, %v609
    %v611 = vpop.f32.mrf.mxu0
    %612 = vmatprep.mubr.bf16.mxu0 0
    %613 = vmatmul.mubr.bf16.gmra.mxu0 %v377
    %v614 = vpop.f32.mrf.mxu0
    %v615 = vadd.f32 0.0, %v614
    %v616 = vpop.f32.mrf.mxu0
    %v617 = vpop.f32.mrf.mxu0
    %v618 = vadd.f32 0.0, %v617
    %v619 = vpop.f32.mrf.mxu0
    %620 = vmatprep.mubr.bf16.mxu0 0
    %621 = vmatmul.mubr.bf16.gmra.mxu0 %v378
    %v622 = vpop.f32.mrf.mxu0
    %v623 = vadd.f32 0.0, %v622
    %v624 = vpop.f32.mrf.mxu0
    %v625 = vpop.f32.mrf.mxu0
    %v626 = vadd.f32 0.0, %v625
    %v627 = vpop.f32.mrf.mxu0
    %628 = vmatprep.mubr.bf16.mxu0 0
    %629 = vmatmul.mubr.bf16.gmra.mxu0 %v379
    %v630 = vpop.f32.mrf.mxu0
    %v631 = vadd.f32 0.0, %v630
    %v632 = vpop.f32.mrf.mxu0
    %v633 = vpop.f32.mrf.mxu0
    %v634 = vadd.f32 0.0, %v633
    %v635 = vpop.f32.mrf.mxu0
    %636 = vmatprep.mubr.bf16.mxu0 0
    %637 = vmatmul.mubr.bf16.gmra.mxu0 %v380
    %v638 = vpop.f32.mrf.mxu0
    %v639 = vadd.f32 0.0, %v638
    %v640 = vpop.f32.mrf.mxu0
    %v641 = vpop.f32.mrf.mxu0
    %v642 = vadd.f32 0.0, %v641
    %v643 = vpop.f32.mrf.mxu0
    %644 = vmatprep.mubr.bf16.mxu0 0
    %645 = vmatmul.mubr.bf16.gmra.mxu0 %v381
    %v646 = vpop.f32.mrf.mxu0
    %v647 = vadd.f32 0.0, %v646
    %v648 = vpop.f32.mrf.mxu0
    %v649 = vpop.f32.mrf.mxu0
    %v650 = vadd.f32 0.0, %v649
    %v651 = vpop.f32.mrf.mxu0
    %652 = vmatprep.mubr.bf16.mxu0 0
    %653 = vmatmul.mubr.bf16.gmra.mxu0 %v382
    %v654 = vpop.f32.mrf.mxu0
    %v655 = vadd.f32 0.0, %v654
    %v656 = vpop.f32.mrf.mxu0
    %v657 = vpop.f32.mrf.mxu0
    %v658 = vadd.f32 0.0, %v657
    %v659 = vpop.f32.mrf.mxu0
    %660 = vmatprep.mubr.bf16.mxu0 0
    %661 = vmatmul.mubr.bf16.gmra.mxu0 %v383
    %v662 = vpop.f32.mrf.mxu0
    %v663 = vadd.f32 0.0, %v662
    %v664 = vpop.f32.mrf.mxu0
    %v665 = vpop.f32.mrf.mxu0
    %v666 = vadd.f32 0.0, %v665
    %v667 = vpop.f32.mrf.mxu0
    %668 = vmatprep.mubr.bf16.mxu0 0
    %669 = vmatmul.mubr.bf16.gmra.mxu0 %v384
    %v670 = vpop.f32.mrf.mxu0
    %v671 = vadd.f32 0.0, %v670
    %v672 = vpop.f32.mrf.mxu0
    %v673 = vpop.f32.mrf.mxu0
    %v674 = vadd.f32 0.0, %v673
    %v675 = vpop.f32.mrf.mxu0
    %676 = vmatprep.mubr.bf16.mxu0 0
    %677 = vmatmul.mubr.bf16.gmra.mxu0 %v385
    %v678 = vpop.f32.mrf.mxu0
    %v679 = vadd.f32 0.0, %v678
    %v680 = vpop.f32.mrf.mxu0
    %v681 = vpop.f32.mrf.mxu0
    %v682 = vadd.f32 0.0, %v681
    %v683 = vpop.f32.mrf.mxu0
    %684 = vmatprep.mubr.bf16.mxu0 0
    %685 = vmatmul.mubr.bf16.gmra.mxu0 %v386
    %v686 = vpop.f32.mrf.mxu0
    %v687 = vadd.f32 0.0, %v686
    %v688 = vpop.f32.mrf.mxu0
    %v689 = vpop.f32.mrf.mxu0
    %v690 = vadd.f32 0.0, %v689
    %v691 = vpop.f32.mrf.mxu0
    %692 = vmatprep.mubr.bf16.mxu0 0
    %693 = vmatmul.mubr.bf16.gmra.mxu0 %v387
    %v694 = vpop.f32.mrf.mxu0
    %v695 = vadd.f32 0.0, %v694
    %v696 = vpop.f32.mrf.mxu0
    %v697 = vpop.f32.mrf.mxu0
    %v698 = vadd.f32 0.0, %v697
    %v699 = vpop.f32.mrf.mxu0
    %700 = vmatprep.mubr.bf16.mxu0 0
    %701 = vmatmul.mubr.bf16.gmra.mxu0 %v388
    %v702 = vpop.f32.mrf.mxu0
    %v703 = vadd.f32 0.0, %v702
    %v704 = vpop.f32.mrf.mxu0
    %v705 = vpop.f32.mrf.mxu0
    %v706 = vadd.f32 0.0, %v705
    %v707 = vpop.f32.mrf.mxu0
    %708 = vmatprep.mubr.bf16.mxu0 0
    %709 = vmatmul.mubr.bf16.gmra.mxu0 %v389
    %v710 = vpop.f32.mrf.mxu0
    %v711 = vadd.f32 0.0, %v710
    %v712 = vpop.f32.mrf.mxu0
    %v713 = vpop.f32.mrf.mxu0
    %v714 = vadd.f32 0.0, %v713
    %v715 = vpop.f32.mrf.mxu0
    %716 = vmatprep.mubr.bf16.mxu0 0
    %717 = vmatmul.mubr.bf16.gmra.mxu0 %v390
    %v718 = vpop.f32.mrf.mxu0
    %v719 = vadd.f32 0.0, %v718
    %v720 = vpop.f32.mrf.mxu0
    %v721 = vpop.f32.mrf.mxu0
    %v722 = vadd.f32 0.0, %v721
    %v723 = vpop.f32.mrf.mxu0
    %724 = vmatprep.mubr.bf16.mxu0 0
    %725 = vmatmul.mubr.bf16.gmra.mxu0 %v391
    %v726 = vpop.f32.mrf.mxu0
    %v727 = vadd.f32 0.0, %v726
    %v728 = vpop.f32.mrf.mxu0
    %v729 = vpop.f32.mrf.mxu0
    %v730 = vadd.f32 0.0, %v729
    %v731 = vpop.f32.mrf.mxu0
    %732 = vmatprep.mubr.bf16.mxu0 0
    %733 = vmatmul.mubr.bf16.gmra.mxu0 %v392
    %v734 = vpop.f32.mrf.mxu0
    %v735 = vadd.f32 0.0, %v734
    %v736 = vpop.f32.mrf.mxu0
    %v737 = vpop.f32.mrf.mxu0
    %v738 = vadd.f32 0.0, %v737
    %v739 = vpop.f32.mrf.mxu0
    %740 = vmatprep.mubr.bf16.mxu0 0
    %741 = vmatmul.mubr.bf16.gmra.mxu0 %v393
    %v742 = vpop.f32.mrf.mxu0
    %v743 = vadd.f32 0.0, %v742
    %v744 = vpop.f32.mrf.mxu0
    %v745 = vpop.f32.mrf.mxu0
    %v746 = vadd.f32 0.0, %v745
    %v747 = vpop.f32.mrf.mxu0
    %748 = vmatprep.mubr.bf16.mxu0 0
    %749 = vmatmul.mubr.bf16.gmra.mxu0 %v394
    %v750 = vpop.f32.mrf.mxu0
    %v751 = vadd.f32 0.0, %v750
    %v752 = vpop.f32.mrf.mxu0
    %v753 = vpop.f32.mrf.mxu0
    %v754 = vadd.f32 0.0, %v753
    %v755 = vpop.f32.mrf.mxu0
    %756 = vmatprep.mubr.bf16.mxu0 0
    %757 = vmatmul.mubr.bf16.gmra.mxu0 %v395
    %v758 = vpop.f32.mrf.mxu0
    %v759 = vadd.f32 0.0, %v758
    %v760 = vpop.f32.mrf.mxu0
    %v761 = vpop.f32.mrf.mxu0
    %v762 = vadd.f32 0.0, %v761
    %v763 = vpop.f32.mrf.mxu0
    %764 = vdwg.mxu0
    %v765 = vadd.f32 %v156, %v511
    %v766 = vadd.f32 %v157, %v514
    %v767 = vadd.f32 %v158, %v519
    %v768 = vadd.f32 %v159, %v522
    %v769 = vadd.f32 %v160, %v527
    %v770 = vadd.f32 %v161, %v530
    %v771 = vadd.f32 %v162, %v535
    %v772 = vadd.f32 %v163, %v538
    %v773 = vadd.f32 %v164, %v543
    %v774 = vadd.f32 %v165, %v546
    %v775 = vadd.f32 %v166, %v551
    %v776 = vadd.f32 %v167, %v554
    %v777 = vadd.f32 %v168, %v559
    %v778 = vadd.f32 %v169, %v562
    %v779 = vadd.f32 %v170, %v567
    %v780 = vadd.f32 %v171, %v570
    %v781 = vadd.f32 %v172, %v575
    %v782 = vadd.f32 %v173, %v578
    %v783 = vadd.f32 %v174, %v583
    %v784 = vadd.f32 %v175, %v586
    %v785 = vadd.f32 %v176, %v591
    %v786 = vadd.f32 %v177, %v594
    %v787 = vadd.f32 %v178, %v599
    %v788 = vadd.f32 %v179, %v602
    %v789 = vadd.f32 %v180, %v607
    %v790 = vadd.f32 %v181, %v610
    %v791 = vadd.f32 %v182, %v615
    %v792 = vadd.f32 %v183, %v618
    %v793 = vadd.f32 %v184, %v623
    %v794 = vadd.f32 %v185, %v626
    %v795 = vadd.f32 %v186, %v631
    %v796 = vadd.f32 %v187, %v634
    %v797 = vadd.f32 %v188, %v639
    %v798 = vadd.f32 %v189, %v642
    %v799 = vadd.f32 %v190, %v647
    %v800 = vadd.f32 %v191, %v650
    %v801 = vadd.f32 %v192, %v655
    %v802 = vadd.f32 %v193, %v658
    %v803 = vadd.f32 %v194, %v663
    %v804 = vadd.f32 %v195, %v666
    %v805 = vadd.f32 %v196, %v671
    %v806 = vadd.f32 %v197, %v674
    %v807 = vadd.f32 %v198, %v679
    %v808 = vadd.f32 %v199, %v682
    %v809 = vadd.f32 %v200, %v687
    %v810 = vadd.f32 %v201, %v690
    %v811 = vadd.f32 %v202, %v695
    %v812 = vadd.f32 %v203, %v698
    %v813 = vadd.f32 %v204, %v703
    %v814 = vadd.f32 %v205, %v706
    %v815 = vadd.f32 %v206, %v711
    %v816 = vadd.f32 %v207, %v714
    %v817 = vadd.f32 %v208, %v719
    %v818 = vadd.f32 %v209, %v722
    %v819 = vadd.f32 %v210, %v727
    %v820 = vadd.f32 %v211, %v730
    %v821 = vadd.f32 %v212, %v735
    %v822 = vadd.f32 %v213, %v738
    %v823 = vadd.f32 %v214, %v743
    %v824 = vadd.f32 %v215, %v746
    %v825 = vadd.f32 %v216, %v751
    %v826 = vadd.f32 %v217, %v754
    %v827 = vadd.f32 %v218, %v759
    %v828 = vadd.f32 %v219, %v762
    %829 = vst [vmem:[#allocation2] sm:$0xff] %v765
    %830 = vst [vmem:[#allocation2 + $0x8] sm:$0xff] %v766
    %831 = vst [vmem:[#allocation2 + $0x10] sm:$0xff] %v767
    %832 = vst [vmem:[#allocation2 + $0x18] sm:$0xff] %v768
    %833 = vst [vmem:[#allocation2 + $0x20] sm:$0xff] %v769
    %834 = vst [vmem:[#allocation2 + $0x28] sm:$0xff] %v770
    %835 = vst [vmem:[#allocation2 + $0x30] sm:$0xff] %v771
    %836 = vst [vmem:[#allocation2 + $0x38] sm:$0xff] %v772
    %837 = vst [vmem:[#allocation2 + $0x40] sm:$0xff] %v773
    %838 = vst [vmem:[#allocation2 + $0x48] sm:$0xff] %v774
    %839 = vst [vmem:[#allocation2 + $0x50] sm:$0xff] %v775
    %840 = vst [vmem:[#allocation2 + $0x58] sm:$0xff] %v776
    %841 = vst [vmem:[#allocation2 + $0x60] sm:$0xff] %v777
    %842 = vst [vmem:[#allocation2 + $0x68] sm:$0xff] %v778
    %843 = vst [vmem:[#allocation2 + $0x70] sm:$0xff] %v779
    %844 = vst [vmem:[#allocation2 + $0x78] sm:$0xff] %v780
    %845 = vst [vmem:[#allocation2 + $0x80] sm:$0xff] %v781
    %846 = vst [vmem:[#allocation2 + $0x88] sm:$0xff] %v782
    %847 = vst [vmem:[#allocation2 + $0x90] sm:$0xff] %v783
    %848 = vst [vmem:[#allocation2 + $0x98] sm:$0xff] %v784
    %849 = vst [vmem:[#allocation2 + $0xa0] sm:$0xff] %v785
    %850 = vst [vmem:[#allocation2 + $0xa8] sm:$0xff] %v786
    %851 = vst [vmem:[#allocation2 + $0xb0] sm:$0xff] %v787
    %852 = vst [vmem:[#allocation2 + $0xb8] sm:$0xff] %v788
    %853 = vst [vmem:[#allocation2 + $0xc0] sm:$0xff] %v789
    %854 = vst [vmem:[#allocation2 + $0xc8] sm:$0xff] %v790
    %855 = vst [vmem:[#allocation2 + $0xd0] sm:$0xff] %v791
    %856 = vst [vmem:[#allocation2 + $0xd8] sm:$0xff] %v792
    %857 = vst [vmem:[#allocation2 + $0xe0] sm:$0xff] %v793
    %858 = vst [vmem:[#allocation2 + $0xe8] sm:$0xff] %v794
    %859 = vst [vmem:[#allocation2 + $0xf0] sm:$0xff] %v795
    %860 = vst [vmem:[#allocation2 + $0xf8] sm:$0xff] %v796
    %861 = vst [vmem:[#allocation2 + $0x100] sm:$0xff] %v797
    %862 = vst [vmem:[#allocation2 + $0x108] sm:$0xff] %v798
    %863 = vst [vmem:[#allocation2 + $0x110] sm:$0xff] %v799
    %864 = vst [vmem:[#allocation2 + $0x118] sm:$0xff] %v800
    %865 = vst [vmem:[#allocation2 + $0x120] sm:$0xff] %v801
    %866 = vst [vmem:[#allocation2 + $0x128] sm:$0xff] %v802
    %867 = vst [vmem:[#allocation2 + $0x130] sm:$0xff] %v803
    %868 = vst [vmem:[#allocation2 + $0x138] sm:$0xff] %v804
    %869 = vst [vmem:[#allocation2 + $0x140] sm:$0xff] %v805
    %870 = vst [vmem:[#allocation2 + $0x148] sm:$0xff] %v806
    %871 = vst [vmem:[#allocation2 + $0x150] sm:$0xff] %v807
    %872 = vst [vmem:[#allocation2 + $0x158] sm:$0xff] %v808
    %873 = vst [vmem:[#allocation2 + $0x160] sm:$0xff] %v809
    %874 = vst [vmem:[#allocation2 + $0x168] sm:$0xff] %v810
    %875 = vst [vmem:[#allocation2 + $0x170] sm:$0xff] %v811
    %876 = vst [vmem:[#allocation2 + $0x178] sm:$0xff] %v812
    %877 = vst [vmem:[#allocation2 + $0x180] sm:$0xff] %v813
    %878 = vst [vmem:[#allocation2 + $0x188] sm:$0xff] %v814
    %879 = vst [vmem:[#allocation2 + $0x190] sm:$0xff] %v815
    %880 = vst [vmem:[#allocation2 + $0x198] sm:$0xff] %v816
    %881 = vst [vmem:[#allocation2 + $0x1a0] sm:$0xff] %v817
    %882 = vst [vmem:[#allocation2 + $0x1a8] sm:$0xff] %v818
    %883 = vst [vmem:[#allocation2 + $0x1b0] sm:$0xff] %v819
    %884 = vst [vmem:[#allocation2 + $0x1b8] sm:$0xff] %v820
    %885 = vst [vmem:[#allocation2 + $0x1c0] sm:$0xff] %v821
    %886 = vst [vmem:[#allocation2 + $0x1c8] sm:$0xff] %v822
    %887 = vst [vmem:[#allocation2 + $0x1d0] sm:$0xff] %v823
    %888 = vst [vmem:[#allocation2 + $0x1d8] sm:$0xff] %v824
    %889 = vst [vmem:[#allocation2 + $0x1e0] sm:$0xff] %v825
    %890 = vst [vmem:[#allocation2 + $0x1e8] sm:$0xff] %v826
    %891 = vst [vmem:[#allocation2 + $0x1f0] sm:$0xff] %v827
    %892 = vst [vmem:[#allocation2 + $0x1f8] sm:$0xff] %v828
    // Predicated region
    $region26: #{_lambda_.5} parent=1 // pred_check
      %p893 = pneg %p24
    $region27: #{_lambda_.5} parent=1 // pred_check_branch
      %895 = sbr.rel (%p893) target = $region29
    $region28: #{_lambda_.5} parent=1 // pred_region
      %v896 = vld [vmem:[#allocation2] sm:$0xff]
      %v897 = vld [vmem:[#allocation2 + $0x8] sm:$0xff]
      %v898 = vld [vmem:[#allocation2 + $0x10] sm:$0xff]
      %v899 = vld [vmem:[#allocation2 + $0x18] sm:$0xff]
      %v900 = vld [vmem:[#allocation2 + $0x20] sm:$0xff]
      %v901 = vld [vmem:[#allocation2 + $0x28] sm:$0xff]
      %v902 = vld [vmem:[#allocation2 + $0x30] sm:$0xff]
      %v903 = vld [vmem:[#allocation2 + $0x38] sm:$0xff]
      %v904 = vld [vmem:[#allocation2 + $0x40] sm:$0xff]
      %v905 = vld [vmem:[#allocation2 + $0x48] sm:$0xff]
      %v906 = vld [vmem:[#allocation2 + $0x50] sm:$0xff]
      %v907 = vld [vmem:[#allocation2 + $0x58] sm:$0xff]
      %v908 = vld [vmem:[#allocation2 + $0x60] sm:$0xff]
      %v909 = vld [vmem:[#allocation2 + $0x68] sm:$0xff]
      %v910 = vld [vmem:[#allocation2 + $0x70] sm:$0xff]
      %v911 = vld [vmem:[#allocation2 + $0x78] sm:$0xff]
      %v912 = vld [vmem:[#allocation2 + $0x80] sm:$0xff]
      %v913 = vld [vmem:[#allocation2 + $0x88] sm:$0xff]
      %v914 = vld [vmem:[#allocation2 + $0x90] sm:$0xff]
      %v915 = vld [vmem:[#allocation2 + $0x98] sm:$0xff]
      %v916 = vld [vmem:[#allocation2 + $0xa0] sm:$0xff]
      %v917 = vld [vmem:[#allocation2 + $0xa8] sm:$0xff]
      %v918 = vld [vmem:[#allocation2 + $0xb0] sm:$0xff]
      %v919 = vld [vmem:[#allocation2 + $0xb8] sm:$0xff]
      %v920 = vld [vmem:[#allocation2 + $0xc0] sm:$0xff]
      %v921 = vld [vmem:[#allocation2 + $0xc8] sm:$0xff]
      %v922 = vld [vmem:[#allocation2 + $0xd0] sm:$0xff]
      %v923 = vld [vmem:[#allocation2 + $0xd8] sm:$0xff]
      %v924 = vld [vmem:[#allocation2 + $0xe0] sm:$0xff]
      %v925 = vld [vmem:[#allocation2 + $0xe8] sm:$0xff]
      %v926 = vld [vmem:[#allocation2 + $0xf0] sm:$0xff]
      %v927 = vld [vmem:[#allocation2 + $0xf8] sm:$0xff]
      %v928 = vld [vmem:[#allocation2 + $0x100] sm:$0xff]
      %v929 = vld [vmem:[#allocation2 + $0x108] sm:$0xff]
      %v930 = vld [vmem:[#allocation2 + $0x110] sm:$0xff]
      %v931 = vld [vmem:[#allocation2 + $0x118] sm:$0xff]
      %v932 = vld [vmem:[#allocation2 + $0x120] sm:$0xff]
      %v933 = vld [vmem:[#allocation2 + $0x128] sm:$0xff]
      %v934 = vld [vmem:[#allocation2 + $0x130] sm:$0xff]
      %v935 = vld [vmem:[#allocation2 + $0x138] sm:$0xff]
      %v936 = vld [vmem:[#allocation2 + $0x140] sm:$0xff]
      %v937 = vld [vmem:[#allocation2 + $0x148] sm:$0xff]
      %v938 = vld [vmem:[#allocation2 + $0x150] sm:$0xff]
      %v939 = vld [vmem:[#allocation2 + $0x158] sm:$0xff]
      %v940 = vld [vmem:[#allocation2 + $0x160] sm:$0xff]
      %v941 = vld [vmem:[#allocation2 + $0x168] sm:$0xff]
      %v942 = vld [vmem:[#allocation2 + $0x170] sm:$0xff]
      %v943 = vld [vmem:[#allocation2 + $0x178] sm:$0xff]
      %v944 = vld [vmem:[#allocation2 + $0x180] sm:$0xff]
      %v945 = vld [vmem:[#allocation2 + $0x188] sm:$0xff]
      %v946 = vld [vmem:[#allocation2 + $0x190] sm:$0xff]
      %v947 = vld [vmem:[#allocation2 + $0x198] sm:$0xff]
      %v948 = vld [vmem:[#allocation2 + $0x1a0] sm:$0xff]
      %v949 = vld [vmem:[#allocation2 + $0x1a8] sm:$0xff]
      %v950 = vld [vmem:[#allocation2 + $0x1b0] sm:$0xff]
      %v951 = vld [vmem:[#allocation2 + $0x1b8] sm:$0xff]
      %v952 = vld [vmem:[#allocation2 + $0x1c0] sm:$0xff]
      %v953 = vld [vmem:[#allocation2 + $0x1c8] sm:$0xff]
      %v954 = vld [vmem:[#allocation2 + $0x1d0] sm:$0xff]
      %v955 = vld [vmem:[#allocation2 + $0x1d8] sm:$0xff]
      %v956 = vld [vmem:[#allocation2 + $0x1e0] sm:$0xff]
      %v957 = vld [vmem:[#allocation2 + $0x1e8] sm:$0xff]
      %v958 = vld [vmem:[#allocation2 + $0x1f0] sm:$0xff]
      %v959 = vld [vmem:[#allocation2 + $0x1f8] sm:$0xff]
      %v960 = vld [vmem:[%s4] sm:$0x1]
      %v962 = vlaneseq
      %v963 = vshrl.u32 %v962, 7
      %v964 = vsub.s32 0, %v963
      %v965 = vrot.slane %v960, %v964
      %v967 = vadd.f32 %v896, %v965
      %v968 = vadd.f32 %v897, %v965
      %v969 = vadd.f32 %v898, %v965
      %v970 = vadd.f32 %v899, %v965
      %v971 = vadd.f32 %v900, %v965
      %v972 = vadd.f32 %v901, %v965
      %v973 = vadd.f32 %v902, %v965
      %v974 = vadd.f32 %v903, %v965
      %v975 = vadd.f32 %v904, %v965
      %v976 = vadd.f32 %v905, %v965
      %v977 = vadd.f32 %v906, %v965
      %v978 = vadd.f32 %v907, %v965
      %v979 = vadd.f32 %v908, %v965
      %v980 = vadd.f32 %v909, %v965
      %v981 = vadd.f32 %v910, %v965
      %v982 = vadd.f32 %v911, %v965
      %v983 = vadd.f32 %v912, %v965
      %v984 = vadd.f32 %v913, %v965
      %v985 = vadd.f32 %v914, %v965
      %v986 = vadd.f32 %v915, %v965
      %v987 = vadd.f32 %v916, %v965
      %v988 = vadd.f32 %v917, %v965
      %v989 = vadd.f32 %v918, %v965
      %v990 = vadd.f32 %v919, %v965
      %v991 = vadd.f32 %v920, %v965
      %v992 = vadd.f32 %v921, %v965
      %v993 = vadd.f32 %v922, %v965
      %v994 = vadd.f32 %v923, %v965
      %v995 = vadd.f32 %v924, %v965
      %v996 = vadd.f32 %v925, %v965
      %v997 = vadd.f32 %v926, %v965
      %v998 = vadd.f32 %v927, %v965
      %v999 = vadd.f32 %v928, %v965
      %v1000 = vadd.f32 %v929, %v965
      %v1001 = vadd.f32 %v930, %v965
      %v1002 = vadd.f32 %v931, %v965
      %v1003 = vadd.f32 %v932, %v965
      %v1004 = vadd.f32 %v933, %v965
      %v1005 = vadd.f32 %v934, %v965
      %v1006 = vadd.f32 %v935, %v965
      %v1007 = vadd.f32 %v936, %v965
      %v1008 = vadd.f32 %v937, %v965
      %v1009 = vadd.f32 %v938, %v965
      %v1010 = vadd.f32 %v939, %v965
      %v1011 = vadd.f32 %v940, %v965
      %v1012 = vadd.f32 %v941, %v965
      %v1013 = vadd.f32 %v942, %v965
      %v1014 = vadd.f32 %v943, %v965
      %v1015 = vadd.f32 %v944, %v965
      %v1016 = vadd.f32 %v945, %v965
      %v1017 = vadd.f32 %v946, %v965
      %v1018 = vadd.f32 %v947, %v965
      %v1019 = vadd.f32 %v948, %v965
      %v1020 = vadd.f32 %v949, %v965
      %v1021 = vadd.f32 %v950, %v965
      %v1022 = vadd.f32 %v951, %v965
      %v1023 = vadd.f32 %v952, %v965
      %v1024 = vadd.f32 %v953, %v965
      %v1025 = vadd.f32 %v954, %v965
      %v1026 = vadd.f32 %v955, %v965
      %v1027 = vadd.f32 %v956, %v965
      %v1028 = vadd.f32 %v957, %v965
      %v1029 = vadd.f32 %v958, %v965
      %v1030 = vadd.f32 %v959, %v965
      %1031 = vst [vmem:[#allocation3] sm:$0xff] 0.0
      %vm1032 = vcmp.ge.f32.partialorder %v967, 0.0
      %vm1033 = vcmp.ge.f32.partialorder %v968, 0.0
      %vm1034 = vcmp.ge.f32.partialorder %v969, 0.0
      %vm1035 = vcmp.ge.f32.partialorder %v970, 0.0
      %vm1036 = vcmp.ge.f32.partialorder %v971, 0.0
      %vm1037 = vcmp.ge.f32.partialorder %v972, 0.0
      %vm1038 = vcmp.ge.f32.partialorder %v973, 0.0
      %vm1039 = vcmp.ge.f32.partialorder %v974, 0.0
      %vm1040 = vcmp.ge.f32.partialorder %v975, 0.0
      %vm1041 = vcmp.ge.f32.partialorder %v976, 0.0
      %vm1042 = vcmp.ge.f32.partialorder %v977, 0.0
      %vm1043 = vcmp.ge.f32.partialorder %v978, 0.0
      %vm1044 = vcmp.ge.f32.partialorder %v979, 0.0
      %vm1045 = vcmp.ge.f32.partialorder %v980, 0.0
      %vm1046 = vcmp.ge.f32.partialorder %v981, 0.0
      %vm1047 = vcmp.ge.f32.partialorder %v982, 0.0
      %vm1048 = vcmp.ge.f32.partialorder %v983, 0.0
      %vm1049 = vcmp.ge.f32.partialorder %v984, 0.0
      %vm1050 = vcmp.ge.f32.partialorder %v985, 0.0
      %vm1051 = vcmp.ge.f32.partialorder %v986, 0.0
      %vm1052 = vcmp.ge.f32.partialorder %v987, 0.0
      %vm1053 = vcmp.ge.f32.partialorder %v988, 0.0
      %vm1054 = vcmp.ge.f32.partialorder %v989, 0.0
      %vm1055 = vcmp.ge.f32.partialorder %v990, 0.0
      %vm1056 = vcmp.ge.f32.partialorder %v991, 0.0
      %vm1057 = vcmp.ge.f32.partialorder %v992, 0.0
      %vm1058 = vcmp.ge.f32.partialorder %v993, 0.0
      %vm1059 = vcmp.ge.f32.partialorder %v994, 0.0
      %vm1060 = vcmp.ge.f32.partialorder %v995, 0.0
      %vm1061 = vcmp.ge.f32.partialorder %v996, 0.0
      %vm1062 = vcmp.ge.f32.partialorder %v997, 0.0
      %vm1063 = vcmp.ge.f32.partialorder %v998, 0.0
      %vm1064 = vcmp.ge.f32.partialorder %v999, 0.0
      %vm1065 = vcmp.ge.f32.partialorder %v1000, 0.0
      %vm1066 = vcmp.ge.f32.partialorder %v1001, 0.0
      %vm1067 = vcmp.ge.f32.partialorder %v1002, 0.0
      %vm1068 = vcmp.ge.f32.partialorder %v1003, 0.0
      %vm1069 = vcmp.ge.f32.partialorder %v1004, 0.0
      %vm1070 = vcmp.ge.f32.partialorder %v1005, 0.0
      %vm1071 = vcmp.ge.f32.partialorder %v1006, 0.0
      %vm1072 = vcmp.ge.f32.partialorder %v1007, 0.0
      %vm1073 = vcmp.ge.f32.partialorder %v1008, 0.0
      %vm1074 = vcmp.ge.f32.partialorder %v1009, 0.0
      %vm1075 = vcmp.ge.f32.partialorder %v1010, 0.0
      %vm1076 = vcmp.ge.f32.partialorder %v1011, 0.0
      %vm1077 = vcmp.ge.f32.partialorder %v1012, 0.0
      %vm1078 = vcmp.ge.f32.partialorder %v1013, 0.0
      %vm1079 = vcmp.ge.f32.partialorder %v1014, 0.0
      %vm1080 = vcmp.ge.f32.partialorder %v1015, 0.0
      %vm1081 = vcmp.ge.f32.partialorder %v1016, 0.0
      %vm1082 = vcmp.ge.f32.partialorder %v1017, 0.0
      %vm1083 = vcmp.ge.f32.partialorder %v1018, 0.0
      %vm1084 = vcmp.ge.f32.partialorder %v1019, 0.0
      %vm1085 = vcmp.ge.f32.partialorder %v1020, 0.0
      %vm1086 = vcmp.ge.f32.partialorder %v1021, 0.0
      %vm1087 = vcmp.ge.f32.partialorder %v1022, 0.0
      %vm1088 = vcmp.ge.f32.partialorder %v1023, 0.0
      %vm1089 = vcmp.ge.f32.partialorder %v1024, 0.0
      %vm1090 = vcmp.ge.f32.partialorder %v1025, 0.0
      %vm1091 = vcmp.ge.f32.partialorder %v1026, 0.0
      %vm1092 = vcmp.ge.f32.partialorder %v1027, 0.0
      %vm1093 = vcmp.ge.f32.partialorder %v1028, 0.0
      %vm1094 = vcmp.ge.f32.partialorder %v1029, 0.0
      %vm1095 = vcmp.ge.f32.partialorder %v1030, 0.0
      %v1096 = vmul.f32 %v967, 0.2
      %v1097 = vmul.f32 %v968, 0.2
      %v1098 = vmul.f32 %v969, 0.2
      %v1099 = vmul.f32 %v970, 0.2
      %v1100 = vmul.f32 %v971, 0.2
      %v1101 = vmul.f32 %v972, 0.2
      %v1102 = vmul.f32 %v973, 0.2
      %v1103 = vmul.f32 %v974, 0.2
      %v1104 = vmul.f32 %v975, 0.2
      %v1105 = vmul.f32 %v976, 0.2
      %v1106 = vmul.f32 %v977, 0.2
      %v1107 = vmul.f32 %v978, 0.2
      %v1108 = vmul.f32 %v979, 0.2
      %v1109 = vmul.f32 %v980, 0.2
      %v1110 = vmul.f32 %v981, 0.2
      %v1111 = vmul.f32 %v982, 0.2
      %v1112 = vmul.f32 %v983, 0.2
      %v1113 = vmul.f32 %v984, 0.2
      %v1114 = vmul.f32 %v985, 0.2
      %v1115 = vmul.f32 %v986, 0.2
      %v1116 = vmul.f32 %v987, 0.2
      %v1117 = vmul.f32 %v988, 0.2
      %v1118 = vmul.f32 %v989, 0.2
      %v1119 = vmul.f32 %v990, 0.2
      %v1120 = vmul.f32 %v991, 0.2
      %v1121 = vmul.f32 %v992, 0.2
      %v1122 = vmul.f32 %v993, 0.2
      %v1123 = vmul.f32 %v994, 0.2
      %v1124 = vmul.f32 %v995, 0.2
      %v1125 = vmul.f32 %v996, 0.2
      %v1126 = vmul.f32 %v997, 0.2
      %v1127 = vmul.f32 %v998, 0.2
      %v1128 = vmul.f32 %v999, 0.2
      %v1129 = vmul.f32 %v1000, 0.2
      %v1130 = vmul.f32 %v1001, 0.2
      %v1131 = vmul.f32 %v1002, 0.2
      %v1132 = vmul.f32 %v1003, 0.2
      %v1133 = vmul.f32 %v1004, 0.2
      %v1134 = vmul.f32 %v1005, 0.2
      %v1135 = vmul.f32 %v1006, 0.2
      %v1136 = vmul.f32 %v1007, 0.2
      %v1137 = vmul.f32 %v1008, 0.2
      %v1138 = vmul.f32 %v1009, 0.2
      %v1139 = vmul.f32 %v1010, 0.2
      %v1140 = vmul.f32 %v1011, 0.2
      %v1141 = vmul.f32 %v1012, 0.2
      %v1142 = vmul.f32 %v1013, 0.2
      %v1143 = vmul.f32 %v1014, 0.2
      %v1144 = vmul.f32 %v1015, 0.2
      %v1145 = vmul.f32 %v1016, 0.2
      %v1146 = vmul.f32 %v1017, 0.2
      %v1147 = vmul.f32 %v1018, 0.2
      %v1148 = vmul.f32 %v1019, 0.2
      %v1149 = vmul.f32 %v1020, 0.2
      %v1150 = vmul.f32 %v1021, 0.2
      %v1151 = vmul.f32 %v1022, 0.2
      %v1152 = vmul.f32 %v1023, 0.2
      %v1153 = vmul.f32 %v1024, 0.2
      %v1154 = vmul.f32 %v1025, 0.2
      %v1155 = vmul.f32 %v1026, 0.2
      %v1156 = vmul.f32 %v1027, 0.2
      %v1157 = vmul.f32 %v1028, 0.2
      %v1158 = vmul.f32 %v1029, 0.2
      %v1159 = vmul.f32 %v1030, 0.2
      %v1160 = vsel %vm1032, %v967, %v1096
      %v1161 = vsel %vm1033, %v968, %v1097
      %v1162 = vsel %vm1034, %v969, %v1098
      %v1163 = vsel %vm1035, %v970, %v1099
      %v1164 = vsel %vm1036, %v971, %v1100
      %v1165 = vsel %vm1037, %v972, %v1101
      %v1166 = vsel %vm1038, %v973, %v1102
      %v1167 = vsel %vm1039, %v974, %v1103
      %v1168 = vsel %vm1040, %v975, %v1104
      %v1169 = vsel %vm1041, %v976, %v1105
      %v1170 = vsel %vm1042, %v977, %v1106
      %v1171 = vsel %vm1043, %v978, %v1107
      %v1172 = vsel %vm1044, %v979, %v1108
      %v1173 = vsel %vm1045, %v980, %v1109
      %v1174 = vsel %vm1046, %v981, %v1110
      %v1175 = vsel %vm1047, %v982, %v1111
      %v1176 = vsel %vm1048, %v983, %v1112
      %v1177 = vsel %vm1049, %v984, %v1113
      %v1178 = vsel %vm1050, %v985, %v1114
      %v1179 = vsel %vm1051, %v986, %v1115
      %v1180 = vsel %vm1052, %v987, %v1116
      %v1181 = vsel %vm1053, %v988, %v1117
      %v1182 = vsel %vm1054, %v989, %v1118
      %v1183 = vsel %vm1055, %v990, %v1119
      %v1184 = vsel %vm1056, %v991, %v1120
      %v1185 = vsel %vm1057, %v992, %v1121
      %v1186 = vsel %vm1058, %v993, %v1122
      %v1187 = vsel %vm1059, %v994, %v1123
      %v1188 = vsel %vm1060, %v995, %v1124
      %v1189 = vsel %vm1061, %v996, %v1125
      %v1190 = vsel %vm1062, %v997, %v1126
      %v1191 = vsel %vm1063, %v998, %v1127
      %v1192 = vsel %vm1064, %v999, %v1128
      %v1193 = vsel %vm1065, %v1000, %v1129
      %v1194 = vsel %vm1066, %v1001, %v1130
      %v1195 = vsel %vm1067, %v1002, %v1131
      %v1196 = vsel %vm1068, %v1003, %v1132
      %v1197 = vsel %vm1069, %v1004, %v1133
      %v1198 = vsel %vm1070, %v1005, %v1134
      %v1199 = vsel %vm1071, %v1006, %v1135
      %v1200 = vsel %vm1072, %v1007, %v1136
      %v1201 = vsel %vm1073, %v1008, %v1137
      %v1202 = vsel %vm1074, %v1009, %v1138
      %v1203 = vsel %vm1075, %v1010, %v1139
      %v1204 = vsel %vm1076, %v1011, %v1140
      %v1205 = vsel %vm1077, %v1012, %v1141
      %v1206 = vsel %vm1078, %v1013, %v1142
      %v1207 = vsel %vm1079, %v1014, %v1143
      %v1208 = vsel %vm1080, %v1015, %v1144
      %v1209 = vsel %vm1081, %v1016, %v1145
      %v1210 = vsel %vm1082, %v1017, %v1146
      %v1211 = vsel %vm1083, %v1018, %v1147
      %v1212 = vsel %vm1084, %v1019, %v1148
      %v1213 = vsel %vm1085, %v1020, %v1149
      %v1214 = vsel %vm1086, %v1021, %v1150
      %v1215 = vsel %vm1087, %v1022, %v1151
      %v1216 = vsel %vm1088, %v1023, %v1152
      %v1217 = vsel %vm1089, %v1024, %v1153
      %v1218 = vsel %vm1090, %v1025, %v1154
      %v1219 = vsel %vm1091, %v1026, %v1155
      %v1220 = vsel %vm1092, %v1027, %v1156
      %v1221 = vsel %vm1093, %v1028, %v1157
      %v1222 = vsel %vm1094, %v1029, %v1158
      %v1223 = vsel %vm1095, %v1030, %v1159
      %v1224 = vpack.c.bf16 %v1161, %v1160
      %v1225 = vpack.c.bf16 %v1163, %v1162
      %v1226 = vpack.c.bf16 %v1165, %v1164
      %v1227 = vpack.c.bf16 %v1167, %v1166
      %v1228 = vpack.c.bf16 %v1169, %v1168
      %v1229 = vpack.c.bf16 %v1171, %v1170
      %v1230 = vpack.c.bf16 %v1173, %v1172
      %v1231 = vpack.c.bf16 %v1175, %v1174
      %v1232 = vpack.c.bf16 %v1177, %v1176
      %v1233 = vpack.c.bf16 %v1179, %v1178
      %v1234 = vpack.c.bf16 %v1181, %v1180
      %v1235 = vpack.c.bf16 %v1183, %v1182
      %v1236 = vpack.c.bf16 %v1185, %v1184
      %v1237 = vpack.c.bf16 %v1187, %v1186
      %v1238 = vpack.c.bf16 %v1189, %v1188
      %v1239 = vpack.c.bf16 %v1191, %v1190
      %v1240 = vpack.c.bf16 %v1193, %v1192
      %v1241 = vpack.c.bf16 %v1195, %v1194
      %v1242 = vpack.c.bf16 %v1197, %v1196
      %v1243 = vpack.c.bf16 %v1199, %v1198
      %v1244 = vpack.c.bf16 %v1201, %v1200
      %v1245 = vpack.c.bf16 %v1203, %v1202
      %v1246 = vpack.c.bf16 %v1205, %v1204
      %v1247 = vpack.c.bf16 %v1207, %v1206
      %v1248 = vpack.c.bf16 %v1209, %v1208
      %v1249 = vpack.c.bf16 %v1211, %v1210
      %v1250 = vpack.c.bf16 %v1213, %v1212
      %v1251 = vpack.c.bf16 %v1215, %v1214
      %v1252 = vpack.c.bf16 %v1217, %v1216
      %v1253 = vpack.c.bf16 %v1219, %v1218
      %v1254 = vpack.c.bf16 %v1221, %v1220
      %v1255 = vpack.c.bf16 %v1223, %v1222
      %v1288 = vunpack.c.l.b16 %v1224
      %v1289 = vunpack.c.h.b16 %v1224
      %v1290 = vunpack.c.l.b16 %v1225
      %v1291 = vunpack.c.h.b16 %v1225
      %v1292 = vunpack.c.l.b16 %v1226
      %v1293 = vunpack.c.h.b16 %v1226
      %v1294 = vunpack.c.l.b16 %v1227
      %v1295 = vunpack.c.h.b16 %v1227
      %v1296 = vunpack.c.l.b16 %v1228
      %v1297 = vunpack.c.h.b16 %v1228
      %v1298 = vunpack.c.l.b16 %v1229
      %v1299 = vunpack.c.h.b16 %v1229
      %v1300 = vunpack.c.l.b16 %v1230
      %v1301 = vunpack.c.h.b16 %v1230
      %v1302 = vunpack.c.l.b16 %v1231
      %v1303 = vunpack.c.h.b16 %v1231
      %v1304 = vunpack.c.l.b16 %v1232
      %v1305 = vunpack.c.h.b16 %v1232
      %v1306 = vunpack.c.l.b16 %v1233
      %v1307 = vunpack.c.h.b16 %v1233
      %v1308 = vunpack.c.l.b16 %v1234
      %v1309 = vunpack.c.h.b16 %v1234
      %v1310 = vunpack.c.l.b16 %v1235
      %v1311 = vunpack.c.h.b16 %v1235
      %v1312 = vunpack.c.l.b16 %v1236
      %v1313 = vunpack.c.h.b16 %v1236
      %v1314 = vunpack.c.l.b16 %v1237
      %v1315 = vunpack.c.h.b16 %v1237
      %v1316 = vunpack.c.l.b16 %v1238
      %v1317 = vunpack.c.h.b16 %v1238
      %v1318 = vunpack.c.l.b16 %v1239
      %v1319 = vunpack.c.h.b16 %v1239
      %v1320 = vunpack.c.l.b16 %v1240
      %v1321 = vunpack.c.h.b16 %v1240
      %v1322 = vunpack.c.l.b16 %v1241
      %v1323 = vunpack.c.h.b16 %v1241
      %v1324 = vunpack.c.l.b16 %v1242
      %v1325 = vunpack.c.h.b16 %v1242
      %v1326 = vunpack.c.l.b16 %v1243
      %v1327 = vunpack.c.h.b16 %v1243
      %v1328 = vunpack.c.l.b16 %v1244
      %v1329 = vunpack.c.h.b16 %v1244
      %v1330 = vunpack.c.l.b16 %v1245
      %v1331 = vunpack.c.h.b16 %v1245
      %v1332 = vunpack.c.l.b16 %v1246
      %v1333 = vunpack.c.h.b16 %v1246
      %v1334 = vunpack.c.l.b16 %v1247
      %v1335 = vunpack.c.h.b16 %v1247
      %v1336 = vunpack.c.l.b16 %v1248
      %v1337 = vunpack.c.h.b16 %v1248
      %v1338 = vunpack.c.l.b16 %v1249
      %v1339 = vunpack.c.h.b16 %v1249
      %v1340 = vunpack.c.l.b16 %v1250
      %v1341 = vunpack.c.h.b16 %v1250
      %v1342 = vunpack.c.l.b16 %v1251
      %v1343 = vunpack.c.h.b16 %v1251
      %v1344 = vunpack.c.l.b16 %v1252
      %v1345 = vunpack.c.h.b16 %v1252
      %v1346 = vunpack.c.l.b16 %v1253
      %v1347 = vunpack.c.h.b16 %v1253
      %v1348 = vunpack.c.l.b16 %v1254
      %v1349 = vunpack.c.h.b16 %v1254
      %v1350 = vunpack.c.l.b16 %v1255
      %v1351 = vunpack.c.h.b16 %v1255
      %v1352 = vpack.c.b16 %v1288, %v1288
      %v1353 = vpack.c.b16 %v1289, %v1289
      %v1354 = vpack.c.b16 %v1290, %v1290
      %v1355 = vpack.c.b16 %v1291, %v1291
      %v1356 = vpack.c.b16 %v1292, %v1292
      %v1357 = vpack.c.b16 %v1293, %v1293
      %v1358 = vpack.c.b16 %v1294, %v1294
      %v1359 = vpack.c.b16 %v1295, %v1295
      %v1360 = vpack.c.b16 %v1296, %v1296
      %v1361 = vpack.c.b16 %v1297, %v1297
      %v1362 = vpack.c.b16 %v1298, %v1298
      %v1363 = vpack.c.b16 %v1299, %v1299
      %v1364 = vpack.c.b16 %v1300, %v1300
      %v1365 = vpack.c.b16 %v1301, %v1301
      %v1366 = vpack.c.b16 %v1302, %v1302
      %v1367 = vpack.c.b16 %v1303, %v1303
      %v1368 = vpack.c.b16 %v1304, %v1304
      %v1369 = vpack.c.b16 %v1305, %v1305
      %v1370 = vpack.c.b16 %v1306, %v1306
      %v1371 = vpack.c.b16 %v1307, %v1307
      %v1372 = vpack.c.b16 %v1308, %v1308
      %v1373 = vpack.c.b16 %v1309, %v1309
      %v1374 = vpack.c.b16 %v1310, %v1310
      %v1375 = vpack.c.b16 %v1311, %v1311
      %v1376 = vpack.c.b16 %v1312, %v1312
      %v1377 = vpack.c.b16 %v1313, %v1313
      %v1378 = vpack.c.b16 %v1314, %v1314
      %v1379 = vpack.c.b16 %v1315, %v1315
      %v1380 = vpack.c.b16 %v1316, %v1316
      %v1381 = vpack.c.b16 %v1317, %v1317
      %v1382 = vpack.c.b16 %v1318, %v1318
      %v1383 = vpack.c.b16 %v1319, %v1319
      %v1384 = vpack.c.b16 %v1320, %v1320
      %v1385 = vpack.c.b16 %v1321, %v1321
      %v1386 = vpack.c.b16 %v1322, %v1322
      %v1387 = vpack.c.b16 %v1323, %v1323
      %v1388 = vpack.c.b16 %v1324, %v1324
      %v1389 = vpack.c.b16 %v1325, %v1325
      %v1390 = vpack.c.b16 %v1326, %v1326
      %v1391 = vpack.c.b16 %v1327, %v1327
      %v1392 = vpack.c.b16 %v1328, %v1328
      %v1393 = vpack.c.b16 %v1329, %v1329
      %v1394 = vpack.c.b16 %v1330, %v1330
      %v1395 = vpack.c.b16 %v1331, %v1331
      %v1396 = vpack.c.b16 %v1332, %v1332
      %v1397 = vpack.c.b16 %v1333, %v1333
      %v1398 = vpack.c.b16 %v1334, %v1334
      %v1399 = vpack.c.b16 %v1335, %v1335
      %v1400 = vpack.c.b16 %v1336, %v1336
      %v1401 = vpack.c.b16 %v1337, %v1337
      %v1402 = vpack.c.b16 %v1338, %v1338
      %v1403 = vpack.c.b16 %v1339, %v1339
      %v1404 = vpack.c.b16 %v1340, %v1340
      %v1405 = vpack.c.b16 %v1341, %v1341
      %v1406 = vpack.c.b16 %v1342, %v1342
      %v1407 = vpack.c.b16 %v1343, %v1343
      %v1408 = vpack.c.b16 %v1344, %v1344
      %v1409 = vpack.c.b16 %v1345, %v1345
      %v1410 = vpack.c.b16 %v1346, %v1346
      %v1411 = vpack.c.b16 %v1347, %v1347
      %v1412 = vpack.c.b16 %v1348, %v1348
      %v1413 = vpack.c.b16 %v1349, %v1349
      %v1414 = vpack.c.b16 %v1350, %v1350
      %v1415 = vpack.c.b16 %v1351, %v1351
      %1480 = vst [vmem:[%s5] sm:$0xf] %v1352
      %1481 = vst [vmem:[%s5 + $0x4] sm:$0xf] %v1353
      %1482 = vst [vmem:[%s5 + $0x8] sm:$0xf] %v1354
      %1483 = vst [vmem:[%s5 + $0xc] sm:$0xf] %v1355
      %1484 = vst [vmem:[%s5 + $0x10] sm:$0xf] %v1356
      %1485 = vst [vmem:[%s5 + $0x14] sm:$0xf] %v1357
      %1486 = vst [vmem:[%s5 + $0x18] sm:$0xf] %v1358
      %1487 = vst [vmem:[%s5 + $0x1c] sm:$0xf] %v1359
      %1488 = vst [vmem:[%s5 + $0x20] sm:$0xf] %v1360
      %1489 = vst [vmem:[%s5 + $0x24] sm:$0xf] %v1361
      %1490 = vst [vmem:[%s5 + $0x28] sm:$0xf] %v1362
      %1491 = vst [vmem:[%s5 + $0x2c] sm:$0xf] %v1363
      %1492 = vst [vmem:[%s5 + $0x30] sm:$0xf] %v1364
      %1493 = vst [vmem:[%s5 + $0x34] sm:$0xf] %v1365
      %1494 = vst [vmem:[%s5 + $0x38] sm:$0xf] %v1366
      %1495 = vst [vmem:[%s5 + $0x3c] sm:$0xf] %v1367
      %1496 = vst [vmem:[%s5 + $0x40] sm:$0xf] %v1368
      %1497 = vst [vmem:[%s5 + $0x44] sm:$0xf] %v1369
      %1498 = vst [vmem:[%s5 + $0x48] sm:$0xf] %v1370
      %1499 = vst [vmem:[%s5 + $0x4c] sm:$0xf] %v1371
      %1500 = vst [vmem:[%s5 + $0x50] sm:$0xf] %v1372
      %1501 = vst [vmem:[%s5 + $0x54] sm:$0xf] %v1373
      %1502 = vst [vmem:[%s5 + $0x58] sm:$0xf] %v1374
      %1503 = vst [vmem:[%s5 + $0x5c] sm:$0xf] %v1375
      %1504 = vst [vmem:[%s5 + $0x60] sm:$0xf] %v1376
      %1505 = vst [vmem:[%s5 + $0x64] sm:$0xf] %v1377
      %1506 = vst [vmem:[%s5 + $0x68] sm:$0xf] %v1378
      %1507 = vst [vmem:[%s5 + $0x6c] sm:$0xf] %v1379
      %1508 = vst [vmem:[%s5 + $0x70] sm:$0xf] %v1380
      %1509 = vst [vmem:[%s5 + $0x74] sm:$0xf] %v1381
      %1510 = vst [vmem:[%s5 + $0x78] sm:$0xf] %v1382
      %1511 = vst [vmem:[%s5 + $0x7c] sm:$0xf] %v1383
      %1512 = vst [vmem:[%s5 + $0x80] sm:$0xf] %v1384
      %1513 = vst [vmem:[%s5 + $0x84] sm:$0xf] %v1385
      %1514 = vst [vmem:[%s5 + $0x88] sm:$0xf] %v1386
      %1515 = vst [vmem:[%s5 + $0x8c] sm:$0xf] %v1387
      %1516 = vst [vmem:[%s5 + $0x90] sm:$0xf] %v1388
      %1517 = vst [vmem:[%s5 + $0x94] sm:$0xf] %v1389
      %1518 = vst [vmem:[%s5 + $0x98] sm:$0xf] %v1390
      %1519 = vst [vmem:[%s5 + $0x9c] sm:$0xf] %v1391
      %1520 = vst [vmem:[%s5 + $0xa0] sm:$0xf] %v1392
      %1521 = vst [vmem:[%s5 + $0xa4] sm:$0xf] %v1393
      %1522 = vst [vmem:[%s5 + $0xa8] sm:$0xf] %v1394
      %1523 = vst [vmem:[%s5 + $0xac] sm:$0xf] %v1395
      %1524 = vst [vmem:[%s5 + $0xb0] sm:$0xf] %v1396
      %1525 = vst [vmem:[%s5 + $0xb4] sm:$0xf] %v1397
      %1526 = vst [vmem:[%s5 + $0xb8] sm:$0xf] %v1398
      %1527 = vst [vmem:[%s5 + $0xbc] sm:$0xf] %v1399
      %1528 = vst [vmem:[%s5 + $0xc0] sm:$0xf] %v1400
      %1529 = vst [vmem:[%s5 + $0xc4] sm:$0xf] %v1401
      %1530 = vst [vmem:[%s5 + $0xc8] sm:$0xf] %v1402
      %1531 = vst [vmem:[%s5 + $0xcc] sm:$0xf] %v1403
      %1532 = vst [vmem:[%s5 + $0xd0] sm:$0xf] %v1404
      %1533 = vst [vmem:[%s5 + $0xd4] sm:$0xf] %v1405
      %1534 = vst [vmem:[%s5 + $0xd8] sm:$0xf] %v1406
      %1535 = vst [vmem:[%s5 + $0xdc] sm:$0xf] %v1407
      %1536 = vst [vmem:[%s5 + $0xe0] sm:$0xf] %v1408
      %1537 = vst [vmem:[%s5 + $0xe4] sm:$0xf] %v1409
      %1538 = vst [vmem:[%s5 + $0xe8] sm:$0xf] %v1410
      %1539 = vst [vmem:[%s5 + $0xec] sm:$0xf] %v1411
      %1540 = vst [vmem:[%s5 + $0xf0] sm:$0xf] %v1412
      %1541 = vst [vmem:[%s5 + $0xf4] sm:$0xf] %v1413
      %1542 = vst [vmem:[%s5 + $0xf8] sm:$0xf] %v1414
      %1543 = vst [vmem:[%s5 + $0xfc] sm:$0xf] %v1415
    $region29: #{_lambda_.5} parent=1 // pred_fallthru
      _
    // Predicated region
    $region30: #{_lambda_.5} parent=1 // pred_check
      _
    $region31: #{_lambda_.5} parent=1 // pred_check_branch
      %1545 = sbr.rel (0) target = $region33
    $region32: #{_lambda_.5} parent=1 // pred_region
      _
    $region33: #{_lambda_.5} parent=1 // pred_fallthru
      _
    // Predicated region
    $region34: #{_lambda_.5} parent=1 // pred_check
      _
    $region35: #{_lambda_.5} parent=1 // pred_check_branch
      %1547 = sbr.rel (0) target = $region37
    $region36: #{_lambda_.5} parent=1 // pred_region
      %s1549 = ssub.s32 128, 128
      %1550 = vsyncadd [#allocation4], %s1549
      %s1552 = sshll.u32 [#allocation3], 4
      %s1553 = int_to_ptr.vmem [resolvable:$true] %s1552
      %1555 = dma.vmem_to_hbm [thread:$0]  %s1553, 128, %s6, [#allocation4]
    $region37: #{_lambda_.5} parent=1 // pred_fallthru
      _
    // Predicated region
    $region38: #{_lambda_.5} parent=1 // pred_check
      _
    $region39: #{_lambda_.5} parent=1 // pred_check_branch
      %1557 = sbr.rel (0) target = $region41
    $region40: #{_lambda_.5} parent=1 // pred_region
      _
    $region41: #{_lambda_.5} parent=1 // pred_fallthru
      _
    // Predicated region
    $region42: #{_lambda_.5} parent=1 // pred_check
      _
    $region43: #{_lambda_.5} parent=1 // pred_check_branch
      %1559 = sbr.rel (0) target = $region45
    $region44: #{_lambda_.5} parent=1 // pred_region
      %1560 = dma.done [#allocation4], 128
    $region45: #{_lambda_.5} parent=1 // pred_fallthru
      _
    %1561 = vsyncpa [#allocation4], 1

// kernel: _lambda_.6
$region0: #{_lambda_.6}
  #allocation0 [shape = 'u32[]', space=smem, size = 0x4, offset = 0x4, fixed_abs, tag = 'smem constant byte address 0x4 - core index']
  #allocation1 [shape = 'u32[144,128]{1,0:T(1,128)}', space=vmem, size = 0x12000, scoped, tag = 'internal scratch']
  #allocation2 [shape = 'f32[128,128]{1,0:T(8,128)}', space=vmem, size = 0x10000, scoped, tag = 'scratch operand']
  %s0 = inlined_call_operand.vmem [shape: bf16[128,256], index: 0, kind: input, shape index: {}]
  %s1 = inlined_call_operand.vmem [shape: bf16[256,128], index: 1, kind: input, shape index: {}]
  %s2 = inlined_call_operand.vmem [shape: f32[1,256], index: 2, kind: input, shape index: {}]
  %s3 = inlined_call_operand.vmem [shape: f32[1,256], index: 3, kind: input, shape index: {}]
  %s4 = inlined_call_operand.vmem [shape: f32[1,128], index: 4, kind: input, shape index: {}]
  %s5 = inlined_call_operand.vmem [shape: bf16[128,128], index: 5, kind: output, shape index: {0}]
  %s6 = inlined_call_operand.vmem [shape: f32[8,128], index: 6, kind: output, shape index: {1}]
  %7 = xla_tuple %s5, %s6
  %s8 = sld [smem:[#allocation0]]
  $region46: #{_lambda_.6} parent=0
    _
  %s10 = ssub.s32 1, %s8
  %s11 = scalar_select 0, %s10, %s8
  // Predicated region
  $region2: #{_lambda_.6} parent=0 // pred_check
    _
  $region3: #{_lambda_.6} parent=0 // pred_check_branch
    %13 = sbr.rel (0) target = $region5
  $region4: #{_lambda_.6} parent=0 // pred_region
    _
  $region5: #{_lambda_.6} parent=0 // pred_fallthru
    _
  // Predicated region
  $region6: #{_lambda_.6} parent=0 // pred_check
    _
  $region7: #{_lambda_.6} parent=0 // pred_check_branch
    %15 = sbr.rel (0) target = $region9
  $region8: #{_lambda_.6} parent=0 // pred_region
    _
  $region9: #{_lambda_.6} parent=0 // pred_fallthru
    _
  // Predicated region
  $region10: #{_lambda_.6} parent=0 // pred_check
    _
  $region11: #{_lambda_.6} parent=0 // pred_check_branch
    %17 = sbr.rel (0) target = $region13
  $region12: #{_lambda_.6} parent=0 // pred_region
    _
  $region13: #{_lambda_.6} parent=0 // pred_fallthru
    _
  // Predicated region
  $region14: #{_lambda_.6} parent=0 // pred_check
    _
  $region15: #{_lambda_.6} parent=0 // pred_check_branch
    %19 = sbr.rel (0) target = $region17
  $region16: #{_lambda_.6} parent=0 // pred_region
    _
  $region17: #{_lambda_.6} parent=0 // pred_fallthru
    _
  // Predicated region
  $region18: #{_lambda_.6} parent=0 // pred_check
    _
  $region19: #{_lambda_.6} parent=0 // pred_check_branch
    %21 = sbr.rel (0) target = $region21
  $region20: #{_lambda_.6} parent=0 // pred_region
    _
  $region21: #{_lambda_.6} parent=0 // pred_fallthru
    _
  %p23 = scmp.eq.s32.totalorder 0, 0
  // Predicated region
  $region22: #{_lambda_.6} parent=0 // pred_check
    %p24 = pneg %p23
  $region23: #{_lambda_.6} parent=0 // pred_check_branch
    %26 = sbr.rel (%p24) target = $region25
  $region24: #{_lambda_.6} parent=0 // pred_region
    %27 = vst [vmem:[#allocation2] sm:$0xff] 0.0
    %28 = vst [vmem:[#allocation2 + $0x8] sm:$0xff] 0.0
    %29 = vst [vmem:[#allocation2 + $0x10] sm:$0xff] 0.0
    %30 = vst [vmem:[#allocation2 + $0x18] sm:$0xff] 0.0
    %31 = vst [vmem:[#allocation2 + $0x20] sm:$0xff] 0.0
    %32 = vst [vmem:[#allocation2 + $0x28] sm:$0xff] 0.0
    %33 = vst [vmem:[#allocation2 + $0x30] sm:$0xff] 0.0
    %34 = vst [vmem:[#allocation2 + $0x38] sm:$0xff] 0.0
    %35 = vst [vmem:[#allocation2 + $0x40] sm:$0xff] 0.0
    %36 = vst [vmem:[#allocation2 + $0x48] sm:$0xff] 0.0
    %37 = vst [vmem:[#allocation2 + $0x50] sm:$0xff] 0.0
    %38 = vst [vmem:[#allocation2 + $0x58] sm:$0xff] 0.0
    %39 = vst [vmem:[#allocation2 + $0x60] sm:$0xff] 0.0
    %40 = vst [vmem:[#allocation2 + $0x68] sm:$0xff] 0.0
    %41 = vst [vmem:[#allocation2 + $0x70] sm:$0xff] 0.0
    %42 = vst [vmem:[#allocation2 + $0x78] sm:$0xff] 0.0
  $region25: #{_lambda_.6} parent=0 // pred_fallthru
    _
  %v43 = vld [vmem:[%s0] sm:$0xff]
  %v44 = vld [vmem:[%s0 + $0x8] sm:$0xff]
  %v45 = vld [vmem:[%s0 + $0x10] sm:$0xff]
  %v46 = vld [vmem:[%s0 + $0x18] sm:$0xff]
  %v47 = vld [vmem:[%s0 + $0x20] sm:$0xff]
  %v48 = vld [vmem:[%s0 + $0x28] sm:$0xff]
  %v49 = vld [vmem:[%s0 + $0x30] sm:$0xff]
  %v50 = vld [vmem:[%s0 + $0x38] sm:$0xff]
  %v51 = vld [vmem:[%s0 + $0x40] sm:$0xff]
  %v52 = vld [vmem:[%s0 + $0x48] sm:$0xff]
  %v53 = vld [vmem:[%s0 + $0x50] sm:$0xff]
  %v54 = vld [vmem:[%s0 + $0x58] sm:$0xff]
  %v55 = vld [vmem:[%s0 + $0x60] sm:$0xff]
  %v56 = vld [vmem:[%s0 + $0x68] sm:$0xff]
  %v57 = vld [vmem:[%s0 + $0x70] sm:$0xff]
  %v58 = vld [vmem:[%s0 + $0x78] sm:$0xff]
  %v59 = vld [vmem:[#allocation2] sm:$0xff]
  %v60 = vld [vmem:[#allocation2 + $0x8] sm:$0xff]
  %v61 = vld [vmem:[#allocation2 + $0x10] sm:$0xff]
  %v62 = vld [vmem:[#allocation2 + $0x18] sm:$0xff]
  %v63 = vld [vmem:[#allocation2 + $0x20] sm:$0xff]
  %v64 = vld [vmem:[#allocation2 + $0x28] sm:$0xff]
  %v65 = vld [vmem:[#allocation2 + $0x30] sm:$0xff]
  %v66 = vld [vmem:[#allocation2 + $0x38] sm:$0xff]
  %v67 = vld [vmem:[#allocation2 + $0x40] sm:$0xff]
  %v68 = vld [vmem:[#allocation2 + $0x48] sm:$0xff]
  %v69 = vld [vmem:[#allocation2 + $0x50] sm:$0xff]
  %v70 = vld [vmem:[#allocation2 + $0x58] sm:$0xff]
  %v71 = vld [vmem:[#allocation2 + $0x60] sm:$0xff]
  %v72 = vld [vmem:[#allocation2 + $0x68] sm:$0xff]
  %v73 = vld [vmem:[#allocation2 + $0x70] sm:$0xff]
  %v74 = vld [vmem:[#allocation2 + $0x78] sm:$0xff]
  %v75 = vld [vmem:[%s1] sm:$0xf]
  %v76 = vld [vmem:[%s1 + $0x4] sm:$0xf]
  %v77 = vld [vmem:[%s1 + $0x8] sm:$0xf]
  %v78 = vld [vmem:[%s1 + $0xc] sm:$0xf]
  %v79 = vld [vmem:[%s1 + $0x10] sm:$0xf]
  %v80 = vld [vmem:[%s1 + $0x14] sm:$0xf]
  %v81 = vld [vmem:[%s1 + $0x18] sm:$0xf]
  %v82 = vld [vmem:[%s1 + $0x1c] sm:$0xf]
  %v83 = vld [vmem:[%s1 + $0x20] sm:$0xf]
  %v84 = vld [vmem:[%s1 + $0x24] sm:$0xf]
  %v85 = vld [vmem:[%s1 + $0x28] sm:$0xf]
  %v86 = vld [vmem:[%s1 + $0x2c] sm:$0xf]
  %v87 = vld [vmem:[%s1 + $0x30] sm:$0xf]
  %v88 = vld [vmem:[%s1 + $0x34] sm:$0xf]
  %v89 = vld [vmem:[%s1 + $0x38] sm:$0xf]
  %v90 = vld [vmem:[%s1 + $0x3c] sm:$0xf]
  %v91 = vld [vmem:[%s1 + $0x40] sm:$0xf]
  %v92 = vld [vmem:[%s1 + $0x44] sm:$0xf]
  %v93 = vld [vmem:[%s1 + $0x48] sm:$0xf]
  %v94 = vld [vmem:[%s1 + $0x4c] sm:$0xf]
  %v95 = vld [vmem:[%s1 + $0x50] sm:$0xf]
  %v96 = vld [vmem:[%s1 + $0x54] sm:$0xf]
  %v97 = vld [vmem:[%s1 + $0x58] sm:$0xf]
  %v98 = vld [vmem:[%s1 + $0x5c] sm:$0xf]
  %v99 = vld [vmem:[%s1 + $0x60] sm:$0xf]
  %v100 = vld [vmem:[%s1 + $0x64] sm:$0xf]
  %v101 = vld [vmem:[%s1 + $0x68] sm:$0xf]
  %v102 = vld [vmem:[%s1 + $0x6c] sm:$0xf]
  %v103 = vld [vmem:[%s1 + $0x70] sm:$0xf]
  %v104 = vld [vmem:[%s1 + $0x74] sm:$0xf]
  %v105 = vld [vmem:[%s1 + $0x78] sm:$0xf]
  %v106 = vld [vmem:[%s1 + $0x7c] sm:$0xf]
  %v123 = vunpack.c.l.b16 %v43
  %v124 = vunpack.c.h.b16 %v43
  %v125 = vunpack.c.l.b16 %v44
  %v126 = vunpack.c.h.b16 %v44
  %v127 = vunpack.c.l.b16 %v45
  %v128 = vunpack.c.h.b16 %v45
  %v129 = vunpack.c.l.b16 %v46
  %v130 = vunpack.c.h.b16 %v46
  %v131 = vunpack.c.l.b16 %v47
  %v132 = vunpack.c.h.b16 %v47
  %v133 = vunpack.c.l.b16 %v48
  %v134 = vunpack.c.h.b16 %v48
  %v135 = vunpack.c.l.b16 %v49
  %v136 = vunpack.c.h.b16 %v49
  %v137 = vunpack.c.l.b16 %v50
  %v138 = vunpack.c.h.b16 %v50
  %v139 = vunpack.c.l.b16 %v51
  %v140 = vunpack.c.h.b16 %v51
  %v141 = vunpack.c.l.b16 %v52
  %v142 = vunpack.c.h.b16 %v52
  %v143 = vunpack.c.l.b16 %v53
  %v144 = vunpack.c.h.b16 %v53
  %v145 = vunpack.c.l.b16 %v54
  %v146 = vunpack.c.h.b16 %v54
  %v147 = vunpack.c.l.b16 %v55
  %v148 = vunpack.c.h.b16 %v55
  %v149 = vunpack.c.l.b16 %v56
  %v150 = vunpack.c.h.b16 %v56
  %v151 = vunpack.c.l.b16 %v57
  %v152 = vunpack.c.h.b16 %v57
  %v153 = vunpack.c.l.b16 %v58
  %v154 = vunpack.c.h.b16 %v58
  %v155 = vpack.c.b16 %v125, %v123
  %v156 = vpack.c.b16 %v126, %v124
  %v157 = vpack.c.b16 %v129, %v127
  %v158 = vpack.c.b16 %v130, %v128
  %v159 = vpack.c.b16 %v133, %v131
  %v160 = vpack.c.b16 %v134, %v132
  %v161 = vpack.c.b16 %v137, %v135
  %v162 = vpack.c.b16 %v138, %v136
  %v163 = vpack.c.b16 %v141, %v139
  %v164 = vpack.c.b16 %v142, %v140
  %v165 = vpack.c.b16 %v145, %v143
  %v166 = vpack.c.b16 %v146, %v144
  %v167 = vpack.c.b16 %v149, %v147
  %v168 = vpack.c.b16 %v150, %v148
  %v169 = vpack.c.b16 %v153, %v151
  %v170 = vpack.c.b16 %v154, %v152
  %v219 = vunpack.c.l.b16 %v75
  %v220 = vunpack.c.l.b16 %v76
  %v221 = vunpack.c.l.b16 %v77
  %v222 = vunpack.c.l.b16 %v78
  %v223 = vunpack.c.l.b16 %v79
  %v224 = vunpack.c.l.b16 %v80
  %v225 = vunpack.c.l.b16 %v81
  %v226 = vunpack.c.l.b16 %v82
  %v227 = vunpack.c.l.b16 %v83
  %v228 = vunpack.c.l.b16 %v84
  %v229 = vunpack.c.l.b16 %v85
  %v230 = vunpack.c.l.b16 %v86
  %v231 = vunpack.c.l.b16 %v87
  %v232 = vunpack.c.l.b16 %v88
  %v233 = vunpack.c.l.b16 %v89
  %v234 = vunpack.c.l.b16 %v90
  %v235 = vunpack.c.l.b16 %v91
  %v236 = vunpack.c.l.b16 %v92
  %v237 = vunpack.c.l.b16 %v93
  %v238 = vunpack.c.l.b16 %v94
  %v239 = vunpack.c.l.b16 %v95
  %v240 = vunpack.c.l.b16 %v96
  %v241 = vunpack.c.l.b16 %v97
  %v242 = vunpack.c.l.b16 %v98
  %v243 = vunpack.c.l.b16 %v99
  %v244 = vunpack.c.l.b16 %v100
  %v245 = vunpack.c.l.b16 %v101
  %v246 = vunpack.c.l.b16 %v102
  %v247 = vunpack.c.l.b16 %v103
  %v248 = vunpack.c.l.b16 %v104
  %v249 = vunpack.c.l.b16 %v105
  %v250 = vunpack.c.l.b16 %v106
  %v251 = vpack.c.b16 %v220, %v219
  %v252 = vpack.c.b16 %v222, %v221
  %v253 = vpack.c.b16 %v224, %v223
  %v254 = vpack.c.b16 %v226, %v225
  %v255 = vpack.c.b16 %v228, %v227
  %v256 = vpack.c.b16 %v230, %v229
  %v257 = vpack.c.b16 %v232, %v231
  %v258 = vpack.c.b16 %v234, %v233
  %v259 = vpack.c.b16 %v236, %v235
  %v260 = vpack.c.b16 %v238, %v237
  %v261 = vpack.c.b16 %v240, %v239
  %v262 = vpack.c.b16 %v242, %v241
  %v263 = vpack.c.b16 %v244, %v243
  %v264 = vpack.c.b16 %v246, %v245
  %v265 = vpack.c.b16 %v248, %v247
  %v266 = vpack.c.b16 %v250, %v249
  %283 = vmatprep.subr.bf16.mxu0 0
  %284 = vmatpush1.bf16.msra.mxu0 %v258
  %285 = vmatprep.subr.bf16.mxu0 0
  %286 = vmatpush1.bf16.msra.mxu0 %v257
  %287 = vmatprep.subr.bf16.mxu0 0
  %288 = vmatpush1.bf16.msra.mxu0 %v256
  %289 = vmatprep.subr.bf16.mxu0 0
  %290 = vmatpush1.bf16.msra.mxu0 %v255
  %291 = vmatprep.subr.bf16.mxu0 0
  %292 = vmatpush1.bf16.msra.mxu0 %v254
  %293 = vmatprep.subr.bf16.mxu0 0
  %294 = vmatpush1.bf16.msra.mxu0 %v253
  %295 = vmatprep.subr.bf16.mxu0 0
  %296 = vmatpush1.bf16.msra.mxu0 %v252
  %297 = vmatprep.subr.bf16.mxu0 0
  %298 = vmatpush1.bf16.msra.mxu0 %v251
  %299 = vmatprep.subr.bf16.mxu0 0
  %300 = vmatpush2.bf16.msra.mxu0 %v266
  %301 = vmatprep.subr.bf16.mxu0 0
  %302 = vmatpush2.bf16.msra.mxu0 %v265
  %303 = vmatprep.subr.bf16.mxu0 0
  %304 = vmatpush2.bf16.msra.mxu0 %v264
  %305 = vmatprep.subr.bf16.mxu0 0
  %306 = vmatpush2.bf16.msra.mxu0 %v263
  %307 = vmatprep.subr.bf16.mxu0 0
  %308 = vmatpush2.bf16.msra.mxu0 %v262
  %309 = vmatprep.subr.bf16.mxu0 0
  %310 = vmatpush2.bf16.msra.mxu0 %v261
  %311 = vmatprep.subr.bf16.mxu0 0
  %312 = vmatpush2.bf16.msra.mxu0 %v260
  %313 = vmatprep.subr.bf16.mxu0 0
  %314 = vmatpush2.bf16.msra.mxu0 %v259
  %315 = vmatprep.mubr.bf16.mxu0 %v156
  %316 = vmatmul.mubr.bf16.gmra.mxu0 %v155
  %v317 = vpop.f32.mrf.mxu0
  %v318 = vadd.f32 0.0, %v317
  %v319 = vpop.f32.mrf.mxu0
  %v320 = vpop.f32.mrf.mxu0
  %v321 = vadd.f32 0.0, %v320
  %v322 = vpop.f32.mrf.mxu0
  %323 = vmatprep.mubr.bf16.mxu0 %v158
  %324 = vmatmul.mubr.bf16.gmra.mxu0 %v157
  %v325 = vpop.f32.mrf.mxu0
  %v326 = vadd.f32 0.0, %v325
  %v327 = vpop.f32.mrf.mxu0
  %v328 = vpop.f32.mrf.mxu0
  %v329 = vadd.f32 0.0, %v328
  %v330 = vpop.f32.mrf.mxu0
  %331 = vmatprep.mubr.bf16.mxu0 %v160
  %332 = vmatmul.mubr.bf16.gmra.mxu0 %v159
  %v333 = vpop.f32.mrf.mxu0
  %v334 = vadd.f32 0.0, %v333
  %v335 = vpop.f32.mrf.mxu0
  %v336 = vpop.f32.mrf.mxu0
  %v337 = vadd.f32 0.0, %v336
  %v338 = vpop.f32.mrf.mxu0
  %339 = vmatprep.mubr.bf16.mxu0 %v162
  %340 = vmatmul.mubr.bf16.gmra.mxu0 %v161
  %v341 = vpop.f32.mrf.mxu0
  %v342 = vadd.f32 0.0, %v341
  %v343 = vpop.f32.mrf.mxu0
  %v344 = vpop.f32.mrf.mxu0
  %v345 = vadd.f32 0.0, %v344
  %v346 = vpop.f32.mrf.mxu0
  %347 = vmatprep.mubr.bf16.mxu0 %v164
  %348 = vmatmul.mubr.bf16.gmra.mxu0 %v163
  %v349 = vpop.f32.mrf.mxu0
  %v350 = vadd.f32 0.0, %v349
  %v351 = vpop.f32.mrf.mxu0
  %v352 = vpop.f32.mrf.mxu0
  %v353 = vadd.f32 0.0, %v352
  %v354 = vpop.f32.mrf.mxu0
  %355 = vmatprep.mubr.bf16.mxu0 %v166
  %356 = vmatmul.mubr.bf16.gmra.mxu0 %v165
  %v357 = vpop.f32.mrf.mxu0
  %v358 = vadd.f32 0.0, %v357
  %v359 = vpop.f32.mrf.mxu0
  %v360 = vpop.f32.mrf.mxu0
  %v361 = vadd.f32 0.0, %v360
  %v362 = vpop.f32.mrf.mxu0
  %363 = vmatprep.mubr.bf16.mxu0 %v168
  %364 = vmatmul.mubr.bf16.gmra.mxu0 %v167
  %v365 = vpop.f32.mrf.mxu0
  %v366 = vadd.f32 0.0, %v365
  %v367 = vpop.f32.mrf.mxu0
  %v368 = vpop.f32.mrf.mxu0
  %v369 = vadd.f32 0.0, %v368
  %v370 = vpop.f32.mrf.mxu0
  %371 = vmatprep.mubr.bf16.mxu0 %v170
  %372 = vmatmul.mubr.bf16.gmra.mxu0 %v169
  %v373 = vpop.f32.mrf.mxu0
  %v374 = vadd.f32 0.0, %v373
  %v375 = vpop.f32.mrf.mxu0
  %v376 = vpop.f32.mrf.mxu0
  %v377 = vadd.f32 0.0, %v376
  %v378 = vpop.f32.mrf.mxu0
  %379 = vdwg.mxu0
  %v380 = vadd.f32 %v59, %v318
  %v381 = vadd.f32 %v60, %v321
  %v382 = vadd.f32 %v61, %v326
  %v383 = vadd.f32 %v62, %v329
  %v384 = vadd.f32 %v63, %v334
  %v385 = vadd.f32 %v64, %v337
  %v386 = vadd.f32 %v65, %v342
  %v387 = vadd.f32 %v66, %v345
  %v388 = vadd.f32 %v67, %v350
  %v389 = vadd.f32 %v68, %v353
  %v390 = vadd.f32 %v69, %v358
  %v391 = vadd.f32 %v70, %v361
  %v392 = vadd.f32 %v71, %v366
  %v393 = vadd.f32 %v72, %v369
  %v394 = vadd.f32 %v73, %v374
  %v395 = vadd.f32 %v74, %v377
  %396 = vst [vmem:[#allocation2] sm:$0xff] %v380
  %397 = vst [vmem:[#allocation2 + $0x8] sm:$0xff] %v381
  %398 = vst [vmem:[#allocation2 + $0x10] sm:$0xff] %v382
  %399 = vst [vmem:[#allocation2 + $0x18] sm:$0xff] %v383
  %400 = vst [vmem:[#allocation2 + $0x20] sm:$0xff] %v384
  %401 = vst [vmem:[#allocation2 + $0x28] sm:$0xff] %v385
  %402 = vst [vmem:[#allocation2 + $0x30] sm:$0xff] %v386
  %403 = vst [vmem:[#allocation2 + $0x38] sm:$0xff] %v387
  %404 = vst [vmem:[#allocation2 + $0x40] sm:$0xff] %v388
  %405 = vst [vmem:[#allocation2 + $0x48] sm:$0xff] %v389
  %406 = vst [vmem:[#allocation2 + $0x50] sm:$0xff] %v390
  %407 = vst [vmem:[#allocation2 + $0x58] sm:$0xff] %v391
  %408 = vst [vmem:[#allocation2 + $0x60] sm:$0xff] %v392
  %409 = vst [vmem:[#allocation2 + $0x68] sm:$0xff] %v393
  %410 = vst [vmem:[#allocation2 + $0x70] sm:$0xff] %v394
  %411 = vst [vmem:[#allocation2 + $0x78] sm:$0xff] %v395
  // Predicated region
  $region26: #{_lambda_.6} parent=0 // pred_check
    %p412 = pneg %p23
  $region27: #{_lambda_.6} parent=0 // pred_check_branch
    %414 = sbr.rel (%p412) target = $region29
  $region28: #{_lambda_.6} parent=0 // pred_region
    %v415 = vld [vmem:[#allocation2] sm:$0xff]
    %v416 = vld [vmem:[#allocation2 + $0x8] sm:$0xff]
    %v417 = vld [vmem:[#allocation2 + $0x10] sm:$0xff]
    %v418 = vld [vmem:[#allocation2 + $0x18] sm:$0xff]
    %v419 = vld [vmem:[#allocation2 + $0x20] sm:$0xff]
    %v420 = vld [vmem:[#allocation2 + $0x28] sm:$0xff]
    %v421 = vld [vmem:[#allocation2 + $0x30] sm:$0xff]
    %v422 = vld [vmem:[#allocation2 + $0x38] sm:$0xff]
    %v423 = vld [vmem:[#allocation2 + $0x40] sm:$0xff]
    %v424 = vld [vmem:[#allocation2 + $0x48] sm:$0xff]
    %v425 = vld [vmem:[#allocation2 + $0x50] sm:$0xff]
    %v426 = vld [vmem:[#allocation2 + $0x58] sm:$0xff]
    %v427 = vld [vmem:[#allocation2 + $0x60] sm:$0xff]
    %v428 = vld [vmem:[#allocation2 + $0x68] sm:$0xff]
    %v429 = vld [vmem:[#allocation2 + $0x70] sm:$0xff]
    %v430 = vld [vmem:[#allocation2 + $0x78] sm:$0xff]
    %v431 = vld [vmem:[%s4] sm:$0x1]
    %v433 = vlaneseq
    %v434 = vshrl.u32 %v433, 7
    %v435 = vsub.s32 0, %v434
    %v436 = vrot.slane %v431, %v435
    %v438 = vadd.f32 %v415, %v436
    %v439 = vadd.f32 %v416, %v436
    %v440 = vadd.f32 %v417, %v436
    %v441 = vadd.f32 %v418, %v436
    %v442 = vadd.f32 %v419, %v436
    %v443 = vadd.f32 %v420, %v436
    %v444 = vadd.f32 %v421, %v436
    %v445 = vadd.f32 %v422, %v436
    %v446 = vadd.f32 %v423, %v436
    %v447 = vadd.f32 %v424, %v436
    %v448 = vadd.f32 %v425, %v436
    %v449 = vadd.f32 %v426, %v436
    %v450 = vadd.f32 %v427, %v436
    %v451 = vadd.f32 %v428, %v436
    %v452 = vadd.f32 %v429, %v436
    %v453 = vadd.f32 %v430, %v436
    %v454 = vadd.f32 %v438, %v439
    %v455 = vadd.f32 %v454, %v440
    %v456 = vadd.f32 %v455, %v441
    %v457 = vadd.f32 %v456, %v442
    %v458 = vadd.f32 %v457, %v443
    %v459 = vadd.f32 %v458, %v444
    %v460 = vadd.f32 %v459, %v445
    %v461 = vadd.f32 %v460, %v446
    %v462 = vadd.f32 %v461, %v447
    %v463 = vadd.f32 %v462, %v448
    %v464 = vadd.f32 %v463, %v449
    %v465 = vadd.f32 %v464, %v450
    %v466 = vadd.f32 %v465, %v451
    %v467 = vadd.f32 %v466, %v452
    %v468 = vadd.f32 %v467, %v453
    %v469 = vrot.slane %v468, 4
    %v470 = vadd.f32 %v468, %v469
    %v471 = vrot.slane %v470, 2
    %v472 = vadd.f32 %v470, %v471
    %v473 = vrot.slane %v472, 1
    %v474 = vadd.f32 %v472, %v473
    %475 = vst [vmem:[%s6] sm:$0x1] %v474
    %v476 = vmul.f32 %v438, %v438
    %v477 = vmul.f32 %v439, %v439
    %v478 = vmul.f32 %v440, %v440
    %v479 = vmul.f32 %v441, %v441
    %v480 = vmul.f32 %v442, %v442
    %v481 = vmul.f32 %v443, %v443
    %v482 = vmul.f32 %v444, %v444
    %v483 = vmul.f32 %v445, %v445
    %v484 = vmul.f32 %v446, %v446
    %v485 = vmul.f32 %v447, %v447
    %v486 = vmul.f32 %v448, %v448
    %v487 = vmul.f32 %v449, %v449
    %v488 = vmul.f32 %v450, %v450
    %v489 = vmul.f32 %v451, %v451
    %v490 = vmul.f32 %v452, %v452
    %v491 = vmul.f32 %v453, %v453
    %v492 = vadd.f32 %v476, %v477
    %v493 = vadd.f32 %v492, %v478
    %v494 = vadd.f32 %v493, %v479
    %v495 = vadd.f32 %v494, %v480
    %v496 = vadd.f32 %v495, %v481
    %v497 = vadd.f32 %v496, %v482
    %v498 = vadd.f32 %v497, %v483
    %v499 = vadd.f32 %v498, %v484
    %v500 = vadd.f32 %v499, %v485
    %v501 = vadd.f32 %v500, %v486
    %v502 = vadd.f32 %v501, %v487
    %v503 = vadd.f32 %v502, %v488
    %v504 = vadd.f32 %v503, %v489
    %v505 = vadd.f32 %v504, %v490
    %v506 = vadd.f32 %v505, %v491
    %v507 = vrot.slane %v506, 4
    %v508 = vadd.f32 %v506, %v507
    %v509 = vrot.slane %v508, 2
    %v510 = vadd.f32 %v508, %v509
    %v511 = vrot.slane %v510, 1
    %v512 = vadd.f32 %v510, %v511
    %513 = vst [vmem:[%s6 + $0x1] sm:$0x1] %v512
    %514 = vst [vmem:[%s6 + $0x2] sm:$0x3f] 0.0
    %v515 = vpack.c.bf16 %v439, %v438
    %v516 = vpack.c.bf16 %v441, %v440
    %v517 = vpack.c.bf16 %v443, %v442
    %v518 = vpack.c.bf16 %v445, %v444
    %v519 = vpack.c.bf16 %v447, %v446
    %v520 = vpack.c.bf16 %v449, %v448
    %v521 = vpack.c.bf16 %v451, %v450
    %v522 = vpack.c.bf16 %v453, %v452
    %v531 = vunpack.c.l.b16 %v515
    %v532 = vunpack.c.h.b16 %v515
    %v533 = vunpack.c.l.b16 %v516
    %v534 = vunpack.c.h.b16 %v516
    %v535 = vunpack.c.l.b16 %v517
    %v536 = vunpack.c.h.b16 %v517
    %v537 = vunpack.c.l.b16 %v518
    %v538 = vunpack.c.h.b16 %v518
    %v539 = vunpack.c.l.b16 %v519
    %v540 = vunpack.c.h.b16 %v519
    %v541 = vunpack.c.l.b16 %v520
    %v542 = vunpack.c.h.b16 %v520
    %v543 = vunpack.c.l.b16 %v521
    %v544 = vunpack.c.h.b16 %v521
    %v545 = vunpack.c.l.b16 %v522
    %v546 = vunpack.c.h.b16 %v522
    %v547 = vpack.c.b16 %v531, %v531
    %v548 = vpack.c.b16 %v532, %v532
    %v549 = vpack.c.b16 %v533, %v533
    %v550 = vpack.c.b16 %v534, %v534
    %v551 = vpack.c.b16 %v535, %v535
    %v552 = vpack.c.b16 %v536, %v536
    %v553 = vpack.c.b16 %v537, %v537
    %v554 = vpack.c.b16 %v538, %v538
    %v555 = vpack.c.b16 %v539, %v539
    %v556 = vpack.c.b16 %v540, %v540
    %v557 = vpack.c.b16 %v541, %v541
    %v558 = vpack.c.b16 %v542, %v542
    %v559 = vpack.c.b16 %v543, %v543
    %v560 = vpack.c.b16 %v544, %v544
    %v561 = vpack.c.b16 %v545, %v545
    %v562 = vpack.c.b16 %v546, %v546
    %579 = vst [vmem:[%s5] sm:$0xf] %v547
    %580 = vst [vmem:[%s5 + $0x4] sm:$0xf] %v548
    %581 = vst [vmem:[%s5 + $0x8] sm:$0xf] %v549
    %582 = vst [vmem:[%s5 + $0xc] sm:$0xf] %v550
    %583 = vst [vmem:[%s5 + $0x10] sm:$0xf] %v551
    %584 = vst [vmem:[%s5 + $0x14] sm:$0xf] %v552
    %585 = vst [vmem:[%s5 + $0x18] sm:$0xf] %v553
    %586 = vst [vmem:[%s5 + $0x1c] sm:$0xf] %v554
    %587 = vst [vmem:[%s5 + $0x20] sm:$0xf] %v555
    %588 = vst [vmem:[%s5 + $0x24] sm:$0xf] %v556
    %589 = vst [vmem:[%s5 + $0x28] sm:$0xf] %v557
    %590 = vst [vmem:[%s5 + $0x2c] sm:$0xf] %v558
    %591 = vst [vmem:[%s5 + $0x30] sm:$0xf] %v559
    %592 = vst [vmem:[%s5 + $0x34] sm:$0xf] %v560
    %593 = vst [vmem:[%s5 + $0x38] sm:$0xf] %v561
    %594 = vst [vmem:[%s5 + $0x3c] sm:$0xf] %v562
  $region29: #{_lambda_.6} parent=0 // pred_fallthru
    _
  // Predicated region
  $region30: #{_lambda_.6} parent=0 // pred_check
    _
  $region31: #{_lambda_.6} parent=0 // pred_check_branch
    %596 = sbr.rel (0) target = $region33
  $region32: #{_lambda_.6} parent=0 // pred_region
    _
  $region33: #{_lambda_.6} parent=0 // pred_fallthru
    _
  // Predicated region
  $region34: #{_lambda_.6} parent=0 // pred_check
    _
  $region35: #{_lambda_.6} parent=0 // pred_check_branch
    %598 = sbr.rel (0) target = $region37
  $region36: #{_lambda_.6} parent=0 // pred_region
    _
  $region37: #{_lambda_.6} parent=0 // pred_fallthru
    _
  // Predicated region
  $region38: #{_lambda_.6} parent=0 // pred_check
    _
  $region39: #{_lambda_.6} parent=0 // pred_check_branch
    %600 = sbr.rel (0) target = $region41
  $region40: #{_lambda_.6} parent=0 // pred_region
    _
  $region41: #{_lambda_.6} parent=0 // pred_fallthru
    _
  // Predicated region
  $region42: #{_lambda_.6} parent=0 // pred_check
    _
  $region43: #{_lambda_.6} parent=0 // pred_check_branch
    %602 = sbr.rel (0) target = $region45
  $region44: #{_lambda_.6} parent=0 // pred_region
    _
  $region45: #{_lambda_.6} parent=0 // pred_fallthru
    _

// kernel: tile.33
$region0: #{tile.33}
  #allocation0 [shape = 's32[1]{0}', space=sflag, size = 0x4, scoped, tag = 'scoped memory for tile.33']
  %s0 = inlined_call_operand.vmem [shape: f32[32], index: 0, kind: input, shape index: {}]
  %s1 = inlined_call_operand.vmem [shape: f32[16,32], index: 1, kind: output, shape index: {}]
  // Predicated region
  $region2: #{tile.33} parent=0 // pred_check
    _
  $region3: #{tile.33} parent=0 // pred_check_branch
    %3 = sbr.rel (0) target = $region5
  $region4: #{tile.33} parent=0 // pred_region
    _
  $region5: #{tile.33} parent=0 // pred_fallthru
    _
  %v4 = vld [vmem:[%s0] ss:$0 sm:$0xff]
  %5 = vst [vmem:[%s1] sm:$0xff] %v4
  %s6 = scalar_lea.vmem %s1, 8
  %7 = vst [vmem:[%s6] sm:$0xff] %v4

// kernel: tile.38
$region0: #{tile.38}
  %s0 = inlined_call_operand.vmem [shape: f32[16,32], index: 0, kind: input, shape index: {}]
  %s1 = inlined_call_operand.vmem [shape: f32[1,512], index: 1, kind: output, shape index: {}]
  $region1: #{tile.38} parent=0
    #allocation0 [shape = 'u8[16384]{0}', space=vmem, size = 0x4000, scoped, tag = 'scoped mem for output reshape']
    %v2 = vld [vmem:[%s0] ss:$4 sm:$0xf]
    %vm3 = vcmask 261120
    %4 = vst.msk [vmem:[#allocation0] ss:$8 sm:$0xf] %vm3, %v2
    %s5 = scalar_lea.vmem %s0, 3
    %v6 = vld [vmem:[%s5] ss:$4 sm:$0xf]
    %7 = vrot.lane.b32.xlu0 %v6, 96
    %v8 = vpop.permute.xlu0 %7
    %vm9 = vcmask 1048320
    %10 = vst.msk [vmem:[#allocation0] ss:$8 sm:$0xf] %vm9, %v8
    %s11 = scalar_lea.vmem %s0, 2
    %v12 = vld [vmem:[%s11] ss:$4 sm:$0xf]
    %13 = vrot.lane.b32.xlu0 %v12, 64
    %v14 = vpop.permute.xlu0 %13
    %vm15 = vcmask 785920
    %16 = vst.msk [vmem:[#allocation0] ss:$8 sm:$0xf] %vm15, %v14
    %s17 = scalar_lea.vmem %s0, 1
    %v18 = vld [vmem:[%s17] ss:$4 sm:$0xf]
    %19 = vrot.lane.b32.xlu0 %v18, 32
    %v20 = vpop.permute.xlu0 %19
    %vm21 = vcmask 523520
    %22 = vst.msk [vmem:[#allocation0] ss:$8 sm:$0xf] %vm21, %v20
    %s24 = sshll.u32 1, 1
    %s25 = ssub.s32 %s24, 1
    %v27 = vld [vmem:[#allocation0] sm:%s25]
    %s28 = sshll.u32 1, 1
    %s29 = ssub.s32 %s28, 1
    %30 = vst [vmem:[%s1] sm:%s29] %v27
    %s31 = scalar_lea.vmem [#allocation0], 8
    %v32 = vld [vmem:[%s31] sm:%s25]
    %s33 = sshll.u32 1, 1
    %s34 = ssub.s32 %s33, 1
    %s35 = scalar_lea.vmem %s1, 1
    %36 = vst [vmem:[%s35] sm:%s34] %v32
    %s37 = scalar_lea.vmem [#allocation0], 16
    %v38 = vld [vmem:[%s37] sm:%s25]
    %s39 = sshll.u32 1, 1
    %s40 = ssub.s32 %s39, 1
    %s41 = smul.addr 1, 2
    %s42 = scalar_lea.vmem %s1, %s41
    %43 = vst [vmem:[%s42] sm:%s40] %v38
    %s44 = scalar_lea.vmem [#allocation0], 24
    %v45 = vld [vmem:[%s44] sm:%s25]
    %s46 = sshll.u32 1, 1
    %s47 = ssub.s32 %s46, 1
    %s48 = smul.addr 1, 3
    %s49 = scalar_lea.vmem %s1, %s48
    %50 = vst [vmem:[%s49] sm:%s47] %v45

// kernel: tile.43
$region0: #{tile.43}
  #allocation0 [shape = 's32[1]{0}', space=sflag, size = 0x4, scoped, tag = 'scoped memory for tile.43']
  %s0 = inlined_call_operand.vmem [shape: f32[64], index: 0, kind: input, shape index: {}]
  %s1 = inlined_call_operand.vmem [shape: f32[16,64], index: 1, kind: output, shape index: {}]
  // Predicated region
  $region2: #{tile.43} parent=0 // pred_check
    _
  $region3: #{tile.43} parent=0 // pred_check_branch
    %3 = sbr.rel (0) target = $region5
  $region4: #{tile.43} parent=0 // pred_region
    _
  $region5: #{tile.43} parent=0 // pred_fallthru
    _
  %v4 = vld [vmem:[%s0] ss:$0 sm:$0xff]
  %5 = vst [vmem:[%s1] sm:$0xff] %v4
  %s6 = scalar_lea.vmem %s1, 8
  %7 = vst [vmem:[%s6] sm:$0xff] %v4

// kernel: tile.48
$region0: #{tile.48}
  %s0 = inlined_call_operand.vmem [shape: f32[16,64], index: 0, kind: input, shape index: {}]
  %s1 = inlined_call_operand.vmem [shape: f32[1,1024], index: 1, kind: output, shape index: {}]
  $region1: #{tile.48} parent=0
    #allocation0 [shape = 'u8[32768]{0}', space=vmem, size = 0x8000, scoped, tag = 'scoped mem for output reshape']
    %v2 = vld [vmem:[%s0] ss:$2 sm:$0xff]
    %vm3 = vcmask 523264
    %4 = vst.msk [vmem:[#allocation0] ss:$8 sm:$0xf] %vm3, %v2
    %5 = vst.msk [vmem:[#allocation0] ss:$8 sm:$0xf0] %vm3, %v2
    %s6 = scalar_lea.vmem %s0, 1
    %v7 = vld [vmem:[%s6] ss:$2 sm:$0xff]
    %8 = vrot.lane.b32.xlu0 %v7, 64
    %v9 = vpop.permute.xlu0 %8
    %vm10 = vcmask 1048064
    %11 = vst.msk [vmem:[#allocation0] ss:$8 sm:$0xf] %vm10, %v9
    %12 = vst.msk [vmem:[#allocation0] ss:$8 sm:$0xf0] %vm10, %v9
    %s14 = sshll.u32 1, 1
    %s15 = ssub.s32 %s14, 1
    %v17 = vld [vmem:[#allocation0] sm:%s15]
    %s18 = sshll.u32 1, 1
    %s19 = ssub.s32 %s18, 1
    %20 = vst [vmem:[%s1] sm:%s19] %v17
    %s21 = scalar_lea.vmem [#allocation0], 8
    %v22 = vld [vmem:[%s21] sm:%s15]
    %s23 = sshll.u32 1, 1
    %s24 = ssub.s32 %s23, 1
    %s25 = scalar_lea.vmem %s1, 1
    %26 = vst [vmem:[%s25] sm:%s24] %v22
    %s27 = scalar_lea.vmem [#allocation0], 16
    %v28 = vld [vmem:[%s27] sm:%s15]
    %s29 = sshll.u32 1, 1
    %s30 = ssub.s32 %s29, 1
    %s31 = smul.addr 1, 2
    %s32 = scalar_lea.vmem %s1, %s31
    %33 = vst [vmem:[%s32] sm:%s30] %v28
    %s34 = scalar_lea.vmem [#allocation0], 24
    %v35 = vld [vmem:[%s34] sm:%s15]
    %s36 = sshll.u32 1, 1
    %s37 = ssub.s32 %s36, 1
    %s38 = smul.addr 1, 3
    %s39 = scalar_lea.vmem %s1, %s38
    %40 = vst [vmem:[%s39] sm:%s37] %v35
    %s41 = scalar_lea.vmem [#allocation0], 32
    %v42 = vld [vmem:[%s41] sm:%s15]
    %s43 = sshll.u32 1, 1
    %s44 = ssub.s32 %s43, 1
    %s45 = smul.addr 1, 4
    %s46 = scalar_lea.vmem %s1, %s45
    %47 = vst [vmem:[%s46] sm:%s44] %v42
    %s48 = scalar_lea.vmem [#allocation0], 40
    %v49 = vld [vmem:[%s48] sm:%s15]
    %s50 = sshll.u32 1, 1
    %s51 = ssub.s32 %s50, 1
    %s52 = smul.addr 1, 5
    %s53 = scalar_lea.vmem %s1, %s52
    %54 = vst [vmem:[%s53] sm:%s51] %v49
    %s55 = scalar_lea.vmem [#allocation0], 48
    %v56 = vld [vmem:[%s55] sm:%s15]
    %s57 = sshll.u32 1, 1
    %s58 = ssub.s32 %s57, 1
    %s59 = smul.addr 1, 6
    %s60 = scalar_lea.vmem %s1, %s59
    %61 = vst [vmem:[%s60] sm:%s58] %v56
    %s62 = scalar_lea.vmem [#allocation0], 56
    %v63 = vld [vmem:[%s62] sm:%s15]
    %s64 = sshll.u32 1, 1
    %s65 = ssub.s32 %s64, 1
    %s66 = smul.addr 1, 7
    %s67 = scalar_lea.vmem %s1, %s66
    %68 = vst [vmem:[%s67] sm:%s65] %v63

// kernel: _lambda_.7
$region0: #{_lambda_.7}
  #allocation0 [shape = 'u32[]', space=smem, size = 0x4, offset = 0x4, fixed_abs, tag = 'smem constant byte address 0x4 - core index']
  #allocation1 [shape = 'u32[144,128]{1,0:T(1,128)}', space=vmem, size = 0x12000, scoped, tag = 'internal scratch']
  #allocation2 [shape = 'f32[128,128]{1,0:T(8,128)}', space=vmem, size = 0x10000, scoped, tag = 'scratch operand']
  %s0 = inlined_call_operand.vmem [shape: bf16[128,512], index: 0, kind: input, shape index: {}]
  %s1 = inlined_call_operand.vmem [shape: bf16[512,128], index: 1, kind: input, shape index: {}]
  %s2 = inlined_call_operand.vmem [shape: f32[1,512], index: 2, kind: input, shape index: {}]
  %s3 = inlined_call_operand.vmem [shape: f32[1,512], index: 3, kind: input, shape index: {}]
  %s4 = inlined_call_operand.vmem [shape: f32[1,128], index: 4, kind: input, shape index: {}]
  %s5 = inlined_call_operand.vmem [shape: bf16[128,128], index: 5, kind: output, shape index: {0}]
  %s6 = inlined_call_operand.vmem [shape: f32[8,128], index: 6, kind: output, shape index: {1}]
  %7 = xla_tuple %s5, %s6
  %s8 = sld [smem:[#allocation0]]
  $region46: #{_lambda_.7} parent=0
    _
  %s10 = ssub.s32 1, %s8
  %s11 = scalar_select 0, %s10, %s8
  // Predicated region
  $region2: #{_lambda_.7} parent=0 // pred_check
    _
  $region3: #{_lambda_.7} parent=0 // pred_check_branch
    %13 = sbr.rel (0) target = $region5
  $region4: #{_lambda_.7} parent=0 // pred_region
    _
  $region5: #{_lambda_.7} parent=0 // pred_fallthru
    _
  // Predicated region
  $region6: #{_lambda_.7} parent=0 // pred_check
    _
  $region7: #{_lambda_.7} parent=0 // pred_check_branch
    %15 = sbr.rel (0) target = $region9
  $region8: #{_lambda_.7} parent=0 // pred_region
    _
  $region9: #{_lambda_.7} parent=0 // pred_fallthru
    _
  // Predicated region
  $region10: #{_lambda_.7} parent=0 // pred_check
    _
  $region11: #{_lambda_.7} parent=0 // pred_check_branch
    %17 = sbr.rel (0) target = $region13
  $region12: #{_lambda_.7} parent=0 // pred_region
    _
  $region13: #{_lambda_.7} parent=0 // pred_fallthru
    _
  // Predicated region
  $region14: #{_lambda_.7} parent=0 // pred_check
    _
  $region15: #{_lambda_.7} parent=0 // pred_check_branch
    %19 = sbr.rel (0) target = $region17
  $region16: #{_lambda_.7} parent=0 // pred_region
    _
  $region17: #{_lambda_.7} parent=0 // pred_fallthru
    _
  // Predicated region
  $region18: #{_lambda_.7} parent=0 // pred_check
    _
  $region19: #{_lambda_.7} parent=0 // pred_check_branch
    %21 = sbr.rel (0) target = $region21
  $region20: #{_lambda_.7} parent=0 // pred_region
    _
  $region21: #{_lambda_.7} parent=0 // pred_fallthru
    _
  %s23 = smul.u32 0, 128
  %p24 = scmp.eq.s32.totalorder 0, 0
  // Predicated region
  $region22: #{_lambda_.7} parent=0 // pred_check
    %p25 = pneg %p24
  $region23: #{_lambda_.7} parent=0 // pred_check_branch
    %27 = sbr.rel (%p25) target = $region25
  $region24: #{_lambda_.7} parent=0 // pred_region
    %28 = vst [vmem:[#allocation2] sm:$0xff] 0.0
    %29 = vst [vmem:[#allocation2 + $0x8] sm:$0xff] 0.0
    %30 = vst [vmem:[#allocation2 + $0x10] sm:$0xff] 0.0
    %31 = vst [vmem:[#allocation2 + $0x18] sm:$0xff] 0.0
    %32 = vst [vmem:[#allocation2 + $0x20] sm:$0xff] 0.0
    %33 = vst [vmem:[#allocation2 + $0x28] sm:$0xff] 0.0
    %34 = vst [vmem:[#allocation2 + $0x30] sm:$0xff] 0.0
    %35 = vst [vmem:[#allocation2 + $0x38] sm:$0xff] 0.0
    %36 = vst [vmem:[#allocation2 + $0x40] sm:$0xff] 0.0
    %37 = vst [vmem:[#allocation2 + $0x48] sm:$0xff] 0.0
    %38 = vst [vmem:[#allocation2 + $0x50] sm:$0xff] 0.0
    %39 = vst [vmem:[#allocation2 + $0x58] sm:$0xff] 0.0
    %40 = vst [vmem:[#allocation2 + $0x60] sm:$0xff] 0.0
    %41 = vst [vmem:[#allocation2 + $0x68] sm:$0xff] 0.0
    %42 = vst [vmem:[#allocation2 + $0x70] sm:$0xff] 0.0
    %43 = vst [vmem:[#allocation2 + $0x78] sm:$0xff] 0.0
  $region25: #{_lambda_.7} parent=0 // pred_fallthru
    _
  %v44 = vld [vmem:[%s0] sm:$0xff]
  %v45 = vld [vmem:[%s0 + $0x8] sm:$0xff]
  %v46 = vld [vmem:[%s0 + $0x10] sm:$0xff]
  %v47 = vld [vmem:[%s0 + $0x18] sm:$0xff]
  %v48 = vld [vmem:[%s0 + $0x20] sm:$0xff]
  %v49 = vld [vmem:[%s0 + $0x28] sm:$0xff]
  %v50 = vld [vmem:[%s0 + $0x30] sm:$0xff]
  %v51 = vld [vmem:[%s0 + $0x38] sm:$0xff]
  %v52 = vld [vmem:[%s0 + $0x40] sm:$0xff]
  %v53 = vld [vmem:[%s0 + $0x48] sm:$0xff]
  %v54 = vld [vmem:[%s0 + $0x50] sm:$0xff]
  %v55 = vld [vmem:[%s0 + $0x58] sm:$0xff]
  %v56 = vld [vmem:[%s0 + $0x60] sm:$0xff]
  %v57 = vld [vmem:[%s0 + $0x68] sm:$0xff]
  %v58 = vld [vmem:[%s0 + $0x70] sm:$0xff]
  %v59 = vld [vmem:[%s0 + $0x78] sm:$0xff]
  %v60 = vld [vmem:[%s0 + $0x80] sm:$0xff]
  %v61 = vld [vmem:[%s0 + $0x88] sm:$0xff]
  %v62 = vld [vmem:[%s0 + $0x90] sm:$0xff]
  %v63 = vld [vmem:[%s0 + $0x98] sm:$0xff]
  %v64 = vld [vmem:[%s0 + $0xa0] sm:$0xff]
  %v65 = vld [vmem:[%s0 + $0xa8] sm:$0xff]
  %v66 = vld [vmem:[%s0 + $0xb0] sm:$0xff]
  %v67 = vld [vmem:[%s0 + $0xb8] sm:$0xff]
  %v68 = vld [vmem:[%s0 + $0xc0] sm:$0xff]
  %v69 = vld [vmem:[%s0 + $0xc8] sm:$0xff]
  %v70 = vld [vmem:[%s0 + $0xd0] sm:$0xff]
  %v71 = vld [vmem:[%s0 + $0xd8] sm:$0xff]
  %v72 = vld [vmem:[%s0 + $0xe0] sm:$0xff]
  %v73 = vld [vmem:[%s0 + $0xe8] sm:$0xff]
  %v74 = vld [vmem:[%s0 + $0xf0] sm:$0xff]
  %v75 = vld [vmem:[%s0 + $0xf8] sm:$0xff]
  %v76 = vunpack.c.l.bf16 %v44
  %v77 = vunpack.c.h.bf16 %v44
  %v78 = vunpack.c.l.bf16 %v45
  %v79 = vunpack.c.h.bf16 %v45
  %v80 = vunpack.c.l.bf16 %v46
  %v81 = vunpack.c.h.bf16 %v46
  %v82 = vunpack.c.l.bf16 %v47
  %v83 = vunpack.c.h.bf16 %v47
  %v84 = vunpack.c.l.bf16 %v48
  %v85 = vunpack.c.h.bf16 %v48
  %v86 = vunpack.c.l.bf16 %v49
  %v87 = vunpack.c.h.bf16 %v49
  %v88 = vunpack.c.l.bf16 %v50
  %v89 = vunpack.c.h.bf16 %v50
  %v90 = vunpack.c.l.bf16 %v51
  %v91 = vunpack.c.h.bf16 %v51
  %v92 = vunpack.c.l.bf16 %v52
  %v93 = vunpack.c.h.bf16 %v52
  %v94 = vunpack.c.l.bf16 %v53
  %v95 = vunpack.c.h.bf16 %v53
  %v96 = vunpack.c.l.bf16 %v54
  %v97 = vunpack.c.h.bf16 %v54
  %v98 = vunpack.c.l.bf16 %v55
  %v99 = vunpack.c.h.bf16 %v55
  %v100 = vunpack.c.l.bf16 %v56
  %v101 = vunpack.c.h.bf16 %v56
  %v102 = vunpack.c.l.bf16 %v57
  %v103 = vunpack.c.h.bf16 %v57
  %v104 = vunpack.c.l.bf16 %v58
  %v105 = vunpack.c.h.bf16 %v58
  %v106 = vunpack.c.l.bf16 %v59
  %v107 = vunpack.c.h.bf16 %v59
  %v108 = vunpack.c.l.bf16 %v60
  %v109 = vunpack.c.h.bf16 %v60
  %v110 = vunpack.c.l.bf16 %v61
  %v111 = vunpack.c.h.bf16 %v61
  %v112 = vunpack.c.l.bf16 %v62
  %v113 = vunpack.c.h.bf16 %v62
  %v114 = vunpack.c.l.bf16 %v63
  %v115 = vunpack.c.h.bf16 %v63
  %v116 = vunpack.c.l.bf16 %v64
  %v117 = vunpack.c.h.bf16 %v64
  %v118 = vunpack.c.l.bf16 %v65
  %v119 = vunpack.c.h.bf16 %v65
  %v120 = vunpack.c.l.bf16 %v66
  %v121 = vunpack.c.h.bf16 %v66
  %v122 = vunpack.c.l.bf16 %v67
  %v123 = vunpack.c.h.bf16 %v67
  %v124 = vunpack.c.l.bf16 %v68
  %v125 = vunpack.c.h.bf16 %v68
  %v126 = vunpack.c.l.bf16 %v69
  %v127 = vunpack.c.h.bf16 %v69
  %v128 = vunpack.c.l.bf16 %v70
  %v129 = vunpack.c.h.bf16 %v70
  %v130 = vunpack.c.l.bf16 %v71
  %v131 = vunpack.c.h.bf16 %v71
  %v132 = vunpack.c.l.bf16 %v72
  %v133 = vunpack.c.h.bf16 %v72
  %v134 = vunpack.c.l.bf16 %v73
  %v135 = vunpack.c.h.bf16 %v73
  %v136 = vunpack.c.l.bf16 %v74
  %v137 = vunpack.c.h.bf16 %v74
  %v138 = vunpack.c.l.bf16 %v75
  %v139 = vunpack.c.h.bf16 %v75
  %v140 = vld [vmem:[%s2] sm:$0xf]
  %v142 = vlaneseq
  %v143 = vshrl.u32 %v142, 7
  %v144 = vsub.s32 0, %v143
  %v145 = vrot.slane %v140, %v144
  %v146 = vlaneseq
  %v147 = vshrl.u32 %v146, 7
  %v148 = vsub.s32 1, %v147
  %v149 = vrot.slane %v140, %v148
  %v150 = vlaneseq
  %v151 = vshrl.u32 %v150, 7
  %v152 = vsub.s32 2, %v151
  %v153 = vrot.slane %v140, %v152
  %v154 = vlaneseq
  %v155 = vshrl.u32 %v154, 7
  %v156 = vsub.s32 3, %v155
  %v157 = vrot.slane %v140, %v156
  %v162 = vmul.f32 %v76, %v145
  %v163 = vmul.f32 %v77, %v149
  %v164 = vmul.f32 %v78, %v153
  %v165 = vmul.f32 %v79, %v157
  %v166 = vmul.f32 %v80, %v145
  %v167 = vmul.f32 %v81, %v149
  %v168 = vmul.f32 %v82, %v153
  %v169 = vmul.f32 %v83, %v157
  %v170 = vmul.f32 %v84, %v145
  %v171 = vmul.f32 %v85, %v149
  %v172 = vmul.f32 %v86, %v153
  %v173 = vmul.f32 %v87, %v157
  %v174 = vmul.f32 %v88, %v145
  %v175 = vmul.f32 %v89, %v149
  %v176 = vmul.f32 %v90, %v153
  %v177 = vmul.f32 %v91, %v157
  %v178 = vmul.f32 %v92, %v145
  %v179 = vmul.f32 %v93, %v149
  %v180 = vmul.f32 %v94, %v153
  %v181 = vmul.f32 %v95, %v157
  %v182 = vmul.f32 %v96, %v145
  %v183 = vmul.f32 %v97, %v149
  %v184 = vmul.f32 %v98, %v153
  %v185 = vmul.f32 %v99, %v157
  %v186 = vmul.f32 %v100, %v145
  %v187 = vmul.f32 %v101, %v149
  %v188 = vmul.f32 %v102, %v153
  %v189 = vmul.f32 %v103, %v157
  %v190 = vmul.f32 %v104, %v145
  %v191 = vmul.f32 %v105, %v149
  %v192 = vmul.f32 %v106, %v153
  %v193 = vmul.f32 %v107, %v157
  %v194 = vmul.f32 %v108, %v145
  %v195 = vmul.f32 %v109, %v149
  %v196 = vmul.f32 %v110, %v153
  %v197 = vmul.f32 %v111, %v157
  %v198 = vmul.f32 %v112, %v145
  %v199 = vmul.f32 %v113, %v149
  %v200 = vmul.f32 %v114, %v153
  %v201 = vmul.f32 %v115, %v157
  %v202 = vmul.f32 %v116, %v145
  %v203 = vmul.f32 %v117, %v149
  %v204 = vmul.f32 %v118, %v153
  %v205 = vmul.f32 %v119, %v157
  %v206 = vmul.f32 %v120, %v145
  %v207 = vmul.f32 %v121, %v149
  %v208 = vmul.f32 %v122, %v153
  %v209 = vmul.f32 %v123, %v157
  %v210 = vmul.f32 %v124, %v145
  %v211 = vmul.f32 %v125, %v149
  %v212 = vmul.f32 %v126, %v153
  %v213 = vmul.f32 %v127, %v157
  %v214 = vmul.f32 %v128, %v145
  %v215 = vmul.f32 %v129, %v149
  %v216 = vmul.f32 %v130, %v153
  %v217 = vmul.f32 %v131, %v157
  %v218 = vmul.f32 %v132, %v145
  %v219 = vmul.f32 %v133, %v149
  %v220 = vmul.f32 %v134, %v153
  %v221 = vmul.f32 %v135, %v157
  %v222 = vmul.f32 %v136, %v145
  %v223 = vmul.f32 %v137, %v149
  %v224 = vmul.f32 %v138, %v153
  %v225 = vmul.f32 %v139, %v157
  %v226 = vld [vmem:[%s3] sm:$0xf]
  %v228 = vlaneseq
  %v229 = vshrl.u32 %v228, 7
  %v230 = vsub.s32 0, %v229
  %v231 = vrot.slane %v226, %v230
  %v232 = vlaneseq
  %v233 = vshrl.u32 %v232, 7
  %v234 = vsub.s32 1, %v233
  %v235 = vrot.slane %v226, %v234
  %v236 = vlaneseq
  %v237 = vshrl.u32 %v236, 7
  %v238 = vsub.s32 2, %v237
  %v239 = vrot.slane %v226, %v238
  %v240 = vlaneseq
  %v241 = vshrl.u32 %v240, 7
  %v242 = vsub.s32 3, %v241
  %v243 = vrot.slane %v226, %v242
  %v248 = vadd.f32 %v162, %v231
  %v249 = vadd.f32 %v163, %v235
  %v250 = vadd.f32 %v164, %v239
  %v251 = vadd.f32 %v165, %v243
  %v252 = vadd.f32 %v166, %v231
  %v253 = vadd.f32 %v167, %v235
  %v254 = vadd.f32 %v168, %v239
  %v255 = vadd.f32 %v169, %v243
  %v256 = vadd.f32 %v170, %v231
  %v257 = vadd.f32 %v171, %v235
  %v258 = vadd.f32 %v172, %v239
  %v259 = vadd.f32 %v173, %v243
  %v260 = vadd.f32 %v174, %v231
  %v261 = vadd.f32 %v175, %v235
  %v262 = vadd.f32 %v176, %v239
  %v263 = vadd.f32 %v177, %v243
  %v264 = vadd.f32 %v178, %v231
  %v265 = vadd.f32 %v179, %v235
  %v266 = vadd.f32 %v180, %v239
  %v267 = vadd.f32 %v181, %v243
  %v268 = vadd.f32 %v182, %v231
  %v269 = vadd.f32 %v183, %v235
  %v270 = vadd.f32 %v184, %v239
  %v271 = vadd.f32 %v185, %v243
  %v272 = vadd.f32 %v186, %v231
  %v273 = vadd.f32 %v187, %v235
  %v274 = vadd.f32 %v188, %v239
  %v275 = vadd.f32 %v189, %v243
  %v276 = vadd.f32 %v190, %v231
  %v277 = vadd.f32 %v191, %v235
  %v278 = vadd.f32 %v192, %v239
  %v279 = vadd.f32 %v193, %v243
  %v280 = vadd.f32 %v194, %v231
  %v281 = vadd.f32 %v195, %v235
  %v282 = vadd.f32 %v196, %v239
  %v283 = vadd.f32 %v197, %v243
  %v284 = vadd.f32 %v198, %v231
  %v285 = vadd.f32 %v199, %v235
  %v286 = vadd.f32 %v200, %v239
  %v287 = vadd.f32 %v201, %v243
  %v288 = vadd.f32 %v202, %v231
  %v289 = vadd.f32 %v203, %v235
  %v290 = vadd.f32 %v204, %v239
  %v291 = vadd.f32 %v205, %v243
  %v292 = vadd.f32 %v206, %v231
  %v293 = vadd.f32 %v207, %v235
  %v294 = vadd.f32 %v208, %v239
  %v295 = vadd.f32 %v209, %v243
  %v296 = vadd.f32 %v210, %v231
  %v297 = vadd.f32 %v211, %v235
  %v298 = vadd.f32 %v212, %v239
  %v299 = vadd.f32 %v213, %v243
  %v300 = vadd.f32 %v214, %v231
  %v301 = vadd.f32 %v215, %v235
  %v302 = vadd.f32 %v216, %v239
  %v303 = vadd.f32 %v217, %v243
  %v304 = vadd.f32 %v218, %v231
  %v305 = vadd.f32 %v219, %v235
  %v306 = vadd.f32 %v220, %v239
  %v307 = vadd.f32 %v221, %v243
  %v308 = vadd.f32 %v222, %v231
  %v309 = vadd.f32 %v223, %v235
  %v310 = vadd.f32 %v224, %v239
  %v311 = vadd.f32 %v225, %v243
  %vm312 = vcmp.ge.f32.partialorder %v248, 0.0
  %vm313 = vcmp.ge.f32.partialorder %v249, 0.0
  %vm314 = vcmp.ge.f32.partialorder %v250, 0.0
  %vm315 = vcmp.ge.f32.partialorder %v251, 0.0
  %vm316 = vcmp.ge.f32.partialorder %v252, 0.0
  %vm317 = vcmp.ge.f32.partialorder %v253, 0.0
  %vm318 = vcmp.ge.f32.partialorder %v254, 0.0
  %vm319 = vcmp.ge.f32.partialorder %v255, 0.0
  %vm320 = vcmp.ge.f32.partialorder %v256, 0.0
  %vm321 = vcmp.ge.f32.partialorder %v257, 0.0
  %vm322 = vcmp.ge.f32.partialorder %v258, 0.0
  %vm323 = vcmp.ge.f32.partialorder %v259, 0.0
  %vm324 = vcmp.ge.f32.partialorder %v260, 0.0
  %vm325 = vcmp.ge.f32.partialorder %v261, 0.0
  %vm326 = vcmp.ge.f32.partialorder %v262, 0.0
  %vm327 = vcmp.ge.f32.partialorder %v263, 0.0
  %vm328 = vcmp.ge.f32.partialorder %v264, 0.0
  %vm329 = vcmp.ge.f32.partialorder %v265, 0.0
  %vm330 = vcmp.ge.f32.partialorder %v266, 0.0
  %vm331 = vcmp.ge.f32.partialorder %v267, 0.0
  %vm332 = vcmp.ge.f32.partialorder %v268, 0.0
  %vm333 = vcmp.ge.f32.partialorder %v269, 0.0
  %vm334 = vcmp.ge.f32.partialorder %v270, 0.0
  %vm335 = vcmp.ge.f32.partialorder %v271, 0.0
  %vm336 = vcmp.ge.f32.partialorder %v272, 0.0
  %vm337 = vcmp.ge.f32.partialorder %v273, 0.0
  %vm338 = vcmp.ge.f32.partialorder %v274, 0.0
  %vm339 = vcmp.ge.f32.partialorder %v275, 0.0
  %vm340 = vcmp.ge.f32.partialorder %v276, 0.0
  %vm341 = vcmp.ge.f32.partialorder %v277, 0.0
  %vm342 = vcmp.ge.f32.partialorder %v278, 0.0
  %vm343 = vcmp.ge.f32.partialorder %v279, 0.0
  %vm344 = vcmp.ge.f32.partialorder %v280, 0.0
  %vm345 = vcmp.ge.f32.partialorder %v281, 0.0
  %vm346 = vcmp.ge.f32.partialorder %v282, 0.0
  %vm347 = vcmp.ge.f32.partialorder %v283, 0.0
  %vm348 = vcmp.ge.f32.partialorder %v284, 0.0
  %vm349 = vcmp.ge.f32.partialorder %v285, 0.0
  %vm350 = vcmp.ge.f32.partialorder %v286, 0.0
  %vm351 = vcmp.ge.f32.partialorder %v287, 0.0
  %vm352 = vcmp.ge.f32.partialorder %v288, 0.0
  %vm353 = vcmp.ge.f32.partialorder %v289, 0.0
  %vm354 = vcmp.ge.f32.partialorder %v290, 0.0
  %vm355 = vcmp.ge.f32.partialorder %v291, 0.0
  %vm356 = vcmp.ge.f32.partialorder %v292, 0.0
  %vm357 = vcmp.ge.f32.partialorder %v293, 0.0
  %vm358 = vcmp.ge.f32.partialorder %v294, 0.0
  %vm359 = vcmp.ge.f32.partialorder %v295, 0.0
  %vm360 = vcmp.ge.f32.partialorder %v296, 0.0
  %vm361 = vcmp.ge.f32.partialorder %v297, 0.0
  %vm362 = vcmp.ge.f32.partialorder %v298, 0.0
  %vm363 = vcmp.ge.f32.partialorder %v299, 0.0
  %vm364 = vcmp.ge.f32.partialorder %v300, 0.0
  %vm365 = vcmp.ge.f32.partialorder %v301, 0.0
  %vm366 = vcmp.ge.f32.partialorder %v302, 0.0
  %vm367 = vcmp.ge.f32.partialorder %v303, 0.0
  %vm368 = vcmp.ge.f32.partialorder %v304, 0.0
  %vm369 = vcmp.ge.f32.partialorder %v305, 0.0
  %vm370 = vcmp.ge.f32.partialorder %v306, 0.0
  %vm371 = vcmp.ge.f32.partialorder %v307, 0.0
  %vm372 = vcmp.ge.f32.partialorder %v308, 0.0
  %vm373 = vcmp.ge.f32.partialorder %v309, 0.0
  %vm374 = vcmp.ge.f32.partialorder %v310, 0.0
  %vm375 = vcmp.ge.f32.partialorder %v311, 0.0
  %v376 = vmul.f32 %v248, 0.2
  %v377 = vmul.f32 %v249, 0.2
  %v378 = vmul.f32 %v250, 0.2
  %v379 = vmul.f32 %v251, 0.2
  %v380 = vmul.f32 %v252, 0.2
  %v381 = vmul.f32 %v253, 0.2
  %v382 = vmul.f32 %v254, 0.2
  %v383 = vmul.f32 %v255, 0.2
  %v384 = vmul.f32 %v256, 0.2
  %v385 = vmul.f32 %v257, 0.2
  %v386 = vmul.f32 %v258, 0.2
  %v387 = vmul.f32 %v259, 0.2
  %v388 = vmul.f32 %v260, 0.2
  %v389 = vmul.f32 %v261, 0.2
  %v390 = vmul.f32 %v262, 0.2
  %v391 = vmul.f32 %v263, 0.2
  %v392 = vmul.f32 %v264, 0.2
  %v393 = vmul.f32 %v265, 0.2
  %v394 = vmul.f32 %v266, 0.2
  %v395 = vmul.f32 %v267, 0.2
  %v396 = vmul.f32 %v268, 0.2
  %v397 = vmul.f32 %v269, 0.2
  %v398 = vmul.f32 %v270, 0.2
  %v399 = vmul.f32 %v271, 0.2
  %v400 = vmul.f32 %v272, 0.2
  %v401 = vmul.f32 %v273, 0.2
  %v402 = vmul.f32 %v274, 0.2
  %v403 = vmul.f32 %v275, 0.2
  %v404 = vmul.f32 %v276, 0.2
  %v405 = vmul.f32 %v277, 0.2
  %v406 = vmul.f32 %v278, 0.2
  %v407 = vmul.f32 %v279, 0.2
  %v408 = vmul.f32 %v280, 0.2
  %v409 = vmul.f32 %v281, 0.2
  %v410 = vmul.f32 %v282, 0.2
  %v411 = vmul.f32 %v283, 0.2
  %v412 = vmul.f32 %v284, 0.2
  %v413 = vmul.f32 %v285, 0.2
  %v414 = vmul.f32 %v286, 0.2
  %v415 = vmul.f32 %v287, 0.2
  %v416 = vmul.f32 %v288, 0.2
  %v417 = vmul.f32 %v289, 0.2
  %v418 = vmul.f32 %v290, 0.2
  %v419 = vmul.f32 %v291, 0.2
  %v420 = vmul.f32 %v292, 0.2
  %v421 = vmul.f32 %v293, 0.2
  %v422 = vmul.f32 %v294, 0.2
  %v423 = vmul.f32 %v295, 0.2
  %v424 = vmul.f32 %v296, 0.2
  %v425 = vmul.f32 %v297, 0.2
  %v426 = vmul.f32 %v298, 0.2
  %v427 = vmul.f32 %v299, 0.2
  %v428 = vmul.f32 %v300, 0.2
  %v429 = vmul.f32 %v301, 0.2
  %v430 = vmul.f32 %v302, 0.2
  %v431 = vmul.f32 %v303, 0.2
  %v432 = vmul.f32 %v304, 0.2
  %v433 = vmul.f32 %v305, 0.2
  %v434 = vmul.f32 %v306, 0.2
  %v435 = vmul.f32 %v307, 0.2
  %v436 = vmul.f32 %v308, 0.2
  %v437 = vmul.f32 %v309, 0.2
  %v438 = vmul.f32 %v310, 0.2
  %v439 = vmul.f32 %v311, 0.2
  %v440 = vsel %vm312, %v248, %v376
  %v441 = vsel %vm313, %v249, %v377
  %v442 = vsel %vm314, %v250, %v378
  %v443 = vsel %vm315, %v251, %v379
  %v444 = vsel %vm316, %v252, %v380
  %v445 = vsel %vm317, %v253, %v381
  %v446 = vsel %vm318, %v254, %v382
  %v447 = vsel %vm319, %v255, %v383
  %v448 = vsel %vm320, %v256, %v384
  %v449 = vsel %vm321, %v257, %v385
  %v450 = vsel %vm322, %v258, %v386
  %v451 = vsel %vm323, %v259, %v387
  %v452 = vsel %vm324, %v260, %v388
  %v453 = vsel %vm325, %v261, %v389
  %v454 = vsel %vm326, %v262, %v390
  %v455 = vsel %vm327, %v263, %v391
  %v456 = vsel %vm328, %v264, %v392
  %v457 = vsel %vm329, %v265, %v393
  %v458 = vsel %vm330, %v266, %v394
  %v459 = vsel %vm331, %v267, %v395
  %v460 = vsel %vm332, %v268, %v396
  %v461 = vsel %vm333, %v269, %v397
  %v462 = vsel %vm334, %v270, %v398
  %v463 = vsel %vm335, %v271, %v399
  %v464 = vsel %vm336, %v272, %v400
  %v465 = vsel %vm337, %v273, %v401
  %v466 = vsel %vm338, %v274, %v402
  %v467 = vsel %vm339, %v275, %v403
  %v468 = vsel %vm340, %v276, %v404
  %v469 = vsel %vm341, %v277, %v405
  %v470 = vsel %vm342, %v278, %v406
  %v471 = vsel %vm343, %v279, %v407
  %v472 = vsel %vm344, %v280, %v408
  %v473 = vsel %vm345, %v281, %v409
  %v474 = vsel %vm346, %v282, %v410
  %v475 = vsel %vm347, %v283, %v411
  %v476 = vsel %vm348, %v284, %v412
  %v477 = vsel %vm349, %v285, %v413
  %v478 = vsel %vm350, %v286, %v414
  %v479 = vsel %vm351, %v287, %v415
  %v480 = vsel %vm352, %v288, %v416
  %v481 = vsel %vm353, %v289, %v417
  %v482 = vsel %vm354, %v290, %v418
  %v483 = vsel %vm355, %v291, %v419
  %v484 = vsel %vm356, %v292, %v420
  %v485 = vsel %vm357, %v293, %v421
  %v486 = vsel %vm358, %v294, %v422
  %v487 = vsel %vm359, %v295, %v423
  %v488 = vsel %vm360, %v296, %v424
  %v489 = vsel %vm361, %v297, %v425
  %v490 = vsel %vm362, %v298, %v426
  %v491 = vsel %vm363, %v299, %v427
  %v492 = vsel %vm364, %v300, %v428
  %v493 = vsel %vm365, %v301, %v429
  %v494 = vsel %vm366, %v302, %v430
  %v495 = vsel %vm367, %v303, %v431
  %v496 = vsel %vm368, %v304, %v432
  %v497 = vsel %vm369, %v305, %v433
  %v498 = vsel %vm370, %v306, %v434
  %v499 = vsel %vm371, %v307, %v435
  %v500 = vsel %vm372, %v308, %v436
  %v501 = vsel %vm373, %v309, %v437
  %v502 = vsel %vm374, %v310, %v438
  %v503 = vsel %vm375, %v311, %v439
  %v504 = vpack.c.bf16 %v444, %v440
  %v505 = vpack.c.bf16 %v445, %v441
  %v506 = vpack.c.bf16 %v446, %v442
  %v507 = vpack.c.bf16 %v447, %v443
  %v508 = vpack.c.bf16 %v452, %v448
  %v509 = vpack.c.bf16 %v453, %v449
  %v510 = vpack.c.bf16 %v454, %v450
  %v511 = vpack.c.bf16 %v455, %v451
  %v512 = vpack.c.bf16 %v460, %v456
  %v513 = vpack.c.bf16 %v461, %v457
  %v514 = vpack.c.bf16 %v462, %v458
  %v515 = vpack.c.bf16 %v463, %v459
  %v516 = vpack.c.bf16 %v468, %v464
  %v517 = vpack.c.bf16 %v469, %v465
  %v518 = vpack.c.bf16 %v470, %v466
  %v519 = vpack.c.bf16 %v471, %v467
  %v520 = vpack.c.bf16 %v476, %v472
  %v521 = vpack.c.bf16 %v477, %v473
  %v522 = vpack.c.bf16 %v478, %v474
  %v523 = vpack.c.bf16 %v479, %v475
  %v524 = vpack.c.bf16 %v484, %v480
  %v525 = vpack.c.bf16 %v485, %v481
  %v526 = vpack.c.bf16 %v486, %v482
  %v527 = vpack.c.bf16 %v487, %v483
  %v528 = vpack.c.bf16 %v492, %v488
  %v529 = vpack.c.bf16 %v493, %v489
  %v530 = vpack.c.bf16 %v494, %v490
  %v531 = vpack.c.bf16 %v495, %v491
  %v532 = vpack.c.bf16 %v500, %v496
  %v533 = vpack.c.bf16 %v501, %v497
  %v534 = vpack.c.bf16 %v502, %v498
  %v535 = vpack.c.bf16 %v503, %v499
  %v536 = vld [vmem:[#allocation2] sm:$0xff]
  %v537 = vld [vmem:[#allocation2 + $0x8] sm:$0xff]
  %v538 = vld [vmem:[#allocation2 + $0x10] sm:$0xff]
  %v539 = vld [vmem:[#allocation2 + $0x18] sm:$0xff]
  %v540 = vld [vmem:[#allocation2 + $0x20] sm:$0xff]
  %v541 = vld [vmem:[#allocation2 + $0x28] sm:$0xff]
  %v542 = vld [vmem:[#allocation2 + $0x30] sm:$0xff]
  %v543 = vld [vmem:[#allocation2 + $0x38] sm:$0xff]
  %v544 = vld [vmem:[#allocation2 + $0x40] sm:$0xff]
  %v545 = vld [vmem:[#allocation2 + $0x48] sm:$0xff]
  %v546 = vld [vmem:[#allocation2 + $0x50] sm:$0xff]
  %v547 = vld [vmem:[#allocation2 + $0x58] sm:$0xff]
  %v548 = vld [vmem:[#allocation2 + $0x60] sm:$0xff]
  %v549 = vld [vmem:[#allocation2 + $0x68] sm:$0xff]
  %v550 = vld [vmem:[#allocation2 + $0x70] sm:$0xff]
  %v551 = vld [vmem:[#allocation2 + $0x78] sm:$0xff]
  %v552 = vld [vmem:[%s1] sm:$0xf]
  %v553 = vld [vmem:[%s1 + $0x4] sm:$0xf]
  %v554 = vld [vmem:[%s1 + $0x8] sm:$0xf]
  %v555 = vld [vmem:[%s1 + $0xc] sm:$0xf]
  %v556 = vld [vmem:[%s1 + $0x10] sm:$0xf]
  %v557 = vld [vmem:[%s1 + $0x14] sm:$0xf]
  %v558 = vld [vmem:[%s1 + $0x18] sm:$0xf]
  %v559 = vld [vmem:[%s1 + $0x1c] sm:$0xf]
  %v560 = vld [vmem:[%s1 + $0x20] sm:$0xf]
  %v561 = vld [vmem:[%s1 + $0x24] sm:$0xf]
  %v562 = vld [vmem:[%s1 + $0x28] sm:$0xf]
  %v563 = vld [vmem:[%s1 + $0x2c] sm:$0xf]
  %v564 = vld [vmem:[%s1 + $0x30] sm:$0xf]
  %v565 = vld [vmem:[%s1 + $0x34] sm:$0xf]
  %v566 = vld [vmem:[%s1 + $0x38] sm:$0xf]
  %v567 = vld [vmem:[%s1 + $0x3c] sm:$0xf]
  %v568 = vld [vmem:[%s1 + $0x40] sm:$0xf]
  %v569 = vld [vmem:[%s1 + $0x44] sm:$0xf]
  %v570 = vld [vmem:[%s1 + $0x48] sm:$0xf]
  %v571 = vld [vmem:[%s1 + $0x4c] sm:$0xf]
  %v572 = vld [vmem:[%s1 + $0x50] sm:$0xf]
  %v573 = vld [vmem:[%s1 + $0x54] sm:$0xf]
  %v574 = vld [vmem:[%s1 + $0x58] sm:$0xf]
  %v575 = vld [vmem:[%s1 + $0x5c] sm:$0xf]
  %v576 = vld [vmem:[%s1 + $0x60] sm:$0xf]
  %v577 = vld [vmem:[%s1 + $0x64] sm:$0xf]
  %v578 = vld [vmem:[%s1 + $0x68] sm:$0xf]
  %v579 = vld [vmem:[%s1 + $0x6c] sm:$0xf]
  %v580 = vld [vmem:[%s1 + $0x70] sm:$0xf]
  %v581 = vld [vmem:[%s1 + $0x74] sm:$0xf]
  %v582 = vld [vmem:[%s1 + $0x78] sm:$0xf]
  %v583 = vld [vmem:[%s1 + $0x7c] sm:$0xf]
  %v584 = vld [vmem:[%s1 + $0x80] sm:$0xf]
  %v585 = vld [vmem:[%s1 + $0x84] sm:$0xf]
  %v586 = vld [vmem:[%s1 + $0x88] sm:$0xf]
  %v587 = vld [vmem:[%s1 + $0x8c] sm:$0xf]
  %v588 = vld [vmem:[%s1 + $0x90] sm:$0xf]
  %v589 = vld [vmem:[%s1 + $0x94] sm:$0xf]
  %v590 = vld [vmem:[%s1 + $0x98] sm:$0xf]
  %v591 = vld [vmem:[%s1 + $0x9c] sm:$0xf]
  %v592 = vld [vmem:[%s1 + $0xa0] sm:$0xf]
  %v593 = vld [vmem:[%s1 + $0xa4] sm:$0xf]
  %v594 = vld [vmem:[%s1 + $0xa8] sm:$0xf]
  %v595 = vld [vmem:[%s1 + $0xac] sm:$0xf]
  %v596 = vld [vmem:[%s1 + $0xb0] sm:$0xf]
  %v597 = vld [vmem:[%s1 + $0xb4] sm:$0xf]
  %v598 = vld [vmem:[%s1 + $0xb8] sm:$0xf]
  %v599 = vld [vmem:[%s1 + $0xbc] sm:$0xf]
  %v600 = vld [vmem:[%s1 + $0xc0] sm:$0xf]
  %v601 = vld [vmem:[%s1 + $0xc4] sm:$0xf]
  %v602 = vld [vmem:[%s1 + $0xc8] sm:$0xf]
  %v603 = vld [vmem:[%s1 + $0xcc] sm:$0xf]
  %v604 = vld [vmem:[%s1 + $0xd0] sm:$0xf]
  %v605 = vld [vmem:[%s1 + $0xd4] sm:$0xf]
  %v606 = vld [vmem:[%s1 + $0xd8] sm:$0xf]
  %v607 = vld [vmem:[%s1 + $0xdc] sm:$0xf]
  %v608 = vld [vmem:[%s1 + $0xe0] sm:$0xf]
  %v609 = vld [vmem:[%s1 + $0xe4] sm:$0xf]
  %v610 = vld [vmem:[%s1 + $0xe8] sm:$0xf]
  %v611 = vld [vmem:[%s1 + $0xec] sm:$0xf]
  %v612 = vld [vmem:[%s1 + $0xf0] sm:$0xf]
  %v613 = vld [vmem:[%s1 + $0xf4] sm:$0xf]
  %v614 = vld [vmem:[%s1 + $0xf8] sm:$0xf]
  %v615 = vld [vmem:[%s1 + $0xfc] sm:$0xf]
  %v680 = vunpack.c.l.b16 %v552
  %v681 = vunpack.c.l.b16 %v553
  %v682 = vunpack.c.l.b16 %v554
  %v683 = vunpack.c.l.b16 %v555
  %v684 = vunpack.c.l.b16 %v556
  %v685 = vunpack.c.l.b16 %v557
  %v686 = vunpack.c.l.b16 %v558
  %v687 = vunpack.c.l.b16 %v559
  %v688 = vunpack.c.l.b16 %v560
  %v689 = vunpack.c.l.b16 %v561
  %v690 = vunpack.c.l.b16 %v562
  %v691 = vunpack.c.l.b16 %v563
  %v692 = vunpack.c.l.b16 %v564
  %v693 = vunpack.c.l.b16 %v565
  %v694 = vunpack.c.l.b16 %v566
  %v695 = vunpack.c.l.b16 %v567
  %v696 = vunpack.c.l.b16 %v568
  %v697 = vunpack.c.l.b16 %v569
  %v698 = vunpack.c.l.b16 %v570
  %v699 = vunpack.c.l.b16 %v571
  %v700 = vunpack.c.l.b16 %v572
  %v701 = vunpack.c.l.b16 %v573
  %v702 = vunpack.c.l.b16 %v574
  %v703 = vunpack.c.l.b16 %v575
  %v704 = vunpack.c.l.b16 %v576
  %v705 = vunpack.c.l.b16 %v577
  %v706 = vunpack.c.l.b16 %v578
  %v707 = vunpack.c.l.b16 %v579
  %v708 = vunpack.c.l.b16 %v580
  %v709 = vunpack.c.l.b16 %v581
  %v710 = vunpack.c.l.b16 %v582
  %v711 = vunpack.c.l.b16 %v583
  %v712 = vunpack.c.l.b16 %v584
  %v713 = vunpack.c.l.b16 %v585
  %v714 = vunpack.c.l.b16 %v586
  %v715 = vunpack.c.l.b16 %v587
  %v716 = vunpack.c.l.b16 %v588
  %v717 = vunpack.c.l.b16 %v589
  %v718 = vunpack.c.l.b16 %v590
  %v719 = vunpack.c.l.b16 %v591
  %v720 = vunpack.c.l.b16 %v592
  %v721 = vunpack.c.l.b16 %v593
  %v722 = vunpack.c.l.b16 %v594
  %v723 = vunpack.c.l.b16 %v595
  %v724 = vunpack.c.l.b16 %v596
  %v725 = vunpack.c.l.b16 %v597
  %v726 = vunpack.c.l.b16 %v598
  %v727 = vunpack.c.l.b16 %v599
  %v728 = vunpack.c.l.b16 %v600
  %v729 = vunpack.c.l.b16 %v601
  %v730 = vunpack.c.l.b16 %v602
  %v731 = vunpack.c.l.b16 %v603
  %v732 = vunpack.c.l.b16 %v604
  %v733 = vunpack.c.l.b16 %v605
  %v734 = vunpack.c.l.b16 %v606
  %v735 = vunpack.c.l.b16 %v607
  %v736 = vunpack.c.l.b16 %v608
  %v737 = vunpack.c.l.b16 %v609
  %v738 = vunpack.c.l.b16 %v610
  %v739 = vunpack.c.l.b16 %v611
  %v740 = vunpack.c.l.b16 %v612
  %v741 = vunpack.c.l.b16 %v613
  %v742 = vunpack.c.l.b16 %v614
  %v743 = vunpack.c.l.b16 %v615
  %v744 = vpack.c.b16 %v681, %v680
  %v745 = vpack.c.b16 %v683, %v682
  %v746 = vpack.c.b16 %v685, %v684
  %v747 = vpack.c.b16 %v687, %v686
  %v748 = vpack.c.b16 %v689, %v688
  %v749 = vpack.c.b16 %v691, %v690
  %v750 = vpack.c.b16 %v693, %v692
  %v751 = vpack.c.b16 %v695, %v694
  %v752 = vpack.c.b16 %v697, %v696
  %v753 = vpack.c.b16 %v699, %v698
  %v754 = vpack.c.b16 %v701, %v700
  %v755 = vpack.c.b16 %v703, %v702
  %v756 = vpack.c.b16 %v705, %v704
  %v757 = vpack.c.b16 %v707, %v706
  %v758 = vpack.c.b16 %v709, %v708
  %v759 = vpack.c.b16 %v711, %v710
  %v760 = vpack.c.b16 %v713, %v712
  %v761 = vpack.c.b16 %v715, %v714
  %v762 = vpack.c.b16 %v717, %v716
  %v763 = vpack.c.b16 %v719, %v718
  %v764 = vpack.c.b16 %v721, %v720
  %v765 = vpack.c.b16 %v723, %v722
  %v766 = vpack.c.b16 %v725, %v724
  %v767 = vpack.c.b16 %v727, %v726
  %v768 = vpack.c.b16 %v729, %v728
  %v769 = vpack.c.b16 %v731, %v730
  %v770 = vpack.c.b16 %v733, %v732
  %v771 = vpack.c.b16 %v735, %v734
  %v772 = vpack.c.b16 %v737, %v736
  %v773 = vpack.c.b16 %v739, %v738
  %v774 = vpack.c.b16 %v741, %v740
  %v775 = vpack.c.b16 %v743, %v742
  %808 = vmatprep.subr.bf16.mxu0 0
  %809 = vmatpush1.bf16.msra.mxu0 %v751
  %810 = vmatprep.subr.bf16.mxu0 0
  %811 = vmatpush1.bf16.msra.mxu0 %v750
  %812 = vmatprep.subr.bf16.mxu0 0
  %813 = vmatpush1.bf16.msra.mxu0 %v749
  %814 = vmatprep.subr.bf16.mxu0 0
  %815 = vmatpush1.bf16.msra.mxu0 %v748
  %816 = vmatprep.subr.bf16.mxu0 0
  %817 = vmatpush1.bf16.msra.mxu0 %v747
  %818 = vmatprep.subr.bf16.mxu0 0
  %819 = vmatpush1.bf16.msra.mxu0 %v746
  %820 = vmatprep.subr.bf16.mxu0 0
  %821 = vmatpush1.bf16.msra.mxu0 %v745
  %822 = vmatprep.subr.bf16.mxu0 0
  %823 = vmatpush1.bf16.msra.mxu0 %v744
  %824 = vmatprep.subr.bf16.mxu0 0
  %825 = vmatpush2.bf16.msra.mxu0 %v759
  %826 = vmatprep.subr.bf16.mxu0 0
  %827 = vmatpush2.bf16.msra.mxu0 %v758
  %828 = vmatprep.subr.bf16.mxu0 0
  %829 = vmatpush2.bf16.msra.mxu0 %v757
  %830 = vmatprep.subr.bf16.mxu0 0
  %831 = vmatpush2.bf16.msra.mxu0 %v756
  %832 = vmatprep.subr.bf16.mxu0 0
  %833 = vmatpush2.bf16.msra.mxu0 %v755
  %834 = vmatprep.subr.bf16.mxu0 0
  %835 = vmatpush2.bf16.msra.mxu0 %v754
  %836 = vmatprep.subr.bf16.mxu0 0
  %837 = vmatpush2.bf16.msra.mxu0 %v753
  %838 = vmatprep.subr.bf16.mxu0 0
  %839 = vmatpush2.bf16.msra.mxu0 %v752
  %840 = vmatprep.mubr.bf16.mxu0 %v505
  %841 = vmatmul.mubr.bf16.gmra.mxu0 %v504
  %v842 = vpop.f32.mrf.mxu0
  %v843 = vadd.f32 0.0, %v842
  %v844 = vpop.f32.mrf.mxu0
  %v845 = vpop.f32.mrf.mxu0
  %v846 = vadd.f32 0.0, %v845
  %v847 = vpop.f32.mrf.mxu0
  %848 = vmatprep.mubr.bf16.mxu0 %v509
  %849 = vmatmul.mubr.bf16.gmra.mxu0 %v508
  %v850 = vpop.f32.mrf.mxu0
  %v851 = vadd.f32 0.0, %v850
  %v852 = vpop.f32.mrf.mxu0
  %v853 = vpop.f32.mrf.mxu0
  %v854 = vadd.f32 0.0, %v853
  %v855 = vpop.f32.mrf.mxu0
  %856 = vmatprep.mubr.bf16.mxu0 %v513
  %857 = vmatmul.mubr.bf16.gmra.mxu0 %v512
  %v858 = vpop.f32.mrf.mxu0
  %v859 = vadd.f32 0.0, %v858
  %v860 = vpop.f32.mrf.mxu0
  %v861 = vpop.f32.mrf.mxu0
  %v862 = vadd.f32 0.0, %v861
  %v863 = vpop.f32.mrf.mxu0
  %864 = vmatprep.mubr.bf16.mxu0 %v517
  %865 = vmatmul.mubr.bf16.gmra.mxu0 %v516
  %v866 = vpop.f32.mrf.mxu0
  %v867 = vadd.f32 0.0, %v866
  %v868 = vpop.f32.mrf.mxu0
  %v869 = vpop.f32.mrf.mxu0
  %v870 = vadd.f32 0.0, %v869
  %v871 = vpop.f32.mrf.mxu0
  %872 = vmatprep.mubr.bf16.mxu0 %v521
  %873 = vmatmul.mubr.bf16.gmra.mxu0 %v520
  %v874 = vpop.f32.mrf.mxu0
  %v875 = vadd.f32 0.0, %v874
  %v876 = vpop.f32.mrf.mxu0
  %v877 = vpop.f32.mrf.mxu0
  %v878 = vadd.f32 0.0, %v877
  %v879 = vpop.f32.mrf.mxu0
  %880 = vmatprep.mubr.bf16.mxu0 %v525
  %881 = vmatmul.mubr.bf16.gmra.mxu0 %v524
  %v882 = vpop.f32.mrf.mxu0
  %v883 = vadd.f32 0.0, %v882
  %v884 = vpop.f32.mrf.mxu0
  %v885 = vpop.f32.mrf.mxu0
  %v886 = vadd.f32 0.0, %v885
  %v887 = vpop.f32.mrf.mxu0
  %888 = vmatprep.mubr.bf16.mxu0 %v529
  %889 = vmatmul.mubr.bf16.gmra.mxu0 %v528
  %v890 = vpop.f32.mrf.mxu0
  %v891 = vadd.f32 0.0, %v890
  %v892 = vpop.f32.mrf.mxu0
  %v893 = vpop.f32.mrf.mxu0
  %v894 = vadd.f32 0.0, %v893
  %v895 = vpop.f32.mrf.mxu0
  %896 = vmatprep.mubr.bf16.mxu0 %v533
  %897 = vmatmul.mubr.bf16.gmra.mxu0 %v532
  %v898 = vpop.f32.mrf.mxu0
  %v899 = vadd.f32 0.0, %v898
  %v900 = vpop.f32.mrf.mxu0
  %v901 = vpop.f32.mrf.mxu0
  %v902 = vadd.f32 0.0, %v901
  %v903 = vpop.f32.mrf.mxu0
  %904 = vdwg.mxu0
  %905 = vmatprep.subr.bf16.mxu0 0
  %906 = vmatpush1.bf16.msra.mxu0 %v767
  %907 = vmatprep.subr.bf16.mxu0 0
  %908 = vmatpush1.bf16.msra.mxu0 %v766
  %909 = vmatprep.subr.bf16.mxu0 0
  %910 = vmatpush1.bf16.msra.mxu0 %v765
  %911 = vmatprep.subr.bf16.mxu0 0
  %912 = vmatpush1.bf16.msra.mxu0 %v764
  %913 = vmatprep.subr.bf16.mxu0 0
  %914 = vmatpush1.bf16.msra.mxu0 %v763
  %915 = vmatprep.subr.bf16.mxu0 0
  %916 = vmatpush1.bf16.msra.mxu0 %v762
  %917 = vmatprep.subr.bf16.mxu0 0
  %918 = vmatpush1.bf16.msra.mxu0 %v761
  %919 = vmatprep.subr.bf16.mxu0 0
  %920 = vmatpush1.bf16.msra.mxu0 %v760
  %921 = vmatprep.subr.bf16.mxu0 0
  %922 = vmatpush2.bf16.msra.mxu0 %v775
  %923 = vmatprep.subr.bf16.mxu0 0
  %924 = vmatpush2.bf16.msra.mxu0 %v774
  %925 = vmatprep.subr.bf16.mxu0 0
  %926 = vmatpush2.bf16.msra.mxu0 %v773
  %927 = vmatprep.subr.bf16.mxu0 0
  %928 = vmatpush2.bf16.msra.mxu0 %v772
  %929 = vmatprep.subr.bf16.mxu0 0
  %930 = vmatpush2.bf16.msra.mxu0 %v771
  %931 = vmatprep.subr.bf16.mxu0 0
  %932 = vmatpush2.bf16.msra.mxu0 %v770
  %933 = vmatprep.subr.bf16.mxu0 0
  %934 = vmatpush2.bf16.msra.mxu0 %v769
  %935 = vmatprep.subr.bf16.mxu0 0
  %936 = vmatpush2.bf16.msra.mxu0 %v768
  %937 = vmatprep.mubr.bf16.mxu0 %v507
  %938 = vmatmul.mubr.bf16.gmra.mxu0 %v506
  %v939 = vpop.f32.mrf.mxu0
  %v940 = vadd.f32 %v843, %v939
  %v941 = vpop.f32.mrf.mxu0
  %v942 = vpop.f32.mrf.mxu0
  %v943 = vadd.f32 %v846, %v942
  %v944 = vpop.f32.mrf.mxu0
  %945 = vmatprep.mubr.bf16.mxu0 %v511
  %946 = vmatmul.mubr.bf16.gmra.mxu0 %v510
  %v947 = vpop.f32.mrf.mxu0
  %v948 = vadd.f32 %v851, %v947
  %v949 = vpop.f32.mrf.mxu0
  %v950 = vpop.f32.mrf.mxu0
  %v951 = vadd.f32 %v854, %v950
  %v952 = vpop.f32.mrf.mxu0
  %953 = vmatprep.mubr.bf16.mxu0 %v515
  %954 = vmatmul.mubr.bf16.gmra.mxu0 %v514
  %v955 = vpop.f32.mrf.mxu0
  %v956 = vadd.f32 %v859, %v955
  %v957 = vpop.f32.mrf.mxu0
  %v958 = vpop.f32.mrf.mxu0
  %v959 = vadd.f32 %v862, %v958
  %v960 = vpop.f32.mrf.mxu0
  %961 = vmatprep.mubr.bf16.mxu0 %v519
  %962 = vmatmul.mubr.bf16.gmra.mxu0 %v518
  %v963 = vpop.f32.mrf.mxu0
  %v964 = vadd.f32 %v867, %v963
  %v965 = vpop.f32.mrf.mxu0
  %v966 = vpop.f32.mrf.mxu0
  %v967 = vadd.f32 %v870, %v966
  %v968 = vpop.f32.mrf.mxu0
  %969 = vmatprep.mubr.bf16.mxu0 %v523
  %970 = vmatmul.mubr.bf16.gmra.mxu0 %v522
  %v971 = vpop.f32.mrf.mxu0
  %v972 = vadd.f32 %v875, %v971
  %v973 = vpop.f32.mrf.mxu0
  %v974 = vpop.f32.mrf.mxu0
  %v975 = vadd.f32 %v878, %v974
  %v976 = vpop.f32.mrf.mxu0
  %977 = vmatprep.mubr.bf16.mxu0 %v527
  %978 = vmatmul.mubr.bf16.gmra.mxu0 %v526
  %v979 = vpop.f32.mrf.mxu0
  %v980 = vadd.f32 %v883, %v979
  %v981 = vpop.f32.mrf.mxu0
  %v982 = vpop.f32.mrf.mxu0
  %v983 = vadd.f32 %v886, %v982
  %v984 = vpop.f32.mrf.mxu0
  %985 = vmatprep.mubr.bf16.mxu0 %v531
  %986 = vmatmul.mubr.bf16.gmra.mxu0 %v530
  %v987 = vpop.f32.mrf.mxu0
  %v988 = vadd.f32 %v891, %v987
  %v989 = vpop.f32.mrf.mxu0
  %v990 = vpop.f32.mrf.mxu0
  %v991 = vadd.f32 %v894, %v990
  %v992 = vpop.f32.mrf.mxu0
  %993 = vmatprep.mubr.bf16.mxu0 %v535
  %994 = vmatmul.mubr.bf16.gmra.mxu0 %v534
  %v995 = vpop.f32.mrf.mxu0
  %v996 = vadd.f32 %v899, %v995
  %v997 = vpop.f32.mrf.mxu0
  %v998 = vpop.f32.mrf.mxu0
  %v999 = vadd.f32 %v902, %v998
  %v1000 = vpop.f32.mrf.mxu0
  %1001 = vdwg.mxu0
  %v1002 = vadd.f32 %v536, %v940
  %v1003 = vadd.f32 %v537, %v943
  %v1004 = vadd.f32 %v538, %v948
  %v1005 = vadd.f32 %v539, %v951
  %v1006 = vadd.f32 %v540, %v956
  %v1007 = vadd.f32 %v541, %v959
  %v1008 = vadd.f32 %v542, %v964
  %v1009 = vadd.f32 %v543, %v967
  %v1010 = vadd.f32 %v544, %v972
  %v1011 = vadd.f32 %v545, %v975
  %v1012 = vadd.f32 %v546, %v980
  %v1013 = vadd.f32 %v547, %v983
  %v1014 = vadd.f32 %v548, %v988
  %v1015 = vadd.f32 %v549, %v991
  %v1016 = vadd.f32 %v550, %v996
  %v1017 = vadd.f32 %v551, %v999
  %1018 = vst [vmem:[#allocation2] sm:$0xff] %v1002
  %1019 = vst [vmem:[#allocation2 + $0x8] sm:$0xff] %v1003
  %1020 = vst [vmem:[#allocation2 + $0x10] sm:$0xff] %v1004
  %1021 = vst [vmem:[#allocation2 + $0x18] sm:$0xff] %v1005
  %1022 = vst [vmem:[#allocation2 + $0x20] sm:$0xff] %v1006
  %1023 = vst [vmem:[#allocation2 + $0x28] sm:$0xff] %v1007
  %1024 = vst [vmem:[#allocation2 + $0x30] sm:$0xff] %v1008
  %1025 = vst [vmem:[#allocation2 + $0x38] sm:$0xff] %v1009
  %1026 = vst [vmem:[#allocation2 + $0x40] sm:$0xff] %v1010
  %1027 = vst [vmem:[#allocation2 + $0x48] sm:$0xff] %v1011
  %1028 = vst [vmem:[#allocation2 + $0x50] sm:$0xff] %v1012
  %1029 = vst [vmem:[#allocation2 + $0x58] sm:$0xff] %v1013
  %1030 = vst [vmem:[#allocation2 + $0x60] sm:$0xff] %v1014
  %1031 = vst [vmem:[#allocation2 + $0x68] sm:$0xff] %v1015
  %1032 = vst [vmem:[#allocation2 + $0x70] sm:$0xff] %v1016
  %1033 = vst [vmem:[#allocation2 + $0x78] sm:$0xff] %v1017
  // Predicated region
  $region26: #{_lambda_.7} parent=0 // pred_check
    %p1034 = pneg %p24
  $region27: #{_lambda_.7} parent=0 // pred_check_branch
    %1036 = sbr.rel (%p1034) target = $region29
  $region28: #{_lambda_.7} parent=0 // pred_region
    %v1037 = vld [vmem:[#allocation2] sm:$0xff]
    %v1038 = vld [vmem:[#allocation2 + $0x8] sm:$0xff]
    %v1039 = vld [vmem:[#allocation2 + $0x10] sm:$0xff]
    %v1040 = vld [vmem:[#allocation2 + $0x18] sm:$0xff]
    %v1041 = vld [vmem:[#allocation2 + $0x20] sm:$0xff]
    %v1042 = vld [vmem:[#allocation2 + $0x28] sm:$0xff]
    %v1043 = vld [vmem:[#allocation2 + $0x30] sm:$0xff]
    %v1044 = vld [vmem:[#allocation2 + $0x38] sm:$0xff]
    %v1045 = vld [vmem:[#allocation2 + $0x40] sm:$0xff]
    %v1046 = vld [vmem:[#allocation2 + $0x48] sm:$0xff]
    %v1047 = vld [vmem:[#allocation2 + $0x50] sm:$0xff]
    %v1048 = vld [vmem:[#allocation2 + $0x58] sm:$0xff]
    %v1049 = vld [vmem:[#allocation2 + $0x60] sm:$0xff]
    %v1050 = vld [vmem:[#allocation2 + $0x68] sm:$0xff]
    %v1051 = vld [vmem:[#allocation2 + $0x70] sm:$0xff]
    %v1052 = vld [vmem:[#allocation2 + $0x78] sm:$0xff]
    %v1053 = vld [vmem:[%s4] sm:$0x1]
    %v1055 = vlaneseq
    %v1056 = vshrl.u32 %v1055, 7
    %v1057 = vsub.s32 0, %v1056
    %v1058 = vrot.slane %v1053, %v1057
    %v1060 = vadd.f32 %v1037, %v1058
    %v1061 = vadd.f32 %v1038, %v1058
    %v1062 = vadd.f32 %v1039, %v1058
    %v1063 = vadd.f32 %v1040, %v1058
    %v1064 = vadd.f32 %v1041, %v1058
    %v1065 = vadd.f32 %v1042, %v1058
    %v1066 = vadd.f32 %v1043, %v1058
    %v1067 = vadd.f32 %v1044, %v1058
    %v1068 = vadd.f32 %v1045, %v1058
    %v1069 = vadd.f32 %v1046, %v1058
    %v1070 = vadd.f32 %v1047, %v1058
    %v1071 = vadd.f32 %v1048, %v1058
    %v1072 = vadd.f32 %v1049, %v1058
    %v1073 = vadd.f32 %v1050, %v1058
    %v1074 = vadd.f32 %v1051, %v1058
    %v1075 = vadd.f32 %v1052, %v1058
    %v1076 = vlaneseq
    %v1077 = vshrl.u32 %v1076, 7
    %v1078 = vadd.s32 %v1077, 8
    %v1079 = vadd.s32 %v1077, 16
    %v1080 = vadd.s32 %v1077, 24
    %v1081 = vadd.s32 %v1077, 32
    %v1082 = vadd.s32 %v1077, 40
    %v1083 = vadd.s32 %v1077, 48
    %v1084 = vadd.s32 %v1077, 56
    %v1085 = vadd.s32 %v1077, 64
    %v1086 = vadd.s32 %v1077, 72
    %v1087 = vadd.s32 %v1077, 80
    %v1088 = vadd.s32 %v1077, 88
    %v1089 = vadd.s32 %v1077, 96
    %v1090 = vadd.s32 %v1077, 104
    %v1091 = vadd.s32 %v1077, 112
    %v1092 = vadd.s32 %v1077, 120
    %v1093 = vstv %s23
    %v1094 = vadd.s32 %v1077, %v1093
    %v1095 = vadd.s32 %v1078, %v1093
    %v1096 = vadd.s32 %v1079, %v1093
    %v1097 = vadd.s32 %v1080, %v1093
    %v1098 = vadd.s32 %v1081, %v1093
    %v1099 = vadd.s32 %v1082, %v1093
    %v1100 = vadd.s32 %v1083, %v1093
    %v1101 = vadd.s32 %v1084, %v1093
    %v1102 = vadd.s32 %v1085, %v1093
    %v1103 = vadd.s32 %v1086, %v1093
    %v1104 = vadd.s32 %v1087, %v1093
    %v1105 = vadd.s32 %v1088, %v1093
    %v1106 = vadd.s32 %v1089, %v1093
    %v1107 = vadd.s32 %v1090, %v1093
    %v1108 = vadd.s32 %v1091, %v1093
    %v1109 = vadd.s32 %v1092, %v1093
    %vm1110 = vcmp.lt.s32.totalorder %v1094, 32
    %vm1111 = vcmp.lt.s32.totalorder %v1095, 32
    %vm1112 = vcmp.lt.s32.totalorder %v1096, 32
    %vm1113 = vcmp.lt.s32.totalorder %v1097, 32
    %vm1114 = vcmp.lt.s32.totalorder %v1098, 32
    %vm1115 = vcmp.lt.s32.totalorder %v1099, 32
    %vm1116 = vcmp.lt.s32.totalorder %v1100, 32
    %vm1117 = vcmp.lt.s32.totalorder %v1101, 32
    %vm1118 = vcmp.lt.s32.totalorder %v1102, 32
    %vm1119 = vcmp.lt.s32.totalorder %v1103, 32
    %vm1120 = vcmp.lt.s32.totalorder %v1104, 32
    %vm1121 = vcmp.lt.s32.totalorder %v1105, 32
    %vm1122 = vcmp.lt.s32.totalorder %v1106, 32
    %vm1123 = vcmp.lt.s32.totalorder %v1107, 32
    %vm1124 = vcmp.lt.s32.totalorder %v1108, 32
    %vm1125 = vcmp.lt.s32.totalorder %v1109, 32
    %v1126 = vsel %vm1110, %v1060, 0.0
    %v1127 = vsel %vm1111, %v1061, 0.0
    %v1128 = vsel %vm1112, %v1062, 0.0
    %v1129 = vsel %vm1113, %v1063, 0.0
    %v1130 = vsel %vm1114, %v1064, 0.0
    %v1131 = vsel %vm1115, %v1065, 0.0
    %v1132 = vsel %vm1116, %v1066, 0.0
    %v1133 = vsel %vm1117, %v1067, 0.0
    %v1134 = vsel %vm1118, %v1068, 0.0
    %v1135 = vsel %vm1119, %v1069, 0.0
    %v1136 = vsel %vm1120, %v1070, 0.0
    %v1137 = vsel %vm1121, %v1071, 0.0
    %v1138 = vsel %vm1122, %v1072, 0.0
    %v1139 = vsel %vm1123, %v1073, 0.0
    %v1140 = vsel %vm1124, %v1074, 0.0
    %v1141 = vsel %vm1125, %v1075, 0.0
    %v1142 = vadd.f32 %v1126, %v1127
    %v1143 = vadd.f32 %v1142, %v1128
    %v1144 = vadd.f32 %v1143, %v1129
    %v1145 = vadd.f32 %v1144, %v1130
    %v1146 = vadd.f32 %v1145, %v1131
    %v1147 = vadd.f32 %v1146, %v1132
    %v1148 = vadd.f32 %v1147, %v1133
    %v1149 = vadd.f32 %v1148, %v1134
    %v1150 = vadd.f32 %v1149, %v1135
    %v1151 = vadd.f32 %v1150, %v1136
    %v1152 = vadd.f32 %v1151, %v1137
    %v1153 = vadd.f32 %v1152, %v1138
    %v1154 = vadd.f32 %v1153, %v1139
    %v1155 = vadd.f32 %v1154, %v1140
    %v1156 = vadd.f32 %v1155, %v1141
    %v1157 = vrot.slane %v1156, 4
    %v1158 = vadd.f32 %v1156, %v1157
    %v1159 = vrot.slane %v1158, 2
    %v1160 = vadd.f32 %v1158, %v1159
    %v1161 = vrot.slane %v1160, 1
    %v1162 = vadd.f32 %v1160, %v1161
    %1163 = vst [vmem:[%s6] sm:$0x1] %v1162
    %v1164 = vmul.f32 %v1126, %v1126
    %v1165 = vmul.f32 %v1127, %v1127
    %v1166 = vmul.f32 %v1128, %v1128
    %v1167 = vmul.f32 %v1129, %v1129
    %v1168 = vmul.f32 %v1130, %v1130
    %v1169 = vmul.f32 %v1131, %v1131
    %v1170 = vmul.f32 %v1132, %v1132
    %v1171 = vmul.f32 %v1133, %v1133
    %v1172 = vmul.f32 %v1134, %v1134
    %v1173 = vmul.f32 %v1135, %v1135
    %v1174 = vmul.f32 %v1136, %v1136
    %v1175 = vmul.f32 %v1137, %v1137
    %v1176 = vmul.f32 %v1138, %v1138
    %v1177 = vmul.f32 %v1139, %v1139
    %v1178 = vmul.f32 %v1140, %v1140
    %v1179 = vmul.f32 %v1141, %v1141
    %v1180 = vadd.f32 %v1164, %v1165
    %v1181 = vadd.f32 %v1180, %v1166
    %v1182 = vadd.f32 %v1181, %v1167
    %v1183 = vadd.f32 %v1182, %v1168
    %v1184 = vadd.f32 %v1183, %v1169
    %v1185 = vadd.f32 %v1184, %v1170
    %v1186 = vadd.f32 %v1185, %v1171
    %v1187 = vadd.f32 %v1186, %v1172
    %v1188 = vadd.f32 %v1187, %v1173
    %v1189 = vadd.f32 %v1188, %v1174
    %v1190 = vadd.f32 %v1189, %v1175
    %v1191 = vadd.f32 %v1190, %v1176
    %v1192 = vadd.f32 %v1191, %v1177
    %v1193 = vadd.f32 %v1192, %v1178
    %v1194 = vadd.f32 %v1193, %v1179
    %v1195 = vrot.slane %v1194, 4
    %v1196 = vadd.f32 %v1194, %v1195
    %v1197 = vrot.slane %v1196, 2
    %v1198 = vadd.f32 %v1196, %v1197
    %v1199 = vrot.slane %v1198, 1
    %v1200 = vadd.f32 %v1198, %v1199
    %1201 = vst [vmem:[%s6 + $0x1] sm:$0x1] %v1200
    %1202 = vst [vmem:[%s6 + $0x2] sm:$0x3f] 0.0
    %v1203 = vpack.c.bf16 %v1061, %v1060
    %v1204 = vpack.c.bf16 %v1063, %v1062
    %v1205 = vpack.c.bf16 %v1065, %v1064
    %v1206 = vpack.c.bf16 %v1067, %v1066
    %v1207 = vpack.c.bf16 %v1069, %v1068
    %v1208 = vpack.c.bf16 %v1071, %v1070
    %v1209 = vpack.c.bf16 %v1073, %v1072
    %v1210 = vpack.c.bf16 %v1075, %v1074
    %v1219 = vunpack.c.l.b16 %v1203
    %v1220 = vunpack.c.h.b16 %v1203
    %v1221 = vunpack.c.l.b16 %v1204
    %v1222 = vunpack.c.h.b16 %v1204
    %v1223 = vunpack.c.l.b16 %v1205
    %v1224 = vunpack.c.h.b16 %v1205
    %v1225 = vunpack.c.l.b16 %v1206
    %v1226 = vunpack.c.h.b16 %v1206
    %v1227 = vunpack.c.l.b16 %v1207
    %v1228 = vunpack.c.h.b16 %v1207
    %v1229 = vunpack.c.l.b16 %v1208
    %v1230 = vunpack.c.h.b16 %v1208
    %v1231 = vunpack.c.l.b16 %v1209
    %v1232 = vunpack.c.h.b16 %v1209
    %v1233 = vunpack.c.l.b16 %v1210
    %v1234 = vunpack.c.h.b16 %v1210
    %v1235 = vpack.c.b16 %v1219, %v1219
    %v1236 = vpack.c.b16 %v1220, %v1220
    %v1237 = vpack.c.b16 %v1221, %v1221
    %v1238 = vpack.c.b16 %v1222, %v1222
    %v1239 = vpack.c.b16 %v1223, %v1223
    %v1240 = vpack.c.b16 %v1224, %v1224
    %v1241 = vpack.c.b16 %v1225, %v1225
    %v1242 = vpack.c.b16 %v1226, %v1226
    %v1243 = vpack.c.b16 %v1227, %v1227
    %v1244 = vpack.c.b16 %v1228, %v1228
    %v1245 = vpack.c.b16 %v1229, %v1229
    %v1246 = vpack.c.b16 %v1230, %v1230
    %v1247 = vpack.c.b16 %v1231, %v1231
    %v1248 = vpack.c.b16 %v1232, %v1232
    %v1249 = vpack.c.b16 %v1233, %v1233
    %v1250 = vpack.c.b16 %v1234, %v1234
    %1267 = vst [vmem:[%s5] sm:$0xf] %v1235
    %1268 = vst [vmem:[%s5 + $0x4] sm:$0xf] %v1236
    %1269 = vst [vmem:[%s5 + $0x8] sm:$0xf] %v1237
    %1270 = vst [vmem:[%s5 + $0xc] sm:$0xf] %v1238
    %1271 = vst [vmem:[%s5 + $0x10] sm:$0xf] %v1239
    %1272 = vst [vmem:[%s5 + $0x14] sm:$0xf] %v1240
    %1273 = vst [vmem:[%s5 + $0x18] sm:$0xf] %v1241
    %1274 = vst [vmem:[%s5 + $0x1c] sm:$0xf] %v1242
    %1275 = vst [vmem:[%s5 + $0x20] sm:$0xf] %v1243
    %1276 = vst [vmem:[%s5 + $0x24] sm:$0xf] %v1244
    %1277 = vst [vmem:[%s5 + $0x28] sm:$0xf] %v1245
    %1278 = vst [vmem:[%s5 + $0x2c] sm:$0xf] %v1246
    %1279 = vst [vmem:[%s5 + $0x30] sm:$0xf] %v1247
    %1280 = vst [vmem:[%s5 + $0x34] sm:$0xf] %v1248
    %1281 = vst [vmem:[%s5 + $0x38] sm:$0xf] %v1249
    %1282 = vst [vmem:[%s5 + $0x3c] sm:$0xf] %v1250
  $region29: #{_lambda_.7} parent=0 // pred_fallthru
    _
  // Predicated region
  $region30: #{_lambda_.7} parent=0 // pred_check
    _
  $region31: #{_lambda_.7} parent=0 // pred_check_branch
    %1284 = sbr.rel (0) target = $region33
  $region32: #{_lambda_.7} parent=0 // pred_region
    _
  $region33: #{_lambda_.7} parent=0 // pred_fallthru
    _
  // Predicated region
  $region34: #{_lambda_.7} parent=0 // pred_check
    _
  $region35: #{_lambda_.7} parent=0 // pred_check_branch
    %1286 = sbr.rel (0) target = $region37
  $region36: #{_lambda_.7} parent=0 // pred_region
    _
  $region37: #{_lambda_.7} parent=0 // pred_fallthru
    _
  // Predicated region
  $region38: #{_lambda_.7} parent=0 // pred_check
    _
  $region39: #{_lambda_.7} parent=0 // pred_check_branch
    %1288 = sbr.rel (0) target = $region41
  $region40: #{_lambda_.7} parent=0 // pred_region
    _
  $region41: #{_lambda_.7} parent=0 // pred_fallthru
    _
  // Predicated region
  $region42: #{_lambda_.7} parent=0 // pred_check
    _
  $region43: #{_lambda_.7} parent=0 // pred_check_branch
    %1290 = sbr.rel (0) target = $region45
  $region44: #{_lambda_.7} parent=0 // pred_region
    _
  $region45: #{_lambda_.7} parent=0 // pred_fallthru
    _

// kernel: tile.53
$region0: #{tile.53}
  #allocation0 [shape = 's32[1]{0}', space=sflag, size = 0x4, scoped, tag = 'scoped memory for tile.53']
  %s0 = inlined_call_operand.vmem [shape: f32[128], index: 0, kind: input, shape index: {}]
  %s1 = inlined_call_operand.vmem [shape: f32[16,128], index: 1, kind: output, shape index: {}]
  // Predicated region
  $region2: #{tile.53} parent=0 // pred_check
    _
  $region3: #{tile.53} parent=0 // pred_check_branch
    %3 = sbr.rel (0) target = $region5
  $region4: #{tile.53} parent=0 // pred_region
    _
  $region5: #{tile.53} parent=0 // pred_fallthru
    _
  %v4 = vld [vmem:[%s0] ss:$0 sm:$0xff]
  %5 = vst [vmem:[%s1] sm:$0xff] %v4
  %s6 = scalar_lea.vmem %s1, 8
  %7 = vst [vmem:[%s6] sm:$0xff] %v4

// kernel: _lambda_.8
$region0: #{_lambda_.8}
  #allocation0 [shape = 'u32[]', space=smem, size = 0x4, offset = 0x4, fixed_abs, tag = 'smem constant byte address 0x4 - core index']
  #allocation1 [shape = 'u32[144,128]{1,0:T(1,128)}', space=vmem, size = 0x12000, scoped, tag = 'internal scratch']
  #allocation2 [shape = 'f32[128,128]{1,0:T(8,128)}', space=vmem, size = 0x10000, scoped, tag = 'scratch operand']
  %s0 = inlined_call_operand.vmem [shape: bf16[128,1024], index: 0, kind: input, shape index: {}]
  %s1 = inlined_call_operand.vmem [shape: bf16[1024,128], index: 1, kind: input, shape index: {}]
  %s2 = inlined_call_operand.vmem [shape: f32[1,1024], index: 2, kind: input, shape index: {}]
  %s3 = inlined_call_operand.vmem [shape: f32[1,1024], index: 3, kind: input, shape index: {}]
  %s4 = inlined_call_operand.vmem [shape: f32[1,128], index: 4, kind: input, shape index: {}]
  %s5 = inlined_call_operand.vmem [shape: bf16[128,128], index: 5, kind: output, shape index: {0}]
  %s6 = inlined_call_operand.vmem [shape: f32[8,128], index: 6, kind: output, shape index: {1}]
  %7 = xla_tuple %s5, %s6
  %s8 = sld [smem:[#allocation0]]
  $region46: #{_lambda_.8} parent=0
    _
  %s10 = ssub.s32 1, %s8
  %s11 = scalar_select 0, %s10, %s8
  // Predicated region
  $region2: #{_lambda_.8} parent=0 // pred_check
    _
  $region3: #{_lambda_.8} parent=0 // pred_check_branch
    %13 = sbr.rel (0) target = $region5
  $region4: #{_lambda_.8} parent=0 // pred_region
    _
  $region5: #{_lambda_.8} parent=0 // pred_fallthru
    _
  // Predicated region
  $region6: #{_lambda_.8} parent=0 // pred_check
    _
  $region7: #{_lambda_.8} parent=0 // pred_check_branch
    %15 = sbr.rel (0) target = $region9
  $region8: #{_lambda_.8} parent=0 // pred_region
    _
  $region9: #{_lambda_.8} parent=0 // pred_fallthru
    _
  // Predicated region
  $region10: #{_lambda_.8} parent=0 // pred_check
    _
  $region11: #{_lambda_.8} parent=0 // pred_check_branch
    %17 = sbr.rel (0) target = $region13
  $region12: #{_lambda_.8} parent=0 // pred_region
    _
  $region13: #{_lambda_.8} parent=0 // pred_fallthru
    _
  // Predicated region
  $region14: #{_lambda_.8} parent=0 // pred_check
    _
  $region15: #{_lambda_.8} parent=0 // pred_check_branch
    %19 = sbr.rel (0) target = $region17
  $region16: #{_lambda_.8} parent=0 // pred_region
    _
  $region17: #{_lambda_.8} parent=0 // pred_fallthru
    _
  // Predicated region
  $region18: #{_lambda_.8} parent=0 // pred_check
    _
  $region19: #{_lambda_.8} parent=0 // pred_check_branch
    %21 = sbr.rel (0) target = $region21
  $region20: #{_lambda_.8} parent=0 // pred_region
    _
  $region21: #{_lambda_.8} parent=0 // pred_fallthru
    _
  %s23 = smul.u32 0, 128
  %p24 = scmp.eq.s32.totalorder 0, 0
  // Predicated region
  $region22: #{_lambda_.8} parent=0 // pred_check
    %p25 = pneg %p24
  $region23: #{_lambda_.8} parent=0 // pred_check_branch
    %27 = sbr.rel (%p25) target = $region25
  $region24: #{_lambda_.8} parent=0 // pred_region
    %28 = vst [vmem:[#allocation2] sm:$0xff] 0.0
    %29 = vst [vmem:[#allocation2 + $0x8] sm:$0xff] 0.0
    %30 = vst [vmem:[#allocation2 + $0x10] sm:$0xff] 0.0
    %31 = vst [vmem:[#allocation2 + $0x18] sm:$0xff] 0.0
    %32 = vst [vmem:[#allocation2 + $0x20] sm:$0xff] 0.0
    %33 = vst [vmem:[#allocation2 + $0x28] sm:$0xff] 0.0
    %34 = vst [vmem:[#allocation2 + $0x30] sm:$0xff] 0.0
    %35 = vst [vmem:[#allocation2 + $0x38] sm:$0xff] 0.0
    %36 = vst [vmem:[#allocation2 + $0x40] sm:$0xff] 0.0
    %37 = vst [vmem:[#allocation2 + $0x48] sm:$0xff] 0.0
    %38 = vst [vmem:[#allocation2 + $0x50] sm:$0xff] 0.0
    %39 = vst [vmem:[#allocation2 + $0x58] sm:$0xff] 0.0
    %40 = vst [vmem:[#allocation2 + $0x60] sm:$0xff] 0.0
    %41 = vst [vmem:[#allocation2 + $0x68] sm:$0xff] 0.0
    %42 = vst [vmem:[#allocation2 + $0x70] sm:$0xff] 0.0
    %43 = vst [vmem:[#allocation2 + $0x78] sm:$0xff] 0.0
  $region25: #{_lambda_.8} parent=0 // pred_fallthru
    _
  %v44 = vld [vmem:[%s0] sm:$0xff]
  %v45 = vld [vmem:[%s0 + $0x8] sm:$0xff]
  %v46 = vld [vmem:[%s0 + $0x10] sm:$0xff]
  %v47 = vld [vmem:[%s0 + $0x18] sm:$0xff]
  %v48 = vld [vmem:[%s0 + $0x20] sm:$0xff]
  %v49 = vld [vmem:[%s0 + $0x28] sm:$0xff]
  %v50 = vld [vmem:[%s0 + $0x30] sm:$0xff]
  %v51 = vld [vmem:[%s0 + $0x38] sm:$0xff]
  %v52 = vld [vmem:[%s0 + $0x40] sm:$0xff]
  %v53 = vld [vmem:[%s0 + $0x48] sm:$0xff]
  %v54 = vld [vmem:[%s0 + $0x50] sm:$0xff]
  %v55 = vld [vmem:[%s0 + $0x58] sm:$0xff]
  %v56 = vld [vmem:[%s0 + $0x60] sm:$0xff]
  %v57 = vld [vmem:[%s0 + $0x68] sm:$0xff]
  %v58 = vld [vmem:[%s0 + $0x70] sm:$0xff]
  %v59 = vld [vmem:[%s0 + $0x78] sm:$0xff]
  %v60 = vld [vmem:[%s0 + $0x80] sm:$0xff]
  %v61 = vld [vmem:[%s0 + $0x88] sm:$0xff]
  %v62 = vld [vmem:[%s0 + $0x90] sm:$0xff]
  %v63 = vld [vmem:[%s0 + $0x98] sm:$0xff]
  %v64 = vld [vmem:[%s0 + $0xa0] sm:$0xff]
  %v65 = vld [vmem:[%s0 + $0xa8] sm:$0xff]
  %v66 = vld [vmem:[%s0 + $0xb0] sm:$0xff]
  %v67 = vld [vmem:[%s0 + $0xb8] sm:$0xff]
  %v68 = vld [vmem:[%s0 + $0xc0] sm:$0xff]
  %v69 = vld [vmem:[%s0 + $0xc8] sm:$0xff]
  %v70 = vld [vmem:[%s0 + $0xd0] sm:$0xff]
  %v71 = vld [vmem:[%s0 + $0xd8] sm:$0xff]
  %v72 = vld [vmem:[%s0 + $0xe0] sm:$0xff]
  %v73 = vld [vmem:[%s0 + $0xe8] sm:$0xff]
  %v74 = vld [vmem:[%s0 + $0xf0] sm:$0xff]
  %v75 = vld [vmem:[%s0 + $0xf8] sm:$0xff]
  %v76 = vld [vmem:[%s0 + $0x100] sm:$0xff]
  %v77 = vld [vmem:[%s0 + $0x108] sm:$0xff]
  %v78 = vld [vmem:[%s0 + $0x110] sm:$0xff]
  %v79 = vld [vmem:[%s0 + $0x118] sm:$0xff]
  %v80 = vld [vmem:[%s0 + $0x120] sm:$0xff]
  %v81 = vld [vmem:[%s0 + $0x128] sm:$0xff]
  %v82 = vld [vmem:[%s0 + $0x130] sm:$0xff]
  %v83 = vld [vmem:[%s0 + $0x138] sm:$0xff]
  %v84 = vld [vmem:[%s0 + $0x140] sm:$0xff]
  %v85 = vld [vmem:[%s0 + $0x148] sm:$0xff]
  %v86 = vld [vmem:[%s0 + $0x150] sm:$0xff]
  %v87 = vld [vmem:[%s0 + $0x158] sm:$0xff]
  %v88 = vld [vmem:[%s0 + $0x160] sm:$0xff]
  %v89 = vld [vmem:[%s0 + $0x168] sm:$0xff]
  %v90 = vld [vmem:[%s0 + $0x170] sm:$0xff]
  %v91 = vld [vmem:[%s0 + $0x178] sm:$0xff]
  %v92 = vld [vmem:[%s0 + $0x180] sm:$0xff]
  %v93 = vld [vmem:[%s0 + $0x188] sm:$0xff]
  %v94 = vld [vmem:[%s0 + $0x190] sm:$0xff]
  %v95 = vld [vmem:[%s0 + $0x198] sm:$0xff]
  %v96 = vld [vmem:[%s0 + $0x1a0] sm:$0xff]
  %v97 = vld [vmem:[%s0 + $0x1a8] sm:$0xff]
  %v98 = vld [vmem:[%s0 + $0x1b0] sm:$0xff]
  %v99 = vld [vmem:[%s0 + $0x1b8] sm:$0xff]
  %v100 = vld [vmem:[%s0 + $0x1c0] sm:$0xff]
  %v101 = vld [vmem:[%s0 + $0x1c8] sm:$0xff]
  %v102 = vld [vmem:[%s0 + $0x1d0] sm:$0xff]
  %v103 = vld [vmem:[%s0 + $0x1d8] sm:$0xff]
  %v104 = vld [vmem:[%s0 + $0x1e0] sm:$0xff]
  %v105 = vld [vmem:[%s0 + $0x1e8] sm:$0xff]
  %v106 = vld [vmem:[%s0 + $0x1f0] sm:$0xff]
  %v107 = vld [vmem:[%s0 + $0x1f8] sm:$0xff]
  %v108 = vunpack.c.l.bf16 %v44
  %v109 = vunpack.c.h.bf16 %v44
  %v110 = vunpack.c.l.bf16 %v45
  %v111 = vunpack.c.h.bf16 %v45
  %v112 = vunpack.c.l.bf16 %v46
  %v113 = vunpack.c.h.bf16 %v46
  %v114 = vunpack.c.l.bf16 %v47
  %v115 = vunpack.c.h.bf16 %v47
  %v116 = vunpack.c.l.bf16 %v48
  %v117 = vunpack.c.h.bf16 %v48
  %v118 = vunpack.c.l.bf16 %v49
  %v119 = vunpack.c.h.bf16 %v49
  %v120 = vunpack.c.l.bf16 %v50
  %v121 = vunpack.c.h.bf16 %v50
  %v122 = vunpack.c.l.bf16 %v51
  %v123 = vunpack.c.h.bf16 %v51
  %v124 = vunpack.c.l.bf16 %v52
  %v125 = vunpack.c.h.bf16 %v52
  %v126 = vunpack.c.l.bf16 %v53
  %v127 = vunpack.c.h.bf16 %v53
  %v128 = vunpack.c.l.bf16 %v54
  %v129 = vunpack.c.h.bf16 %v54
  %v130 = vunpack.c.l.bf16 %v55
  %v131 = vunpack.c.h.bf16 %v55
  %v132 = vunpack.c.l.bf16 %v56
  %v133 = vunpack.c.h.bf16 %v56
  %v134 = vunpack.c.l.bf16 %v57
  %v135 = vunpack.c.h.bf16 %v57
  %v136 = vunpack.c.l.bf16 %v58
  %v137 = vunpack.c.h.bf16 %v58
  %v138 = vunpack.c.l.bf16 %v59
  %v139 = vunpack.c.h.bf16 %v59
  %v140 = vunpack.c.l.bf16 %v60
  %v141 = vunpack.c.h.bf16 %v60
  %v142 = vunpack.c.l.bf16 %v61
  %v143 = vunpack.c.h.bf16 %v61
  %v144 = vunpack.c.l.bf16 %v62
  %v145 = vunpack.c.h.bf16 %v62
  %v146 = vunpack.c.l.bf16 %v63
  %v147 = vunpack.c.h.bf16 %v63
  %v148 = vunpack.c.l.bf16 %v64
  %v149 = vunpack.c.h.bf16 %v64
  %v150 = vunpack.c.l.bf16 %v65
  %v151 = vunpack.c.h.bf16 %v65
  %v152 = vunpack.c.l.bf16 %v66
  %v153 = vunpack.c.h.bf16 %v66
  %v154 = vunpack.c.l.bf16 %v67
  %v155 = vunpack.c.h.bf16 %v67
  %v156 = vunpack.c.l.bf16 %v68
  %v157 = vunpack.c.h.bf16 %v68
  %v158 = vunpack.c.l.bf16 %v69
  %v159 = vunpack.c.h.bf16 %v69
  %v160 = vunpack.c.l.bf16 %v70
  %v161 = vunpack.c.h.bf16 %v70
  %v162 = vunpack.c.l.bf16 %v71
  %v163 = vunpack.c.h.bf16 %v71
  %v164 = vunpack.c.l.bf16 %v72
  %v165 = vunpack.c.h.bf16 %v72
  %v166 = vunpack.c.l.bf16 %v73
  %v167 = vunpack.c.h.bf16 %v73
  %v168 = vunpack.c.l.bf16 %v74
  %v169 = vunpack.c.h.bf16 %v74
  %v170 = vunpack.c.l.bf16 %v75
  %v171 = vunpack.c.h.bf16 %v75
  %v172 = vunpack.c.l.bf16 %v76
  %v173 = vunpack.c.h.bf16 %v76
  %v174 = vunpack.c.l.bf16 %v77
  %v175 = vunpack.c.h.bf16 %v77
  %v176 = vunpack.c.l.bf16 %v78
  %v177 = vunpack.c.h.bf16 %v78
  %v178 = vunpack.c.l.bf16 %v79
  %v179 = vunpack.c.h.bf16 %v79
  %v180 = vunpack.c.l.bf16 %v80
  %v181 = vunpack.c.h.bf16 %v80
  %v182 = vunpack.c.l.bf16 %v81
  %v183 = vunpack.c.h.bf16 %v81
  %v184 = vunpack.c.l.bf16 %v82
  %v185 = vunpack.c.h.bf16 %v82
  %v186 = vunpack.c.l.bf16 %v83
  %v187 = vunpack.c.h.bf16 %v83
  %v188 = vunpack.c.l.bf16 %v84
  %v189 = vunpack.c.h.bf16 %v84
  %v190 = vunpack.c.l.bf16 %v85
  %v191 = vunpack.c.h.bf16 %v85
  %v192 = vunpack.c.l.bf16 %v86
  %v193 = vunpack.c.h.bf16 %v86
  %v194 = vunpack.c.l.bf16 %v87
  %v195 = vunpack.c.h.bf16 %v87
  %v196 = vunpack.c.l.bf16 %v88
  %v197 = vunpack.c.h.bf16 %v88
  %v198 = vunpack.c.l.bf16 %v89
  %v199 = vunpack.c.h.bf16 %v89
  %v200 = vunpack.c.l.bf16 %v90
  %v201 = vunpack.c.h.bf16 %v90
  %v202 = vunpack.c.l.bf16 %v91
  %v203 = vunpack.c.h.bf16 %v91
  %v204 = vunpack.c.l.bf16 %v92
  %v205 = vunpack.c.h.bf16 %v92
  %v206 = vunpack.c.l.bf16 %v93
  %v207 = vunpack.c.h.bf16 %v93
  %v208 = vunpack.c.l.bf16 %v94
  %v209 = vunpack.c.h.bf16 %v94
  %v210 = vunpack.c.l.bf16 %v95
  %v211 = vunpack.c.h.bf16 %v95
  %v212 = vunpack.c.l.bf16 %v96
  %v213 = vunpack.c.h.bf16 %v96
  %v214 = vunpack.c.l.bf16 %v97
  %v215 = vunpack.c.h.bf16 %v97
  %v216 = vunpack.c.l.bf16 %v98
  %v217 = vunpack.c.h.bf16 %v98
  %v218 = vunpack.c.l.bf16 %v99
  %v219 = vunpack.c.h.bf16 %v99
  %v220 = vunpack.c.l.bf16 %v100
  %v221 = vunpack.c.h.bf16 %v100
  %v222 = vunpack.c.l.bf16 %v101
  %v223 = vunpack.c.h.bf16 %v101
  %v224 = vunpack.c.l.bf16 %v102
  %v225 = vunpack.c.h.bf16 %v102
  %v226 = vunpack.c.l.bf16 %v103
  %v227 = vunpack.c.h.bf16 %v103
  %v228 = vunpack.c.l.bf16 %v104
  %v229 = vunpack.c.h.bf16 %v104
  %v230 = vunpack.c.l.bf16 %v105
  %v231 = vunpack.c.h.bf16 %v105
  %v232 = vunpack.c.l.bf16 %v106
  %v233 = vunpack.c.h.bf16 %v106
  %v234 = vunpack.c.l.bf16 %v107
  %v235 = vunpack.c.h.bf16 %v107
  %v236 = vld [vmem:[%s2] sm:$0xff]
  %v238 = vlaneseq
  %v239 = vshrl.u32 %v238, 7
  %v240 = vsub.s32 0, %v239
  %v241 = vrot.slane %v236, %v240
  %v242 = vlaneseq
  %v243 = vshrl.u32 %v242, 7
  %v244 = vsub.s32 1, %v243
  %v245 = vrot.slane %v236, %v244
  %v246 = vlaneseq
  %v247 = vshrl.u32 %v246, 7
  %v248 = vsub.s32 2, %v247
  %v249 = vrot.slane %v236, %v248
  %v250 = vlaneseq
  %v251 = vshrl.u32 %v250, 7
  %v252 = vsub.s32 3, %v251
  %v253 = vrot.slane %v236, %v252
  %v254 = vlaneseq
  %v255 = vshrl.u32 %v254, 7
  %v256 = vsub.s32 4, %v255
  %v257 = vrot.slane %v236, %v256
  %v258 = vlaneseq
  %v259 = vshrl.u32 %v258, 7
  %v260 = vsub.s32 5, %v259
  %v261 = vrot.slane %v236, %v260
  %v262 = vlaneseq
  %v263 = vshrl.u32 %v262, 7
  %v264 = vsub.s32 6, %v263
  %v265 = vrot.slane %v236, %v264
  %v266 = vlaneseq
  %v267 = vshrl.u32 %v266, 7
  %v268 = vsub.s32 7, %v267
  %v269 = vrot.slane %v236, %v268
  %v278 = vmul.f32 %v108, %v241
  %v279 = vmul.f32 %v109, %v245
  %v280 = vmul.f32 %v110, %v249
  %v281 = vmul.f32 %v111, %v253
  %v282 = vmul.f32 %v112, %v257
  %v283 = vmul.f32 %v113, %v261
  %v284 = vmul.f32 %v114, %v265
  %v285 = vmul.f32 %v115, %v269
  %v286 = vmul.f32 %v116, %v241
  %v287 = vmul.f32 %v117, %v245
  %v288 = vmul.f32 %v118, %v249
  %v289 = vmul.f32 %v119, %v253
  %v290 = vmul.f32 %v120, %v257
  %v291 = vmul.f32 %v121, %v261
  %v292 = vmul.f32 %v122, %v265
  %v293 = vmul.f32 %v123, %v269
  %v294 = vmul.f32 %v124, %v241
  %v295 = vmul.f32 %v125, %v245
  %v296 = vmul.f32 %v126, %v249
  %v297 = vmul.f32 %v127, %v253
  %v298 = vmul.f32 %v128, %v257
  %v299 = vmul.f32 %v129, %v261
  %v300 = vmul.f32 %v130, %v265
  %v301 = vmul.f32 %v131, %v269
  %v302 = vmul.f32 %v132, %v241
  %v303 = vmul.f32 %v133, %v245
  %v304 = vmul.f32 %v134, %v249
  %v305 = vmul.f32 %v135, %v253
  %v306 = vmul.f32 %v136, %v257
  %v307 = vmul.f32 %v137, %v261
  %v308 = vmul.f32 %v138, %v265
  %v309 = vmul.f32 %v139, %v269
  %v310 = vmul.f32 %v140, %v241
  %v311 = vmul.f32 %v141, %v245
  %v312 = vmul.f32 %v142, %v249
  %v313 = vmul.f32 %v143, %v253
  %v314 = vmul.f32 %v144, %v257
  %v315 = vmul.f32 %v145, %v261
  %v316 = vmul.f32 %v146, %v265
  %v317 = vmul.f32 %v147, %v269
  %v318 = vmul.f32 %v148, %v241
  %v319 = vmul.f32 %v149, %v245
  %v320 = vmul.f32 %v150, %v249
  %v321 = vmul.f32 %v151, %v253
  %v322 = vmul.f32 %v152, %v257
  %v323 = vmul.f32 %v153, %v261
  %v324 = vmul.f32 %v154, %v265
  %v325 = vmul.f32 %v155, %v269
  %v326 = vmul.f32 %v156, %v241
  %v327 = vmul.f32 %v157, %v245
  %v328 = vmul.f32 %v158, %v249
  %v329 = vmul.f32 %v159, %v253
  %v330 = vmul.f32 %v160, %v257
  %v331 = vmul.f32 %v161, %v261
  %v332 = vmul.f32 %v162, %v265
  %v333 = vmul.f32 %v163, %v269
  %v334 = vmul.f32 %v164, %v241
  %v335 = vmul.f32 %v165, %v245
  %v336 = vmul.f32 %v166, %v249
  %v337 = vmul.f32 %v167, %v253
  %v338 = vmul.f32 %v168, %v257
  %v339 = vmul.f32 %v169, %v261
  %v340 = vmul.f32 %v170, %v265
  %v341 = vmul.f32 %v171, %v269
  %v342 = vmul.f32 %v172, %v241
  %v343 = vmul.f32 %v173, %v245
  %v344 = vmul.f32 %v174, %v249
  %v345 = vmul.f32 %v175, %v253
  %v346 = vmul.f32 %v176, %v257
  %v347 = vmul.f32 %v177, %v261
  %v348 = vmul.f32 %v178, %v265
  %v349 = vmul.f32 %v179, %v269
  %v350 = vmul.f32 %v180, %v241
  %v351 = vmul.f32 %v181, %v245
  %v352 = vmul.f32 %v182, %v249
  %v353 = vmul.f32 %v183, %v253
  %v354 = vmul.f32 %v184, %v257
  %v355 = vmul.f32 %v185, %v261
  %v356 = vmul.f32 %v186, %v265
  %v357 = vmul.f32 %v187, %v269
  %v358 = vmul.f32 %v188, %v241
  %v359 = vmul.f32 %v189, %v245
  %v360 = vmul.f32 %v190, %v249
  %v361 = vmul.f32 %v191, %v253
  %v362 = vmul.f32 %v192, %v257
  %v363 = vmul.f32 %v193, %v261
  %v364 = vmul.f32 %v194, %v265
  %v365 = vmul.f32 %v195, %v269
  %v366 = vmul.f32 %v196, %v241
  %v367 = vmul.f32 %v197, %v245
  %v368 = vmul.f32 %v198, %v249
  %v369 = vmul.f32 %v199, %v253
  %v370 = vmul.f32 %v200, %v257
  %v371 = vmul.f32 %v201, %v261
  %v372 = vmul.f32 %v202, %v265
  %v373 = vmul.f32 %v203, %v269
  %v374 = vmul.f32 %v204, %v241
  %v375 = vmul.f32 %v205, %v245
  %v376 = vmul.f32 %v206, %v249
  %v377 = vmul.f32 %v207, %v253
  %v378 = vmul.f32 %v208, %v257
  %v379 = vmul.f32 %v209, %v261
  %v380 = vmul.f32 %v210, %v265
  %v381 = vmul.f32 %v211, %v269
  %v382 = vmul.f32 %v212, %v241
  %v383 = vmul.f32 %v213, %v245
  %v384 = vmul.f32 %v214, %v249
  %v385 = vmul.f32 %v215, %v253
  %v386 = vmul.f32 %v216, %v257
  %v387 = vmul.f32 %v217, %v261
  %v388 = vmul.f32 %v218, %v265
  %v389 = vmul.f32 %v219, %v269
  %v390 = vmul.f32 %v220, %v241
  %v391 = vmul.f32 %v221, %v245
  %v392 = vmul.f32 %v222, %v249
  %v393 = vmul.f32 %v223, %v253
  %v394 = vmul.f32 %v224, %v257
  %v395 = vmul.f32 %v225, %v261
  %v396 = vmul.f32 %v226, %v265
  %v397 = vmul.f32 %v227, %v269
  %v398 = vmul.f32 %v228, %v241
  %v399 = vmul.f32 %v229, %v245
  %v400 = vmul.f32 %v230, %v249
  %v401 = vmul.f32 %v231, %v253
  %v402 = vmul.f32 %v232, %v257
  %v403 = vmul.f32 %v233, %v261
  %v404 = vmul.f32 %v234, %v265
  %v405 = vmul.f32 %v235, %v269
  %v406 = vld [vmem:[%s3] sm:$0xff]
  %v408 = vlaneseq
  %v409 = vshrl.u32 %v408, 7
  %v410 = vsub.s32 0, %v409
  %v411 = vrot.slane %v406, %v410
  %v412 = vlaneseq
  %v413 = vshrl.u32 %v412, 7
  %v414 = vsub.s32 1, %v413
  %v415 = vrot.slane %v406, %v414
  %v416 = vlaneseq
  %v417 = vshrl.u32 %v416, 7
  %v418 = vsub.s32 2, %v417
  %v419 = vrot.slane %v406, %v418
  %v420 = vlaneseq
  %v421 = vshrl.u32 %v420, 7
  %v422 = vsub.s32 3, %v421
  %v423 = vrot.slane %v406, %v422
  %v424 = vlaneseq
  %v425 = vshrl.u32 %v424, 7
  %v426 = vsub.s32 4, %v425
  %v427 = vrot.slane %v406, %v426
  %v428 = vlaneseq
  %v429 = vshrl.u32 %v428, 7
  %v430 = vsub.s32 5, %v429
  %v431 = vrot.slane %v406, %v430
  %v432 = vlaneseq
  %v433 = vshrl.u32 %v432, 7
  %v434 = vsub.s32 6, %v433
  %v435 = vrot.slane %v406, %v434
  %v436 = vlaneseq
  %v437 = vshrl.u32 %v436, 7
  %v438 = vsub.s32 7, %v437
  %v439 = vrot.slane %v406, %v438
  %v448 = vadd.f32 %v278, %v411
  %v449 = vadd.f32 %v279, %v415
  %v450 = vadd.f32 %v280, %v419
  %v451 = vadd.f32 %v281, %v423
  %v452 = vadd.f32 %v282, %v427
  %v453 = vadd.f32 %v283, %v431
  %v454 = vadd.f32 %v284, %v435
  %v455 = vadd.f32 %v285, %v439
  %v456 = vadd.f32 %v286, %v411
  %v457 = vadd.f32 %v287, %v415
  %v458 = vadd.f32 %v288, %v419
  %v459 = vadd.f32 %v289, %v423
  %v460 = vadd.f32 %v290, %v427
  %v461 = vadd.f32 %v291, %v431
  %v462 = vadd.f32 %v292, %v435
  %v463 = vadd.f32 %v293, %v439
  %v464 = vadd.f32 %v294, %v411
  %v465 = vadd.f32 %v295, %v415
  %v466 = vadd.f32 %v296, %v419
  %v467 = vadd.f32 %v297, %v423
  %v468 = vadd.f32 %v298, %v427
  %v469 = vadd.f32 %v299, %v431
  %v470 = vadd.f32 %v300, %v435
  %v471 = vadd.f32 %v301, %v439
  %v472 = vadd.f32 %v302, %v411
  %v473 = vadd.f32 %v303, %v415
  %v474 = vadd.f32 %v304, %v419
  %v475 = vadd.f32 %v305, %v423
  %v476 = vadd.f32 %v306, %v427
  %v477 = vadd.f32 %v307, %v431
  %v478 = vadd.f32 %v308, %v435
  %v479 = vadd.f32 %v309, %v439
  %v480 = vadd.f32 %v310, %v411
  %v481 = vadd.f32 %v311, %v415
  %v482 = vadd.f32 %v312, %v419
  %v483 = vadd.f32 %v313, %v423
  %v484 = vadd.f32 %v314, %v427
  %v485 = vadd.f32 %v315, %v431
  %v486 = vadd.f32 %v316, %v435
  %v487 = vadd.f32 %v317, %v439
  %v488 = vadd.f32 %v318, %v411
  %v489 = vadd.f32 %v319, %v415
  %v490 = vadd.f32 %v320, %v419
  %v491 = vadd.f32 %v321, %v423
  %v492 = vadd.f32 %v322, %v427
  %v493 = vadd.f32 %v323, %v431
  %v494 = vadd.f32 %v324, %v435
  %v495 = vadd.f32 %v325, %v439
  %v496 = vadd.f32 %v326, %v411
  %v497 = vadd.f32 %v327, %v415
  %v498 = vadd.f32 %v328, %v419
  %v499 = vadd.f32 %v329, %v423
  %v500 = vadd.f32 %v330, %v427
  %v501 = vadd.f32 %v331, %v431
  %v502 = vadd.f32 %v332, %v435
  %v503 = vadd.f32 %v333, %v439
  %v504 = vadd.f32 %v334, %v411
  %v505 = vadd.f32 %v335, %v415
  %v506 = vadd.f32 %v336, %v419
  %v507 = vadd.f32 %v337, %v423
  %v508 = vadd.f32 %v338, %v427
  %v509 = vadd.f32 %v339, %v431
  %v510 = vadd.f32 %v340, %v435
  %v511 = vadd.f32 %v341, %v439
  %v512 = vadd.f32 %v342, %v411
  %v513 = vadd.f32 %v343, %v415
  %v514 = vadd.f32 %v344, %v419
  %v515 = vadd.f32 %v345, %v423
  %v516 = vadd.f32 %v346, %v427
  %v517 = vadd.f32 %v347, %v431
  %v518 = vadd.f32 %v348, %v435
  %v519 = vadd.f32 %v349, %v439
  %v520 = vadd.f32 %v350, %v411
  %v521 = vadd.f32 %v351, %v415
  %v522 = vadd.f32 %v352, %v419
  %v523 = vadd.f32 %v353, %v423
  %v524 = vadd.f32 %v354, %v427
  %v525 = vadd.f32 %v355, %v431
  %v526 = vadd.f32 %v356, %v435
  %v527 = vadd.f32 %v357, %v439
  %v528 = vadd.f32 %v358, %v411
  %v529 = vadd.f32 %v359, %v415
  %v530 = vadd.f32 %v360, %v419
  %v531 = vadd.f32 %v361, %v423
  %v532 = vadd.f32 %v362, %v427
  %v533 = vadd.f32 %v363, %v431
  %v534 = vadd.f32 %v364, %v435
  %v535 = vadd.f32 %v365, %v439
  %v536 = vadd.f32 %v366, %v411
  %v537 = vadd.f32 %v367, %v415
  %v538 = vadd.f32 %v368, %v419
  %v539 = vadd.f32 %v369, %v423
  %v540 = vadd.f32 %v370, %v427
  %v541 = vadd.f32 %v371, %v431
  %v542 = vadd.f32 %v372, %v435
  %v543 = vadd.f32 %v373, %v439
  %v544 = vadd.f32 %v374, %v411
  %v545 = vadd.f32 %v375, %v415
  %v546 = vadd.f32 %v376, %v419
  %v547 = vadd.f32 %v377, %v423
  %v548 = vadd.f32 %v378, %v427
  %v549 = vadd.f32 %v379, %v431
  %v550 = vadd.f32 %v380, %v435
  %v551 = vadd.f32 %v381, %v439
  %v552 = vadd.f32 %v382, %v411
  %v553 = vadd.f32 %v383, %v415
  %v554 = vadd.f32 %v384, %v419
  %v555 = vadd.f32 %v385, %v423
  %v556 = vadd.f32 %v386, %v427
  %v557 = vadd.f32 %v387, %v431
  %v558 = vadd.f32 %v388, %v435
  %v559 = vadd.f32 %v389, %v439
  %v560 = vadd.f32 %v390, %v411
  %v561 = vadd.f32 %v391, %v415
  %v562 = vadd.f32 %v392, %v419
  %v563 = vadd.f32 %v393, %v423
  %v564 = vadd.f32 %v394, %v427
  %v565 = vadd.f32 %v395, %v431
  %v566 = vadd.f32 %v396, %v435
  %v567 = vadd.f32 %v397, %v439
  %v568 = vadd.f32 %v398, %v411
  %v569 = vadd.f32 %v399, %v415
  %v570 = vadd.f32 %v400, %v419
  %v571 = vadd.f32 %v401, %v423
  %v572 = vadd.f32 %v402, %v427
  %v573 = vadd.f32 %v403, %v431
  %v574 = vadd.f32 %v404, %v435
  %v575 = vadd.f32 %v405, %v439
  %vm576 = vcmp.ge.f32.partialorder %v448, 0.0
  %vm577 = vcmp.ge.f32.partialorder %v449, 0.0
  %vm578 = vcmp.ge.f32.partialorder %v450, 0.0
  %vm579 = vcmp.ge.f32.partialorder %v451, 0.0
  %vm580 = vcmp.ge.f32.partialorder %v452, 0.0
  %vm581 = vcmp.ge.f32.partialorder %v453, 0.0
  %vm582 = vcmp.ge.f32.partialorder %v454, 0.0
  %vm583 = vcmp.ge.f32.partialorder %v455, 0.0
  %vm584 = vcmp.ge.f32.partialorder %v456, 0.0
  %vm585 = vcmp.ge.f32.partialorder %v457, 0.0
  %vm586 = vcmp.ge.f32.partialorder %v458, 0.0
  %vm587 = vcmp.ge.f32.partialorder %v459, 0.0
  %vm588 = vcmp.ge.f32.partialorder %v460, 0.0
  %vm589 = vcmp.ge.f32.partialorder %v461, 0.0
  %vm590 = vcmp.ge.f32.partialorder %v462, 0.0
  %vm591 = vcmp.ge.f32.partialorder %v463, 0.0
  %vm592 = vcmp.ge.f32.partialorder %v464, 0.0
  %vm593 = vcmp.ge.f32.partialorder %v465, 0.0
  %vm594 = vcmp.ge.f32.partialorder %v466, 0.0
  %vm595 = vcmp.ge.f32.partialorder %v467, 0.0
  %vm596 = vcmp.ge.f32.partialorder %v468, 0.0
  %vm597 = vcmp.ge.f32.partialorder %v469, 0.0
  %vm598 = vcmp.ge.f32.partialorder %v470, 0.0
  %vm599 = vcmp.ge.f32.partialorder %v471, 0.0
  %vm600 = vcmp.ge.f32.partialorder %v472, 0.0
  %vm601 = vcmp.ge.f32.partialorder %v473, 0.0
  %vm602 = vcmp.ge.f32.partialorder %v474, 0.0
  %vm603 = vcmp.ge.f32.partialorder %v475, 0.0
  %vm604 = vcmp.ge.f32.partialorder %v476, 0.0
  %vm605 = vcmp.ge.f32.partialorder %v477, 0.0
  %vm606 = vcmp.ge.f32.partialorder %v478, 0.0
  %vm607 = vcmp.ge.f32.partialorder %v479, 0.0
  %vm608 = vcmp.ge.f32.partialorder %v480, 0.0
  %vm609 = vcmp.ge.f32.partialorder %v481, 0.0
  %vm610 = vcmp.ge.f32.partialorder %v482, 0.0
  %vm611 = vcmp.ge.f32.partialorder %v483, 0.0
  %vm612 = vcmp.ge.f32.partialorder %v484, 0.0
  %vm613 = vcmp.ge.f32.partialorder %v485, 0.0
  %vm614 = vcmp.ge.f32.partialorder %v486, 0.0
  %vm615 = vcmp.ge.f32.partialorder %v487, 0.0
  %vm616 = vcmp.ge.f32.partialorder %v488, 0.0
  %vm617 = vcmp.ge.f32.partialorder %v489, 0.0
  %vm618 = vcmp.ge.f32.partialorder %v490, 0.0
  %vm619 = vcmp.ge.f32.partialorder %v491, 0.0
  %vm620 = vcmp.ge.f32.partialorder %v492, 0.0
  %vm621 = vcmp.ge.f32.partialorder %v493, 0.0
  %vm622 = vcmp.ge.f32.partialorder %v494, 0.0
  %vm623 = vcmp.ge.f32.partialorder %v495, 0.0
  %vm624 = vcmp.ge.f32.partialorder %v496, 0.0
  %vm625 = vcmp.ge.f32.partialorder %v497, 0.0
  %vm626 = vcmp.ge.f32.partialorder %v498, 0.0
  %vm627 = vcmp.ge.f32.partialorder %v499, 0.0
  %vm628 = vcmp.ge.f32.partialorder %v500, 0.0
  %vm629 = vcmp.ge.f32.partialorder %v501, 0.0
  %vm630 = vcmp.ge.f32.partialorder %v502, 0.0
  %vm631 = vcmp.ge.f32.partialorder %v503, 0.0
  %vm632 = vcmp.ge.f32.partialorder %v504, 0.0
  %vm633 = vcmp.ge.f32.partialorder %v505, 0.0
  %vm634 = vcmp.ge.f32.partialorder %v506, 0.0
  %vm635 = vcmp.ge.f32.partialorder %v507, 0.0
  %vm636 = vcmp.ge.f32.partialorder %v508, 0.0
  %vm637 = vcmp.ge.f32.partialorder %v509, 0.0
  %vm638 = vcmp.ge.f32.partialorder %v510, 0.0
  %vm639 = vcmp.ge.f32.partialorder %v511, 0.0
  %vm640 = vcmp.ge.f32.partialorder %v512, 0.0
  %vm641 = vcmp.ge.f32.partialorder %v513, 0.0
  %vm642 = vcmp.ge.f32.partialorder %v514, 0.0
  %vm643 = vcmp.ge.f32.partialorder %v515, 0.0
  %vm644 = vcmp.ge.f32.partialorder %v516, 0.0
  %vm645 = vcmp.ge.f32.partialorder %v517, 0.0
  %vm646 = vcmp.ge.f32.partialorder %v518, 0.0
  %vm647 = vcmp.ge.f32.partialorder %v519, 0.0
  %vm648 = vcmp.ge.f32.partialorder %v520, 0.0
  %vm649 = vcmp.ge.f32.partialorder %v521, 0.0
  %vm650 = vcmp.ge.f32.partialorder %v522, 0.0
  %vm651 = vcmp.ge.f32.partialorder %v523, 0.0
  %vm652 = vcmp.ge.f32.partialorder %v524, 0.0
  %vm653 = vcmp.ge.f32.partialorder %v525, 0.0
  %vm654 = vcmp.ge.f32.partialorder %v526, 0.0
  %vm655 = vcmp.ge.f32.partialorder %v527, 0.0
  %vm656 = vcmp.ge.f32.partialorder %v528, 0.0
  %vm657 = vcmp.ge.f32.partialorder %v529, 0.0
  %vm658 = vcmp.ge.f32.partialorder %v530, 0.0
  %vm659 = vcmp.ge.f32.partialorder %v531, 0.0
  %vm660 = vcmp.ge.f32.partialorder %v532, 0.0
  %vm661 = vcmp.ge.f32.partialorder %v533, 0.0
  %vm662 = vcmp.ge.f32.partialorder %v534, 0.0
  %vm663 = vcmp.ge.f32.partialorder %v535, 0.0
  %vm664 = vcmp.ge.f32.partialorder %v536, 0.0
  %vm665 = vcmp.ge.f32.partialorder %v537, 0.0
  %vm666 = vcmp.ge.f32.partialorder %v538, 0.0
  %vm667 = vcmp.ge.f32.partialorder %v539, 0.0
  %vm668 = vcmp.ge.f32.partialorder %v540, 0.0
  %vm669 = vcmp.ge.f32.partialorder %v541, 0.0
  %vm670 = vcmp.ge.f32.partialorder %v542, 0.0
  %vm671 = vcmp.ge.f32.partialorder %v543, 0.0
  %vm672 = vcmp.ge.f32.partialorder %v544, 0.0
  %vm673 = vcmp.ge.f32.partialorder %v545, 0.0
  %vm674 = vcmp.ge.f32.partialorder %v546, 0.0
  %vm675 = vcmp.ge.f32.partialorder %v547, 0.0
  %vm676 = vcmp.ge.f32.partialorder %v548, 0.0
  %vm677 = vcmp.ge.f32.partialorder %v549, 0.0
  %vm678 = vcmp.ge.f32.partialorder %v550, 0.0
  %vm679 = vcmp.ge.f32.partialorder %v551, 0.0
  %vm680 = vcmp.ge.f32.partialorder %v552, 0.0
  %vm681 = vcmp.ge.f32.partialorder %v553, 0.0
  %vm682 = vcmp.ge.f32.partialorder %v554, 0.0
  %vm683 = vcmp.ge.f32.partialorder %v555, 0.0
  %vm684 = vcmp.ge.f32.partialorder %v556, 0.0
  %vm685 = vcmp.ge.f32.partialorder %v557, 0.0
  %vm686 = vcmp.ge.f32.partialorder %v558, 0.0
  %vm687 = vcmp.ge.f32.partialorder %v559, 0.0
  %vm688 = vcmp.ge.f32.partialorder %v560, 0.0
  %vm689 = vcmp.ge.f32.partialorder %v561, 0.0
  %vm690 = vcmp.ge.f32.partialorder %v562, 0.0
  %vm691 = vcmp.ge.f32.partialorder %v563, 0.0
  %vm692 = vcmp.ge.f32.partialorder %v564, 0.0
  %vm693 = vcmp.ge.f32.partialorder %v565, 0.0
  %vm694 = vcmp.ge.f32.partialorder %v566, 0.0
  %vm695 = vcmp.ge.f32.partialorder %v567, 0.0
  %vm696 = vcmp.ge.f32.partialorder %v568, 0.0
  %vm697 = vcmp.ge.f32.partialorder %v569, 0.0
  %vm698 = vcmp.ge.f32.partialorder %v570, 0.0
  %vm699 = vcmp.ge.f32.partialorder %v571, 0.0
  %vm700 = vcmp.ge.f32.partialorder %v572, 0.0
  %vm701 = vcmp.ge.f32.partialorder %v573, 0.0
  %vm702 = vcmp.ge.f32.partialorder %v574, 0.0
  %vm703 = vcmp.ge.f32.partialorder %v575, 0.0
  %v704 = vmul.f32 %v448, 0.2
  %v705 = vmul.f32 %v449, 0.2
  %v706 = vmul.f32 %v450, 0.2
  %v707 = vmul.f32 %v451, 0.2
  %v708 = vmul.f32 %v452, 0.2
  %v709 = vmul.f32 %v453, 0.2
  %v710 = vmul.f32 %v454, 0.2
  %v711 = vmul.f32 %v455, 0.2
  %v712 = vmul.f32 %v456, 0.2
  %v713 = vmul.f32 %v457, 0.2
  %v714 = vmul.f32 %v458, 0.2
  %v715 = vmul.f32 %v459, 0.2
  %v716 = vmul.f32 %v460, 0.2
  %v717 = vmul.f32 %v461, 0.2
  %v718 = vmul.f32 %v462, 0.2
  %v719 = vmul.f32 %v463, 0.2
  %v720 = vmul.f32 %v464, 0.2
  %v721 = vmul.f32 %v465, 0.2
  %v722 = vmul.f32 %v466, 0.2
  %v723 = vmul.f32 %v467, 0.2
  %v724 = vmul.f32 %v468, 0.2
  %v725 = vmul.f32 %v469, 0.2
  %v726 = vmul.f32 %v470, 0.2
  %v727 = vmul.f32 %v471, 0.2
  %v728 = vmul.f32 %v472, 0.2
  %v729 = vmul.f32 %v473, 0.2
  %v730 = vmul.f32 %v474, 0.2
  %v731 = vmul.f32 %v475, 0.2
  %v732 = vmul.f32 %v476, 0.2
  %v733 = vmul.f32 %v477, 0.2
  %v734 = vmul.f32 %v478, 0.2
  %v735 = vmul.f32 %v479, 0.2
  %v736 = vmul.f32 %v480, 0.2
  %v737 = vmul.f32 %v481, 0.2
  %v738 = vmul.f32 %v482, 0.2
  %v739 = vmul.f32 %v483, 0.2
  %v740 = vmul.f32 %v484, 0.2
  %v741 = vmul.f32 %v485, 0.2
  %v742 = vmul.f32 %v486, 0.2
  %v743 = vmul.f32 %v487, 0.2
  %v744 = vmul.f32 %v488, 0.2
  %v745 = vmul.f32 %v489, 0.2
  %v746 = vmul.f32 %v490, 0.2
  %v747 = vmul.f32 %v491, 0.2
  %v748 = vmul.f32 %v492, 0.2
  %v749 = vmul.f32 %v493, 0.2
  %v750 = vmul.f32 %v494, 0.2
  %v751 = vmul.f32 %v495, 0.2
  %v752 = vmul.f32 %v496, 0.2
  %v753 = vmul.f32 %v497, 0.2
  %v754 = vmul.f32 %v498, 0.2
  %v755 = vmul.f32 %v499, 0.2
  %v756 = vmul.f32 %v500, 0.2
  %v757 = vmul.f32 %v501, 0.2
  %v758 = vmul.f32 %v502, 0.2
  %v759 = vmul.f32 %v503, 0.2
  %v760 = vmul.f32 %v504, 0.2
  %v761 = vmul.f32 %v505, 0.2
  %v762 = vmul.f32 %v506, 0.2
  %v763 = vmul.f32 %v507, 0.2
  %v764 = vmul.f32 %v508, 0.2
  %v765 = vmul.f32 %v509, 0.2
  %v766 = vmul.f32 %v510, 0.2
  %v767 = vmul.f32 %v511, 0.2
  %v768 = vmul.f32 %v512, 0.2
  %v769 = vmul.f32 %v513, 0.2
  %v770 = vmul.f32 %v514, 0.2
  %v771 = vmul.f32 %v515, 0.2
  %v772 = vmul.f32 %v516, 0.2
  %v773 = vmul.f32 %v517, 0.2
  %v774 = vmul.f32 %v518, 0.2
  %v775 = vmul.f32 %v519, 0.2
  %v776 = vmul.f32 %v520, 0.2
  %v777 = vmul.f32 %v521, 0.2
  %v778 = vmul.f32 %v522, 0.2
  %v779 = vmul.f32 %v523, 0.2
  %v780 = vmul.f32 %v524, 0.2
  %v781 = vmul.f32 %v525, 0.2
  %v782 = vmul.f32 %v526, 0.2
  %v783 = vmul.f32 %v527, 0.2
  %v784 = vmul.f32 %v528, 0.2
  %v785 = vmul.f32 %v529, 0.2
  %v786 = vmul.f32 %v530, 0.2
  %v787 = vmul.f32 %v531, 0.2
  %v788 = vmul.f32 %v532, 0.2
  %v789 = vmul.f32 %v533, 0.2
  %v790 = vmul.f32 %v534, 0.2
  %v791 = vmul.f32 %v535, 0.2
  %v792 = vmul.f32 %v536, 0.2
  %v793 = vmul.f32 %v537, 0.2
  %v794 = vmul.f32 %v538, 0.2
  %v795 = vmul.f32 %v539, 0.2
  %v796 = vmul.f32 %v540, 0.2
  %v797 = vmul.f32 %v541, 0.2
  %v798 = vmul.f32 %v542, 0.2
  %v799 = vmul.f32 %v543, 0.2
  %v800 = vmul.f32 %v544, 0.2
  %v801 = vmul.f32 %v545, 0.2
  %v802 = vmul.f32 %v546, 0.2
  %v803 = vmul.f32 %v547, 0.2
  %v804 = vmul.f32 %v548, 0.2
  %v805 = vmul.f32 %v549, 0.2
  %v806 = vmul.f32 %v550, 0.2
  %v807 = vmul.f32 %v551, 0.2
  %v808 = vmul.f32 %v552, 0.2
  %v809 = vmul.f32 %v553, 0.2
  %v810 = vmul.f32 %v554, 0.2
  %v811 = vmul.f32 %v555, 0.2
  %v812 = vmul.f32 %v556, 0.2
  %v813 = vmul.f32 %v557, 0.2
  %v814 = vmul.f32 %v558, 0.2
  %v815 = vmul.f32 %v559, 0.2
  %v816 = vmul.f32 %v560, 0.2
  %v817 = vmul.f32 %v561, 0.2
  %v818 = vmul.f32 %v562, 0.2
  %v819 = vmul.f32 %v563, 0.2
  %v820 = vmul.f32 %v564, 0.2
  %v821 = vmul.f32 %v565, 0.2
  %v822 = vmul.f32 %v566, 0.2
  %v823 = vmul.f32 %v567, 0.2
  %v824 = vmul.f32 %v568, 0.2
  %v825 = vmul.f32 %v569, 0.2
  %v826 = vmul.f32 %v570, 0.2
  %v827 = vmul.f32 %v571, 0.2
  %v828 = vmul.f32 %v572, 0.2
  %v829 = vmul.f32 %v573, 0.2
  %v830 = vmul.f32 %v574, 0.2
  %v831 = vmul.f32 %v575, 0.2
  %v832 = vsel %vm576, %v448, %v704
  %v833 = vsel %vm577, %v449, %v705
  %v834 = vsel %vm578, %v450, %v706
  %v835 = vsel %vm579, %v451, %v707
  %v836 = vsel %vm580, %v452, %v708
  %v837 = vsel %vm581, %v453, %v709
  %v838 = vsel %vm582, %v454, %v710
  %v839 = vsel %vm583, %v455, %v711
  %v840 = vsel %vm584, %v456, %v712
  %v841 = vsel %vm585, %v457, %v713
  %v842 = vsel %vm586, %v458, %v714
  %v843 = vsel %vm587, %v459, %v715
  %v844 = vsel %vm588, %v460, %v716
  %v845 = vsel %vm589, %v461, %v717
  %v846 = vsel %vm590, %v462, %v718
  %v847 = vsel %vm591, %v463, %v719
  %v848 = vsel %vm592, %v464, %v720
  %v849 = vsel %vm593, %v465, %v721
  %v850 = vsel %vm594, %v466, %v722
  %v851 = vsel %vm595, %v467, %v723
  %v852 = vsel %vm596, %v468, %v724
  %v853 = vsel %vm597, %v469, %v725
  %v854 = vsel %vm598, %v470, %v726
  %v855 = vsel %vm599, %v471, %v727
  %v856 = vsel %vm600, %v472, %v728
  %v857 = vsel %vm601, %v473, %v729
  %v858 = vsel %vm602, %v474, %v730
  %v859 = vsel %vm603, %v475, %v731
  %v860 = vsel %vm604, %v476, %v732
  %v861 = vsel %vm605, %v477, %v733
  %v862 = vsel %vm606, %v478, %v734
  %v863 = vsel %vm607, %v479, %v735
  %v864 = vsel %vm608, %v480, %v736
  %v865 = vsel %vm609, %v481, %v737
  %v866 = vsel %vm610, %v482, %v738
  %v867 = vsel %vm611, %v483, %v739
  %v868 = vsel %vm612, %v484, %v740
  %v869 = vsel %vm613, %v485, %v741
  %v870 = vsel %vm614, %v486, %v742
  %v871 = vsel %vm615, %v487, %v743
  %v872 = vsel %vm616, %v488, %v744
  %v873 = vsel %vm617, %v489, %v745
  %v874 = vsel %vm618, %v490, %v746
  %v875 = vsel %vm619, %v491, %v747
  %v876 = vsel %vm620, %v492, %v748
  %v877 = vsel %vm621, %v493, %v749
  %v878 = vsel %vm622, %v494, %v750
  %v879 = vsel %vm623, %v495, %v751
  %v880 = vsel %vm624, %v496, %v752
  %v881 = vsel %vm625, %v497, %v753
  %v882 = vsel %vm626, %v498, %v754
  %v883 = vsel %vm627, %v499, %v755
  %v884 = vsel %vm628, %v500, %v756
  %v885 = vsel %vm629, %v501, %v757
  %v886 = vsel %vm630, %v502, %v758
  %v887 = vsel %vm631, %v503, %v759
  %v888 = vsel %vm632, %v504, %v760
  %v889 = vsel %vm633, %v505, %v761
  %v890 = vsel %vm634, %v506, %v762
  %v891 = vsel %vm635, %v507, %v763
  %v892 = vsel %vm636, %v508, %v764
  %v893 = vsel %vm637, %v509, %v765
  %v894 = vsel %vm638, %v510, %v766
  %v895 = vsel %vm639, %v511, %v767
  %v896 = vsel %vm640, %v512, %v768
  %v897 = vsel %vm641, %v513, %v769
  %v898 = vsel %vm642, %v514, %v770
  %v899 = vsel %vm643, %v515, %v771
  %v900 = vsel %vm644, %v516, %v772
  %v901 = vsel %vm645, %v517, %v773
  %v902 = vsel %vm646, %v518, %v774
  %v903 = vsel %vm647, %v519, %v775
  %v904 = vsel %vm648, %v520, %v776
  %v905 = vsel %vm649, %v521, %v777
  %v906 = vsel %vm650, %v522, %v778
  %v907 = vsel %vm651, %v523, %v779
  %v908 = vsel %vm652, %v524, %v780
  %v909 = vsel %vm653, %v525, %v781
  %v910 = vsel %vm654, %v526, %v782
  %v911 = vsel %vm655, %v527, %v783
  %v912 = vsel %vm656, %v528, %v784
  %v913 = vsel %vm657, %v529, %v785
  %v914 = vsel %vm658, %v530, %v786
  %v915 = vsel %vm659, %v531, %v787
  %v916 = vsel %vm660, %v532, %v788
  %v917 = vsel %vm661, %v533, %v789
  %v918 = vsel %vm662, %v534, %v790
  %v919 = vsel %vm663, %v535, %v791
  %v920 = vsel %vm664, %v536, %v792
  %v921 = vsel %vm665, %v537, %v793
  %v922 = vsel %vm666, %v538, %v794
  %v923 = vsel %vm667, %v539, %v795
  %v924 = vsel %vm668, %v540, %v796
  %v925 = vsel %vm669, %v541, %v797
  %v926 = vsel %vm670, %v542, %v798
  %v927 = vsel %vm671, %v543, %v799
  %v928 = vsel %vm672, %v544, %v800
  %v929 = vsel %vm673, %v545, %v801
  %v930 = vsel %vm674, %v546, %v802
  %v931 = vsel %vm675, %v547, %v803
  %v932 = vsel %vm676, %v548, %v804
  %v933 = vsel %vm677, %v549, %v805
  %v934 = vsel %vm678, %v550, %v806
  %v935 = vsel %vm679, %v551, %v807
  %v936 = vsel %vm680, %v552, %v808
  %v937 = vsel %vm681, %v553, %v809
  %v938 = vsel %vm682, %v554, %v810
  %v939 = vsel %vm683, %v555, %v811
  %v940 = vsel %vm684, %v556, %v812
  %v941 = vsel %vm685, %v557, %v813
  %v942 = vsel %vm686, %v558, %v814
  %v943 = vsel %vm687, %v559, %v815
  %v944 = vsel %vm688, %v560, %v816
  %v945 = vsel %vm689, %v561, %v817
  %v946 = vsel %vm690, %v562, %v818
  %v947 = vsel %vm691, %v563, %v819
  %v948 = vsel %vm692, %v564, %v820
  %v949 = vsel %vm693, %v565, %v821
  %v950 = vsel %vm694, %v566, %v822
  %v951 = vsel %vm695, %v567, %v823
  %v952 = vsel %vm696, %v568, %v824
  %v953 = vsel %vm697, %v569, %v825
  %v954 = vsel %vm698, %v570, %v826
  %v955 = vsel %vm699, %v571, %v827
  %v956 = vsel %vm700, %v572, %v828
  %v957 = vsel %vm701, %v573, %v829
  %v958 = vsel %vm702, %v574, %v830
  %v959 = vsel %vm703, %v575, %v831
  %v960 = vpack.c.bf16 %v840, %v832
  %v961 = vpack.c.bf16 %v841, %v833
  %v962 = vpack.c.bf16 %v842, %v834
  %v963 = vpack.c.bf16 %v843, %v835
  %v964 = vpack.c.bf16 %v844, %v836
  %v965 = vpack.c.bf16 %v845, %v837
  %v966 = vpack.c.bf16 %v846, %v838
  %v967 = vpack.c.bf16 %v847, %v839
  %v968 = vpack.c.bf16 %v856, %v848
  %v969 = vpack.c.bf16 %v857, %v849
  %v970 = vpack.c.bf16 %v858, %v850
  %v971 = vpack.c.bf16 %v859, %v851
  %v972 = vpack.c.bf16 %v860, %v852
  %v973 = vpack.c.bf16 %v861, %v853
  %v974 = vpack.c.bf16 %v862, %v854
  %v975 = vpack.c.bf16 %v863, %v855
  %v976 = vpack.c.bf16 %v872, %v864
  %v977 = vpack.c.bf16 %v873, %v865
  %v978 = vpack.c.bf16 %v874, %v866
  %v979 = vpack.c.bf16 %v875, %v867
  %v980 = vpack.c.bf16 %v876, %v868
  %v981 = vpack.c.bf16 %v877, %v869
  %v982 = vpack.c.bf16 %v878, %v870
  %v983 = vpack.c.bf16 %v879, %v871
  %v984 = vpack.c.bf16 %v888, %v880
  %v985 = vpack.c.bf16 %v889, %v881
  %v986 = vpack.c.bf16 %v890, %v882
  %v987 = vpack.c.bf16 %v891, %v883
  %v988 = vpack.c.bf16 %v892, %v884
  %v989 = vpack.c.bf16 %v893, %v885
  %v990 = vpack.c.bf16 %v894, %v886
  %v991 = vpack.c.bf16 %v895, %v887
  %v992 = vpack.c.bf16 %v904, %v896
  %v993 = vpack.c.bf16 %v905, %v897
  %v994 = vpack.c.bf16 %v906, %v898
  %v995 = vpack.c.bf16 %v907, %v899
  %v996 = vpack.c.bf16 %v908, %v900
  %v997 = vpack.c.bf16 %v909, %v901
  %v998 = vpack.c.bf16 %v910, %v902
  %v999 = vpack.c.bf16 %v911, %v903
  %v1000 = vpack.c.bf16 %v920, %v912
  %v1001 = vpack.c.bf16 %v921, %v913
  %v1002 = vpack.c.bf16 %v922, %v914
  %v1003 = vpack.c.bf16 %v923, %v915
  %v1004 = vpack.c.bf16 %v924, %v916
  %v1005 = vpack.c.bf16 %v925, %v917
  %v1006 = vpack.c.bf16 %v926, %v918
  %v1007 = vpack.c.bf16 %v927, %v919
  %v1008 = vpack.c.bf16 %v936, %v928
  %v1009 = vpack.c.bf16 %v937, %v929
  %v1010 = vpack.c.bf16 %v938, %v930
  %v1011 = vpack.c.bf16 %v939, %v931
  %v1012 = vpack.c.bf16 %v940, %v932
  %v1013 = vpack.c.bf16 %v941, %v933
  %v1014 = vpack.c.bf16 %v942, %v934
  %v1015 = vpack.c.bf16 %v943, %v935
  %v1016 = vpack.c.bf16 %v952, %v944
  %v1017 = vpack.c.bf16 %v953, %v945
  %v1018 = vpack.c.bf16 %v954, %v946
  %v1019 = vpack.c.bf16 %v955, %v947
  %v1020 = vpack.c.bf16 %v956, %v948
  %v1021 = vpack.c.bf16 %v957, %v949
  %v1022 = vpack.c.bf16 %v958, %v950
  %v1023 = vpack.c.bf16 %v959, %v951
  %v1024 = vld [vmem:[#allocation2] sm:$0xff]
  %v1025 = vld [vmem:[#allocation2 + $0x8] sm:$0xff]
  %v1026 = vld [vmem:[#allocation2 + $0x10] sm:$0xff]
  %v1027 = vld [vmem:[#allocation2 + $0x18] sm:$0xff]
  %v1028 = vld [vmem:[#allocation2 + $0x20] sm:$0xff]
  %v1029 = vld [vmem:[#allocation2 + $0x28] sm:$0xff]
  %v1030 = vld [vmem:[#allocation2 + $0x30] sm:$0xff]
  %v1031 = vld [vmem:[#allocation2 + $0x38] sm:$0xff]
  %v1032 = vld [vmem:[#allocation2 + $0x40] sm:$0xff]
  %v1033 = vld [vmem:[#allocation2 + $0x48] sm:$0xff]
  %v1034 = vld [vmem:[#allocation2 + $0x50] sm:$0xff]
  %v1035 = vld [vmem:[#allocation2 + $0x58] sm:$0xff]
  %v1036 = vld [vmem:[#allocation2 + $0x60] sm:$0xff]
  %v1037 = vld [vmem:[#allocation2 + $0x68] sm:$0xff]
  %v1038 = vld [vmem:[#allocation2 + $0x70] sm:$0xff]
  %v1039 = vld [vmem:[#allocation2 + $0x78] sm:$0xff]
  %v1040 = vld [vmem:[%s1] sm:$0xf]
  %v1041 = vld [vmem:[%s1 + $0x4] sm:$0xf]
  %v1042 = vld [vmem:[%s1 + $0x8] sm:$0xf]
  %v1043 = vld [vmem:[%s1 + $0xc] sm:$0xf]
  %v1044 = vld [vmem:[%s1 + $0x10] sm:$0xf]
  %v1045 = vld [vmem:[%s1 + $0x14] sm:$0xf]
  %v1046 = vld [vmem:[%s1 + $0x18] sm:$0xf]
  %v1047 = vld [vmem:[%s1 + $0x1c] sm:$0xf]
  %v1048 = vld [vmem:[%s1 + $0x20] sm:$0xf]
  %v1049 = vld [vmem:[%s1 + $0x24] sm:$0xf]
  %v1050 = vld [vmem:[%s1 + $0x28] sm:$0xf]
  %v1051 = vld [vmem:[%s1 + $0x2c] sm:$0xf]
  %v1052 = vld [vmem:[%s1 + $0x30] sm:$0xf]
  %v1053 = vld [vmem:[%s1 + $0x34] sm:$0xf]
  %v1054 = vld [vmem:[%s1 + $0x38] sm:$0xf]
  %v1055 = vld [vmem:[%s1 + $0x3c] sm:$0xf]
  %v1056 = vld [vmem:[%s1 + $0x40] sm:$0xf]
  %v1057 = vld [vmem:[%s1 + $0x44] sm:$0xf]
  %v1058 = vld [vmem:[%s1 + $0x48] sm:$0xf]
  %v1059 = vld [vmem:[%s1 + $0x4c] sm:$0xf]
  %v1060 = vld [vmem:[%s1 + $0x50] sm:$0xf]
  %v1061 = vld [vmem:[%s1 + $0x54] sm:$0xf]
  %v1062 = vld [vmem:[%s1 + $0x58] sm:$0xf]
  %v1063 = vld [vmem:[%s1 + $0x5c] sm:$0xf]
  %v1064 = vld [vmem:[%s1 + $0x60] sm:$0xf]
  %v1065 = vld [vmem:[%s1 + $0x64] sm:$0xf]
  %v1066 = vld [vmem:[%s1 + $0x68] sm:$0xf]
  %v1067 = vld [vmem:[%s1 + $0x6c] sm:$0xf]
  %v1068 = vld [vmem:[%s1 + $0x70] sm:$0xf]
  %v1069 = vld [vmem:[%s1 + $0x74] sm:$0xf]
  %v1070 = vld [vmem:[%s1 + $0x78] sm:$0xf]
  %v1071 = vld [vmem:[%s1 + $0x7c] sm:$0xf]
  %v1072 = vld [vmem:[%s1 + $0x80] sm:$0xf]
  %v1073 = vld [vmem:[%s1 + $0x84] sm:$0xf]
  %v1074 = vld [vmem:[%s1 + $0x88] sm:$0xf]
  %v1075 = vld [vmem:[%s1 + $0x8c] sm:$0xf]
  %v1076 = vld [vmem:[%s1 + $0x90] sm:$0xf]
  %v1077 = vld [vmem:[%s1 + $0x94] sm:$0xf]
  %v1078 = vld [vmem:[%s1 + $0x98] sm:$0xf]
  %v1079 = vld [vmem:[%s1 + $0x9c] sm:$0xf]
  %v1080 = vld [vmem:[%s1 + $0xa0] sm:$0xf]
  %v1081 = vld [vmem:[%s1 + $0xa4] sm:$0xf]
  %v1082 = vld [vmem:[%s1 + $0xa8] sm:$0xf]
  %v1083 = vld [vmem:[%s1 + $0xac] sm:$0xf]
  %v1084 = vld [vmem:[%s1 + $0xb0] sm:$0xf]
  %v1085 = vld [vmem:[%s1 + $0xb4] sm:$0xf]
  %v1086 = vld [vmem:[%s1 + $0xb8] sm:$0xf]
  %v1087 = vld [vmem:[%s1 + $0xbc] sm:$0xf]
  %v1088 = vld [vmem:[%s1 + $0xc0] sm:$0xf]
  %v1089 = vld [vmem:[%s1 + $0xc4] sm:$0xf]
  %v1090 = vld [vmem:[%s1 + $0xc8] sm:$0xf]
  %v1091 = vld [vmem:[%s1 + $0xcc] sm:$0xf]
  %v1092 = vld [vmem:[%s1 + $0xd0] sm:$0xf]
  %v1093 = vld [vmem:[%s1 + $0xd4] sm:$0xf]
  %v1094 = vld [vmem:[%s1 + $0xd8] sm:$0xf]
  %v1095 = vld [vmem:[%s1 + $0xdc] sm:$0xf]
  %v1096 = vld [vmem:[%s1 + $0xe0] sm:$0xf]
  %v1097 = vld [vmem:[%s1 + $0xe4] sm:$0xf]
  %v1098 = vld [vmem:[%s1 + $0xe8] sm:$0xf]
  %v1099 = vld [vmem:[%s1 + $0xec] sm:$0xf]
  %v1100 = vld [vmem:[%s1 + $0xf0] sm:$0xf]
  %v1101 = vld [vmem:[%s1 + $0xf4] sm:$0xf]
  %v1102 = vld [vmem:[%s1 + $0xf8] sm:$0xf]
  %v1103 = vld [vmem:[%s1 + $0xfc] sm:$0xf]
  %v1104 = vld [vmem:[%s1 + $0x100] sm:$0xf]
  %v1105 = vld [vmem:[%s1 + $0x104] sm:$0xf]
  %v1106 = vld [vmem:[%s1 + $0x108] sm:$0xf]
  %v1107 = vld [vmem:[%s1 + $0x10c] sm:$0xf]
  %v1108 = vld [vmem:[%s1 + $0x110] sm:$0xf]
  %v1109 = vld [vmem:[%s1 + $0x114] sm:$0xf]
  %v1110 = vld [vmem:[%s1 + $0x118] sm:$0xf]
  %v1111 = vld [vmem:[%s1 + $0x11c] sm:$0xf]
  %v1112 = vld [vmem:[%s1 + $0x120] sm:$0xf]
  %v1113 = vld [vmem:[%s1 + $0x124] sm:$0xf]
  %v1114 = vld [vmem:[%s1 + $0x128] sm:$0xf]
  %v1115 = vld [vmem:[%s1 + $0x12c] sm:$0xf]
  %v1116 = vld [vmem:[%s1 + $0x130] sm:$0xf]
  %v1117 = vld [vmem:[%s1 + $0x134] sm:$0xf]
  %v1118 = vld [vmem:[%s1 + $0x138] sm:$0xf]
  %v1119 = vld [vmem:[%s1 + $0x13c] sm:$0xf]
  %v1120 = vld [vmem:[%s1 + $0x140] sm:$0xf]
  %v1121 = vld [vmem:[%s1 + $0x144] sm:$0xf]
  %v1122 = vld [vmem:[%s1 + $0x148] sm:$0xf]
  %v1123 = vld [vmem:[%s1 + $0x14c] sm:$0xf]
  %v1124 = vld [vmem:[%s1 + $0x150] sm:$0xf]
  %v1125 = vld [vmem:[%s1 + $0x154] sm:$0xf]
  %v1126 = vld [vmem:[%s1 + $0x158] sm:$0xf]
  %v1127 = vld [vmem:[%s1 + $0x15c] sm:$0xf]
  %v1128 = vld [vmem:[%s1 + $0x160] sm:$0xf]
  %v1129 = vld [vmem:[%s1 + $0x164] sm:$0xf]
  %v1130 = vld [vmem:[%s1 + $0x168] sm:$0xf]
  %v1131 = vld [vmem:[%s1 + $0x16c] sm:$0xf]
  %v1132 = vld [vmem:[%s1 + $0x170] sm:$0xf]
  %v1133 = vld [vmem:[%s1 + $0x174] sm:$0xf]
  %v1134 = vld [vmem:[%s1 + $0x178] sm:$0xf]
  %v1135 = vld [vmem:[%s1 + $0x17c] sm:$0xf]
  %v1136 = vld [vmem:[%s1 + $0x180] sm:$0xf]
  %v1137 = vld [vmem:[%s1 + $0x184] sm:$0xf]
  %v1138 = vld [vmem:[%s1 + $0x188] sm:$0xf]
  %v1139 = vld [vmem:[%s1 + $0x18c] sm:$0xf]
  %v1140 = vld [vmem:[%s1 + $0x190] sm:$0xf]
  %v1141 = vld [vmem:[%s1 + $0x194] sm:$0xf]
  %v1142 = vld [vmem:[%s1 + $0x198] sm:$0xf]
  %v1143 = vld [vmem:[%s1 + $0x19c] sm:$0xf]
  %v1144 = vld [vmem:[%s1 + $0x1a0] sm:$0xf]
  %v1145 = vld [vmem:[%s1 + $0x1a4] sm:$0xf]
  %v1146 = vld [vmem:[%s1 + $0x1a8] sm:$0xf]
  %v1147 = vld [vmem:[%s1 + $0x1ac] sm:$0xf]
  %v1148 = vld [vmem:[%s1 + $0x1b0] sm:$0xf]
  %v1149 = vld [vmem:[%s1 + $0x1b4] sm:$0xf]
  %v1150 = vld [vmem:[%s1 + $0x1b8] sm:$0xf]
  %v1151 = vld [vmem:[%s1 + $0x1bc] sm:$0xf]
  %v1152 = vld [vmem:[%s1 + $0x1c0] sm:$0xf]
  %v1153 = vld [vmem:[%s1 + $0x1c4] sm:$0xf]
  %v1154 = vld [vmem:[%s1 + $0x1c8] sm:$0xf]
  %v1155 = vld [vmem:[%s1 + $0x1cc] sm:$0xf]
  %v1156 = vld [vmem:[%s1 + $0x1d0] sm:$0xf]
  %v1157 = vld [vmem:[%s1 + $0x1d4] sm:$0xf]
  %v1158 = vld [vmem:[%s1 + $0x1d8] sm:$0xf]
  %v1159 = vld [vmem:[%s1 + $0x1dc] sm:$0xf]
  %v1160 = vld [vmem:[%s1 + $0x1e0] sm:$0xf]
  %v1161 = vld [vmem:[%s1 + $0x1e4] sm:$0xf]
  %v1162 = vld [vmem:[%s1 + $0x1e8] sm:$0xf]
  %v1163 = vld [vmem:[%s1 + $0x1ec] sm:$0xf]
  %v1164 = vld [vmem:[%s1 + $0x1f0] sm:$0xf]
  %v1165 = vld [vmem:[%s1 + $0x1f4] sm:$0xf]
  %v1166 = vld [vmem:[%s1 + $0x1f8] sm:$0xf]
  %v1167 = vld [vmem:[%s1 + $0x1fc] sm:$0xf]
  %v1296 = vunpack.c.l.b16 %v1040
  %v1297 = vunpack.c.l.b16 %v1041
  %v1298 = vunpack.c.l.b16 %v1042
  %v1299 = vunpack.c.l.b16 %v1043
  %v1300 = vunpack.c.l.b16 %v1044
  %v1301 = vunpack.c.l.b16 %v1045
  %v1302 = vunpack.c.l.b16 %v1046
  %v1303 = vunpack.c.l.b16 %v1047
  %v1304 = vunpack.c.l.b16 %v1048
  %v1305 = vunpack.c.l.b16 %v1049
  %v1306 = vunpack.c.l.b16 %v1050
  %v1307 = vunpack.c.l.b16 %v1051
  %v1308 = vunpack.c.l.b16 %v1052
  %v1309 = vunpack.c.l.b16 %v1053
  %v1310 = vunpack.c.l.b16 %v1054
  %v1311 = vunpack.c.l.b16 %v1055
  %v1312 = vunpack.c.l.b16 %v1056
  %v1313 = vunpack.c.l.b16 %v1057
  %v1314 = vunpack.c.l.b16 %v1058
  %v1315 = vunpack.c.l.b16 %v1059
  %v1316 = vunpack.c.l.b16 %v1060
  %v1317 = vunpack.c.l.b16 %v1061
  %v1318 = vunpack.c.l.b16 %v1062
  %v1319 = vunpack.c.l.b16 %v1063
  %v1320 = vunpack.c.l.b16 %v1064
  %v1321 = vunpack.c.l.b16 %v1065
  %v1322 = vunpack.c.l.b16 %v1066
  %v1323 = vunpack.c.l.b16 %v1067
  %v1324 = vunpack.c.l.b16 %v1068
  %v1325 = vunpack.c.l.b16 %v1069
  %v1326 = vunpack.c.l.b16 %v1070
  %v1327 = vunpack.c.l.b16 %v1071
  %v1328 = vunpack.c.l.b16 %v1072
  %v1329 = vunpack.c.l.b16 %v1073
  %v1330 = vunpack.c.l.b16 %v1074
  %v1331 = vunpack.c.l.b16 %v1075
  %v1332 = vunpack.c.l.b16 %v1076
  %v1333 = vunpack.c.l.b16 %v1077
  %v1334 = vunpack.c.l.b16 %v1078
  %v1335 = vunpack.c.l.b16 %v1079
  %v1336 = vunpack.c.l.b16 %v1080
  %v1337 = vunpack.c.l.b16 %v1081
  %v1338 = vunpack.c.l.b16 %v1082
  %v1339 = vunpack.c.l.b16 %v1083
  %v1340 = vunpack.c.l.b16 %v1084
  %v1341 = vunpack.c.l.b16 %v1085
  %v1342 = vunpack.c.l.b16 %v1086
  %v1343 = vunpack.c.l.b16 %v1087
  %v1344 = vunpack.c.l.b16 %v1088
  %v1345 = vunpack.c.l.b16 %v1089
  %v1346 = vunpack.c.l.b16 %v1090
  %v1347 = vunpack.c.l.b16 %v1091
  %v1348 = vunpack.c.l.b16 %v1092
  %v1349 = vunpack.c.l.b16 %v1093
  %v1350 = vunpack.c.l.b16 %v1094
  %v1351 = vunpack.c.l.b16 %v1095
  %v1352 = vunpack.c.l.b16 %v1096
  %v1353 = vunpack.c.l.b16 %v1097
  %v1354 = vunpack.c.l.b16 %v1098
  %v1355 = vunpack.c.l.b16 %v1099
  %v1356 = vunpack.c.l.b16 %v1100
  %v1357 = vunpack.c.l.b16 %v1101
  %v1358 = vunpack.c.l.b16 %v1102
  %v1359 = vunpack.c.l.b16 %v1103
  %v1360 = vunpack.c.l.b16 %v1104
  %v1361 = vunpack.c.l.b16 %v1105
  %v1362 = vunpack.c.l.b16 %v1106
  %v1363 = vunpack.c.l.b16 %v1107
  %v1364 = vunpack.c.l.b16 %v1108
  %v1365 = vunpack.c.l.b16 %v1109
  %v1366 = vunpack.c.l.b16 %v1110
  %v1367 = vunpack.c.l.b16 %v1111
  %v1368 = vunpack.c.l.b16 %v1112
  %v1369 = vunpack.c.l.b16 %v1113
  %v1370 = vunpack.c.l.b16 %v1114
  %v1371 = vunpack.c.l.b16 %v1115
  %v1372 = vunpack.c.l.b16 %v1116
  %v1373 = vunpack.c.l.b16 %v1117
  %v1374 = vunpack.c.l.b16 %v1118
  %v1375 = vunpack.c.l.b16 %v1119
  %v1376 = vunpack.c.l.b16 %v1120
  %v1377 = vunpack.c.l.b16 %v1121
  %v1378 = vunpack.c.l.b16 %v1122
  %v1379 = vunpack.c.l.b16 %v1123
  %v1380 = vunpack.c.l.b16 %v1124
  %v1381 = vunpack.c.l.b16 %v1125
  %v1382 = vunpack.c.l.b16 %v1126
  %v1383 = vunpack.c.l.b16 %v1127
  %v1384 = vunpack.c.l.b16 %v1128
  %v1385 = vunpack.c.l.b16 %v1129
  %v1386 = vunpack.c.l.b16 %v1130
  %v1387 = vunpack.c.l.b16 %v1131
  %v1388 = vunpack.c.l.b16 %v1132
  %v1389 = vunpack.c.l.b16 %v1133
  %v1390 = vunpack.c.l.b16 %v1134
  %v1391 = vunpack.c.l.b16 %v1135
  %v1392 = vunpack.c.l.b16 %v1136
  %v1393 = vunpack.c.l.b16 %v1137
  %v1394 = vunpack.c.l.b16 %v1138
  %v1395 = vunpack.c.l.b16 %v1139
  %v1396 = vunpack.c.l.b16 %v1140
  %v1397 = vunpack.c.l.b16 %v1141
  %v1398 = vunpack.c.l.b16 %v1142
  %v1399 = vunpack.c.l.b16 %v1143
  %v1400 = vunpack.c.l.b16 %v1144
  %v1401 = vunpack.c.l.b16 %v1145
  %v1402 = vunpack.c.l.b16 %v1146
  %v1403 = vunpack.c.l.b16 %v1147
  %v1404 = vunpack.c.l.b16 %v1148
  %v1405 = vunpack.c.l.b16 %v1149
  %v1406 = vunpack.c.l.b16 %v1150
  %v1407 = vunpack.c.l.b16 %v1151
  %v1408 = vunpack.c.l.b16 %v1152
  %v1409 = vunpack.c.l.b16 %v1153
  %v1410 = vunpack.c.l.b16 %v1154
  %v1411 = vunpack.c.l.b16 %v1155
  %v1412 = vunpack.c.l.b16 %v1156
  %v1413 = vunpack.c.l.b16 %v1157
  %v1414 = vunpack.c.l.b16 %v1158
  %v1415 = vunpack.c.l.b16 %v1159
  %v1416 = vunpack.c.l.b16 %v1160
  %v1417 = vunpack.c.l.b16 %v1161
  %v1418 = vunpack.c.l.b16 %v1162
  %v1419 = vunpack.c.l.b16 %v1163
  %v1420 = vunpack.c.l.b16 %v1164
  %v1421 = vunpack.c.l.b16 %v1165
  %v1422 = vunpack.c.l.b16 %v1166
  %v1423 = vunpack.c.l.b16 %v1167
  %v1424 = vpack.c.b16 %v1297, %v1296
  %v1425 = vpack.c.b16 %v1299, %v1298
  %v1426 = vpack.c.b16 %v1301, %v1300
  %v1427 = vpack.c.b16 %v1303, %v1302
  %v1428 = vpack.c.b16 %v1305, %v1304
  %v1429 = vpack.c.b16 %v1307, %v1306
  %v1430 = vpack.c.b16 %v1309, %v1308
  %v1431 = vpack.c.b16 %v1311, %v1310
  %v1432 = vpack.c.b16 %v1313, %v1312
  %v1433 = vpack.c.b16 %v1315, %v1314
  %v1434 = vpack.c.b16 %v1317, %v1316
  %v1435 = vpack.c.b16 %v1319, %v1318
  %v1436 = vpack.c.b16 %v1321, %v1320
  %v1437 = vpack.c.b16 %v1323, %v1322
  %v1438 = vpack.c.b16 %v1325, %v1324
  %v1439 = vpack.c.b16 %v1327, %v1326
  %v1440 = vpack.c.b16 %v1329, %v1328
  %v1441 = vpack.c.b16 %v1331, %v1330
  %v1442 = vpack.c.b16 %v1333, %v1332
  %v1443 = vpack.c.b16 %v1335, %v1334
  %v1444 = vpack.c.b16 %v1337, %v1336
  %v1445 = vpack.c.b16 %v1339, %v1338
  %v1446 = vpack.c.b16 %v1341, %v1340
  %v1447 = vpack.c.b16 %v1343, %v1342
  %v1448 = vpack.c.b16 %v1345, %v1344
  %v1449 = vpack.c.b16 %v1347, %v1346
  %v1450 = vpack.c.b16 %v1349, %v1348
  %v1451 = vpack.c.b16 %v1351, %v1350
  %v1452 = vpack.c.b16 %v1353, %v1352
  %v1453 = vpack.c.b16 %v1355, %v1354
  %v1454 = vpack.c.b16 %v1357, %v1356
  %v1455 = vpack.c.b16 %v1359, %v1358
  %v1456 = vpack.c.b16 %v1361, %v1360
  %v1457 = vpack.c.b16 %v1363, %v1362
  %v1458 = vpack.c.b16 %v1365, %v1364
  %v1459 = vpack.c.b16 %v1367, %v1366
  %v1460 = vpack.c.b16 %v1369, %v1368
  %v1461 = vpack.c.b16 %v1371, %v1370
  %v1462 = vpack.c.b16 %v1373, %v1372
  %v1463 = vpack.c.b16 %v1375, %v1374
  %v1464 = vpack.c.b16 %v1377, %v1376
  %v1465 = vpack.c.b16 %v1379, %v1378
  %v1466 = vpack.c.b16 %v1381, %v1380
  %v1467 = vpack.c.b16 %v1383, %v1382
  %v1468 = vpack.c.b16 %v1385, %v1384
  %v1469 = vpack.c.b16 %v1387, %v1386
  %v1470 = vpack.c.b16 %v1389, %v1388
  %v1471 = vpack.c.b16 %v1391, %v1390
  %v1472 = vpack.c.b16 %v1393, %v1392
  %v1473 = vpack.c.b16 %v1395, %v1394
  %v1474 = vpack.c.b16 %v1397, %v1396
  %v1475 = vpack.c.b16 %v1399, %v1398
  %v1476 = vpack.c.b16 %v1401, %v1400
  %v1477 = vpack.c.b16 %v1403, %v1402
  %v1478 = vpack.c.b16 %v1405, %v1404
  %v1479 = vpack.c.b16 %v1407, %v1406
  %v1480 = vpack.c.b16 %v1409, %v1408
  %v1481 = vpack.c.b16 %v1411, %v1410
  %v1482 = vpack.c.b16 %v1413, %v1412
  %v1483 = vpack.c.b16 %v1415, %v1414
  %v1484 = vpack.c.b16 %v1417, %v1416
  %v1485 = vpack.c.b16 %v1419, %v1418
  %v1486 = vpack.c.b16 %v1421, %v1420
  %v1487 = vpack.c.b16 %v1423, %v1422
  %1552 = vmatprep.subr.bf16.mxu0 0
  %1553 = vmatpush1.bf16.msra.mxu0 %v1431
  %1554 = vmatprep.subr.bf16.mxu0 0
  %1555 = vmatpush1.bf16.msra.mxu0 %v1430
  %1556 = vmatprep.subr.bf16.mxu0 0
  %1557 = vmatpush1.bf16.msra.mxu0 %v1429
  %1558 = vmatprep.subr.bf16.mxu0 0
  %1559 = vmatpush1.bf16.msra.mxu0 %v1428
  %1560 = vmatprep.subr.bf16.mxu0 0
  %1561 = vmatpush1.bf16.msra.mxu0 %v1427
  %1562 = vmatprep.subr.bf16.mxu0 0
  %1563 = vmatpush1.bf16.msra.mxu0 %v1426
  %1564 = vmatprep.subr.bf16.mxu0 0
  %1565 = vmatpush1.bf16.msra.mxu0 %v1425
  %1566 = vmatprep.subr.bf16.mxu0 0
  %1567 = vmatpush1.bf16.msra.mxu0 %v1424
  %1568 = vmatprep.subr.bf16.mxu0 0
  %1569 = vmatpush2.bf16.msra.mxu0 %v1439
  %1570 = vmatprep.subr.bf16.mxu0 0
  %1571 = vmatpush2.bf16.msra.mxu0 %v1438
  %1572 = vmatprep.subr.bf16.mxu0 0
  %1573 = vmatpush2.bf16.msra.mxu0 %v1437
  %1574 = vmatprep.subr.bf16.mxu0 0
  %1575 = vmatpush2.bf16.msra.mxu0 %v1436
  %1576 = vmatprep.subr.bf16.mxu0 0
  %1577 = vmatpush2.bf16.msra.mxu0 %v1435
  %1578 = vmatprep.subr.bf16.mxu0 0
  %1579 = vmatpush2.bf16.msra.mxu0 %v1434
  %1580 = vmatprep.subr.bf16.mxu0 0
  %1581 = vmatpush2.bf16.msra.mxu0 %v1433
  %1582 = vmatprep.subr.bf16.mxu0 0
  %1583 = vmatpush2.bf16.msra.mxu0 %v1432
  %1584 = vmatprep.mubr.bf16.mxu0 %v961
  %1585 = vmatmul.mubr.bf16.gmra.mxu0 %v960
  %v1586 = vpop.f32.mrf.mxu0
  %v1587 = vadd.f32 0.0, %v1586
  %v1588 = vpop.f32.mrf.mxu0
  %v1589 = vpop.f32.mrf.mxu0
  %v1590 = vadd.f32 0.0, %v1589
  %v1591 = vpop.f32.mrf.mxu0
  %1592 = vmatprep.mubr.bf16.mxu0 %v969
  %1593 = vmatmul.mubr.bf16.gmra.mxu0 %v968
  %v1594 = vpop.f32.mrf.mxu0
  %v1595 = vadd.f32 0.0, %v1594
  %v1596 = vpop.f32.mrf.mxu0
  %v1597 = vpop.f32.mrf.mxu0
  %v1598 = vadd.f32 0.0, %v1597
  %v1599 = vpop.f32.mrf.mxu0
  %1600 = vmatprep.mubr.bf16.mxu0 %v977
  %1601 = vmatmul.mubr.bf16.gmra.mxu0 %v976
  %v1602 = vpop.f32.mrf.mxu0
  %v1603 = vadd.f32 0.0, %v1602
  %v1604 = vpop.f32.mrf.mxu0
  %v1605 = vpop.f32.mrf.mxu0
  %v1606 = vadd.f32 0.0, %v1605
  %v1607 = vpop.f32.mrf.mxu0
  %1608 = vmatprep.mubr.bf16.mxu0 %v985
  %1609 = vmatmul.mubr.bf16.gmra.mxu0 %v984
  %v1610 = vpop.f32.mrf.mxu0
  %v1611 = vadd.f32 0.0, %v1610
  %v1612 = vpop.f32.mrf.mxu0
  %v1613 = vpop.f32.mrf.mxu0
  %v1614 = vadd.f32 0.0, %v1613
  %v1615 = vpop.f32.mrf.mxu0
  %1616 = vmatprep.mubr.bf16.mxu0 %v993
  %1617 = vmatmul.mubr.bf16.gmra.mxu0 %v992
  %v1618 = vpop.f32.mrf.mxu0
  %v1619 = vadd.f32 0.0, %v1618
  %v1620 = vpop.f32.mrf.mxu0
  %v1621 = vpop.f32.mrf.mxu0
  %v1622 = vadd.f32 0.0, %v1621
  %v1623 = vpop.f32.mrf.mxu0
  %1624 = vmatprep.mubr.bf16.mxu0 %v1001
  %1625 = vmatmul.mubr.bf16.gmra.mxu0 %v1000
  %v1626 = vpop.f32.mrf.mxu0
  %v1627 = vadd.f32 0.0, %v1626
  %v1628 = vpop.f32.mrf.mxu0
  %v1629 = vpop.f32.mrf.mxu0
  %v1630 = vadd.f32 0.0, %v1629
  %v1631 = vpop.f32.mrf.mxu0
  %1632 = vmatprep.mubr.bf16.mxu0 %v1009
  %1633 = vmatmul.mubr.bf16.gmra.mxu0 %v1008
  %v1634 = vpop.f32.mrf.mxu0
  %v1635 = vadd.f32 0.0, %v1634
  %v1636 = vpop.f32.mrf.mxu0
  %v1637 = vpop.f32.mrf.mxu0
  %v1638 = vadd.f32 0.0, %v1637
  %v1639 = vpop.f32.mrf.mxu0
  %1640 = vmatprep.mubr.bf16.mxu0 %v1017
  %1641 = vmatmul.mubr.bf16.gmra.mxu0 %v1016
  %v1642 = vpop.f32.mrf.mxu0
  %v1643 = vadd.f32 0.0, %v1642
  %v1644 = vpop.f32.mrf.mxu0
  %v1645 = vpop.f32.mrf.mxu0
  %v1646 = vadd.f32 0.0, %v1645
  %v1647 = vpop.f32.mrf.mxu0
  %1648 = vdwg.mxu0
  %1649 = vmatprep.subr.bf16.mxu0 0
  %1650 = vmatpush1.bf16.msra.mxu0 %v1447
  %1651 = vmatprep.subr.bf16.mxu0 0
  %1652 = vmatpush1.bf16.msra.mxu0 %v1446
  %1653 = vmatprep.subr.bf16.mxu0 0
  %1654 = vmatpush1.bf16.msra.mxu0 %v1445
  %1655 = vmatprep.subr.bf16.mxu0 0
  %1656 = vmatpush1.bf16.msra.mxu0 %v1444
  %1657 = vmatprep.subr.bf16.mxu0 0
  %1658 = vmatpush1.bf16.msra.mxu0 %v1443
  %1659 = vmatprep.subr.bf16.mxu0 0
  %1660 = vmatpush1.bf16.msra.mxu0 %v1442
  %1661 = vmatprep.subr.bf16.mxu0 0
  %1662 = vmatpush1.bf16.msra.mxu0 %v1441
  %1663 = vmatprep.subr.bf16.mxu0 0
  %1664 = vmatpush1.bf16.msra.mxu0 %v1440
  %1665 = vmatprep.subr.bf16.mxu0 0
  %1666 = vmatpush2.bf16.msra.mxu0 %v1455
  %1667 = vmatprep.subr.bf16.mxu0 0
  %1668 = vmatpush2.bf16.msra.mxu0 %v1454
  %1669 = vmatprep.subr.bf16.mxu0 0
  %1670 = vmatpush2.bf16.msra.mxu0 %v1453
  %1671 = vmatprep.subr.bf16.mxu0 0
  %1672 = vmatpush2.bf16.msra.mxu0 %v1452
  %1673 = vmatprep.subr.bf16.mxu0 0
  %1674 = vmatpush2.bf16.msra.mxu0 %v1451
  %1675 = vmatprep.subr.bf16.mxu0 0
  %1676 = vmatpush2.bf16.msra.mxu0 %v1450
  %1677 = vmatprep.subr.bf16.mxu0 0
  %1678 = vmatpush2.bf16.msra.mxu0 %v1449
  %1679 = vmatprep.subr.bf16.mxu0 0
  %1680 = vmatpush2.bf16.msra.mxu0 %v1448
  %1681 = vmatprep.mubr.bf16.mxu0 %v963
  %1682 = vmatmul.mubr.bf16.gmra.mxu0 %v962
  %v1683 = vpop.f32.mrf.mxu0
  %v1684 = vadd.f32 %v1587, %v1683
  %v1685 = vpop.f32.mrf.mxu0
  %v1686 = vpop.f32.mrf.mxu0
  %v1687 = vadd.f32 %v1590, %v1686
  %v1688 = vpop.f32.mrf.mxu0
  %1689 = vmatprep.mubr.bf16.mxu0 %v971
  %1690 = vmatmul.mubr.bf16.gmra.mxu0 %v970
  %v1691 = vpop.f32.mrf.mxu0
  %v1692 = vadd.f32 %v1595, %v1691
  %v1693 = vpop.f32.mrf.mxu0
  %v1694 = vpop.f32.mrf.mxu0
  %v1695 = vadd.f32 %v1598, %v1694
  %v1696 = vpop.f32.mrf.mxu0
  %1697 = vmatprep.mubr.bf16.mxu0 %v979
  %1698 = vmatmul.mubr.bf16.gmra.mxu0 %v978
  %v1699 = vpop.f32.mrf.mxu0
  %v1700 = vadd.f32 %v1603, %v1699
  %v1701 = vpop.f32.mrf.mxu0
  %v1702 = vpop.f32.mrf.mxu0
  %v1703 = vadd.f32 %v1606, %v1702
  %v1704 = vpop.f32.mrf.mxu0
  %1705 = vmatprep.mubr.bf16.mxu0 %v987
  %1706 = vmatmul.mubr.bf16.gmra.mxu0 %v986
  %v1707 = vpop.f32.mrf.mxu0
  %v1708 = vadd.f32 %v1611, %v1707
  %v1709 = vpop.f32.mrf.mxu0
  %v1710 = vpop.f32.mrf.mxu0
  %v1711 = vadd.f32 %v1614, %v1710
  %v1712 = vpop.f32.mrf.mxu0
  %1713 = vmatprep.mubr.bf16.mxu0 %v995
  %1714 = vmatmul.mubr.bf16.gmra.mxu0 %v994
  %v1715 = vpop.f32.mrf.mxu0
  %v1716 = vadd.f32 %v1619, %v1715
  %v1717 = vpop.f32.mrf.mxu0
  %v1718 = vpop.f32.mrf.mxu0
  %v1719 = vadd.f32 %v1622, %v1718
  %v1720 = vpop.f32.mrf.mxu0
  %1721 = vmatprep.mubr.bf16.mxu0 %v1003
  %1722 = vmatmul.mubr.bf16.gmra.mxu0 %v1002
  %v1723 = vpop.f32.mrf.mxu0
  %v1724 = vadd.f32 %v1627, %v1723
  %v1725 = vpop.f32.mrf.mxu0
  %v1726 = vpop.f32.mrf.mxu0
  %v1727 = vadd.f32 %v1630, %v1726
  %v1728 = vpop.f32.mrf.mxu0
  %1729 = vmatprep.mubr.bf16.mxu0 %v1011
  %1730 = vmatmul.mubr.bf16.gmra.mxu0 %v1010
  %v1731 = vpop.f32.mrf.mxu0
  %v1732 = vadd.f32 %v1635, %v1731
  %v1733 = vpop.f32.mrf.mxu0
  %v1734 = vpop.f32.mrf.mxu0
  %v1735 = vadd.f32 %v1638, %v1734
  %v1736 = vpop.f32.mrf.mxu0
  %1737 = vmatprep.mubr.bf16.mxu0 %v1019
  %1738 = vmatmul.mubr.bf16.gmra.mxu0 %v1018
  %v1739 = vpop.f32.mrf.mxu0
  %v1740 = vadd.f32 %v1643, %v1739
  %v1741 = vpop.f32.mrf.mxu0
  %v1742 = vpop.f32.mrf.mxu0
  %v1743 = vadd.f32 %v1646, %v1742
  %v1744 = vpop.f32.mrf.mxu0
  %1745 = vdwg.mxu0
  %1746 = vmatprep.subr.bf16.mxu0 0
  %1747 = vmatpush1.bf16.msra.mxu0 %v1463
  %1748 = vmatprep.subr.bf16.mxu0 0
  %1749 = vmatpush1.bf16.msra.mxu0 %v1462
  %1750 = vmatprep.subr.bf16.mxu0 0
  %1751 = vmatpush1.bf16.msra.mxu0 %v1461
  %1752 = vmatprep.subr.bf16.mxu0 0
  %1753 = vmatpush1.bf16.msra.mxu0 %v1460
  %1754 = vmatprep.subr.bf16.mxu0 0
  %1755 = vmatpush1.bf16.msra.mxu0 %v1459
  %1756 = vmatprep.subr.bf16.mxu0 0
  %1757 = vmatpush1.bf16.msra.mxu0 %v1458
  %1758 = vmatprep.subr.bf16.mxu0 0
  %1759 = vmatpush1.bf16.msra.mxu0 %v1457
  %1760 = vmatprep.subr.bf16.mxu0 0
  %1761 = vmatpush1.bf16.msra.mxu0 %v1456
  %1762 = vmatprep.subr.bf16.mxu0 0
  %1763 = vmatpush2.bf16.msra.mxu0 %v1471
  %1764 = vmatprep.subr.bf16.mxu0 0
  %1765 = vmatpush2.bf16.msra.mxu0 %v1470
  %1766 = vmatprep.subr.bf16.mxu0 0
  %1767 = vmatpush2.bf16.msra.mxu0 %v1469
  %1768 = vmatprep.subr.bf16.mxu0 0
  %1769 = vmatpush2.bf16.msra.mxu0 %v1468
  %1770 = vmatprep.subr.bf16.mxu0 0
  %1771 = vmatpush2.bf16.msra.mxu0 %v1467
  %1772 = vmatprep.subr.bf16.mxu0 0
  %1773 = vmatpush2.bf16.msra.mxu0 %v1466
  %1774 = vmatprep.subr.bf16.mxu0 0
  %1775 = vmatpush2.bf16.msra.mxu0 %v1465
  %1776 = vmatprep.subr.bf16.mxu0 0
  %1777 = vmatpush2.bf16.msra.mxu0 %v1464
  %1778 = vmatprep.mubr.bf16.mxu0 %v965
  %1779 = vmatmul.mubr.bf16.gmra.mxu0 %v964
  %v1780 = vpop.f32.mrf.mxu0
  %v1781 = vadd.f32 %v1684, %v1780
  %v1782 = vpop.f32.mrf.mxu0
  %v1783 = vpop.f32.mrf.mxu0
  %v1784 = vadd.f32 %v1687, %v1783
  %v1785 = vpop.f32.mrf.mxu0
  %1786 = vmatprep.mubr.bf16.mxu0 %v973
  %1787 = vmatmul.mubr.bf16.gmra.mxu0 %v972
  %v1788 = vpop.f32.mrf.mxu0
  %v1789 = vadd.f32 %v1692, %v1788
  %v1790 = vpop.f32.mrf.mxu0
  %v1791 = vpop.f32.mrf.mxu0
  %v1792 = vadd.f32 %v1695, %v1791
  %v1793 = vpop.f32.mrf.mxu0
  %1794 = vmatprep.mubr.bf16.mxu0 %v981
  %1795 = vmatmul.mubr.bf16.gmra.mxu0 %v980
  %v1796 = vpop.f32.mrf.mxu0
  %v1797 = vadd.f32 %v1700, %v1796
  %v1798 = vpop.f32.mrf.mxu0
  %v1799 = vpop.f32.mrf.mxu0
  %v1800 = vadd.f32 %v1703, %v1799
  %v1801 = vpop.f32.mrf.mxu0
  %1802 = vmatprep.mubr.bf16.mxu0 %v989
  %1803 = vmatmul.mubr.bf16.gmra.mxu0 %v988
  %v1804 = vpop.f32.mrf.mxu0
  %v1805 = vadd.f32 %v1708, %v1804
  %v1806 = vpop.f32.mrf.mxu0
  %v1807 = vpop.f32.mrf.mxu0
  %v1808 = vadd.f32 %v1711, %v1807
  %v1809 = vpop.f32.mrf.mxu0
  %1810 = vmatprep.mubr.bf16.mxu0 %v997
  %1811 = vmatmul.mubr.bf16.gmra.mxu0 %v996
  %v1812 = vpop.f32.mrf.mxu0
  %v1813 = vadd.f32 %v1716, %v1812
  %v1814 = vpop.f32.mrf.mxu0
  %v1815 = vpop.f32.mrf.mxu0
  %v1816 = vadd.f32 %v1719, %v1815
  %v1817 = vpop.f32.mrf.mxu0
  %1818 = vmatprep.mubr.bf16.mxu0 %v1005
  %1819 = vmatmul.mubr.bf16.gmra.mxu0 %v1004
  %v1820 = vpop.f32.mrf.mxu0
  %v1821 = vadd.f32 %v1724, %v1820
  %v1822 = vpop.f32.mrf.mxu0
  %v1823 = vpop.f32.mrf.mxu0
  %v1824 = vadd.f32 %v1727, %v1823
  %v1825 = vpop.f32.mrf.mxu0
  %1826 = vmatprep.mubr.bf16.mxu0 %v1013
  %1827 = vmatmul.mubr.bf16.gmra.mxu0 %v1012
  %v1828 = vpop.f32.mrf.mxu0
  %v1829 = vadd.f32 %v1732, %v1828
  %v1830 = vpop.f32.mrf.mxu0
  %v1831 = vpop.f32.mrf.mxu0
  %v1832 = vadd.f32 %v1735, %v1831
  %v1833 = vpop.f32.mrf.mxu0
  %1834 = vmatprep.mubr.bf16.mxu0 %v1021
  %1835 = vmatmul.mubr.bf16.gmra.mxu0 %v1020
  %v1836 = vpop.f32.mrf.mxu0
  %v1837 = vadd.f32 %v1740, %v1836
  %v1838 = vpop.f32.mrf.mxu0
  %v1839 = vpop.f32.mrf.mxu0
  %v1840 = vadd.f32 %v1743, %v1839
  %v1841 = vpop.f32.mrf.mxu0
  %1842 = vdwg.mxu0
  %1843 = vmatprep.subr.bf16.mxu0 0
  %1844 = vmatpush1.bf16.msra.mxu0 %v1479
  %1845 = vmatprep.subr.bf16.mxu0 0
  %1846 = vmatpush1.bf16.msra.mxu0 %v1478
  %1847 = vmatprep.subr.bf16.mxu0 0
  %1848 = vmatpush1.bf16.msra.mxu0 %v1477
  %1849 = vmatprep.subr.bf16.mxu0 0
  %1850 = vmatpush1.bf16.msra.mxu0 %v1476
  %1851 = vmatprep.subr.bf16.mxu0 0
  %1852 = vmatpush1.bf16.msra.mxu0 %v1475
  %1853 = vmatprep.subr.bf16.mxu0 0
  %1854 = vmatpush1.bf16.msra.mxu0 %v1474
  %1855 = vmatprep.subr.bf16.mxu0 0
  %1856 = vmatpush1.bf16.msra.mxu0 %v1473
  %1857 = vmatprep.subr.bf16.mxu0 0
  %1858 = vmatpush1.bf16.msra.mxu0 %v1472
  %1859 = vmatprep.subr.bf16.mxu0 0
  %1860 = vmatpush2.bf16.msra.mxu0 %v1487
  %1861 = vmatprep.subr.bf16.mxu0 0
  %1862 = vmatpush2.bf16.msra.mxu0 %v1486
  %1863 = vmatprep.subr.bf16.mxu0 0
  %1864 = vmatpush2.bf16.msra.mxu0 %v1485
  %1865 = vmatprep.subr.bf16.mxu0 0
  %1866 = vmatpush2.bf16.msra.mxu0 %v1484
  %1867 = vmatprep.subr.bf16.mxu0 0
  %1868 = vmatpush2.bf16.msra.mxu0 %v1483
  %1869 = vmatprep.subr.bf16.mxu0 0
  %1870 = vmatpush2.bf16.msra.mxu0 %v1482
  %1871 = vmatprep.subr.bf16.mxu0 0
  %1872 = vmatpush2.bf16.msra.mxu0 %v1481
  %1873 = vmatprep.subr.bf16.mxu0 0
  %1874 = vmatpush2.bf16.msra.mxu0 %v1480
  %1875 = vmatprep.mubr.bf16.mxu0 %v967
  %1876 = vmatmul.mubr.bf16.gmra.mxu0 %v966
  %v1877 = vpop.f32.mrf.mxu0
  %v1878 = vadd.f32 %v1781, %v1877
  %v1879 = vpop.f32.mrf.mxu0
  %v1880 = vpop.f32.mrf.mxu0
  %v1881 = vadd.f32 %v1784, %v1880
  %v1882 = vpop.f32.mrf.mxu0
  %1883 = vmatprep.mubr.bf16.mxu0 %v975
  %1884 = vmatmul.mubr.bf16.gmra.mxu0 %v974
  %v1885 = vpop.f32.mrf.mxu0
  %v1886 = vadd.f32 %v1789, %v1885
  %v1887 = vpop.f32.mrf.mxu0
  %v1888 = vpop.f32.mrf.mxu0
  %v1889 = vadd.f32 %v1792, %v1888
  %v1890 = vpop.f32.mrf.mxu0
  %1891 = vmatprep.mubr.bf16.mxu0 %v983
  %1892 = vmatmul.mubr.bf16.gmra.mxu0 %v982
  %v1893 = vpop.f32.mrf.mxu0
  %v1894 = vadd.f32 %v1797, %v1893
  %v1895 = vpop.f32.mrf.mxu0
  %v1896 = vpop.f32.mrf.mxu0
  %v1897 = vadd.f32 %v1800, %v1896
  %v1898 = vpop.f32.mrf.mxu0
  %1899 = vmatprep.mubr.bf16.mxu0 %v991
  %1900 = vmatmul.mubr.bf16.gmra.mxu0 %v990
  %v1901 = vpop.f32.mrf.mxu0
  %v1902 = vadd.f32 %v1805, %v1901
  %v1903 = vpop.f32.mrf.mxu0
  %v1904 = vpop.f32.mrf.mxu0
  %v1905 = vadd.f32 %v1808, %v1904
  %v1906 = vpop.f32.mrf.mxu0
  %1907 = vmatprep.mubr.bf16.mxu0 %v999
  %1908 = vmatmul.mubr.bf16.gmra.mxu0 %v998
  %v1909 = vpop.f32.mrf.mxu0
  %v1910 = vadd.f32 %v1813, %v1909
  %v1911 = vpop.f32.mrf.mxu0
  %v1912 = vpop.f32.mrf.mxu0
  %v1913 = vadd.f32 %v1816, %v1912
  %v1914 = vpop.f32.mrf.mxu0
  %1915 = vmatprep.mubr.bf16.mxu0 %v1007
  %1916 = vmatmul.mubr.bf16.gmra.mxu0 %v1006
  %v1917 = vpop.f32.mrf.mxu0
  %v1918 = vadd.f32 %v1821, %v1917
  %v1919 = vpop.f32.mrf.mxu0
  %v1920 = vpop.f32.mrf.mxu0
  %v1921 = vadd.f32 %v1824, %v1920
  %v1922 = vpop.f32.mrf.mxu0
  %1923 = vmatprep.mubr.bf16.mxu0 %v1015
  %1924 = vmatmul.mubr.bf16.gmra.mxu0 %v1014
  %v1925 = vpop.f32.mrf.mxu0
  %v1926 = vadd.f32 %v1829, %v1925
  %v1927 = vpop.f32.mrf.mxu0
  %v1928 = vpop.f32.mrf.mxu0
  %v1929 = vadd.f32 %v1832, %v1928
  %v1930 = vpop.f32.mrf.mxu0
  %1931 = vmatprep.mubr.bf16.mxu0 %v1023
  %1932 = vmatmul.mubr.bf16.gmra.mxu0 %v1022
  %v1933 = vpop.f32.mrf.mxu0
  %v1934 = vadd.f32 %v1837, %v1933
  %v1935 = vpop.f32.mrf.mxu0
  %v1936 = vpop.f32.mrf.mxu0
  %v1937 = vadd.f32 %v1840, %v1936
  %v1938 = vpop.f32.mrf.mxu0
  %1939 = vdwg.mxu0
  %v1940 = vadd.f32 %v1024, %v1878
  %v1941 = vadd.f32 %v1025, %v1881
  %v1942 = vadd.f32 %v1026, %v1886
  %v1943 = vadd.f32 %v1027, %v1889
  %v1944 = vadd.f32 %v1028, %v1894
  %v1945 = vadd.f32 %v1029, %v1897
  %v1946 = vadd.f32 %v1030, %v1902
  %v1947 = vadd.f32 %v1031, %v1905
  %v1948 = vadd.f32 %v1032, %v1910
  %v1949 = vadd.f32 %v1033, %v1913
  %v1950 = vadd.f32 %v1034, %v1918
  %v1951 = vadd.f32 %v1035, %v1921
  %v1952 = vadd.f32 %v1036, %v1926
  %v1953 = vadd.f32 %v1037, %v1929
  %v1954 = vadd.f32 %v1038, %v1934
  %v1955 = vadd.f32 %v1039, %v1937
  %1956 = vst [vmem:[#allocation2] sm:$0xff] %v1940
  %1957 = vst [vmem:[#allocation2 + $0x8] sm:$0xff] %v1941
  %1958 = vst [vmem:[#allocation2 + $0x10] sm:$0xff] %v1942
  %1959 = vst [vmem:[#allocation2 + $0x18] sm:$0xff] %v1943
  %1960 = vst [vmem:[#allocation2 + $0x20] sm:$0xff] %v1944
  %1961 = vst [vmem:[#allocation2 + $0x28] sm:$0xff] %v1945
  %1962 = vst [vmem:[#allocation2 + $0x30] sm:$0xff] %v1946
  %1963 = vst [vmem:[#allocation2 + $0x38] sm:$0xff] %v1947
  %1964 = vst [vmem:[#allocation2 + $0x40] sm:$0xff] %v1948
  %1965 = vst [vmem:[#allocation2 + $0x48] sm:$0xff] %v1949
  %1966 = vst [vmem:[#allocation2 + $0x50] sm:$0xff] %v1950
  %1967 = vst [vmem:[#allocation2 + $0x58] sm:$0xff] %v1951
  %1968 = vst [vmem:[#allocation2 + $0x60] sm:$0xff] %v1952
  %1969 = vst [vmem:[#allocation2 + $0x68] sm:$0xff] %v1953
  %1970 = vst [vmem:[#allocation2 + $0x70] sm:$0xff] %v1954
  %1971 = vst [vmem:[#allocation2 + $0x78] sm:$0xff] %v1955
  // Predicated region
  $region26: #{_lambda_.8} parent=0 // pred_check
    %p1972 = pneg %p24
  $region27: #{_lambda_.8} parent=0 // pred_check_branch
    %1974 = sbr.rel (%p1972) target = $region29
  $region28: #{_lambda_.8} parent=0 // pred_region
    %v1975 = vld [vmem:[#allocation2] sm:$0xff]
    %v1976 = vld [vmem:[#allocation2 + $0x8] sm:$0xff]
    %v1977 = vld [vmem:[#allocation2 + $0x10] sm:$0xff]
    %v1978 = vld [vmem:[#allocation2 + $0x18] sm:$0xff]
    %v1979 = vld [vmem:[#allocation2 + $0x20] sm:$0xff]
    %v1980 = vld [vmem:[#allocation2 + $0x28] sm:$0xff]
    %v1981 = vld [vmem:[#allocation2 + $0x30] sm:$0xff]
    %v1982 = vld [vmem:[#allocation2 + $0x38] sm:$0xff]
    %v1983 = vld [vmem:[#allocation2 + $0x40] sm:$0xff]
    %v1984 = vld [vmem:[#allocation2 + $0x48] sm:$0xff]
    %v1985 = vld [vmem:[#allocation2 + $0x50] sm:$0xff]
    %v1986 = vld [vmem:[#allocation2 + $0x58] sm:$0xff]
    %v1987 = vld [vmem:[#allocation2 + $0x60] sm:$0xff]
    %v1988 = vld [vmem:[#allocation2 + $0x68] sm:$0xff]
    %v1989 = vld [vmem:[#allocation2 + $0x70] sm:$0xff]
    %v1990 = vld [vmem:[#allocation2 + $0x78] sm:$0xff]
    %v1991 = vld [vmem:[%s4] sm:$0x1]
    %v1993 = vlaneseq
    %v1994 = vshrl.u32 %v1993, 7
    %v1995 = vsub.s32 0, %v1994
    %v1996 = vrot.slane %v1991, %v1995
    %v1998 = vadd.f32 %v1975, %v1996
    %v1999 = vadd.f32 %v1976, %v1996
    %v2000 = vadd.f32 %v1977, %v1996
    %v2001 = vadd.f32 %v1978, %v1996
    %v2002 = vadd.f32 %v1979, %v1996
    %v2003 = vadd.f32 %v1980, %v1996
    %v2004 = vadd.f32 %v1981, %v1996
    %v2005 = vadd.f32 %v1982, %v1996
    %v2006 = vadd.f32 %v1983, %v1996
    %v2007 = vadd.f32 %v1984, %v1996
    %v2008 = vadd.f32 %v1985, %v1996
    %v2009 = vadd.f32 %v1986, %v1996
    %v2010 = vadd.f32 %v1987, %v1996
    %v2011 = vadd.f32 %v1988, %v1996
    %v2012 = vadd.f32 %v1989, %v1996
    %v2013 = vadd.f32 %v1990, %v1996
    %v2014 = vlaneseq
    %v2015 = vshrl.u32 %v2014, 7
    %v2016 = vadd.s32 %v2015, 8
    %v2017 = vadd.s32 %v2015, 16
    %v2018 = vadd.s32 %v2015, 24
    %v2019 = vadd.s32 %v2015, 32
    %v2020 = vadd.s32 %v2015, 40
    %v2021 = vadd.s32 %v2015, 48
    %v2022 = vadd.s32 %v2015, 56
    %v2023 = vadd.s32 %v2015, 64
    %v2024 = vadd.s32 %v2015, 72
    %v2025 = vadd.s32 %v2015, 80
    %v2026 = vadd.s32 %v2015, 88
    %v2027 = vadd.s32 %v2015, 96
    %v2028 = vadd.s32 %v2015, 104
    %v2029 = vadd.s32 %v2015, 112
    %v2030 = vadd.s32 %v2015, 120
    %v2031 = vstv %s23
    %v2032 = vadd.s32 %v2015, %v2031
    %v2033 = vadd.s32 %v2016, %v2031
    %v2034 = vadd.s32 %v2017, %v2031
    %v2035 = vadd.s32 %v2018, %v2031
    %v2036 = vadd.s32 %v2019, %v2031
    %v2037 = vadd.s32 %v2020, %v2031
    %v2038 = vadd.s32 %v2021, %v2031
    %v2039 = vadd.s32 %v2022, %v2031
    %v2040 = vadd.s32 %v2023, %v2031
    %v2041 = vadd.s32 %v2024, %v2031
    %v2042 = vadd.s32 %v2025, %v2031
    %v2043 = vadd.s32 %v2026, %v2031
    %v2044 = vadd.s32 %v2027, %v2031
    %v2045 = vadd.s32 %v2028, %v2031
    %v2046 = vadd.s32 %v2029, %v2031
    %v2047 = vadd.s32 %v2030, %v2031
    %vm2048 = vcmp.lt.s32.totalorder %v2032, 18
    %vm2049 = vcmp.lt.s32.totalorder %v2033, 18
    %vm2050 = vcmp.lt.s32.totalorder %v2034, 18
    %vm2051 = vcmp.lt.s32.totalorder %v2035, 18
    %vm2052 = vcmp.lt.s32.totalorder %v2036, 18
    %vm2053 = vcmp.lt.s32.totalorder %v2037, 18
    %vm2054 = vcmp.lt.s32.totalorder %v2038, 18
    %vm2055 = vcmp.lt.s32.totalorder %v2039, 18
    %vm2056 = vcmp.lt.s32.totalorder %v2040, 18
    %vm2057 = vcmp.lt.s32.totalorder %v2041, 18
    %vm2058 = vcmp.lt.s32.totalorder %v2042, 18
    %vm2059 = vcmp.lt.s32.totalorder %v2043, 18
    %vm2060 = vcmp.lt.s32.totalorder %v2044, 18
    %vm2061 = vcmp.lt.s32.totalorder %v2045, 18
    %vm2062 = vcmp.lt.s32.totalorder %v2046, 18
    %vm2063 = vcmp.lt.s32.totalorder %v2047, 18
    %v2064 = vsel %vm2048, %v1998, 0.0
    %v2065 = vsel %vm2049, %v1999, 0.0
    %v2066 = vsel %vm2050, %v2000, 0.0
    %v2067 = vsel %vm2051, %v2001, 0.0
    %v2068 = vsel %vm2052, %v2002, 0.0
    %v2069 = vsel %vm2053, %v2003, 0.0
    %v2070 = vsel %vm2054, %v2004, 0.0
    %v2071 = vsel %vm2055, %v2005, 0.0
    %v2072 = vsel %vm2056, %v2006, 0.0
    %v2073 = vsel %vm2057, %v2007, 0.0
    %v2074 = vsel %vm2058, %v2008, 0.0
    %v2075 = vsel %vm2059, %v2009, 0.0
    %v2076 = vsel %vm2060, %v2010, 0.0
    %v2077 = vsel %vm2061, %v2011, 0.0
    %v2078 = vsel %vm2062, %v2012, 0.0
    %v2079 = vsel %vm2063, %v2013, 0.0
    %v2080 = vadd.f32 %v2064, %v2065
    %v2081 = vadd.f32 %v2080, %v2066
    %v2082 = vadd.f32 %v2081, %v2067
    %v2083 = vadd.f32 %v2082, %v2068
    %v2084 = vadd.f32 %v2083, %v2069
    %v2085 = vadd.f32 %v2084, %v2070
    %v2086 = vadd.f32 %v2085, %v2071
    %v2087 = vadd.f32 %v2086, %v2072
    %v2088 = vadd.f32 %v2087, %v2073
    %v2089 = vadd.f32 %v2088, %v2074
    %v2090 = vadd.f32 %v2089, %v2075
    %v2091 = vadd.f32 %v2090, %v2076
    %v2092 = vadd.f32 %v2091, %v2077
    %v2093 = vadd.f32 %v2092, %v2078
    %v2094 = vadd.f32 %v2093, %v2079
    %v2095 = vrot.slane %v2094, 4
    %v2096 = vadd.f32 %v2094, %v2095
    %v2097 = vrot.slane %v2096, 2
    %v2098 = vadd.f32 %v2096, %v2097
    %v2099 = vrot.slane %v2098, 1
    %v2100 = vadd.f32 %v2098, %v2099
    %2101 = vst [vmem:[%s6] sm:$0x1] %v2100
    %v2102 = vmul.f32 %v2064, %v2064
    %v2103 = vmul.f32 %v2065, %v2065
    %v2104 = vmul.f32 %v2066, %v2066
    %v2105 = vmul.f32 %v2067, %v2067
    %v2106 = vmul.f32 %v2068, %v2068
    %v2107 = vmul.f32 %v2069, %v2069
    %v2108 = vmul.f32 %v2070, %v2070
    %v2109 = vmul.f32 %v2071, %v2071
    %v2110 = vmul.f32 %v2072, %v2072
    %v2111 = vmul.f32 %v2073, %v2073
    %v2112 = vmul.f32 %v2074, %v2074
    %v2113 = vmul.f32 %v2075, %v2075
    %v2114 = vmul.f32 %v2076, %v2076
    %v2115 = vmul.f32 %v2077, %v2077
    %v2116 = vmul.f32 %v2078, %v2078
    %v2117 = vmul.f32 %v2079, %v2079
    %v2118 = vadd.f32 %v2102, %v2103
    %v2119 = vadd.f32 %v2118, %v2104
    %v2120 = vadd.f32 %v2119, %v2105
    %v2121 = vadd.f32 %v2120, %v2106
    %v2122 = vadd.f32 %v2121, %v2107
    %v2123 = vadd.f32 %v2122, %v2108
    %v2124 = vadd.f32 %v2123, %v2109
    %v2125 = vadd.f32 %v2124, %v2110
    %v2126 = vadd.f32 %v2125, %v2111
    %v2127 = vadd.f32 %v2126, %v2112
    %v2128 = vadd.f32 %v2127, %v2113
    %v2129 = vadd.f32 %v2128, %v2114
    %v2130 = vadd.f32 %v2129, %v2115
    %v2131 = vadd.f32 %v2130, %v2116
    %v2132 = vadd.f32 %v2131, %v2117
    %v2133 = vrot.slane %v2132, 4
    %v2134 = vadd.f32 %v2132, %v2133
    %v2135 = vrot.slane %v2134, 2
    %v2136 = vadd.f32 %v2134, %v2135
    %v2137 = vrot.slane %v2136, 1
    %v2138 = vadd.f32 %v2136, %v2137
    %2139 = vst [vmem:[%s6 + $0x1] sm:$0x1] %v2138
    %2140 = vst [vmem:[%s6 + $0x2] sm:$0x3f] 0.0
    %v2141 = vpack.c.bf16 %v1999, %v1998
    %v2142 = vpack.c.bf16 %v2001, %v2000
    %v2143 = vpack.c.bf16 %v2003, %v2002
    %v2144 = vpack.c.bf16 %v2005, %v2004
    %v2145 = vpack.c.bf16 %v2007, %v2006
    %v2146 = vpack.c.bf16 %v2009, %v2008
    %v2147 = vpack.c.bf16 %v2011, %v2010
    %v2148 = vpack.c.bf16 %v2013, %v2012
    %v2157 = vunpack.c.l.b16 %v2141
    %v2158 = vunpack.c.h.b16 %v2141
    %v2159 = vunpack.c.l.b16 %v2142
    %v2160 = vunpack.c.h.b16 %v2142
    %v2161 = vunpack.c.l.b16 %v2143
    %v2162 = vunpack.c.h.b16 %v2143
    %v2163 = vunpack.c.l.b16 %v2144
    %v2164 = vunpack.c.h.b16 %v2144
    %v2165 = vunpack.c.l.b16 %v2145
    %v2166 = vunpack.c.h.b16 %v2145
    %v2167 = vunpack.c.l.b16 %v2146
    %v2168 = vunpack.c.h.b16 %v2146
    %v2169 = vunpack.c.l.b16 %v2147
    %v2170 = vunpack.c.h.b16 %v2147
    %v2171 = vunpack.c.l.b16 %v2148
    %v2172 = vunpack.c.h.b16 %v2148
    %v2173 = vpack.c.b16 %v2157, %v2157
    %v2174 = vpack.c.b16 %v2158, %v2158
    %v2175 = vpack.c.b16 %v2159, %v2159
    %v2176 = vpack.c.b16 %v2160, %v2160
    %v2177 = vpack.c.b16 %v2161, %v2161
    %v2178 = vpack.c.b16 %v2162, %v2162
    %v2179 = vpack.c.b16 %v2163, %v2163
    %v2180 = vpack.c.b16 %v2164, %v2164
    %v2181 = vpack.c.b16 %v2165, %v2165
    %v2182 = vpack.c.b16 %v2166, %v2166
    %v2183 = vpack.c.b16 %v2167, %v2167
    %v2184 = vpack.c.b16 %v2168, %v2168
    %v2185 = vpack.c.b16 %v2169, %v2169
    %v2186 = vpack.c.b16 %v2170, %v2170
    %v2187 = vpack.c.b16 %v2171, %v2171
    %v2188 = vpack.c.b16 %v2172, %v2172
    %2205 = vst [vmem:[%s5] sm:$0xf] %v2173
    %2206 = vst [vmem:[%s5 + $0x4] sm:$0xf] %v2174
    %2207 = vst [vmem:[%s5 + $0x8] sm:$0xf] %v2175
    %2208 = vst [vmem:[%s5 + $0xc] sm:$0xf] %v2176
    %2209 = vst [vmem:[%s5 + $0x10] sm:$0xf] %v2177
    %2210 = vst [vmem:[%s5 + $0x14] sm:$0xf] %v2178
    %2211 = vst [vmem:[%s5 + $0x18] sm:$0xf] %v2179
    %2212 = vst [vmem:[%s5 + $0x1c] sm:$0xf] %v2180
    %2213 = vst [vmem:[%s5 + $0x20] sm:$0xf] %v2181
    %2214 = vst [vmem:[%s5 + $0x24] sm:$0xf] %v2182
    %2215 = vst [vmem:[%s5 + $0x28] sm:$0xf] %v2183
    %2216 = vst [vmem:[%s5 + $0x2c] sm:$0xf] %v2184
    %2217 = vst [vmem:[%s5 + $0x30] sm:$0xf] %v2185
    %2218 = vst [vmem:[%s5 + $0x34] sm:$0xf] %v2186
    %2219 = vst [vmem:[%s5 + $0x38] sm:$0xf] %v2187
    %2220 = vst [vmem:[%s5 + $0x3c] sm:$0xf] %v2188
  $region29: #{_lambda_.8} parent=0 // pred_fallthru
    _
  // Predicated region
  $region30: #{_lambda_.8} parent=0 // pred_check
    _
  $region31: #{_lambda_.8} parent=0 // pred_check_branch
    %2222 = sbr.rel (0) target = $region33
  $region32: #{_lambda_.8} parent=0 // pred_region
    _
  $region33: #{_lambda_.8} parent=0 // pred_fallthru
    _
  // Predicated region
  $region34: #{_lambda_.8} parent=0 // pred_check
    _
  $region35: #{_lambda_.8} parent=0 // pred_check_branch
    %2224 = sbr.rel (0) target = $region37
  $region36: #{_lambda_.8} parent=0 // pred_region
    _
  $region37: #{_lambda_.8} parent=0 // pred_fallthru
    _
  // Predicated region
  $region38: #{_lambda_.8} parent=0 // pred_check
    _
  $region39: #{_lambda_.8} parent=0 // pred_check_branch
    %2226 = sbr.rel (0) target = $region41
  $region40: #{_lambda_.8} parent=0 // pred_region
    _
  $region41: #{_lambda_.8} parent=0 // pred_fallthru
    _
  // Predicated region
  $region42: #{_lambda_.8} parent=0 // pred_check
    _
  $region43: #{_lambda_.8} parent=0 // pred_check_branch
    %2228 = sbr.rel (0) target = $region45
  $region44: #{_lambda_.8} parent=0 // pred_region
    _
  $region45: #{_lambda_.8} parent=0 // pred_fallthru
    _

// kernel: _lambda_.9
$region0: #{_lambda_.9}
  #allocation0 [shape = 'u32[]', space=smem, size = 0x4, offset = 0x4, fixed_abs, tag = 'smem constant byte address 0x4 - core index']
  #allocation1 [shape = 'u32[144,128]{1,0:T(1,128)}', space=vmem, size = 0x12000, scoped, tag = 'internal scratch']
  #allocation2 [shape = 'f32[128,128]{1,0:T(8,128)}', space=vmem, size = 0x10000, scoped, tag = 'scratch operand']
  %s0 = inlined_call_operand.vmem [shape: bf16[128,2048], index: 0, kind: input, shape index: {}]
  %s1 = inlined_call_operand.vmem [shape: bf16[2048,128], index: 1, kind: input, shape index: {}]
  %s2 = inlined_call_operand.vmem [shape: f32[1,2048], index: 2, kind: input, shape index: {}]
  %s3 = inlined_call_operand.vmem [shape: f32[1,2048], index: 3, kind: input, shape index: {}]
  %s4 = inlined_call_operand.vmem [shape: f32[1,128], index: 4, kind: input, shape index: {}]
  %s5 = inlined_call_operand.vmem [shape: f32[128,128], index: 5, kind: output, shape index: {0}]
  %s6 = inlined_call_operand.hbm [shape: f32[8,128], index: 6, kind: output, shape index: {1}]
  %7 = xla_tuple %s5, %s6
  %s8 = sld [smem:[#allocation0]]
  $region46: #{_lambda_.9} parent=0
    _
  %s10 = ssub.s32 1, %s8
  %s11 = scalar_select 0, %s10, %s8
  $region1: #{_lambda_.9} parent=0
    #allocation3 [shape = 'u8[4096]{0}', space=vmem, size = 0x1000, scoped, tag = 'output window, operand 1, single buffered']
    #allocation4 [shape = 's32[1]{0}', space=sflag, size = 0x4, scoped, tag = 'scoped memory for _lambda_.9']
    %12 = vsyncpa [#allocation4], 0
    // Predicated region
    $region2: #{_lambda_.9} parent=1 // pred_check
      _
    $region3: #{_lambda_.9} parent=1 // pred_check_branch
      %14 = sbr.rel (0) target = $region5
    $region4: #{_lambda_.9} parent=1 // pred_region
      _
    $region5: #{_lambda_.9} parent=1 // pred_fallthru
      _
    // Predicated region
    $region6: #{_lambda_.9} parent=1 // pred_check
      _
    $region7: #{_lambda_.9} parent=1 // pred_check_branch
      %16 = sbr.rel (0) target = $region9
    $region8: #{_lambda_.9} parent=1 // pred_region
      _
    $region9: #{_lambda_.9} parent=1 // pred_fallthru
      _
    // Predicated region
    $region10: #{_lambda_.9} parent=1 // pred_check
      _
    $region11: #{_lambda_.9} parent=1 // pred_check_branch
      %18 = sbr.rel (0) target = $region13
    $region12: #{_lambda_.9} parent=1 // pred_region
      _
    $region13: #{_lambda_.9} parent=1 // pred_fallthru
      _
    // Predicated region
    $region14: #{_lambda_.9} parent=1 // pred_check
      _
    $region15: #{_lambda_.9} parent=1 // pred_check_branch
      %20 = sbr.rel (0) target = $region17
    $region16: #{_lambda_.9} parent=1 // pred_region
      _
    $region17: #{_lambda_.9} parent=1 // pred_fallthru
      _
    // Predicated region
    $region18: #{_lambda_.9} parent=1 // pred_check
      _
    $region19: #{_lambda_.9} parent=1 // pred_check_branch
      %22 = sbr.rel (0) target = $region21
    $region20: #{_lambda_.9} parent=1 // pred_region
      _
    $region21: #{_lambda_.9} parent=1 // pred_fallthru
      _
    %p24 = scmp.eq.s32.totalorder 0, 0
    // Predicated region
    $region22: #{_lambda_.9} parent=1 // pred_check
      %p25 = pneg %p24
    $region23: #{_lambda_.9} parent=1 // pred_check_branch
      %27 = sbr.rel (%p25) target = $region25
    $region24: #{_lambda_.9} parent=1 // pred_region
      %28 = vst [vmem:[#allocation2] sm:$0xff] 0.0
      %29 = vst [vmem:[#allocation2 + $0x8] sm:$0xff] 0.0
      %30 = vst [vmem:[#allocation2 + $0x10] sm:$0xff] 0.0
      %31 = vst [vmem:[#allocation2 + $0x18] sm:$0xff] 0.0
      %32 = vst [vmem:[#allocation2 + $0x20] sm:$0xff] 0.0
      %33 = vst [vmem:[#allocation2 + $0x28] sm:$0xff] 0.0
      %34 = vst [vmem:[#allocation2 + $0x30] sm:$0xff] 0.0
      %35 = vst [vmem:[#allocation2 + $0x38] sm:$0xff] 0.0
      %36 = vst [vmem:[#allocation2 + $0x40] sm:$0xff] 0.0
      %37 = vst [vmem:[#allocation2 + $0x48] sm:$0xff] 0.0
      %38 = vst [vmem:[#allocation2 + $0x50] sm:$0xff] 0.0
      %39 = vst [vmem:[#allocation2 + $0x58] sm:$0xff] 0.0
      %40 = vst [vmem:[#allocation2 + $0x60] sm:$0xff] 0.0
      %41 = vst [vmem:[#allocation2 + $0x68] sm:$0xff] 0.0
      %42 = vst [vmem:[#allocation2 + $0x70] sm:$0xff] 0.0
      %43 = vst [vmem:[#allocation2 + $0x78] sm:$0xff] 0.0
    $region25: #{_lambda_.9} parent=1 // pred_fallthru
      _
    %v44 = vld [vmem:[%s0] sm:$0xff]
    %v45 = vld [vmem:[%s0 + $0x8] sm:$0xff]
    %v46 = vld [vmem:[%s0 + $0x10] sm:$0xff]
    %v47 = vld [vmem:[%s0 + $0x18] sm:$0xff]
    %v48 = vld [vmem:[%s0 + $0x20] sm:$0xff]
    %v49 = vld [vmem:[%s0 + $0x28] sm:$0xff]
    %v50 = vld [vmem:[%s0 + $0x30] sm:$0xff]
    %v51 = vld [vmem:[%s0 + $0x38] sm:$0xff]
    %v52 = vld [vmem:[%s0 + $0x40] sm:$0xff]
    %v53 = vld [vmem:[%s0 + $0x48] sm:$0xff]
    %v54 = vld [vmem:[%s0 + $0x50] sm:$0xff]
    %v55 = vld [vmem:[%s0 + $0x58] sm:$0xff]
    %v56 = vld [vmem:[%s0 + $0x60] sm:$0xff]
    %v57 = vld [vmem:[%s0 + $0x68] sm:$0xff]
    %v58 = vld [vmem:[%s0 + $0x70] sm:$0xff]
    %v59 = vld [vmem:[%s0 + $0x78] sm:$0xff]
    %v60 = vld [vmem:[%s0 + $0x80] sm:$0xff]
    %v61 = vld [vmem:[%s0 + $0x88] sm:$0xff]
    %v62 = vld [vmem:[%s0 + $0x90] sm:$0xff]
    %v63 = vld [vmem:[%s0 + $0x98] sm:$0xff]
    %v64 = vld [vmem:[%s0 + $0xa0] sm:$0xff]
    %v65 = vld [vmem:[%s0 + $0xa8] sm:$0xff]
    %v66 = vld [vmem:[%s0 + $0xb0] sm:$0xff]
    %v67 = vld [vmem:[%s0 + $0xb8] sm:$0xff]
    %v68 = vld [vmem:[%s0 + $0xc0] sm:$0xff]
    %v69 = vld [vmem:[%s0 + $0xc8] sm:$0xff]
    %v70 = vld [vmem:[%s0 + $0xd0] sm:$0xff]
    %v71 = vld [vmem:[%s0 + $0xd8] sm:$0xff]
    %v72 = vld [vmem:[%s0 + $0xe0] sm:$0xff]
    %v73 = vld [vmem:[%s0 + $0xe8] sm:$0xff]
    %v74 = vld [vmem:[%s0 + $0xf0] sm:$0xff]
    %v75 = vld [vmem:[%s0 + $0xf8] sm:$0xff]
    %v76 = vld [vmem:[%s0 + $0x100] sm:$0xff]
    %v77 = vld [vmem:[%s0 + $0x108] sm:$0xff]
    %v78 = vld [vmem:[%s0 + $0x110] sm:$0xff]
    %v79 = vld [vmem:[%s0 + $0x118] sm:$0xff]
    %v80 = vld [vmem:[%s0 + $0x120] sm:$0xff]
    %v81 = vld [vmem:[%s0 + $0x128] sm:$0xff]
    %v82 = vld [vmem:[%s0 + $0x130] sm:$0xff]
    %v83 = vld [vmem:[%s0 + $0x138] sm:$0xff]
    %v84 = vld [vmem:[%s0 + $0x140] sm:$0xff]
    %v85 = vld [vmem:[%s0 + $0x148] sm:$0xff]
    %v86 = vld [vmem:[%s0 + $0x150] sm:$0xff]
    %v87 = vld [vmem:[%s0 + $0x158] sm:$0xff]
    %v88 = vld [vmem:[%s0 + $0x160] sm:$0xff]
    %v89 = vld [vmem:[%s0 + $0x168] sm:$0xff]
    %v90 = vld [vmem:[%s0 + $0x170] sm:$0xff]
    %v91 = vld [vmem:[%s0 + $0x178] sm:$0xff]
    %v92 = vld [vmem:[%s0 + $0x180] sm:$0xff]
    %v93 = vld [vmem:[%s0 + $0x188] sm:$0xff]
    %v94 = vld [vmem:[%s0 + $0x190] sm:$0xff]
    %v95 = vld [vmem:[%s0 + $0x198] sm:$0xff]
    %v96 = vld [vmem:[%s0 + $0x1a0] sm:$0xff]
    %v97 = vld [vmem:[%s0 + $0x1a8] sm:$0xff]
    %v98 = vld [vmem:[%s0 + $0x1b0] sm:$0xff]
    %v99 = vld [vmem:[%s0 + $0x1b8] sm:$0xff]
    %v100 = vld [vmem:[%s0 + $0x1c0] sm:$0xff]
    %v101 = vld [vmem:[%s0 + $0x1c8] sm:$0xff]
    %v102 = vld [vmem:[%s0 + $0x1d0] sm:$0xff]
    %v103 = vld [vmem:[%s0 + $0x1d8] sm:$0xff]
    %v104 = vld [vmem:[%s0 + $0x1e0] sm:$0xff]
    %v105 = vld [vmem:[%s0 + $0x1e8] sm:$0xff]
    %v106 = vld [vmem:[%s0 + $0x1f0] sm:$0xff]
    %v107 = vld [vmem:[%s0 + $0x1f8] sm:$0xff]
    %v108 = vld [vmem:[%s0 + $0x200] sm:$0xff]
    %v109 = vld [vmem:[%s0 + $0x208] sm:$0xff]
    %v110 = vld [vmem:[%s0 + $0x210] sm:$0xff]
    %v111 = vld [vmem:[%s0 + $0x218] sm:$0xff]
    %v112 = vld [vmem:[%s0 + $0x220] sm:$0xff]
    %v113 = vld [vmem:[%s0 + $0x228] sm:$0xff]
    %v114 = vld [vmem:[%s0 + $0x230] sm:$0xff]
    %v115 = vld [vmem:[%s0 + $0x238] sm:$0xff]
    %v116 = vld [vmem:[%s0 + $0x240] sm:$0xff]
    %v117 = vld [vmem:[%s0 + $0x248] sm:$0xff]
    %v118 = vld [vmem:[%s0 + $0x250] sm:$0xff]
    %v119 = vld [vmem:[%s0 + $0x258] sm:$0xff]
    %v120 = vld [vmem:[%s0 + $0x260] sm:$0xff]
    %v121 = vld [vmem:[%s0 + $0x268] sm:$0xff]
    %v122 = vld [vmem:[%s0 + $0x270] sm:$0xff]
    %v123 = vld [vmem:[%s0 + $0x278] sm:$0xff]
    %v124 = vld [vmem:[%s0 + $0x280] sm:$0xff]
    %v125 = vld [vmem:[%s0 + $0x288] sm:$0xff]
    %v126 = vld [vmem:[%s0 + $0x290] sm:$0xff]
    %v127 = vld [vmem:[%s0 + $0x298] sm:$0xff]
    %v128 = vld [vmem:[%s0 + $0x2a0] sm:$0xff]
    %v129 = vld [vmem:[%s0 + $0x2a8] sm:$0xff]
    %v130 = vld [vmem:[%s0 + $0x2b0] sm:$0xff]
    %v131 = vld [vmem:[%s0 + $0x2b8] sm:$0xff]
    %v132 = vld [vmem:[%s0 + $0x2c0] sm:$0xff]
    %v133 = vld [vmem:[%s0 + $0x2c8] sm:$0xff]
    %v134 = vld [vmem:[%s0 + $0x2d0] sm:$0xff]
    %v135 = vld [vmem:[%s0 + $0x2d8] sm:$0xff]
    %v136 = vld [vmem:[%s0 + $0x2e0] sm:$0xff]
    %v137 = vld [vmem:[%s0 + $0x2e8] sm:$0xff]
    %v138 = vld [vmem:[%s0 + $0x2f0] sm:$0xff]
    %v139 = vld [vmem:[%s0 + $0x2f8] sm:$0xff]
    %v140 = vld [vmem:[%s0 + $0x300] sm:$0xff]
    %v141 = vld [vmem:[%s0 + $0x308] sm:$0xff]
    %v142 = vld [vmem:[%s0 + $0x310] sm:$0xff]
    %v143 = vld [vmem:[%s0 + $0x318] sm:$0xff]
    %v144 = vld [vmem:[%s0 + $0x320] sm:$0xff]
    %v145 = vld [vmem:[%s0 + $0x328] sm:$0xff]
    %v146 = vld [vmem:[%s0 + $0x330] sm:$0xff]
    %v147 = vld [vmem:[%s0 + $0x338] sm:$0xff]
    %v148 = vld [vmem:[%s0 + $0x340] sm:$0xff]
    %v149 = vld [vmem:[%s0 + $0x348] sm:$0xff]
    %v150 = vld [vmem:[%s0 + $0x350] sm:$0xff]
    %v151 = vld [vmem:[%s0 + $0x358] sm:$0xff]
    %v152 = vld [vmem:[%s0 + $0x360] sm:$0xff]
    %v153 = vld [vmem:[%s0 + $0x368] sm:$0xff]
    %v154 = vld [vmem:[%s0 + $0x370] sm:$0xff]
    %v155 = vld [vmem:[%s0 + $0x378] sm:$0xff]
    %v156 = vld [vmem:[%s0 + $0x380] sm:$0xff]
    %v157 = vld [vmem:[%s0 + $0x388] sm:$0xff]
    %v158 = vld [vmem:[%s0 + $0x390] sm:$0xff]
    %v159 = vld [vmem:[%s0 + $0x398] sm:$0xff]
    %v160 = vld [vmem:[%s0 + $0x3a0] sm:$0xff]
    %v161 = vld [vmem:[%s0 + $0x3a8] sm:$0xff]
    %v162 = vld [vmem:[%s0 + $0x3b0] sm:$0xff]
    %v163 = vld [vmem:[%s0 + $0x3b8] sm:$0xff]
    %v164 = vld [vmem:[%s0 + $0x3c0] sm:$0xff]
    %v165 = vld [vmem:[%s0 + $0x3c8] sm:$0xff]
    %v166 = vld [vmem:[%s0 + $0x3d0] sm:$0xff]
    %v167 = vld [vmem:[%s0 + $0x3d8] sm:$0xff]
    %v168 = vld [vmem:[%s0 + $0x3e0] sm:$0xff]
    %v169 = vld [vmem:[%s0 + $0x3e8] sm:$0xff]
    %v170 = vld [vmem:[%s0 + $0x3f0] sm:$0xff]
    %v171 = vld [vmem:[%s0 + $0x3f8] sm:$0xff]
    %v172 = vunpack.c.l.bf16 %v44
    %v173 = vunpack.c.h.bf16 %v44
    %v174 = vunpack.c.l.bf16 %v45
    %v175 = vunpack.c.h.bf16 %v45
    %v176 = vunpack.c.l.bf16 %v46
    %v177 = vunpack.c.h.bf16 %v46
    %v178 = vunpack.c.l.bf16 %v47
    %v179 = vunpack.c.h.bf16 %v47
    %v180 = vunpack.c.l.bf16 %v48
    %v181 = vunpack.c.h.bf16 %v48
    %v182 = vunpack.c.l.bf16 %v49
    %v183 = vunpack.c.h.bf16 %v49
    %v184 = vunpack.c.l.bf16 %v50
    %v185 = vunpack.c.h.bf16 %v50
    %v186 = vunpack.c.l.bf16 %v51
    %v187 = vunpack.c.h.bf16 %v51
    %v188 = vunpack.c.l.bf16 %v52
    %v189 = vunpack.c.h.bf16 %v52
    %v190 = vunpack.c.l.bf16 %v53
    %v191 = vunpack.c.h.bf16 %v53
    %v192 = vunpack.c.l.bf16 %v54
    %v193 = vunpack.c.h.bf16 %v54
    %v194 = vunpack.c.l.bf16 %v55
    %v195 = vunpack.c.h.bf16 %v55
    %v196 = vunpack.c.l.bf16 %v56
    %v197 = vunpack.c.h.bf16 %v56
    %v198 = vunpack.c.l.bf16 %v57
    %v199 = vunpack.c.h.bf16 %v57
    %v200 = vunpack.c.l.bf16 %v58
    %v201 = vunpack.c.h.bf16 %v58
    %v202 = vunpack.c.l.bf16 %v59
    %v203 = vunpack.c.h.bf16 %v59
    %v204 = vunpack.c.l.bf16 %v60
    %v205 = vunpack.c.h.bf16 %v60
    %v206 = vunpack.c.l.bf16 %v61
    %v207 = vunpack.c.h.bf16 %v61
    %v208 = vunpack.c.l.bf16 %v62
    %v209 = vunpack.c.h.bf16 %v62
    %v210 = vunpack.c.l.bf16 %v63
    %v211 = vunpack.c.h.bf16 %v63
    %v212 = vunpack.c.l.bf16 %v64
    %v213 = vunpack.c.h.bf16 %v64
    %v214 = vunpack.c.l.bf16 %v65
    %v215 = vunpack.c.h.bf16 %v65
    %v216 = vunpack.c.l.bf16 %v66
    %v217 = vunpack.c.h.bf16 %v66
    %v218 = vunpack.c.l.bf16 %v67
    %v219 = vunpack.c.h.bf16 %v67
    %v220 = vunpack.c.l.bf16 %v68
    %v221 = vunpack.c.h.bf16 %v68
    %v222 = vunpack.c.l.bf16 %v69
    %v223 = vunpack.c.h.bf16 %v69
    %v224 = vunpack.c.l.bf16 %v70
    %v225 = vunpack.c.h.bf16 %v70
    %v226 = vunpack.c.l.bf16 %v71
    %v227 = vunpack.c.h.bf16 %v71
    %v228 = vunpack.c.l.bf16 %v72
    %v229 = vunpack.c.h.bf16 %v72
    %v230 = vunpack.c.l.bf16 %v73
    %v231 = vunpack.c.h.bf16 %v73
    %v232 = vunpack.c.l.bf16 %v74
    %v233 = vunpack.c.h.bf16 %v74
    %v234 = vunpack.c.l.bf16 %v75
    %v235 = vunpack.c.h.bf16 %v75
    %v236 = vunpack.c.l.bf16 %v76
    %v237 = vunpack.c.h.bf16 %v76
    %v238 = vunpack.c.l.bf16 %v77
    %v239 = vunpack.c.h.bf16 %v77
    %v240 = vunpack.c.l.bf16 %v78
    %v241 = vunpack.c.h.bf16 %v78
    %v242 = vunpack.c.l.bf16 %v79
    %v243 = vunpack.c.h.bf16 %v79
    %v244 = vunpack.c.l.bf16 %v80
    %v245 = vunpack.c.h.bf16 %v80
    %v246 = vunpack.c.l.bf16 %v81
    %v247 = vunpack.c.h.bf16 %v81
    %v248 = vunpack.c.l.bf16 %v82
    %v249 = vunpack.c.h.bf16 %v82
    %v250 = vunpack.c.l.bf16 %v83
    %v251 = vunpack.c.h.bf16 %v83
    %v252 = vunpack.c.l.bf16 %v84
    %v253 = vunpack.c.h.bf16 %v84
    %v254 = vunpack.c.l.bf16 %v85
    %v255 = vunpack.c.h.bf16 %v85
    %v256 = vunpack.c.l.bf16 %v86
    %v257 = vunpack.c.h.bf16 %v86
    %v258 = vunpack.c.l.bf16 %v87
    %v259 = vunpack.c.h.bf16 %v87
    %v260 = vunpack.c.l.bf16 %v88
    %v261 = vunpack.c.h.bf16 %v88
    %v262 = vunpack.c.l.bf16 %v89
    %v263 = vunpack.c.h.bf16 %v89
    %v264 = vunpack.c.l.bf16 %v90
    %v265 = vunpack.c.h.bf16 %v90
    %v266 = vunpack.c.l.bf16 %v91
    %v267 = vunpack.c.h.bf16 %v91
    %v268 = vunpack.c.l.bf16 %v92
    %v269 = vunpack.c.h.bf16 %v92
    %v270 = vunpack.c.l.bf16 %v93
    %v271 = vunpack.c.h.bf16 %v93
    %v272 = vunpack.c.l.bf16 %v94
    %v273 = vunpack.c.h.bf16 %v94
    %v274 = vunpack.c.l.bf16 %v95
    %v275 = vunpack.c.h.bf16 %v95
    %v276 = vunpack.c.l.bf16 %v96
    %v277 = vunpack.c.h.bf16 %v96
    %v278 = vunpack.c.l.bf16 %v97
    %v279 = vunpack.c.h.bf16 %v97
    %v280 = vunpack.c.l.bf16 %v98
    %v281 = vunpack.c.h.bf16 %v98
    %v282 = vunpack.c.l.bf16 %v99
    %v283 = vunpack.c.h.bf16 %v99
    %v284 = vunpack.c.l.bf16 %v100
    %v285 = vunpack.c.h.bf16 %v100
    %v286 = vunpack.c.l.bf16 %v101
    %v287 = vunpack.c.h.bf16 %v101
    %v288 = vunpack.c.l.bf16 %v102
    %v289 = vunpack.c.h.bf16 %v102
    %v290 = vunpack.c.l.bf16 %v103
    %v291 = vunpack.c.h.bf16 %v103
    %v292 = vunpack.c.l.bf16 %v104
    %v293 = vunpack.c.h.bf16 %v104
    %v294 = vunpack.c.l.bf16 %v105
    %v295 = vunpack.c.h.bf16 %v105
    %v296 = vunpack.c.l.bf16 %v106
    %v297 = vunpack.c.h.bf16 %v106
    %v298 = vunpack.c.l.bf16 %v107
    %v299 = vunpack.c.h.bf16 %v107
    %v300 = vunpack.c.l.bf16 %v108
    %v301 = vunpack.c.h.bf16 %v108
    %v302 = vunpack.c.l.bf16 %v109
    %v303 = vunpack.c.h.bf16 %v109
    %v304 = vunpack.c.l.bf16 %v110
    %v305 = vunpack.c.h.bf16 %v110
    %v306 = vunpack.c.l.bf16 %v111
    %v307 = vunpack.c.h.bf16 %v111
    %v308 = vunpack.c.l.bf16 %v112
    %v309 = vunpack.c.h.bf16 %v112
    %v310 = vunpack.c.l.bf16 %v113
    %v311 = vunpack.c.h.bf16 %v113
    %v312 = vunpack.c.l.bf16 %v114
    %v313 = vunpack.c.h.bf16 %v114
    %v314 = vunpack.c.l.bf16 %v115
    %v315 = vunpack.c.h.bf16 %v115
    %v316 = vunpack.c.l.bf16 %v116
    %v317 = vunpack.c.h.bf16 %v116
    %v318 = vunpack.c.l.bf16 %v117
    %v319 = vunpack.c.h.bf16 %v117
    %v320 = vunpack.c.l.bf16 %v118
    %v321 = vunpack.c.h.bf16 %v118
    %v322 = vunpack.c.l.bf16 %v119
    %v323 = vunpack.c.h.bf16 %v119
    %v324 = vunpack.c.l.bf16 %v120
    %v325 = vunpack.c.h.bf16 %v120
    %v326 = vunpack.c.l.bf16 %v121
    %v327 = vunpack.c.h.bf16 %v121
    %v328 = vunpack.c.l.bf16 %v122
    %v329 = vunpack.c.h.bf16 %v122
    %v330 = vunpack.c.l.bf16 %v123
    %v331 = vunpack.c.h.bf16 %v123
    %v332 = vunpack.c.l.bf16 %v124
    %v333 = vunpack.c.h.bf16 %v124
    %v334 = vunpack.c.l.bf16 %v125
    %v335 = vunpack.c.h.bf16 %v125
    %v336 = vunpack.c.l.bf16 %v126
    %v337 = vunpack.c.h.bf16 %v126
    %v338 = vunpack.c.l.bf16 %v127
    %v339 = vunpack.c.h.bf16 %v127
    %v340 = vunpack.c.l.bf16 %v128
    %v341 = vunpack.c.h.bf16 %v128
    %v342 = vunpack.c.l.bf16 %v129
    %v343 = vunpack.c.h.bf16 %v129
    %v344 = vunpack.c.l.bf16 %v130
    %v345 = vunpack.c.h.bf16 %v130
    %v346 = vunpack.c.l.bf16 %v131
    %v347 = vunpack.c.h.bf16 %v131
    %v348 = vunpack.c.l.bf16 %v132
    %v349 = vunpack.c.h.bf16 %v132
    %v350 = vunpack.c.l.bf16 %v133
    %v351 = vunpack.c.h.bf16 %v133
    %v352 = vunpack.c.l.bf16 %v134
    %v353 = vunpack.c.h.bf16 %v134
    %v354 = vunpack.c.l.bf16 %v135
    %v355 = vunpack.c.h.bf16 %v135
    %v356 = vunpack.c.l.bf16 %v136
    %v357 = vunpack.c.h.bf16 %v136
    %v358 = vunpack.c.l.bf16 %v137
    %v359 = vunpack.c.h.bf16 %v137
    %v360 = vunpack.c.l.bf16 %v138
    %v361 = vunpack.c.h.bf16 %v138
    %v362 = vunpack.c.l.bf16 %v139
    %v363 = vunpack.c.h.bf16 %v139
    %v364 = vunpack.c.l.bf16 %v140
    %v365 = vunpack.c.h.bf16 %v140
    %v366 = vunpack.c.l.bf16 %v141
    %v367 = vunpack.c.h.bf16 %v141
    %v368 = vunpack.c.l.bf16 %v142
    %v369 = vunpack.c.h.bf16 %v142
    %v370 = vunpack.c.l.bf16 %v143
    %v371 = vunpack.c.h.bf16 %v143
    %v372 = vunpack.c.l.bf16 %v144
    %v373 = vunpack.c.h.bf16 %v144
    %v374 = vunpack.c.l.bf16 %v145
    %v375 = vunpack.c.h.bf16 %v145
    %v376 = vunpack.c.l.bf16 %v146
    %v377 = vunpack.c.h.bf16 %v146
    %v378 = vunpack.c.l.bf16 %v147
    %v379 = vunpack.c.h.bf16 %v147
    %v380 = vunpack.c.l.bf16 %v148
    %v381 = vunpack.c.h.bf16 %v148
    %v382 = vunpack.c.l.bf16 %v149
    %v383 = vunpack.c.h.bf16 %v149
    %v384 = vunpack.c.l.bf16 %v150
    %v385 = vunpack.c.h.bf16 %v150
    %v386 = vunpack.c.l.bf16 %v151
    %v387 = vunpack.c.h.bf16 %v151
    %v388 = vunpack.c.l.bf16 %v152
    %v389 = vunpack.c.h.bf16 %v152
    %v390 = vunpack.c.l.bf16 %v153
    %v391 = vunpack.c.h.bf16 %v153
    %v392 = vunpack.c.l.bf16 %v154
    %v393 = vunpack.c.h.bf16 %v154
    %v394 = vunpack.c.l.bf16 %v155
    %v395 = vunpack.c.h.bf16 %v155
    %v396 = vunpack.c.l.bf16 %v156
    %v397 = vunpack.c.h.bf16 %v156
    %v398 = vunpack.c.l.bf16 %v157
    %v399 = vunpack.c.h.bf16 %v157
    %v400 = vunpack.c.l.bf16 %v158
    %v401 = vunpack.c.h.bf16 %v158
    %v402 = vunpack.c.l.bf16 %v159
    %v403 = vunpack.c.h.bf16 %v159
    %v404 = vunpack.c.l.bf16 %v160
    %v405 = vunpack.c.h.bf16 %v160
    %v406 = vunpack.c.l.bf16 %v161
    %v407 = vunpack.c.h.bf16 %v161
    %v408 = vunpack.c.l.bf16 %v162
    %v409 = vunpack.c.h.bf16 %v162
    %v410 = vunpack.c.l.bf16 %v163
    %v411 = vunpack.c.h.bf16 %v163
    %v412 = vunpack.c.l.bf16 %v164
    %v413 = vunpack.c.h.bf16 %v164
    %v414 = vunpack.c.l.bf16 %v165
    %v415 = vunpack.c.h.bf16 %v165
    %v416 = vunpack.c.l.bf16 %v166
    %v417 = vunpack.c.h.bf16 %v166
    %v418 = vunpack.c.l.bf16 %v167
    %v419 = vunpack.c.h.bf16 %v167
    %v420 = vunpack.c.l.bf16 %v168
    %v421 = vunpack.c.h.bf16 %v168
    %v422 = vunpack.c.l.bf16 %v169
    %v423 = vunpack.c.h.bf16 %v169
    %v424 = vunpack.c.l.bf16 %v170
    %v425 = vunpack.c.h.bf16 %v170
    %v426 = vunpack.c.l.bf16 %v171
    %v427 = vunpack.c.h.bf16 %v171
    %v428 = vld [vmem:[%s2] sm:$0xff]
    %v429 = vld [vmem:[%s2 + $0x8] sm:$0xff]
    %v432 = vlaneseq
    %v433 = vshrl.u32 %v432, 7
    %v434 = vsub.s32 0, %v433
    %v435 = vrot.slane %v428, %v434
    %v436 = vlaneseq
    %v437 = vshrl.u32 %v436, 7
    %v438 = vsub.s32 1, %v437
    %v439 = vrot.slane %v428, %v438
    %v440 = vlaneseq
    %v441 = vshrl.u32 %v440, 7
    %v442 = vsub.s32 2, %v441
    %v443 = vrot.slane %v428, %v442
    %v444 = vlaneseq
    %v445 = vshrl.u32 %v444, 7
    %v446 = vsub.s32 3, %v445
    %v447 = vrot.slane %v428, %v446
    %v448 = vlaneseq
    %v449 = vshrl.u32 %v448, 7
    %v450 = vsub.s32 4, %v449
    %v451 = vrot.slane %v428, %v450
    %v452 = vlaneseq
    %v453 = vshrl.u32 %v452, 7
    %v454 = vsub.s32 5, %v453
    %v455 = vrot.slane %v428, %v454
    %v456 = vlaneseq
    %v457 = vshrl.u32 %v456, 7
    %v458 = vsub.s32 6, %v457
    %v459 = vrot.slane %v428, %v458
    %v460 = vlaneseq
    %v461 = vshrl.u32 %v460, 7
    %v462 = vsub.s32 7, %v461
    %v463 = vrot.slane %v428, %v462
    %v464 = vlaneseq
    %v465 = vshrl.u32 %v464, 7
    %v466 = vsub.s32 0, %v465
    %v467 = vrot.slane %v429, %v466
    %v468 = vlaneseq
    %v469 = vshrl.u32 %v468, 7
    %v470 = vsub.s32 1, %v469
    %v471 = vrot.slane %v429, %v470
    %v472 = vlaneseq
    %v473 = vshrl.u32 %v472, 7
    %v474 = vsub.s32 2, %v473
    %v475 = vrot.slane %v429, %v474
    %v476 = vlaneseq
    %v477 = vshrl.u32 %v476, 7
    %v478 = vsub.s32 3, %v477
    %v479 = vrot.slane %v429, %v478
    %v480 = vlaneseq
    %v481 = vshrl.u32 %v480, 7
    %v482 = vsub.s32 4, %v481
    %v483 = vrot.slane %v429, %v482
    %v484 = vlaneseq
    %v485 = vshrl.u32 %v484, 7
    %v486 = vsub.s32 5, %v485
    %v487 = vrot.slane %v429, %v486
    %v488 = vlaneseq
    %v489 = vshrl.u32 %v488, 7
    %v490 = vsub.s32 6, %v489
    %v491 = vrot.slane %v429, %v490
    %v492 = vlaneseq
    %v493 = vshrl.u32 %v492, 7
    %v494 = vsub.s32 7, %v493
    %v495 = vrot.slane %v429, %v494
    %v512 = vmul.f32 %v172, %v435
    %v513 = vmul.f32 %v173, %v439
    %v514 = vmul.f32 %v174, %v443
    %v515 = vmul.f32 %v175, %v447
    %v516 = vmul.f32 %v176, %v451
    %v517 = vmul.f32 %v177, %v455
    %v518 = vmul.f32 %v178, %v459
    %v519 = vmul.f32 %v179, %v463
    %v520 = vmul.f32 %v180, %v467
    %v521 = vmul.f32 %v181, %v471
    %v522 = vmul.f32 %v182, %v475
    %v523 = vmul.f32 %v183, %v479
    %v524 = vmul.f32 %v184, %v483
    %v525 = vmul.f32 %v185, %v487
    %v526 = vmul.f32 %v186, %v491
    %v527 = vmul.f32 %v187, %v495
    %v528 = vmul.f32 %v188, %v435
    %v529 = vmul.f32 %v189, %v439
    %v530 = vmul.f32 %v190, %v443
    %v531 = vmul.f32 %v191, %v447
    %v532 = vmul.f32 %v192, %v451
    %v533 = vmul.f32 %v193, %v455
    %v534 = vmul.f32 %v194, %v459
    %v535 = vmul.f32 %v195, %v463
    %v536 = vmul.f32 %v196, %v467
    %v537 = vmul.f32 %v197, %v471
    %v538 = vmul.f32 %v198, %v475
    %v539 = vmul.f32 %v199, %v479
    %v540 = vmul.f32 %v200, %v483
    %v541 = vmul.f32 %v201, %v487
    %v542 = vmul.f32 %v202, %v491
    %v543 = vmul.f32 %v203, %v495
    %v544 = vmul.f32 %v204, %v435
    %v545 = vmul.f32 %v205, %v439
    %v546 = vmul.f32 %v206, %v443
    %v547 = vmul.f32 %v207, %v447
    %v548 = vmul.f32 %v208, %v451
    %v549 = vmul.f32 %v209, %v455
    %v550 = vmul.f32 %v210, %v459
    %v551 = vmul.f32 %v211, %v463
    %v552 = vmul.f32 %v212, %v467
    %v553 = vmul.f32 %v213, %v471
    %v554 = vmul.f32 %v214, %v475
    %v555 = vmul.f32 %v215, %v479
    %v556 = vmul.f32 %v216, %v483
    %v557 = vmul.f32 %v217, %v487
    %v558 = vmul.f32 %v218, %v491
    %v559 = vmul.f32 %v219, %v495
    %v560 = vmul.f32 %v220, %v435
    %v561 = vmul.f32 %v221, %v439
    %v562 = vmul.f32 %v222, %v443
    %v563 = vmul.f32 %v223, %v447
    %v564 = vmul.f32 %v224, %v451
    %v565 = vmul.f32 %v225, %v455
    %v566 = vmul.f32 %v226, %v459
    %v567 = vmul.f32 %v227, %v463
    %v568 = vmul.f32 %v228, %v467
    %v569 = vmul.f32 %v229, %v471
    %v570 = vmul.f32 %v230, %v475
    %v571 = vmul.f32 %v231, %v479
    %v572 = vmul.f32 %v232, %v483
    %v573 = vmul.f32 %v233, %v487
    %v574 = vmul.f32 %v234, %v491
    %v575 = vmul.f32 %v235, %v495
    %v576 = vmul.f32 %v236, %v435
    %v577 = vmul.f32 %v237, %v439
    %v578 = vmul.f32 %v238, %v443
    %v579 = vmul.f32 %v239, %v447
    %v580 = vmul.f32 %v240, %v451
    %v581 = vmul.f32 %v241, %v455
    %v582 = vmul.f32 %v242, %v459
    %v583 = vmul.f32 %v243, %v463
    %v584 = vmul.f32 %v244, %v467
    %v585 = vmul.f32 %v245, %v471
    %v586 = vmul.f32 %v246, %v475
    %v587 = vmul.f32 %v247, %v479
    %v588 = vmul.f32 %v248, %v483
    %v589 = vmul.f32 %v249, %v487
    %v590 = vmul.f32 %v250, %v491
    %v591 = vmul.f32 %v251, %v495
    %v592 = vmul.f32 %v252, %v435
    %v593 = vmul.f32 %v253, %v439
    %v594 = vmul.f32 %v254, %v443
    %v595 = vmul.f32 %v255, %v447
    %v596 = vmul.f32 %v256, %v451
    %v597 = vmul.f32 %v257, %v455
    %v598 = vmul.f32 %v258, %v459
    %v599 = vmul.f32 %v259, %v463
    %v600 = vmul.f32 %v260, %v467
    %v601 = vmul.f32 %v261, %v471
    %v602 = vmul.f32 %v262, %v475
    %v603 = vmul.f32 %v263, %v479
    %v604 = vmul.f32 %v264, %v483
    %v605 = vmul.f32 %v265, %v487
    %v606 = vmul.f32 %v266, %v491
    %v607 = vmul.f32 %v267, %v495
    %v608 = vmul.f32 %v268, %v435
    %v609 = vmul.f32 %v269, %v439
    %v610 = vmul.f32 %v270, %v443
    %v611 = vmul.f32 %v271, %v447
    %v612 = vmul.f32 %v272, %v451
    %v613 = vmul.f32 %v273, %v455
    %v614 = vmul.f32 %v274, %v459
    %v615 = vmul.f32 %v275, %v463
    %v616 = vmul.f32 %v276, %v467
    %v617 = vmul.f32 %v277, %v471
    %v618 = vmul.f32 %v278, %v475
    %v619 = vmul.f32 %v279, %v479
    %v620 = vmul.f32 %v280, %v483
    %v621 = vmul.f32 %v281, %v487
    %v622 = vmul.f32 %v282, %v491
    %v623 = vmul.f32 %v283, %v495
    %v624 = vmul.f32 %v284, %v435
    %v625 = vmul.f32 %v285, %v439
    %v626 = vmul.f32 %v286, %v443
    %v627 = vmul.f32 %v287, %v447
    %v628 = vmul.f32 %v288, %v451
    %v629 = vmul.f32 %v289, %v455
    %v630 = vmul.f32 %v290, %v459
    %v631 = vmul.f32 %v291, %v463
    %v632 = vmul.f32 %v292, %v467
    %v633 = vmul.f32 %v293, %v471
    %v634 = vmul.f32 %v294, %v475
    %v635 = vmul.f32 %v295, %v479
    %v636 = vmul.f32 %v296, %v483
    %v637 = vmul.f32 %v297, %v487
    %v638 = vmul.f32 %v298, %v491
    %v639 = vmul.f32 %v299, %v495
    %v640 = vmul.f32 %v300, %v435
    %v641 = vmul.f32 %v301, %v439
    %v642 = vmul.f32 %v302, %v443
    %v643 = vmul.f32 %v303, %v447
    %v644 = vmul.f32 %v304, %v451
    %v645 = vmul.f32 %v305, %v455
    %v646 = vmul.f32 %v306, %v459
    %v647 = vmul.f32 %v307, %v463
    %v648 = vmul.f32 %v308, %v467
    %v649 = vmul.f32 %v309, %v471
    %v650 = vmul.f32 %v310, %v475
    %v651 = vmul.f32 %v311, %v479
    %v652 = vmul.f32 %v312, %v483
    %v653 = vmul.f32 %v313, %v487
    %v654 = vmul.f32 %v314, %v491
    %v655 = vmul.f32 %v315, %v495
    %v656 = vmul.f32 %v316, %v435
    %v657 = vmul.f32 %v317, %v439
    %v658 = vmul.f32 %v318, %v443
    %v659 = vmul.f32 %v319, %v447
    %v660 = vmul.f32 %v320, %v451
    %v661 = vmul.f32 %v321, %v455
    %v662 = vmul.f32 %v322, %v459
    %v663 = vmul.f32 %v323, %v463
    %v664 = vmul.f32 %v324, %v467
    %v665 = vmul.f32 %v325, %v471
    %v666 = vmul.f32 %v326, %v475
    %v667 = vmul.f32 %v327, %v479
    %v668 = vmul.f32 %v328, %v483
    %v669 = vmul.f32 %v329, %v487
    %v670 = vmul.f32 %v330, %v491
    %v671 = vmul.f32 %v331, %v495
    %v672 = vmul.f32 %v332, %v435
    %v673 = vmul.f32 %v333, %v439
    %v674 = vmul.f32 %v334, %v443
    %v675 = vmul.f32 %v335, %v447
    %v676 = vmul.f32 %v336, %v451
    %v677 = vmul.f32 %v337, %v455
    %v678 = vmul.f32 %v338, %v459
    %v679 = vmul.f32 %v339, %v463
    %v680 = vmul.f32 %v340, %v467
    %v681 = vmul.f32 %v341, %v471
    %v682 = vmul.f32 %v342, %v475
    %v683 = vmul.f32 %v343, %v479
    %v684 = vmul.f32 %v344, %v483
    %v685 = vmul.f32 %v345, %v487
    %v686 = vmul.f32 %v346, %v491
    %v687 = vmul.f32 %v347, %v495
    %v688 = vmul.f32 %v348, %v435
    %v689 = vmul.f32 %v349, %v439
    %v690 = vmul.f32 %v350, %v443
    %v691 = vmul.f32 %v351, %v447
    %v692 = vmul.f32 %v352, %v451
    %v693 = vmul.f32 %v353, %v455
    %v694 = vmul.f32 %v354, %v459
    %v695 = vmul.f32 %v355, %v463
    %v696 = vmul.f32 %v356, %v467
    %v697 = vmul.f32 %v357, %v471
    %v698 = vmul.f32 %v358, %v475
    %v699 = vmul.f32 %v359, %v479
    %v700 = vmul.f32 %v360, %v483
    %v701 = vmul.f32 %v361, %v487
    %v702 = vmul.f32 %v362, %v491
    %v703 = vmul.f32 %v363, %v495
    %v704 = vmul.f32 %v364, %v435
    %v705 = vmul.f32 %v365, %v439
    %v706 = vmul.f32 %v366, %v443
    %v707 = vmul.f32 %v367, %v447
    %v708 = vmul.f32 %v368, %v451
    %v709 = vmul.f32 %v369, %v455
    %v710 = vmul.f32 %v370, %v459
    %v711 = vmul.f32 %v371, %v463
    %v712 = vmul.f32 %v372, %v467
    %v713 = vmul.f32 %v373, %v471
    %v714 = vmul.f32 %v374, %v475
    %v715 = vmul.f32 %v375, %v479
    %v716 = vmul.f32 %v376, %v483
    %v717 = vmul.f32 %v377, %v487
    %v718 = vmul.f32 %v378, %v491
    %v719 = vmul.f32 %v379, %v495
    %v720 = vmul.f32 %v380, %v435
    %v721 = vmul.f32 %v381, %v439
    %v722 = vmul.f32 %v382, %v443
    %v723 = vmul.f32 %v383, %v447
    %v724 = vmul.f32 %v384, %v451
    %v725 = vmul.f32 %v385, %v455
    %v726 = vmul.f32 %v386, %v459
    %v727 = vmul.f32 %v387, %v463
    %v728 = vmul.f32 %v388, %v467
    %v729 = vmul.f32 %v389, %v471
    %v730 = vmul.f32 %v390, %v475
    %v731 = vmul.f32 %v391, %v479
    %v732 = vmul.f32 %v392, %v483
    %v733 = vmul.f32 %v393, %v487
    %v734 = vmul.f32 %v394, %v491
    %v735 = vmul.f32 %v395, %v495
    %v736 = vmul.f32 %v396, %v435
    %v737 = vmul.f32 %v397, %v439
    %v738 = vmul.f32 %v398, %v443
    %v739 = vmul.f32 %v399, %v447
    %v740 = vmul.f32 %v400, %v451
    %v741 = vmul.f32 %v401, %v455
    %v742 = vmul.f32 %v402, %v459
    %v743 = vmul.f32 %v403, %v463
    %v744 = vmul.f32 %v404, %v467
    %v745 = vmul.f32 %v405, %v471
    %v746 = vmul.f32 %v406, %v475
    %v747 = vmul.f32 %v407, %v479
    %v748 = vmul.f32 %v408, %v483
    %v749 = vmul.f32 %v409, %v487
    %v750 = vmul.f32 %v410, %v491
    %v751 = vmul.f32 %v411, %v495
    %v752 = vmul.f32 %v412, %v435
    %v753 = vmul.f32 %v413, %v439
    %v754 = vmul.f32 %v414, %v443
    %v755 = vmul.f32 %v415, %v447
    %v756 = vmul.f32 %v416, %v451
    %v757 = vmul.f32 %v417, %v455
    %v758 = vmul.f32 %v418, %v459
    %v759 = vmul.f32 %v419, %v463
    %v760 = vmul.f32 %v420, %v467
    %v761 = vmul.f32 %v421, %v471
    %v762 = vmul.f32 %v422, %v475
    %v763 = vmul.f32 %v423, %v479
    %v764 = vmul.f32 %v424, %v483
    %v765 = vmul.f32 %v425, %v487
    %v766 = vmul.f32 %v426, %v491
    %v767 = vmul.f32 %v427, %v495
    %v768 = vld [vmem:[%s3] sm:$0xff]
    %v769 = vld [vmem:[%s3 + $0x8] sm:$0xff]
    %v772 = vlaneseq
    %v773 = vshrl.u32 %v772, 7
    %v774 = vsub.s32 0, %v773
    %v775 = vrot.slane %v768, %v774
    %v776 = vlaneseq
    %v777 = vshrl.u32 %v776, 7
    %v778 = vsub.s32 1, %v777
    %v779 = vrot.slane %v768, %v778
    %v780 = vlaneseq
    %v781 = vshrl.u32 %v780, 7
    %v782 = vsub.s32 2, %v781
    %v783 = vrot.slane %v768, %v782
    %v784 = vlaneseq
    %v785 = vshrl.u32 %v784, 7
    %v786 = vsub.s32 3, %v785
    %v787 = vrot.slane %v768, %v786
    %v788 = vlaneseq
    %v789 = vshrl.u32 %v788, 7
    %v790 = vsub.s32 4, %v789
    %v791 = vrot.slane %v768, %v790
    %v792 = vlaneseq
    %v793 = vshrl.u32 %v792, 7
    %v794 = vsub.s32 5, %v793
    %v795 = vrot.slane %v768, %v794
    %v796 = vlaneseq
    %v797 = vshrl.u32 %v796, 7
    %v798 = vsub.s32 6, %v797
    %v799 = vrot.slane %v768, %v798
    %v800 = vlaneseq
    %v801 = vshrl.u32 %v800, 7
    %v802 = vsub.s32 7, %v801
    %v803 = vrot.slane %v768, %v802
    %v804 = vlaneseq
    %v805 = vshrl.u32 %v804, 7
    %v806 = vsub.s32 0, %v805
    %v807 = vrot.slane %v769, %v806
    %v808 = vlaneseq
    %v809 = vshrl.u32 %v808, 7
    %v810 = vsub.s32 1, %v809
    %v811 = vrot.slane %v769, %v810
    %v812 = vlaneseq
    %v813 = vshrl.u32 %v812, 7
    %v814 = vsub.s32 2, %v813
    %v815 = vrot.slane %v769, %v814
    %v816 = vlaneseq
    %v817 = vshrl.u32 %v816, 7
    %v818 = vsub.s32 3, %v817
    %v819 = vrot.slane %v769, %v818
    %v820 = vlaneseq
    %v821 = vshrl.u32 %v820, 7
    %v822 = vsub.s32 4, %v821
    %v823 = vrot.slane %v769, %v822
    %v824 = vlaneseq
    %v825 = vshrl.u32 %v824, 7
    %v826 = vsub.s32 5, %v825
    %v827 = vrot.slane %v769, %v826
    %v828 = vlaneseq
    %v829 = vshrl.u32 %v828, 7
    %v830 = vsub.s32 6, %v829
    %v831 = vrot.slane %v769, %v830
    %v832 = vlaneseq
    %v833 = vshrl.u32 %v832, 7
    %v834 = vsub.s32 7, %v833
    %v835 = vrot.slane %v769, %v834
    %v852 = vadd.f32 %v512, %v775
    %v853 = vadd.f32 %v513, %v779
    %v854 = vadd.f32 %v514, %v783
    %v855 = vadd.f32 %v515, %v787
    %v856 = vadd.f32 %v516, %v791
    %v857 = vadd.f32 %v517, %v795
    %v858 = vadd.f32 %v518, %v799
    %v859 = vadd.f32 %v519, %v803
    %v860 = vadd.f32 %v520, %v807
    %v861 = vadd.f32 %v521, %v811
    %v862 = vadd.f32 %v522, %v815
    %v863 = vadd.f32 %v523, %v819
    %v864 = vadd.f32 %v524, %v823
    %v865 = vadd.f32 %v525, %v827
    %v866 = vadd.f32 %v526, %v831
    %v867 = vadd.f32 %v527, %v835
    %v868 = vadd.f32 %v528, %v775
    %v869 = vadd.f32 %v529, %v779
    %v870 = vadd.f32 %v530, %v783
    %v871 = vadd.f32 %v531, %v787
    %v872 = vadd.f32 %v532, %v791
    %v873 = vadd.f32 %v533, %v795
    %v874 = vadd.f32 %v534, %v799
    %v875 = vadd.f32 %v535, %v803
    %v876 = vadd.f32 %v536, %v807
    %v877 = vadd.f32 %v537, %v811
    %v878 = vadd.f32 %v538, %v815
    %v879 = vadd.f32 %v539, %v819
    %v880 = vadd.f32 %v540, %v823
    %v881 = vadd.f32 %v541, %v827
    %v882 = vadd.f32 %v542, %v831
    %v883 = vadd.f32 %v543, %v835
    %v884 = vadd.f32 %v544, %v775
    %v885 = vadd.f32 %v545, %v779
    %v886 = vadd.f32 %v546, %v783
    %v887 = vadd.f32 %v547, %v787
    %v888 = vadd.f32 %v548, %v791
    %v889 = vadd.f32 %v549, %v795
    %v890 = vadd.f32 %v550, %v799
    %v891 = vadd.f32 %v551, %v803
    %v892 = vadd.f32 %v552, %v807
    %v893 = vadd.f32 %v553, %v811
    %v894 = vadd.f32 %v554, %v815
    %v895 = vadd.f32 %v555, %v819
    %v896 = vadd.f32 %v556, %v823
    %v897 = vadd.f32 %v557, %v827
    %v898 = vadd.f32 %v558, %v831
    %v899 = vadd.f32 %v559, %v835
    %v900 = vadd.f32 %v560, %v775
    %v901 = vadd.f32 %v561, %v779
    %v902 = vadd.f32 %v562, %v783
    %v903 = vadd.f32 %v563, %v787
    %v904 = vadd.f32 %v564, %v791
    %v905 = vadd.f32 %v565, %v795
    %v906 = vadd.f32 %v566, %v799
    %v907 = vadd.f32 %v567, %v803
    %v908 = vadd.f32 %v568, %v807
    %v909 = vadd.f32 %v569, %v811
    %v910 = vadd.f32 %v570, %v815
    %v911 = vadd.f32 %v571, %v819
    %v912 = vadd.f32 %v572, %v823
    %v913 = vadd.f32 %v573, %v827
    %v914 = vadd.f32 %v574, %v831
    %v915 = vadd.f32 %v575, %v835
    %v916 = vadd.f32 %v576, %v775
    %v917 = vadd.f32 %v577, %v779
    %v918 = vadd.f32 %v578, %v783
    %v919 = vadd.f32 %v579, %v787
    %v920 = vadd.f32 %v580, %v791
    %v921 = vadd.f32 %v581, %v795
    %v922 = vadd.f32 %v582, %v799
    %v923 = vadd.f32 %v583, %v803
    %v924 = vadd.f32 %v584, %v807
    %v925 = vadd.f32 %v585, %v811
    %v926 = vadd.f32 %v586, %v815
    %v927 = vadd.f32 %v587, %v819
    %v928 = vadd.f32 %v588, %v823
    %v929 = vadd.f32 %v589, %v827
    %v930 = vadd.f32 %v590, %v831
    %v931 = vadd.f32 %v591, %v835
    %v932 = vadd.f32 %v592, %v775
    %v933 = vadd.f32 %v593, %v779
    %v934 = vadd.f32 %v594, %v783
    %v935 = vadd.f32 %v595, %v787
    %v936 = vadd.f32 %v596, %v791
    %v937 = vadd.f32 %v597, %v795
    %v938 = vadd.f32 %v598, %v799
    %v939 = vadd.f32 %v599, %v803
    %v940 = vadd.f32 %v600, %v807
    %v941 = vadd.f32 %v601, %v811
    %v942 = vadd.f32 %v602, %v815
    %v943 = vadd.f32 %v603, %v819
    %v944 = vadd.f32 %v604, %v823
    %v945 = vadd.f32 %v605, %v827
    %v946 = vadd.f32 %v606, %v831
    %v947 = vadd.f32 %v607, %v835
    %v948 = vadd.f32 %v608, %v775
    %v949 = vadd.f32 %v609, %v779
    %v950 = vadd.f32 %v610, %v783
    %v951 = vadd.f32 %v611, %v787
    %v952 = vadd.f32 %v612, %v791
    %v953 = vadd.f32 %v613, %v795
    %v954 = vadd.f32 %v614, %v799
    %v955 = vadd.f32 %v615, %v803
    %v956 = vadd.f32 %v616, %v807
    %v957 = vadd.f32 %v617, %v811
    %v958 = vadd.f32 %v618, %v815
    %v959 = vadd.f32 %v619, %v819
    %v960 = vadd.f32 %v620, %v823
    %v961 = vadd.f32 %v621, %v827
    %v962 = vadd.f32 %v622, %v831
    %v963 = vadd.f32 %v623, %v835
    %v964 = vadd.f32 %v624, %v775
    %v965 = vadd.f32 %v625, %v779
    %v966 = vadd.f32 %v626, %v783
    %v967 = vadd.f32 %v627, %v787
    %v968 = vadd.f32 %v628, %v791
    %v969 = vadd.f32 %v629, %v795
    %v970 = vadd.f32 %v630, %v799
    %v971 = vadd.f32 %v631, %v803
    %v972 = vadd.f32 %v632, %v807
    %v973 = vadd.f32 %v633, %v811
    %v974 = vadd.f32 %v634, %v815
    %v975 = vadd.f32 %v635, %v819
    %v976 = vadd.f32 %v636, %v823
    %v977 = vadd.f32 %v637, %v827
    %v978 = vadd.f32 %v638, %v831
    %v979 = vadd.f32 %v639, %v835
    %v980 = vadd.f32 %v640, %v775
    %v981 = vadd.f32 %v641, %v779
    %v982 = vadd.f32 %v642, %v783
    %v983 = vadd.f32 %v643, %v787
    %v984 = vadd.f32 %v644, %v791
    %v985 = vadd.f32 %v645, %v795
    %v986 = vadd.f32 %v646, %v799
    %v987 = vadd.f32 %v647, %v803
    %v988 = vadd.f32 %v648, %v807
    %v989 = vadd.f32 %v649, %v811
    %v990 = vadd.f32 %v650, %v815
    %v991 = vadd.f32 %v651, %v819
    %v992 = vadd.f32 %v652, %v823
    %v993 = vadd.f32 %v653, %v827
    %v994 = vadd.f32 %v654, %v831
    %v995 = vadd.f32 %v655, %v835
    %v996 = vadd.f32 %v656, %v775
    %v997 = vadd.f32 %v657, %v779
    %v998 = vadd.f32 %v658, %v783
    %v999 = vadd.f32 %v659, %v787
    %v1000 = vadd.f32 %v660, %v791
    %v1001 = vadd.f32 %v661, %v795
    %v1002 = vadd.f32 %v662, %v799
    %v1003 = vadd.f32 %v663, %v803
    %v1004 = vadd.f32 %v664, %v807
    %v1005 = vadd.f32 %v665, %v811
    %v1006 = vadd.f32 %v666, %v815
    %v1007 = vadd.f32 %v667, %v819
    %v1008 = vadd.f32 %v668, %v823
    %v1009 = vadd.f32 %v669, %v827
    %v1010 = vadd.f32 %v670, %v831
    %v1011 = vadd.f32 %v671, %v835
    %v1012 = vadd.f32 %v672, %v775
    %v1013 = vadd.f32 %v673, %v779
    %v1014 = vadd.f32 %v674, %v783
    %v1015 = vadd.f32 %v675, %v787
    %v1016 = vadd.f32 %v676, %v791
    %v1017 = vadd.f32 %v677, %v795
    %v1018 = vadd.f32 %v678, %v799
    %v1019 = vadd.f32 %v679, %v803
    %v1020 = vadd.f32 %v680, %v807
    %v1021 = vadd.f32 %v681, %v811
    %v1022 = vadd.f32 %v682, %v815
    %v1023 = vadd.f32 %v683, %v819
    %v1024 = vadd.f32 %v684, %v823
    %v1025 = vadd.f32 %v685, %v827
    %v1026 = vadd.f32 %v686, %v831
    %v1027 = vadd.f32 %v687, %v835
    %v1028 = vadd.f32 %v688, %v775
    %v1029 = vadd.f32 %v689, %v779
    %v1030 = vadd.f32 %v690, %v783
    %v1031 = vadd.f32 %v691, %v787
    %v1032 = vadd.f32 %v692, %v791
    %v1033 = vadd.f32 %v693, %v795
    %v1034 = vadd.f32 %v694, %v799
    %v1035 = vadd.f32 %v695, %v803
    %v1036 = vadd.f32 %v696, %v807
    %v1037 = vadd.f32 %v697, %v811
    %v1038 = vadd.f32 %v698, %v815
    %v1039 = vadd.f32 %v699, %v819
    %v1040 = vadd.f32 %v700, %v823
    %v1041 = vadd.f32 %v701, %v827
    %v1042 = vadd.f32 %v702, %v831
    %v1043 = vadd.f32 %v703, %v835
    %v1044 = vadd.f32 %v704, %v775
    %v1045 = vadd.f32 %v705, %v779
    %v1046 = vadd.f32 %v706, %v783
    %v1047 = vadd.f32 %v707, %v787
    %v1048 = vadd.f32 %v708, %v791
    %v1049 = vadd.f32 %v709, %v795
    %v1050 = vadd.f32 %v710, %v799
    %v1051 = vadd.f32 %v711, %v803
    %v1052 = vadd.f32 %v712, %v807
    %v1053 = vadd.f32 %v713, %v811
    %v1054 = vadd.f32 %v714, %v815
    %v1055 = vadd.f32 %v715, %v819
    %v1056 = vadd.f32 %v716, %v823
    %v1057 = vadd.f32 %v717, %v827
    %v1058 = vadd.f32 %v718, %v831
    %v1059 = vadd.f32 %v719, %v835
    %v1060 = vadd.f32 %v720, %v775
    %v1061 = vadd.f32 %v721, %v779
    %v1062 = vadd.f32 %v722, %v783
    %v1063 = vadd.f32 %v723, %v787
    %v1064 = vadd.f32 %v724, %v791
    %v1065 = vadd.f32 %v725, %v795
    %v1066 = vadd.f32 %v726, %v799
    %v1067 = vadd.f32 %v727, %v803
    %v1068 = vadd.f32 %v728, %v807
    %v1069 = vadd.f32 %v729, %v811
    %v1070 = vadd.f32 %v730, %v815
    %v1071 = vadd.f32 %v731, %v819
    %v1072 = vadd.f32 %v732, %v823
    %v1073 = vadd.f32 %v733, %v827
    %v1074 = vadd.f32 %v734, %v831
    %v1075 = vadd.f32 %v735, %v835
    %v1076 = vadd.f32 %v736, %v775
    %v1077 = vadd.f32 %v737, %v779
    %v1078 = vadd.f32 %v738, %v783
    %v1079 = vadd.f32 %v739, %v787
    %v1080 = vadd.f32 %v740, %v791
    %v1081 = vadd.f32 %v741, %v795
    %v1082 = vadd.f32 %v742, %v799
    %v1083 = vadd.f32 %v743, %v803
    %v1084 = vadd.f32 %v744, %v807
    %v1085 = vadd.f32 %v745, %v811
    %v1086 = vadd.f32 %v746, %v815
    %v1087 = vadd.f32 %v747, %v819
    %v1088 = vadd.f32 %v748, %v823
    %v1089 = vadd.f32 %v749, %v827
    %v1090 = vadd.f32 %v750, %v831
    %v1091 = vadd.f32 %v751, %v835
    %v1092 = vadd.f32 %v752, %v775
    %v1093 = vadd.f32 %v753, %v779
    %v1094 = vadd.f32 %v754, %v783
    %v1095 = vadd.f32 %v755, %v787
    %v1096 = vadd.f32 %v756, %v791
    %v1097 = vadd.f32 %v757, %v795
    %v1098 = vadd.f32 %v758, %v799
    %v1099 = vadd.f32 %v759, %v803
    %v1100 = vadd.f32 %v760, %v807
    %v1101 = vadd.f32 %v761, %v811
    %v1102 = vadd.f32 %v762, %v815
    %v1103 = vadd.f32 %v763, %v819
    %v1104 = vadd.f32 %v764, %v823
    %v1105 = vadd.f32 %v765, %v827
    %v1106 = vadd.f32 %v766, %v831
    %v1107 = vadd.f32 %v767, %v835
    %vm1108 = vcmp.ge.f32.partialorder %v852, 0.0
    %vm1109 = vcmp.ge.f32.partialorder %v853, 0.0
    %vm1110 = vcmp.ge.f32.partialorder %v854, 0.0
    %vm1111 = vcmp.ge.f32.partialorder %v855, 0.0
    %vm1112 = vcmp.ge.f32.partialorder %v856, 0.0
    %vm1113 = vcmp.ge.f32.partialorder %v857, 0.0
    %vm1114 = vcmp.ge.f32.partialorder %v858, 0.0
    %vm1115 = vcmp.ge.f32.partialorder %v859, 0.0
    %vm1116 = vcmp.ge.f32.partialorder %v860, 0.0
    %vm1117 = vcmp.ge.f32.partialorder %v861, 0.0
    %vm1118 = vcmp.ge.f32.partialorder %v862, 0.0
    %vm1119 = vcmp.ge.f32.partialorder %v863, 0.0
    %vm1120 = vcmp.ge.f32.partialorder %v864, 0.0
    %vm1121 = vcmp.ge.f32.partialorder %v865, 0.0
    %vm1122 = vcmp.ge.f32.partialorder %v866, 0.0
    %vm1123 = vcmp.ge.f32.partialorder %v867, 0.0
    %vm1124 = vcmp.ge.f32.partialorder %v868, 0.0
    %vm1125 = vcmp.ge.f32.partialorder %v869, 0.0
    %vm1126 = vcmp.ge.f32.partialorder %v870, 0.0
    %vm1127 = vcmp.ge.f32.partialorder %v871, 0.0
    %vm1128 = vcmp.ge.f32.partialorder %v872, 0.0
    %vm1129 = vcmp.ge.f32.partialorder %v873, 0.0
    %vm1130 = vcmp.ge.f32.partialorder %v874, 0.0
    %vm1131 = vcmp.ge.f32.partialorder %v875, 0.0
    %vm1132 = vcmp.ge.f32.partialorder %v876, 0.0
    %vm1133 = vcmp.ge.f32.partialorder %v877, 0.0
    %vm1134 = vcmp.ge.f32.partialorder %v878, 0.0
    %vm1135 = vcmp.ge.f32.partialorder %v879, 0.0
    %vm1136 = vcmp.ge.f32.partialorder %v880, 0.0
    %vm1137 = vcmp.ge.f32.partialorder %v881, 0.0
    %vm1138 = vcmp.ge.f32.partialorder %v882, 0.0
    %vm1139 = vcmp.ge.f32.partialorder %v883, 0.0
    %vm1140 = vcmp.ge.f32.partialorder %v884, 0.0
    %vm1141 = vcmp.ge.f32.partialorder %v885, 0.0
    %vm1142 = vcmp.ge.f32.partialorder %v886, 0.0
    %vm1143 = vcmp.ge.f32.partialorder %v887, 0.0
    %vm1144 = vcmp.ge.f32.partialorder %v888, 0.0
    %vm1145 = vcmp.ge.f32.partialorder %v889, 0.0
    %vm1146 = vcmp.ge.f32.partialorder %v890, 0.0
    %vm1147 = vcmp.ge.f32.partialorder %v891, 0.0
    %vm1148 = vcmp.ge.f32.partialorder %v892, 0.0
    %vm1149 = vcmp.ge.f32.partialorder %v893, 0.0
    %vm1150 = vcmp.ge.f32.partialorder %v894, 0.0
    %vm1151 = vcmp.ge.f32.partialorder %v895, 0.0
    %vm1152 = vcmp.ge.f32.partialorder %v896, 0.0
    %vm1153 = vcmp.ge.f32.partialorder %v897, 0.0
    %vm1154 = vcmp.ge.f32.partialorder %v898, 0.0
    %vm1155 = vcmp.ge.f32.partialorder %v899, 0.0
    %vm1156 = vcmp.ge.f32.partialorder %v900, 0.0
    %vm1157 = vcmp.ge.f32.partialorder %v901, 0.0
    %vm1158 = vcmp.ge.f32.partialorder %v902, 0.0
    %vm1159 = vcmp.ge.f32.partialorder %v903, 0.0
    %vm1160 = vcmp.ge.f32.partialorder %v904, 0.0
    %vm1161 = vcmp.ge.f32.partialorder %v905, 0.0
    %vm1162 = vcmp.ge.f32.partialorder %v906, 0.0
    %vm1163 = vcmp.ge.f32.partialorder %v907, 0.0
    %vm1164 = vcmp.ge.f32.partialorder %v908, 0.0
    %vm1165 = vcmp.ge.f32.partialorder %v909, 0.0
    %vm1166 = vcmp.ge.f32.partialorder %v910, 0.0
    %vm1167 = vcmp.ge.f32.partialorder %v911, 0.0
    %vm1168 = vcmp.ge.f32.partialorder %v912, 0.0
    %vm1169 = vcmp.ge.f32.partialorder %v913, 0.0
    %vm1170 = vcmp.ge.f32.partialorder %v914, 0.0
    %vm1171 = vcmp.ge.f32.partialorder %v915, 0.0
    %vm1172 = vcmp.ge.f32.partialorder %v916, 0.0
    %vm1173 = vcmp.ge.f32.partialorder %v917, 0.0
    %vm1174 = vcmp.ge.f32.partialorder %v918, 0.0
    %vm1175 = vcmp.ge.f32.partialorder %v919, 0.0
    %vm1176 = vcmp.ge.f32.partialorder %v920, 0.0
    %vm1177 = vcmp.ge.f32.partialorder %v921, 0.0
    %vm1178 = vcmp.ge.f32.partialorder %v922, 0.0
    %vm1179 = vcmp.ge.f32.partialorder %v923, 0.0
    %vm1180 = vcmp.ge.f32.partialorder %v924, 0.0
    %vm1181 = vcmp.ge.f32.partialorder %v925, 0.0
    %vm1182 = vcmp.ge.f32.partialorder %v926, 0.0
    %vm1183 = vcmp.ge.f32.partialorder %v927, 0.0
    %vm1184 = vcmp.ge.f32.partialorder %v928, 0.0
    %vm1185 = vcmp.ge.f32.partialorder %v929, 0.0
    %vm1186 = vcmp.ge.f32.partialorder %v930, 0.0
    %vm1187 = vcmp.ge.f32.partialorder %v931, 0.0
    %vm1188 = vcmp.ge.f32.partialorder %v932, 0.0
    %vm1189 = vcmp.ge.f32.partialorder %v933, 0.0
    %vm1190 = vcmp.ge.f32.partialorder %v934, 0.0
    %vm1191 = vcmp.ge.f32.partialorder %v935, 0.0
    %vm1192 = vcmp.ge.f32.partialorder %v936, 0.0
    %vm1193 = vcmp.ge.f32.partialorder %v937, 0.0
    %vm1194 = vcmp.ge.f32.partialorder %v938, 0.0
    %vm1195 = vcmp.ge.f32.partialorder %v939, 0.0
    %vm1196 = vcmp.ge.f32.partialorder %v940, 0.0
    %vm1197 = vcmp.ge.f32.partialorder %v941, 0.0
    %vm1198 = vcmp.ge.f32.partialorder %v942, 0.0
    %vm1199 = vcmp.ge.f32.partialorder %v943, 0.0
    %vm1200 = vcmp.ge.f32.partialorder %v944, 0.0
    %vm1201 = vcmp.ge.f32.partialorder %v945, 0.0
    %vm1202 = vcmp.ge.f32.partialorder %v946, 0.0
    %vm1203 = vcmp.ge.f32.partialorder %v947, 0.0
    %vm1204 = vcmp.ge.f32.partialorder %v948, 0.0
    %vm1205 = vcmp.ge.f32.partialorder %v949, 0.0
    %vm1206 = vcmp.ge.f32.partialorder %v950, 0.0
    %vm1207 = vcmp.ge.f32.partialorder %v951, 0.0
    %vm1208 = vcmp.ge.f32.partialorder %v952, 0.0
    %vm1209 = vcmp.ge.f32.partialorder %v953, 0.0
    %vm1210 = vcmp.ge.f32.partialorder %v954, 0.0
    %vm1211 = vcmp.ge.f32.partialorder %v955, 0.0
    %vm1212 = vcmp.ge.f32.partialorder %v956, 0.0
    %vm1213 = vcmp.ge.f32.partialorder %v957, 0.0
    %vm1214 = vcmp.ge.f32.partialorder %v958, 0.0
    %vm1215 = vcmp.ge.f32.partialorder %v959, 0.0
    %vm1216 = vcmp.ge.f32.partialorder %v960, 0.0
    %vm1217 = vcmp.ge.f32.partialorder %v961, 0.0
    %vm1218 = vcmp.ge.f32.partialorder %v962, 0.0
    %vm1219 = vcmp.ge.f32.partialorder %v963, 0.0
    %vm1220 = vcmp.ge.f32.partialorder %v964, 0.0
    %vm1221 = vcmp.ge.f32.partialorder %v965, 0.0
    %vm1222 = vcmp.ge.f32.partialorder %v966, 0.0
    %vm1223 = vcmp.ge.f32.partialorder %v967, 0.0
    %vm1224 = vcmp.ge.f32.partialorder %v968, 0.0
    %vm1225 = vcmp.ge.f32.partialorder %v969, 0.0
    %vm1226 = vcmp.ge.f32.partialorder %v970, 0.0
    %vm1227 = vcmp.ge.f32.partialorder %v971, 0.0
    %vm1228 = vcmp.ge.f32.partialorder %v972, 0.0
    %vm1229 = vcmp.ge.f32.partialorder %v973, 0.0
    %vm1230 = vcmp.ge.f32.partialorder %v974, 0.0
    %vm1231 = vcmp.ge.f32.partialorder %v975, 0.0
    %vm1232 = vcmp.ge.f32.partialorder %v976, 0.0
    %vm1233 = vcmp.ge.f32.partialorder %v977, 0.0
    %vm1234 = vcmp.ge.f32.partialorder %v978, 0.0
    %vm1235 = vcmp.ge.f32.partialorder %v979, 0.0
    %vm1236 = vcmp.ge.f32.partialorder %v980, 0.0
    %vm1237 = vcmp.ge.f32.partialorder %v981, 0.0
    %vm1238 = vcmp.ge.f32.partialorder %v982, 0.0
    %vm1239 = vcmp.ge.f32.partialorder %v983, 0.0
    %vm1240 = vcmp.ge.f32.partialorder %v984, 0.0
    %vm1241 = vcmp.ge.f32.partialorder %v985, 0.0
    %vm1242 = vcmp.ge.f32.partialorder %v986, 0.0
    %vm1243 = vcmp.ge.f32.partialorder %v987, 0.0
    %vm1244 = vcmp.ge.f32.partialorder %v988, 0.0
    %vm1245 = vcmp.ge.f32.partialorder %v989, 0.0
    %vm1246 = vcmp.ge.f32.partialorder %v990, 0.0
    %vm1247 = vcmp.ge.f32.partialorder %v991, 0.0
    %vm1248 = vcmp.ge.f32.partialorder %v992, 0.0
    %vm1249 = vcmp.ge.f32.partialorder %v993, 0.0
    %vm1250 = vcmp.ge.f32.partialorder %v994, 0.0
    %vm1251 = vcmp.ge.f32.partialorder %v995, 0.0
    %vm1252 = vcmp.ge.f32.partialorder %v996, 0.0
    %vm1253 = vcmp.ge.f32.partialorder %v997, 0.0
    %vm1254 = vcmp.ge.f32.partialorder %v998, 0.0
    %vm1255 = vcmp.ge.f32.partialorder %v999, 0.0
    %vm1256 = vcmp.ge.f32.partialorder %v1000, 0.0
    %vm1257 = vcmp.ge.f32.partialorder %v1001, 0.0
    %vm1258 = vcmp.ge.f32.partialorder %v1002, 0.0
    %vm1259 = vcmp.ge.f32.partialorder %v1003, 0.0
    %vm1260 = vcmp.ge.f32.partialorder %v1004, 0.0
    %vm1261 = vcmp.ge.f32.partialorder %v1005, 0.0
    %vm1262 = vcmp.ge.f32.partialorder %v1006, 0.0
    %vm1263 = vcmp.ge.f32.partialorder %v1007, 0.0
    %vm1264 = vcmp.ge.f32.partialorder %v1008, 0.0
    %vm1265 = vcmp.ge.f32.partialorder %v1009, 0.0
    %vm1266 = vcmp.ge.f32.partialorder %v1010, 0.0
    %vm1267 = vcmp.ge.f32.partialorder %v1011, 0.0
    %vm1268 = vcmp.ge.f32.partialorder %v1012, 0.0
    %vm1269 = vcmp.ge.f32.partialorder %v1013, 0.0
    %vm1270 = vcmp.ge.f32.partialorder %v1014, 0.0
    %vm1271 = vcmp.ge.f32.partialorder %v1015, 0.0
    %vm1272 = vcmp.ge.f32.partialorder %v1016, 0.0
    %vm1273 = vcmp.ge.f32.partialorder %v1017, 0.0
    %vm1274 = vcmp.ge.f32.partialorder %v1018, 0.0
    %vm1275 = vcmp.ge.f32.partialorder %v1019, 0.0
    %vm1276 = vcmp.ge.f32.partialorder %v1020, 0.0
    %vm1277 = vcmp.ge.f32.partialorder %v1021, 0.0
    %vm1278 = vcmp.ge.f32.partialorder %v1022, 0.0
    %vm1279 = vcmp.ge.f32.partialorder %v1023, 0.0
    %vm1280 = vcmp.ge.f32.partialorder %v1024, 0.0
    %vm1281 = vcmp.ge.f32.partialorder %v1025, 0.0
    %vm1282 = vcmp.ge.f32.partialorder %v1026, 0.0
    %vm1283 = vcmp.ge.f32.partialorder %v1027, 0.0
    %vm1284 = vcmp.ge.f32.partialorder %v1028, 0.0
    %vm1285 = vcmp.ge.f32.partialorder %v1029, 0.0
    %vm1286 = vcmp.ge.f32.partialorder %v1030, 0.0
    %vm1287 = vcmp.ge.f32.partialorder %v1031, 0.0
    %vm1288 = vcmp.ge.f32.partialorder %v1032, 0.0
    %vm1289 = vcmp.ge.f32.partialorder %v1033, 0.0
    %vm1290 = vcmp.ge.f32.partialorder %v1034, 0.0
    %vm1291 = vcmp.ge.f32.partialorder %v1035, 0.0
    %vm1292 = vcmp.ge.f32.partialorder %v1036, 0.0
    %vm1293 = vcmp.ge.f32.partialorder %v1037, 0.0
    %vm1294 = vcmp.ge.f32.partialorder %v1038, 0.0
    %vm1295 = vcmp.ge.f32.partialorder %v1039, 0.0
    %vm1296 = vcmp.ge.f32.partialorder %v1040, 0.0
    %vm1297 = vcmp.ge.f32.partialorder %v1041, 0.0
    %vm1298 = vcmp.ge.f32.partialorder %v1042, 0.0
    %vm1299 = vcmp.ge.f32.partialorder %v1043, 0.0
    %vm1300 = vcmp.ge.f32.partialorder %v1044, 0.0
    %vm1301 = vcmp.ge.f32.partialorder %v1045, 0.0
    %vm1302 = vcmp.ge.f32.partialorder %v1046, 0.0
    %vm1303 = vcmp.ge.f32.partialorder %v1047, 0.0
    %vm1304 = vcmp.ge.f32.partialorder %v1048, 0.0
    %vm1305 = vcmp.ge.f32.partialorder %v1049, 0.0
    %vm1306 = vcmp.ge.f32.partialorder %v1050, 0.0
    %vm1307 = vcmp.ge.f32.partialorder %v1051, 0.0
    %vm1308 = vcmp.ge.f32.partialorder %v1052, 0.0
    %vm1309 = vcmp.ge.f32.partialorder %v1053, 0.0
    %vm1310 = vcmp.ge.f32.partialorder %v1054, 0.0
    %vm1311 = vcmp.ge.f32.partialorder %v1055, 0.0
    %vm1312 = vcmp.ge.f32.partialorder %v1056, 0.0
    %vm1313 = vcmp.ge.f32.partialorder %v1057, 0.0
    %vm1314 = vcmp.ge.f32.partialorder %v1058, 0.0
    %vm1315 = vcmp.ge.f32.partialorder %v1059, 0.0
    %vm1316 = vcmp.ge.f32.partialorder %v1060, 0.0
    %vm1317 = vcmp.ge.f32.partialorder %v1061, 0.0
    %vm1318 = vcmp.ge.f32.partialorder %v1062, 0.0
    %vm1319 = vcmp.ge.f32.partialorder %v1063, 0.0
    %vm1320 = vcmp.ge.f32.partialorder %v1064, 0.0
    %vm1321 = vcmp.ge.f32.partialorder %v1065, 0.0
    %vm1322 = vcmp.ge.f32.partialorder %v1066, 0.0
    %vm1323 = vcmp.ge.f32.partialorder %v1067, 0.0
    %vm1324 = vcmp.ge.f32.partialorder %v1068, 0.0
    %vm1325 = vcmp.ge.f32.partialorder %v1069, 0.0
    %vm1326 = vcmp.ge.f32.partialorder %v1070, 0.0
    %vm1327 = vcmp.ge.f32.partialorder %v1071, 0.0
    %vm1328 = vcmp.ge.f32.partialorder %v1072, 0.0
    %vm1329 = vcmp.ge.f32.partialorder %v1073, 0.0
    %vm1330 = vcmp.ge.f32.partialorder %v1074, 0.0
    %vm1331 = vcmp.ge.f32.partialorder %v1075, 0.0
    %vm1332 = vcmp.ge.f32.partialorder %v1076, 0.0
    %vm1333 = vcmp.ge.f32.partialorder %v1077, 0.0
    %vm1334 = vcmp.ge.f32.partialorder %v1078, 0.0
    %vm1335 = vcmp.ge.f32.partialorder %v1079, 0.0
    %vm1336 = vcmp.ge.f32.partialorder %v1080, 0.0
    %vm1337 = vcmp.ge.f32.partialorder %v1081, 0.0
    %vm1338 = vcmp.ge.f32.partialorder %v1082, 0.0
    %vm1339 = vcmp.ge.f32.partialorder %v1083, 0.0
    %vm1340 = vcmp.ge.f32.partialorder %v1084, 0.0
    %vm1341 = vcmp.ge.f32.partialorder %v1085, 0.0
    %vm1342 = vcmp.ge.f32.partialorder %v1086, 0.0
    %vm1343 = vcmp.ge.f32.partialorder %v1087, 0.0
    %vm1344 = vcmp.ge.f32.partialorder %v1088, 0.0
    %vm1345 = vcmp.ge.f32.partialorder %v1089, 0.0
    %vm1346 = vcmp.ge.f32.partialorder %v1090, 0.0
    %vm1347 = vcmp.ge.f32.partialorder %v1091, 0.0
    %vm1348 = vcmp.ge.f32.partialorder %v1092, 0.0
    %vm1349 = vcmp.ge.f32.partialorder %v1093, 0.0
    %vm1350 = vcmp.ge.f32.partialorder %v1094, 0.0
    %vm1351 = vcmp.ge.f32.partialorder %v1095, 0.0
    %vm1352 = vcmp.ge.f32.partialorder %v1096, 0.0
    %vm1353 = vcmp.ge.f32.partialorder %v1097, 0.0
    %vm1354 = vcmp.ge.f32.partialorder %v1098, 0.0
    %vm1355 = vcmp.ge.f32.partialorder %v1099, 0.0
    %vm1356 = vcmp.ge.f32.partialorder %v1100, 0.0
    %vm1357 = vcmp.ge.f32.partialorder %v1101, 0.0
    %vm1358 = vcmp.ge.f32.partialorder %v1102, 0.0
    %vm1359 = vcmp.ge.f32.partialorder %v1103, 0.0
    %vm1360 = vcmp.ge.f32.partialorder %v1104, 0.0
    %vm1361 = vcmp.ge.f32.partialorder %v1105, 0.0
    %vm1362 = vcmp.ge.f32.partialorder %v1106, 0.0
    %vm1363 = vcmp.ge.f32.partialorder %v1107, 0.0
    %v1364 = vmul.f32 %v852, 0.2
    %v1365 = vmul.f32 %v853, 0.2
    %v1366 = vmul.f32 %v854, 0.2
    %v1367 = vmul.f32 %v855, 0.2
    %v1368 = vmul.f32 %v856, 0.2
    %v1369 = vmul.f32 %v857, 0.2
    %v1370 = vmul.f32 %v858, 0.2
    %v1371 = vmul.f32 %v859, 0.2
    %v1372 = vmul.f32 %v860, 0.2
    %v1373 = vmul.f32 %v861, 0.2
    %v1374 = vmul.f32 %v862, 0.2
    %v1375 = vmul.f32 %v863, 0.2
    %v1376 = vmul.f32 %v864, 0.2
    %v1377 = vmul.f32 %v865, 0.2
    %v1378 = vmul.f32 %v866, 0.2
    %v1379 = vmul.f32 %v867, 0.2
    %v1380 = vmul.f32 %v868, 0.2
    %v1381 = vmul.f32 %v869, 0.2
    %v1382 = vmul.f32 %v870, 0.2
    %v1383 = vmul.f32 %v871, 0.2
    %v1384 = vmul.f32 %v872, 0.2
    %v1385 = vmul.f32 %v873, 0.2
    %v1386 = vmul.f32 %v874, 0.2
    %v1387 = vmul.f32 %v875, 0.2
    %v1388 = vmul.f32 %v876, 0.2
    %v1389 = vmul.f32 %v877, 0.2
    %v1390 = vmul.f32 %v878, 0.2
    %v1391 = vmul.f32 %v879, 0.2
    %v1392 = vmul.f32 %v880, 0.2
    %v1393 = vmul.f32 %v881, 0.2
    %v1394 = vmul.f32 %v882, 0.2
    %v1395 = vmul.f32 %v883, 0.2
    %v1396 = vmul.f32 %v884, 0.2
    %v1397 = vmul.f32 %v885, 0.2
    %v1398 = vmul.f32 %v886, 0.2
    %v1399 = vmul.f32 %v887, 0.2
    %v1400 = vmul.f32 %v888, 0.2
    %v1401 = vmul.f32 %v889, 0.2
    %v1402 = vmul.f32 %v890, 0.2
    %v1403 = vmul.f32 %v891, 0.2
    %v1404 = vmul.f32 %v892, 0.2
    %v1405 = vmul.f32 %v893, 0.2
    %v1406 = vmul.f32 %v894, 0.2
    %v1407 = vmul.f32 %v895, 0.2
    %v1408 = vmul.f32 %v896, 0.2
    %v1409 = vmul.f32 %v897, 0.2
    %v1410 = vmul.f32 %v898, 0.2
    %v1411 = vmul.f32 %v899, 0.2
    %v1412 = vmul.f32 %v900, 0.2
    %v1413 = vmul.f32 %v901, 0.2
    %v1414 = vmul.f32 %v902, 0.2
    %v1415 = vmul.f32 %v903, 0.2
    %v1416 = vmul.f32 %v904, 0.2
    %v1417 = vmul.f32 %v905, 0.2
    %v1418 = vmul.f32 %v906, 0.2
    %v1419 = vmul.f32 %v907, 0.2
    %v1420 = vmul.f32 %v908, 0.2
    %v1421 = vmul.f32 %v909, 0.2
    %v1422 = vmul.f32 %v910, 0.2
    %v1423 = vmul.f32 %v911, 0.2
    %v1424 = vmul.f32 %v912, 0.2
    %v1425 = vmul.f32 %v913, 0.2
    %v1426 = vmul.f32 %v914, 0.2
    %v1427 = vmul.f32 %v915, 0.2
    %v1428 = vmul.f32 %v916, 0.2
    %v1429 = vmul.f32 %v917, 0.2
    %v1430 = vmul.f32 %v918, 0.2
    %v1431 = vmul.f32 %v919, 0.2
    %v1432 = vmul.f32 %v920, 0.2
    %v1433 = vmul.f32 %v921, 0.2
    %v1434 = vmul.f32 %v922, 0.2
    %v1435 = vmul.f32 %v923, 0.2
    %v1436 = vmul.f32 %v924, 0.2
    %v1437 = vmul.f32 %v925, 0.2
    %v1438 = vmul.f32 %v926, 0.2
    %v1439 = vmul.f32 %v927, 0.2
    %v1440 = vmul.f32 %v928, 0.2
    %v1441 = vmul.f32 %v929, 0.2
    %v1442 = vmul.f32 %v930, 0.2
    %v1443 = vmul.f32 %v931, 0.2
    %v1444 = vmul.f32 %v932, 0.2
    %v1445 = vmul.f32 %v933, 0.2
    %v1446 = vmul.f32 %v934, 0.2
    %v1447 = vmul.f32 %v935, 0.2
    %v1448 = vmul.f32 %v936, 0.2
    %v1449 = vmul.f32 %v937, 0.2
    %v1450 = vmul.f32 %v938, 0.2
    %v1451 = vmul.f32 %v939, 0.2
    %v1452 = vmul.f32 %v940, 0.2
    %v1453 = vmul.f32 %v941, 0.2
    %v1454 = vmul.f32 %v942, 0.2
    %v1455 = vmul.f32 %v943, 0.2
    %v1456 = vmul.f32 %v944, 0.2
    %v1457 = vmul.f32 %v945, 0.2
    %v1458 = vmul.f32 %v946, 0.2
    %v1459 = vmul.f32 %v947, 0.2
    %v1460 = vmul.f32 %v948, 0.2
    %v1461 = vmul.f32 %v949, 0.2
    %v1462 = vmul.f32 %v950, 0.2
    %v1463 = vmul.f32 %v951, 0.2
    %v1464 = vmul.f32 %v952, 0.2
    %v1465 = vmul.f32 %v953, 0.2
    %v1466 = vmul.f32 %v954, 0.2
    %v1467 = vmul.f32 %v955, 0.2
    %v1468 = vmul.f32 %v956, 0.2
    %v1469 = vmul.f32 %v957, 0.2
    %v1470 = vmul.f32 %v958, 0.2
    %v1471 = vmul.f32 %v959, 0.2
    %v1472 = vmul.f32 %v960, 0.2
    %v1473 = vmul.f32 %v961, 0.2
    %v1474 = vmul.f32 %v962, 0.2
    %v1475 = vmul.f32 %v963, 0.2
    %v1476 = vmul.f32 %v964, 0.2
    %v1477 = vmul.f32 %v965, 0.2
    %v1478 = vmul.f32 %v966, 0.2
    %v1479 = vmul.f32 %v967, 0.2
    %v1480 = vmul.f32 %v968, 0.2
    %v1481 = vmul.f32 %v969, 0.2
    %v1482 = vmul.f32 %v970, 0.2
    %v1483 = vmul.f32 %v971, 0.2
    %v1484 = vmul.f32 %v972, 0.2
    %v1485 = vmul.f32 %v973, 0.2
    %v1486 = vmul.f32 %v974, 0.2
    %v1487 = vmul.f32 %v975, 0.2
    %v1488 = vmul.f32 %v976, 0.2
    %v1489 = vmul.f32 %v977, 0.2
    %v1490 = vmul.f32 %v978, 0.2
    %v1491 = vmul.f32 %v979, 0.2
    %v1492 = vmul.f32 %v980, 0.2
    %v1493 = vmul.f32 %v981, 0.2
    %v1494 = vmul.f32 %v982, 0.2
    %v1495 = vmul.f32 %v983, 0.2
    %v1496 = vmul.f32 %v984, 0.2
    %v1497 = vmul.f32 %v985, 0.2
    %v1498 = vmul.f32 %v986, 0.2
    %v1499 = vmul.f32 %v987, 0.2
    %v1500 = vmul.f32 %v988, 0.2
    %v1501 = vmul.f32 %v989, 0.2
    %v1502 = vmul.f32 %v990, 0.2
    %v1503 = vmul.f32 %v991, 0.2
    %v1504 = vmul.f32 %v992, 0.2
    %v1505 = vmul.f32 %v993, 0.2
    %v1506 = vmul.f32 %v994, 0.2
    %v1507 = vmul.f32 %v995, 0.2
    %v1508 = vmul.f32 %v996, 0.2
    %v1509 = vmul.f32 %v997, 0.2
    %v1510 = vmul.f32 %v998, 0.2
    %v1511 = vmul.f32 %v999, 0.2
    %v1512 = vmul.f32 %v1000, 0.2
    %v1513 = vmul.f32 %v1001, 0.2
    %v1514 = vmul.f32 %v1002, 0.2
    %v1515 = vmul.f32 %v1003, 0.2
    %v1516 = vmul.f32 %v1004, 0.2
    %v1517 = vmul.f32 %v1005, 0.2
    %v1518 = vmul.f32 %v1006, 0.2
    %v1519 = vmul.f32 %v1007, 0.2
    %v1520 = vmul.f32 %v1008, 0.2
    %v1521 = vmul.f32 %v1009, 0.2
    %v1522 = vmul.f32 %v1010, 0.2
    %v1523 = vmul.f32 %v1011, 0.2
    %v1524 = vmul.f32 %v1012, 0.2
    %v1525 = vmul.f32 %v1013, 0.2
    %v1526 = vmul.f32 %v1014, 0.2
    %v1527 = vmul.f32 %v1015, 0.2
    %v1528 = vmul.f32 %v1016, 0.2
    %v1529 = vmul.f32 %v1017, 0.2
    %v1530 = vmul.f32 %v1018, 0.2
    %v1531 = vmul.f32 %v1019, 0.2
    %v1532 = vmul.f32 %v1020, 0.2
    %v1533 = vmul.f32 %v1021, 0.2
    %v1534 = vmul.f32 %v1022, 0.2
    %v1535 = vmul.f32 %v1023, 0.2
    %v1536 = vmul.f32 %v1024, 0.2
    %v1537 = vmul.f32 %v1025, 0.2
    %v1538 = vmul.f32 %v1026, 0.2
    %v1539 = vmul.f32 %v1027, 0.2
    %v1540 = vmul.f32 %v1028, 0.2
    %v1541 = vmul.f32 %v1029, 0.2
    %v1542 = vmul.f32 %v1030, 0.2
    %v1543 = vmul.f32 %v1031, 0.2
    %v1544 = vmul.f32 %v1032, 0.2
    %v1545 = vmul.f32 %v1033, 0.2
    %v1546 = vmul.f32 %v1034, 0.2
    %v1547 = vmul.f32 %v1035, 0.2
    %v1548 = vmul.f32 %v1036, 0.2
    %v1549 = vmul.f32 %v1037, 0.2
    %v1550 = vmul.f32 %v1038, 0.2
    %v1551 = vmul.f32 %v1039, 0.2
    %v1552 = vmul.f32 %v1040, 0.2
    %v1553 = vmul.f32 %v1041, 0.2
    %v1554 = vmul.f32 %v1042, 0.2
    %v1555 = vmul.f32 %v1043, 0.2
    %v1556 = vmul.f32 %v1044, 0.2
    %v1557 = vmul.f32 %v1045, 0.2
    %v1558 = vmul.f32 %v1046, 0.2
    %v1559 = vmul.f32 %v1047, 0.2
    %v1560 = vmul.f32 %v1048, 0.2
    %v1561 = vmul.f32 %v1049, 0.2
    %v1562 = vmul.f32 %v1050, 0.2
    %v1563 = vmul.f32 %v1051, 0.2
    %v1564 = vmul.f32 %v1052, 0.2
    %v1565 = vmul.f32 %v1053, 0.2
    %v1566 = vmul.f32 %v1054, 0.2
    %v1567 = vmul.f32 %v1055, 0.2
    %v1568 = vmul.f32 %v1056, 0.2
    %v1569 = vmul.f32 %v1057, 0.2
    %v1570 = vmul.f32 %v1058, 0.2
    %v1571 = vmul.f32 %v1059, 0.2
    %v1572 = vmul.f32 %v1060, 0.2
    %v1573 = vmul.f32 %v1061, 0.2
    %v1574 = vmul.f32 %v1062, 0.2
    %v1575 = vmul.f32 %v1063, 0.2
    %v1576 = vmul.f32 %v1064, 0.2
    %v1577 = vmul.f32 %v1065, 0.2
    %v1578 = vmul.f32 %v1066, 0.2
    %v1579 = vmul.f32 %v1067, 0.2
    %v1580 = vmul.f32 %v1068, 0.2
    %v1581 = vmul.f32 %v1069, 0.2
    %v1582 = vmul.f32 %v1070, 0.2
    %v1583 = vmul.f32 %v1071, 0.2
    %v1584 = vmul.f32 %v1072, 0.2
    %v1585 = vmul.f32 %v1073, 0.2
    %v1586 = vmul.f32 %v1074, 0.2
    %v1587 = vmul.f32 %v1075, 0.2
    %v1588 = vmul.f32 %v1076, 0.2
    %v1589 = vmul.f32 %v1077, 0.2
    %v1590 = vmul.f32 %v1078, 0.2
    %v1591 = vmul.f32 %v1079, 0.2
    %v1592 = vmul.f32 %v1080, 0.2
    %v1593 = vmul.f32 %v1081, 0.2
    %v1594 = vmul.f32 %v1082, 0.2
    %v1595 = vmul.f32 %v1083, 0.2
    %v1596 = vmul.f32 %v1084, 0.2
    %v1597 = vmul.f32 %v1085, 0.2
    %v1598 = vmul.f32 %v1086, 0.2
    %v1599 = vmul.f32 %v1087, 0.2
    %v1600 = vmul.f32 %v1088, 0.2
    %v1601 = vmul.f32 %v1089, 0.2
    %v1602 = vmul.f32 %v1090, 0.2
    %v1603 = vmul.f32 %v1091, 0.2
    %v1604 = vmul.f32 %v1092, 0.2
    %v1605 = vmul.f32 %v1093, 0.2
    %v1606 = vmul.f32 %v1094, 0.2
    %v1607 = vmul.f32 %v1095, 0.2
    %v1608 = vmul.f32 %v1096, 0.2
    %v1609 = vmul.f32 %v1097, 0.2
    %v1610 = vmul.f32 %v1098, 0.2
    %v1611 = vmul.f32 %v1099, 0.2
    %v1612 = vmul.f32 %v1100, 0.2
    %v1613 = vmul.f32 %v1101, 0.2
    %v1614 = vmul.f32 %v1102, 0.2
    %v1615 = vmul.f32 %v1103, 0.2
    %v1616 = vmul.f32 %v1104, 0.2
    %v1617 = vmul.f32 %v1105, 0.2
    %v1618 = vmul.f32 %v1106, 0.2
    %v1619 = vmul.f32 %v1107, 0.2
    %v1620 = vsel %vm1108, %v852, %v1364
    %v1621 = vsel %vm1109, %v853, %v1365
    %v1622 = vsel %vm1110, %v854, %v1366
    %v1623 = vsel %vm1111, %v855, %v1367
    %v1624 = vsel %vm1112, %v856, %v1368
    %v1625 = vsel %vm1113, %v857, %v1369
    %v1626 = vsel %vm1114, %v858, %v1370
    %v1627 = vsel %vm1115, %v859, %v1371
    %v1628 = vsel %vm1116, %v860, %v1372
    %v1629 = vsel %vm1117, %v861, %v1373
    %v1630 = vsel %vm1118, %v862, %v1374
    %v1631 = vsel %vm1119, %v863, %v1375
    %v1632 = vsel %vm1120, %v864, %v1376
    %v1633 = vsel %vm1121, %v865, %v1377
    %v1634 = vsel %vm1122, %v866, %v1378
    %v1635 = vsel %vm1123, %v867, %v1379
    %v1636 = vsel %vm1124, %v868, %v1380
    %v1637 = vsel %vm1125, %v869, %v1381
    %v1638 = vsel %vm1126, %v870, %v1382
    %v1639 = vsel %vm1127, %v871, %v1383
    %v1640 = vsel %vm1128, %v872, %v1384
    %v1641 = vsel %vm1129, %v873, %v1385
    %v1642 = vsel %vm1130, %v874, %v1386
    %v1643 = vsel %vm1131, %v875, %v1387
    %v1644 = vsel %vm1132, %v876, %v1388
    %v1645 = vsel %vm1133, %v877, %v1389
    %v1646 = vsel %vm1134, %v878, %v1390
    %v1647 = vsel %vm1135, %v879, %v1391
    %v1648 = vsel %vm1136, %v880, %v1392
    %v1649 = vsel %vm1137, %v881, %v1393
    %v1650 = vsel %vm1138, %v882, %v1394
    %v1651 = vsel %vm1139, %v883, %v1395
    %v1652 = vsel %vm1140, %v884, %v1396
    %v1653 = vsel %vm1141, %v885, %v1397
    %v1654 = vsel %vm1142, %v886, %v1398
    %v1655 = vsel %vm1143, %v887, %v1399
    %v1656 = vsel %vm1144, %v888, %v1400
    %v1657 = vsel %vm1145, %v889, %v1401
    %v1658 = vsel %vm1146, %v890, %v1402
    %v1659 = vsel %vm1147, %v891, %v1403
    %v1660 = vsel %vm1148, %v892, %v1404
    %v1661 = vsel %vm1149, %v893, %v1405
    %v1662 = vsel %vm1150, %v894, %v1406
    %v1663 = vsel %vm1151, %v895, %v1407
    %v1664 = vsel %vm1152, %v896, %v1408
    %v1665 = vsel %vm1153, %v897, %v1409
    %v1666 = vsel %vm1154, %v898, %v1410
    %v1667 = vsel %vm1155, %v899, %v1411
    %v1668 = vsel %vm1156, %v900, %v1412
    %v1669 = vsel %vm1157, %v901, %v1413
    %v1670 = vsel %vm1158, %v902, %v1414
    %v1671 = vsel %vm1159, %v903, %v1415
    %v1672 = vsel %vm1160, %v904, %v1416
    %v1673 = vsel %vm1161, %v905, %v1417
    %v1674 = vsel %vm1162, %v906, %v1418
    %v1675 = vsel %vm1163, %v907, %v1419
    %v1676 = vsel %vm1164, %v908, %v1420
    %v1677 = vsel %vm1165, %v909, %v1421
    %v1678 = vsel %vm1166, %v910, %v1422
    %v1679 = vsel %vm1167, %v911, %v1423
    %v1680 = vsel %vm1168, %v912, %v1424
    %v1681 = vsel %vm1169, %v913, %v1425
    %v1682 = vsel %vm1170, %v914, %v1426
    %v1683 = vsel %vm1171, %v915, %v1427
    %v1684 = vsel %vm1172, %v916, %v1428
    %v1685 = vsel %vm1173, %v917, %v1429
    %v1686 = vsel %vm1174, %v918, %v1430
    %v1687 = vsel %vm1175, %v919, %v1431
    %v1688 = vsel %vm1176, %v920, %v1432
    %v1689 = vsel %vm1177, %v921, %v1433
    %v1690 = vsel %vm1178, %v922, %v1434
    %v1691 = vsel %vm1179, %v923, %v1435
    %v1692 = vsel %vm1180, %v924, %v1436
    %v1693 = vsel %vm1181, %v925, %v1437
    %v1694 = vsel %vm1182, %v926, %v1438
    %v1695 = vsel %vm1183, %v927, %v1439
    %v1696 = vsel %vm1184, %v928, %v1440
    %v1697 = vsel %vm1185, %v929, %v1441
    %v1698 = vsel %vm1186, %v930, %v1442
    %v1699 = vsel %vm1187, %v931, %v1443
    %v1700 = vsel %vm1188, %v932, %v1444
    %v1701 = vsel %vm1189, %v933, %v1445
    %v1702 = vsel %vm1190, %v934, %v1446
    %v1703 = vsel %vm1191, %v935, %v1447
    %v1704 = vsel %vm1192, %v936, %v1448
    %v1705 = vsel %vm1193, %v937, %v1449
    %v1706 = vsel %vm1194, %v938, %v1450
    %v1707 = vsel %vm1195, %v939, %v1451
    %v1708 = vsel %vm1196, %v940, %v1452
    %v1709 = vsel %vm1197, %v941, %v1453
    %v1710 = vsel %vm1198, %v942, %v1454
    %v1711 = vsel %vm1199, %v943, %v1455
    %v1712 = vsel %vm1200, %v944, %v1456
    %v1713 = vsel %vm1201, %v945, %v1457
    %v1714 = vsel %vm1202, %v946, %v1458
    %v1715 = vsel %vm1203, %v947, %v1459
    %v1716 = vsel %vm1204, %v948, %v1460
    %v1717 = vsel %vm1205, %v949, %v1461
    %v1718 = vsel %vm1206, %v950, %v1462
    %v1719 = vsel %vm1207, %v951, %v1463
    %v1720 = vsel %vm1208, %v952, %v1464
    %v1721 = vsel %vm1209, %v953, %v1465
    %v1722 = vsel %vm1210, %v954, %v1466
    %v1723 = vsel %vm1211, %v955, %v1467
    %v1724 = vsel %vm1212, %v956, %v1468
    %v1725 = vsel %vm1213, %v957, %v1469
    %v1726 = vsel %vm1214, %v958, %v1470
    %v1727 = vsel %vm1215, %v959, %v1471
    %v1728 = vsel %vm1216, %v960, %v1472
    %v1729 = vsel %vm1217, %v961, %v1473
    %v1730 = vsel %vm1218, %v962, %v1474
    %v1731 = vsel %vm1219, %v963, %v1475
    %v1732 = vsel %vm1220, %v964, %v1476
    %v1733 = vsel %vm1221, %v965, %v1477
    %v1734 = vsel %vm1222, %v966, %v1478
    %v1735 = vsel %vm1223, %v967, %v1479
    %v1736 = vsel %vm1224, %v968, %v1480
    %v1737 = vsel %vm1225, %v969, %v1481
    %v1738 = vsel %vm1226, %v970, %v1482
    %v1739 = vsel %vm1227, %v971, %v1483
    %v1740 = vsel %vm1228, %v972, %v1484
    %v1741 = vsel %vm1229, %v973, %v1485
    %v1742 = vsel %vm1230, %v974, %v1486
    %v1743 = vsel %vm1231, %v975, %v1487
    %v1744 = vsel %vm1232, %v976, %v1488
    %v1745 = vsel %vm1233, %v977, %v1489
    %v1746 = vsel %vm1234, %v978, %v1490
    %v1747 = vsel %vm1235, %v979, %v1491
    %v1748 = vsel %vm1236, %v980, %v1492
    %v1749 = vsel %vm1237, %v981, %v1493
    %v1750 = vsel %vm1238, %v982, %v1494
    %v1751 = vsel %vm1239, %v983, %v1495
    %v1752 = vsel %vm1240, %v984, %v1496
    %v1753 = vsel %vm1241, %v985, %v1497
    %v1754 = vsel %vm1242, %v986, %v1498
    %v1755 = vsel %vm1243, %v987, %v1499
    %v1756 = vsel %vm1244, %v988, %v1500
    %v1757 = vsel %vm1245, %v989, %v1501
    %v1758 = vsel %vm1246, %v990, %v1502
    %v1759 = vsel %vm1247, %v991, %v1503
    %v1760 = vsel %vm1248, %v992, %v1504
    %v1761 = vsel %vm1249, %v993, %v1505
    %v1762 = vsel %vm1250, %v994, %v1506
    %v1763 = vsel %vm1251, %v995, %v1507
    %v1764 = vsel %vm1252, %v996, %v1508
    %v1765 = vsel %vm1253, %v997, %v1509
    %v1766 = vsel %vm1254, %v998, %v1510
    %v1767 = vsel %vm1255, %v999, %v1511
    %v1768 = vsel %vm1256, %v1000, %v1512
    %v1769 = vsel %vm1257, %v1001, %v1513
    %v1770 = vsel %vm1258, %v1002, %v1514
    %v1771 = vsel %vm1259, %v1003, %v1515
    %v1772 = vsel %vm1260, %v1004, %v1516
    %v1773 = vsel %vm1261, %v1005, %v1517
    %v1774 = vsel %vm1262, %v1006, %v1518
    %v1775 = vsel %vm1263, %v1007, %v1519
    %v1776 = vsel %vm1264, %v1008, %v1520
    %v1777 = vsel %vm1265, %v1009, %v1521
    %v1778 = vsel %vm1266, %v1010, %v1522
    %v1779 = vsel %vm1267, %v1011, %v1523
    %v1780 = vsel %vm1268, %v1012, %v1524
    %v1781 = vsel %vm1269, %v1013, %v1525
    %v1782 = vsel %vm1270, %v1014, %v1526
    %v1783 = vsel %vm1271, %v1015, %v1527
    %v1784 = vsel %vm1272, %v1016, %v1528
    %v1785 = vsel %vm1273, %v1017, %v1529
    %v1786 = vsel %vm1274, %v1018, %v1530
    %v1787 = vsel %vm1275, %v1019, %v1531
    %v1788 = vsel %vm1276, %v1020, %v1532
    %v1789 = vsel %vm1277, %v1021, %v1533
    %v1790 = vsel %vm1278, %v1022, %v1534
    %v1791 = vsel %vm1279, %v1023, %v1535
    %v1792 = vsel %vm1280, %v1024, %v1536
    %v1793 = vsel %vm1281, %v1025, %v1537
    %v1794 = vsel %vm1282, %v1026, %v1538
    %v1795 = vsel %vm1283, %v1027, %v1539
    %v1796 = vsel %vm1284, %v1028, %v1540
    %v1797 = vsel %vm1285, %v1029, %v1541
    %v1798 = vsel %vm1286, %v1030, %v1542
    %v1799 = vsel %vm1287, %v1031, %v1543
    %v1800 = vsel %vm1288, %v1032, %v1544
    %v1801 = vsel %vm1289, %v1033, %v1545
    %v1802 = vsel %vm1290, %v1034, %v1546
    %v1803 = vsel %vm1291, %v1035, %v1547
    %v1804 = vsel %vm1292, %v1036, %v1548
    %v1805 = vsel %vm1293, %v1037, %v1549
    %v1806 = vsel %vm1294, %v1038, %v1550
    %v1807 = vsel %vm1295, %v1039, %v1551
    %v1808 = vsel %vm1296, %v1040, %v1552
    %v1809 = vsel %vm1297, %v1041, %v1553
    %v1810 = vsel %vm1298, %v1042, %v1554
    %v1811 = vsel %vm1299, %v1043, %v1555
    %v1812 = vsel %vm1300, %v1044, %v1556
    %v1813 = vsel %vm1301, %v1045, %v1557
    %v1814 = vsel %vm1302, %v1046, %v1558
    %v1815 = vsel %vm1303, %v1047, %v1559
    %v1816 = vsel %vm1304, %v1048, %v1560
    %v1817 = vsel %vm1305, %v1049, %v1561
    %v1818 = vsel %vm1306, %v1050, %v1562
    %v1819 = vsel %vm1307, %v1051, %v1563
    %v1820 = vsel %vm1308, %v1052, %v1564
    %v1821 = vsel %vm1309, %v1053, %v1565
    %v1822 = vsel %vm1310, %v1054, %v1566
    %v1823 = vsel %vm1311, %v1055, %v1567
    %v1824 = vsel %vm1312, %v1056, %v1568
    %v1825 = vsel %vm1313, %v1057, %v1569
    %v1826 = vsel %vm1314, %v1058, %v1570
    %v1827 = vsel %vm1315, %v1059, %v1571
    %v1828 = vsel %vm1316, %v1060, %v1572
    %v1829 = vsel %vm1317, %v1061, %v1573
    %v1830 = vsel %vm1318, %v1062, %v1574
    %v1831 = vsel %vm1319, %v1063, %v1575
    %v1832 = vsel %vm1320, %v1064, %v1576
    %v1833 = vsel %vm1321, %v1065, %v1577
    %v1834 = vsel %vm1322, %v1066, %v1578
    %v1835 = vsel %vm1323, %v1067, %v1579
    %v1836 = vsel %vm1324, %v1068, %v1580
    %v1837 = vsel %vm1325, %v1069, %v1581
    %v1838 = vsel %vm1326, %v1070, %v1582
    %v1839 = vsel %vm1327, %v1071, %v1583
    %v1840 = vsel %vm1328, %v1072, %v1584
    %v1841 = vsel %vm1329, %v1073, %v1585
    %v1842 = vsel %vm1330, %v1074, %v1586
    %v1843 = vsel %vm1331, %v1075, %v1587
    %v1844 = vsel %vm1332, %v1076, %v1588
    %v1845 = vsel %vm1333, %v1077, %v1589
    %v1846 = vsel %vm1334, %v1078, %v1590
    %v1847 = vsel %vm1335, %v1079, %v1591
    %v1848 = vsel %vm1336, %v1080, %v1592
    %v1849 = vsel %vm1337, %v1081, %v1593
    %v1850 = vsel %vm1338, %v1082, %v1594
    %v1851 = vsel %vm1339, %v1083, %v1595
    %v1852 = vsel %vm1340, %v1084, %v1596
    %v1853 = vsel %vm1341, %v1085, %v1597
    %v1854 = vsel %vm1342, %v1086, %v1598
    %v1855 = vsel %vm1343, %v1087, %v1599
    %v1856 = vsel %vm1344, %v1088, %v1600
    %v1857 = vsel %vm1345, %v1089, %v1601
    %v1858 = vsel %vm1346, %v1090, %v1602
    %v1859 = vsel %vm1347, %v1091, %v1603
    %v1860 = vsel %vm1348, %v1092, %v1604
    %v1861 = vsel %vm1349, %v1093, %v1605
    %v1862 = vsel %vm1350, %v1094, %v1606
    %v1863 = vsel %vm1351, %v1095, %v1607
    %v1864 = vsel %vm1352, %v1096, %v1608
    %v1865 = vsel %vm1353, %v1097, %v1609
    %v1866 = vsel %vm1354, %v1098, %v1610
    %v1867 = vsel %vm1355, %v1099, %v1611
    %v1868 = vsel %vm1356, %v1100, %v1612
    %v1869 = vsel %vm1357, %v1101, %v1613
    %v1870 = vsel %vm1358, %v1102, %v1614
    %v1871 = vsel %vm1359, %v1103, %v1615
    %v1872 = vsel %vm1360, %v1104, %v1616
    %v1873 = vsel %vm1361, %v1105, %v1617
    %v1874 = vsel %vm1362, %v1106, %v1618
    %v1875 = vsel %vm1363, %v1107, %v1619
    %v1876 = vpack.c.bf16 %v1636, %v1620
    %v1877 = vpack.c.bf16 %v1637, %v1621
    %v1878 = vpack.c.bf16 %v1638, %v1622
    %v1879 = vpack.c.bf16 %v1639, %v1623
    %v1880 = vpack.c.bf16 %v1640, %v1624
    %v1881 = vpack.c.bf16 %v1641, %v1625
    %v1882 = vpack.c.bf16 %v1642, %v1626
    %v1883 = vpack.c.bf16 %v1643, %v1627
    %v1884 = vpack.c.bf16 %v1644, %v1628
    %v1885 = vpack.c.bf16 %v1645, %v1629
    %v1886 = vpack.c.bf16 %v1646, %v1630
    %v1887 = vpack.c.bf16 %v1647, %v1631
    %v1888 = vpack.c.bf16 %v1648, %v1632
    %v1889 = vpack.c.bf16 %v1649, %v1633
    %v1890 = vpack.c.bf16 %v1650, %v1634
    %v1891 = vpack.c.bf16 %v1651, %v1635
    %v1892 = vpack.c.bf16 %v1668, %v1652
    %v1893 = vpack.c.bf16 %v1669, %v1653
    %v1894 = vpack.c.bf16 %v1670, %v1654
    %v1895 = vpack.c.bf16 %v1671, %v1655
    %v1896 = vpack.c.bf16 %v1672, %v1656
    %v1897 = vpack.c.bf16 %v1673, %v1657
    %v1898 = vpack.c.bf16 %v1674, %v1658
    %v1899 = vpack.c.bf16 %v1675, %v1659
    %v1900 = vpack.c.bf16 %v1676, %v1660
    %v1901 = vpack.c.bf16 %v1677, %v1661
    %v1902 = vpack.c.bf16 %v1678, %v1662
    %v1903 = vpack.c.bf16 %v1679, %v1663
    %v1904 = vpack.c.bf16 %v1680, %v1664
    %v1905 = vpack.c.bf16 %v1681, %v1665
    %v1906 = vpack.c.bf16 %v1682, %v1666
    %v1907 = vpack.c.bf16 %v1683, %v1667
    %v1908 = vpack.c.bf16 %v1700, %v1684
    %v1909 = vpack.c.bf16 %v1701, %v1685
    %v1910 = vpack.c.bf16 %v1702, %v1686
    %v1911 = vpack.c.bf16 %v1703, %v1687
    %v1912 = vpack.c.bf16 %v1704, %v1688
    %v1913 = vpack.c.bf16 %v1705, %v1689
    %v1914 = vpack.c.bf16 %v1706, %v1690
    %v1915 = vpack.c.bf16 %v1707, %v1691
    %v1916 = vpack.c.bf16 %v1708, %v1692
    %v1917 = vpack.c.bf16 %v1709, %v1693
    %v1918 = vpack.c.bf16 %v1710, %v1694
    %v1919 = vpack.c.bf16 %v1711, %v1695
    %v1920 = vpack.c.bf16 %v1712, %v1696
    %v1921 = vpack.c.bf16 %v1713, %v1697
    %v1922 = vpack.c.bf16 %v1714, %v1698
    %v1923 = vpack.c.bf16 %v1715, %v1699
    %v1924 = vpack.c.bf16 %v1732, %v1716
    %v1925 = vpack.c.bf16 %v1733, %v1717
    %v1926 = vpack.c.bf16 %v1734, %v1718
    %v1927 = vpack.c.bf16 %v1735, %v1719
    %v1928 = vpack.c.bf16 %v1736, %v1720
    %v1929 = vpack.c.bf16 %v1737, %v1721
    %v1930 = vpack.c.bf16 %v1738, %v1722
    %v1931 = vpack.c.bf16 %v1739, %v1723
    %v1932 = vpack.c.bf16 %v1740, %v1724
    %v1933 = vpack.c.bf16 %v1741, %v1725
    %v1934 = vpack.c.bf16 %v1742, %v1726
    %v1935 = vpack.c.bf16 %v1743, %v1727
    %v1936 = vpack.c.bf16 %v1744, %v1728
    %v1937 = vpack.c.bf16 %v1745, %v1729
    %v1938 = vpack.c.bf16 %v1746, %v1730
    %v1939 = vpack.c.bf16 %v1747, %v1731
    %v1940 = vpack.c.bf16 %v1764, %v1748
    %v1941 = vpack.c.bf16 %v1765, %v1749
    %v1942 = vpack.c.bf16 %v1766, %v1750
    %v1943 = vpack.c.bf16 %v1767, %v1751
    %v1944 = vpack.c.bf16 %v1768, %v1752
    %v1945 = vpack.c.bf16 %v1769, %v1753
    %v1946 = vpack.c.bf16 %v1770, %v1754
    %v1947 = vpack.c.bf16 %v1771, %v1755
    %v1948 = vpack.c.bf16 %v1772, %v1756
    %v1949 = vpack.c.bf16 %v1773, %v1757
    %v1950 = vpack.c.bf16 %v1774, %v1758
    %v1951 = vpack.c.bf16 %v1775, %v1759
    %v1952 = vpack.c.bf16 %v1776, %v1760
    %v1953 = vpack.c.bf16 %v1777, %v1761
    %v1954 = vpack.c.bf16 %v1778, %v1762
    %v1955 = vpack.c.bf16 %v1779, %v1763
    %v1956 = vpack.c.bf16 %v1796, %v1780
    %v1957 = vpack.c.bf16 %v1797, %v1781
    %v1958 = vpack.c.bf16 %v1798, %v1782
    %v1959 = vpack.c.bf16 %v1799, %v1783
    %v1960 = vpack.c.bf16 %v1800, %v1784
    %v1961 = vpack.c.bf16 %v1801, %v1785
    %v1962 = vpack.c.bf16 %v1802, %v1786
    %v1963 = vpack.c.bf16 %v1803, %v1787
    %v1964 = vpack.c.bf16 %v1804, %v1788
    %v1965 = vpack.c.bf16 %v1805, %v1789
    %v1966 = vpack.c.bf16 %v1806, %v1790
    %v1967 = vpack.c.bf16 %v1807, %v1791
    %v1968 = vpack.c.bf16 %v1808, %v1792
    %v1969 = vpack.c.bf16 %v1809, %v1793
    %v1970 = vpack.c.bf16 %v1810, %v1794
    %v1971 = vpack.c.bf16 %v1811, %v1795
    %v1972 = vpack.c.bf16 %v1828, %v1812
    %v1973 = vpack.c.bf16 %v1829, %v1813
    %v1974 = vpack.c.bf16 %v1830, %v1814
    %v1975 = vpack.c.bf16 %v1831, %v1815
    %v1976 = vpack.c.bf16 %v1832, %v1816
    %v1977 = vpack.c.bf16 %v1833, %v1817
    %v1978 = vpack.c.bf16 %v1834, %v1818
    %v1979 = vpack.c.bf16 %v1835, %v1819
    %v1980 = vpack.c.bf16 %v1836, %v1820
    %v1981 = vpack.c.bf16 %v1837, %v1821
    %v1982 = vpack.c.bf16 %v1838, %v1822
    %v1983 = vpack.c.bf16 %v1839, %v1823
    %v1984 = vpack.c.bf16 %v1840, %v1824
    %v1985 = vpack.c.bf16 %v1841, %v1825
    %v1986 = vpack.c.bf16 %v1842, %v1826
    %v1987 = vpack.c.bf16 %v1843, %v1827
    %v1988 = vpack.c.bf16 %v1860, %v1844
    %v1989 = vpack.c.bf16 %v1861, %v1845
    %v1990 = vpack.c.bf16 %v1862, %v1846
    %v1991 = vpack.c.bf16 %v1863, %v1847
    %v1992 = vpack.c.bf16 %v1864, %v1848
    %v1993 = vpack.c.bf16 %v1865, %v1849
    %v1994 = vpack.c.bf16 %v1866, %v1850
    %v1995 = vpack.c.bf16 %v1867, %v1851
    %v1996 = vpack.c.bf16 %v1868, %v1852
    %v1997 = vpack.c.bf16 %v1869, %v1853
    %v1998 = vpack.c.bf16 %v1870, %v1854
    %v1999 = vpack.c.bf16 %v1871, %v1855
    %v2000 = vpack.c.bf16 %v1872, %v1856
    %v2001 = vpack.c.bf16 %v1873, %v1857
    %v2002 = vpack.c.bf16 %v1874, %v1858
    %v2003 = vpack.c.bf16 %v1875, %v1859
    %v2004 = vld [vmem:[#allocation2] sm:$0xff]
    %v2005 = vld [vmem:[#allocation2 + $0x8] sm:$0xff]
    %v2006 = vld [vmem:[#allocation2 + $0x10] sm:$0xff]
    %v2007 = vld [vmem:[#allocation2 + $0x18] sm:$0xff]
    %v2008 = vld [vmem:[#allocation2 + $0x20] sm:$0xff]
    %v2009 = vld [vmem:[#allocation2 + $0x28] sm:$0xff]
    %v2010 = vld [vmem:[#allocation2 + $0x30] sm:$0xff]
    %v2011 = vld [vmem:[#allocation2 + $0x38] sm:$0xff]
    %v2012 = vld [vmem:[#allocation2 + $0x40] sm:$0xff]
    %v2013 = vld [vmem:[#allocation2 + $0x48] sm:$0xff]
    %v2014 = vld [vmem:[#allocation2 + $0x50] sm:$0xff]
    %v2015 = vld [vmem:[#allocation2 + $0x58] sm:$0xff]
    %v2016 = vld [vmem:[#allocation2 + $0x60] sm:$0xff]
    %v2017 = vld [vmem:[#allocation2 + $0x68] sm:$0xff]
    %v2018 = vld [vmem:[#allocation2 + $0x70] sm:$0xff]
    %v2019 = vld [vmem:[#allocation2 + $0x78] sm:$0xff]
    %v2020 = vld [vmem:[%s1] sm:$0xf]
    %v2021 = vld [vmem:[%s1 + $0x4] sm:$0xf]
    %v2022 = vld [vmem:[%s1 + $0x8] sm:$0xf]
    %v2023 = vld [vmem:[%s1 + $0xc] sm:$0xf]
    %v2024 = vld [vmem:[%s1 + $0x10] sm:$0xf]
    %v2025 = vld [vmem:[%s1 + $0x14] sm:$0xf]
    %v2026 = vld [vmem:[%s1 + $0x18] sm:$0xf]
    %v2027 = vld [vmem:[%s1 + $0x1c] sm:$0xf]
    %v2028 = vld [vmem:[%s1 + $0x20] sm:$0xf]
    %v2029 = vld [vmem:[%s1 + $0x24] sm:$0xf]
    %v2030 = vld [vmem:[%s1 + $0x28] sm:$0xf]
    %v2031 = vld [vmem:[%s1 + $0x2c] sm:$0xf]
    %v2032 = vld [vmem:[%s1 + $0x30] sm:$0xf]
    %v2033 = vld [vmem:[%s1 + $0x34] sm:$0xf]
    %v2034 = vld [vmem:[%s1 + $0x38] sm:$0xf]
    %v2035 = vld [vmem:[%s1 + $0x3c] sm:$0xf]
    %v2036 = vld [vmem:[%s1 + $0x40] sm:$0xf]
    %v2037 = vld [vmem:[%s1 + $0x44] sm:$0xf]
    %v2038 = vld [vmem:[%s1 + $0x48] sm:$0xf]
    %v2039 = vld [vmem:[%s1 + $0x4c] sm:$0xf]
    %v2040 = vld [vmem:[%s1 + $0x50] sm:$0xf]
    %v2041 = vld [vmem:[%s1 + $0x54] sm:$0xf]
    %v2042 = vld [vmem:[%s1 + $0x58] sm:$0xf]
    %v2043 = vld [vmem:[%s1 + $0x5c] sm:$0xf]
    %v2044 = vld [vmem:[%s1 + $0x60] sm:$0xf]
    %v2045 = vld [vmem:[%s1 + $0x64] sm:$0xf]
    %v2046 = vld [vmem:[%s1 + $0x68] sm:$0xf]
    %v2047 = vld [vmem:[%s1 + $0x6c] sm:$0xf]
    %v2048 = vld [vmem:[%s1 + $0x70] sm:$0xf]
    %v2049 = vld [vmem:[%s1 + $0x74] sm:$0xf]
    %v2050 = vld [vmem:[%s1 + $0x78] sm:$0xf]
    %v2051 = vld [vmem:[%s1 + $0x7c] sm:$0xf]
    %v2052 = vld [vmem:[%s1 + $0x80] sm:$0xf]
    %v2053 = vld [vmem:[%s1 + $0x84] sm:$0xf]
    %v2054 = vld [vmem:[%s1 + $0x88] sm:$0xf]
    %v2055 = vld [vmem:[%s1 + $0x8c] sm:$0xf]
    %v2056 = vld [vmem:[%s1 + $0x90] sm:$0xf]
    %v2057 = vld [vmem:[%s1 + $0x94] sm:$0xf]
    %v2058 = vld [vmem:[%s1 + $0x98] sm:$0xf]
    %v2059 = vld [vmem:[%s1 + $0x9c] sm:$0xf]
    %v2060 = vld [vmem:[%s1 + $0xa0] sm:$0xf]
    %v2061 = vld [vmem:[%s1 + $0xa4] sm:$0xf]
    %v2062 = vld [vmem:[%s1 + $0xa8] sm:$0xf]
    %v2063 = vld [vmem:[%s1 + $0xac] sm:$0xf]
    %v2064 = vld [vmem:[%s1 + $0xb0] sm:$0xf]
    %v2065 = vld [vmem:[%s1 + $0xb4] sm:$0xf]
    %v2066 = vld [vmem:[%s1 + $0xb8] sm:$0xf]
    %v2067 = vld [vmem:[%s1 + $0xbc] sm:$0xf]
    %v2068 = vld [vmem:[%s1 + $0xc0] sm:$0xf]
    %v2069 = vld [vmem:[%s1 + $0xc4] sm:$0xf]
    %v2070 = vld [vmem:[%s1 + $0xc8] sm:$0xf]
    %v2071 = vld [vmem:[%s1 + $0xcc] sm:$0xf]
    %v2072 = vld [vmem:[%s1 + $0xd0] sm:$0xf]
    %v2073 = vld [vmem:[%s1 + $0xd4] sm:$0xf]
    %v2074 = vld [vmem:[%s1 + $0xd8] sm:$0xf]
    %v2075 = vld [vmem:[%s1 + $0xdc] sm:$0xf]
    %v2076 = vld [vmem:[%s1 + $0xe0] sm:$0xf]
    %v2077 = vld [vmem:[%s1 + $0xe4] sm:$0xf]
    %v2078 = vld [vmem:[%s1 + $0xe8] sm:$0xf]
    %v2079 = vld [vmem:[%s1 + $0xec] sm:$0xf]
    %v2080 = vld [vmem:[%s1 + $0xf0] sm:$0xf]
    %v2081 = vld [vmem:[%s1 + $0xf4] sm:$0xf]
    %v2082 = vld [vmem:[%s1 + $0xf8] sm:$0xf]
    %v2083 = vld [vmem:[%s1 + $0xfc] sm:$0xf]
    %v2084 = vld [vmem:[%s1 + $0x100] sm:$0xf]
    %v2085 = vld [vmem:[%s1 + $0x104] sm:$0xf]
    %v2086 = vld [vmem:[%s1 + $0x108] sm:$0xf]
    %v2087 = vld [vmem:[%s1 + $0x10c] sm:$0xf]
    %v2088 = vld [vmem:[%s1 + $0x110] sm:$0xf]
    %v2089 = vld [vmem:[%s1 + $0x114] sm:$0xf]
    %v2090 = vld [vmem:[%s1 + $0x118] sm:$0xf]
    %v2091 = vld [vmem:[%s1 + $0x11c] sm:$0xf]
    %v2092 = vld [vmem:[%s1 + $0x120] sm:$0xf]
    %v2093 = vld [vmem:[%s1 + $0x124] sm:$0xf]
    %v2094 = vld [vmem:[%s1 + $0x128] sm:$0xf]
    %v2095 = vld [vmem:[%s1 + $0x12c] sm:$0xf]
    %v2096 = vld [vmem:[%s1 + $0x130] sm:$0xf]
    %v2097 = vld [vmem:[%s1 + $0x134] sm:$0xf]
    %v2098 = vld [vmem:[%s1 + $0x138] sm:$0xf]
    %v2099 = vld [vmem:[%s1 + $0x13c] sm:$0xf]
    %v2100 = vld [vmem:[%s1 + $0x140] sm:$0xf]
    %v2101 = vld [vmem:[%s1 + $0x144] sm:$0xf]
    %v2102 = vld [vmem:[%s1 + $0x148] sm:$0xf]
    %v2103 = vld [vmem:[%s1 + $0x14c] sm:$0xf]
    %v2104 = vld [vmem:[%s1 + $0x150] sm:$0xf]
    %v2105 = vld [vmem:[%s1 + $0x154] sm:$0xf]
    %v2106 = vld [vmem:[%s1 + $0x158] sm:$0xf]
    %v2107 = vld [vmem:[%s1 + $0x15c] sm:$0xf]
    %v2108 = vld [vmem:[%s1 + $0x160] sm:$0xf]
    %v2109 = vld [vmem:[%s1 + $0x164] sm:$0xf]
    %v2110 = vld [vmem:[%s1 + $0x168] sm:$0xf]
    %v2111 = vld [vmem:[%s1 + $0x16c] sm:$0xf]
    %v2112 = vld [vmem:[%s1 + $0x170] sm:$0xf]
    %v2113 = vld [vmem:[%s1 + $0x174] sm:$0xf]
    %v2114 = vld [vmem:[%s1 + $0x178] sm:$0xf]
    %v2115 = vld [vmem:[%s1 + $0x17c] sm:$0xf]
    %v2116 = vld [vmem:[%s1 + $0x180] sm:$0xf]
    %v2117 = vld [vmem:[%s1 + $0x184] sm:$0xf]
    %v2118 = vld [vmem:[%s1 + $0x188] sm:$0xf]
    %v2119 = vld [vmem:[%s1 + $0x18c] sm:$0xf]
    %v2120 = vld [vmem:[%s1 + $0x190] sm:$0xf]
    %v2121 = vld [vmem:[%s1 + $0x194] sm:$0xf]
    %v2122 = vld [vmem:[%s1 + $0x198] sm:$0xf]
    %v2123 = vld [vmem:[%s1 + $0x19c] sm:$0xf]
    %v2124 = vld [vmem:[%s1 + $0x1a0] sm:$0xf]
    %v2125 = vld [vmem:[%s1 + $0x1a4] sm:$0xf]
    %v2126 = vld [vmem:[%s1 + $0x1a8] sm:$0xf]
    %v2127 = vld [vmem:[%s1 + $0x1ac] sm:$0xf]
    %v2128 = vld [vmem:[%s1 + $0x1b0] sm:$0xf]
    %v2129 = vld [vmem:[%s1 + $0x1b4] sm:$0xf]
    %v2130 = vld [vmem:[%s1 + $0x1b8] sm:$0xf]
    %v2131 = vld [vmem:[%s1 + $0x1bc] sm:$0xf]
    %v2132 = vld [vmem:[%s1 + $0x1c0] sm:$0xf]
    %v2133 = vld [vmem:[%s1 + $0x1c4] sm:$0xf]
    %v2134 = vld [vmem:[%s1 + $0x1c8] sm:$0xf]
    %v2135 = vld [vmem:[%s1 + $0x1cc] sm:$0xf]
    %v2136 = vld [vmem:[%s1 + $0x1d0] sm:$0xf]
    %v2137 = vld [vmem:[%s1 + $0x1d4] sm:$0xf]
    %v2138 = vld [vmem:[%s1 + $0x1d8] sm:$0xf]
    %v2139 = vld [vmem:[%s1 + $0x1dc] sm:$0xf]
    %v2140 = vld [vmem:[%s1 + $0x1e0] sm:$0xf]
    %v2141 = vld [vmem:[%s1 + $0x1e4] sm:$0xf]
    %v2142 = vld [vmem:[%s1 + $0x1e8] sm:$0xf]
    %v2143 = vld [vmem:[%s1 + $0x1ec] sm:$0xf]
    %v2144 = vld [vmem:[%s1 + $0x1f0] sm:$0xf]
    %v2145 = vld [vmem:[%s1 + $0x1f4] sm:$0xf]
    %v2146 = vld [vmem:[%s1 + $0x1f8] sm:$0xf]
    %v2147 = vld [vmem:[%s1 + $0x1fc] sm:$0xf]
    %v2148 = vld [vmem:[%s1 + $0x200] sm:$0xf]
    %v2149 = vld [vmem:[%s1 + $0x204] sm:$0xf]
    %v2150 = vld [vmem:[%s1 + $0x208] sm:$0xf]
    %v2151 = vld [vmem:[%s1 + $0x20c] sm:$0xf]
    %v2152 = vld [vmem:[%s1 + $0x210] sm:$0xf]
    %v2153 = vld [vmem:[%s1 + $0x214] sm:$0xf]
    %v2154 = vld [vmem:[%s1 + $0x218] sm:$0xf]
    %v2155 = vld [vmem:[%s1 + $0x21c] sm:$0xf]
    %v2156 = vld [vmem:[%s1 + $0x220] sm:$0xf]
    %v2157 = vld [vmem:[%s1 + $0x224] sm:$0xf]
    %v2158 = vld [vmem:[%s1 + $0x228] sm:$0xf]
    %v2159 = vld [vmem:[%s1 + $0x22c] sm:$0xf]
    %v2160 = vld [vmem:[%s1 + $0x230] sm:$0xf]
    %v2161 = vld [vmem:[%s1 + $0x234] sm:$0xf]
    %v2162 = vld [vmem:[%s1 + $0x238] sm:$0xf]
    %v2163 = vld [vmem:[%s1 + $0x23c] sm:$0xf]
    %v2164 = vld [vmem:[%s1 + $0x240] sm:$0xf]
    %v2165 = vld [vmem:[%s1 + $0x244] sm:$0xf]
    %v2166 = vld [vmem:[%s1 + $0x248] sm:$0xf]
    %v2167 = vld [vmem:[%s1 + $0x24c] sm:$0xf]
    %v2168 = vld [vmem:[%s1 + $0x250] sm:$0xf]
    %v2169 = vld [vmem:[%s1 + $0x254] sm:$0xf]
    %v2170 = vld [vmem:[%s1 + $0x258] sm:$0xf]
    %v2171 = vld [vmem:[%s1 + $0x25c] sm:$0xf]
    %v2172 = vld [vmem:[%s1 + $0x260] sm:$0xf]
    %v2173 = vld [vmem:[%s1 + $0x264] sm:$0xf]
    %v2174 = vld [vmem:[%s1 + $0x268] sm:$0xf]
    %v2175 = vld [vmem:[%s1 + $0x26c] sm:$0xf]
    %v2176 = vld [vmem:[%s1 + $0x270] sm:$0xf]
    %v2177 = vld [vmem:[%s1 + $0x274] sm:$0xf]
    %v2178 = vld [vmem:[%s1 + $0x278] sm:$0xf]
    %v2179 = vld [vmem:[%s1 + $0x27c] sm:$0xf]
    %v2180 = vld [vmem:[%s1 + $0x280] sm:$0xf]
    %v2181 = vld [vmem:[%s1 + $0x284] sm:$0xf]
    %v2182 = vld [vmem:[%s1 + $0x288] sm:$0xf]
    %v2183 = vld [vmem:[%s1 + $0x28c] sm:$0xf]
    %v2184 = vld [vmem:[%s1 + $0x290] sm:$0xf]
    %v2185 = vld [vmem:[%s1 + $0x294] sm:$0xf]
    %v2186 = vld [vmem:[%s1 + $0x298] sm:$0xf]
    %v2187 = vld [vmem:[%s1 + $0x29c] sm:$0xf]
    %v2188 = vld [vmem:[%s1 + $0x2a0] sm:$0xf]
    %v2189 = vld [vmem:[%s1 + $0x2a4] sm:$0xf]
    %v2190 = vld [vmem:[%s1 + $0x2a8] sm:$0xf]
    %v2191 = vld [vmem:[%s1 + $0x2ac] sm:$0xf]
    %v2192 = vld [vmem:[%s1 + $0x2b0] sm:$0xf]
    %v2193 = vld [vmem:[%s1 + $0x2b4] sm:$0xf]
    %v2194 = vld [vmem:[%s1 + $0x2b8] sm:$0xf]
    %v2195 = vld [vmem:[%s1 + $0x2bc] sm:$0xf]
    %v2196 = vld [vmem:[%s1 + $0x2c0] sm:$0xf]
    %v2197 = vld [vmem:[%s1 + $0x2c4] sm:$0xf]
    %v2198 = vld [vmem:[%s1 + $0x2c8] sm:$0xf]
    %v2199 = vld [vmem:[%s1 + $0x2cc] sm:$0xf]
    %v2200 = vld [vmem:[%s1 + $0x2d0] sm:$0xf]
    %v2201 = vld [vmem:[%s1 + $0x2d4] sm:$0xf]
    %v2202 = vld [vmem:[%s1 + $0x2d8] sm:$0xf]
    %v2203 = vld [vmem:[%s1 + $0x2dc] sm:$0xf]
    %v2204 = vld [vmem:[%s1 + $0x2e0] sm:$0xf]
    %v2205 = vld [vmem:[%s1 + $0x2e4] sm:$0xf]
    %v2206 = vld [vmem:[%s1 + $0x2e8] sm:$0xf]
    %v2207 = vld [vmem:[%s1 + $0x2ec] sm:$0xf]
    %v2208 = vld [vmem:[%s1 + $0x2f0] sm:$0xf]
    %v2209 = vld [vmem:[%s1 + $0x2f4] sm:$0xf]
    %v2210 = vld [vmem:[%s1 + $0x2f8] sm:$0xf]
    %v2211 = vld [vmem:[%s1 + $0x2fc] sm:$0xf]
    %v2212 = vld [vmem:[%s1 + $0x300] sm:$0xf]
    %v2213 = vld [vmem:[%s1 + $0x304] sm:$0xf]
    %v2214 = vld [vmem:[%s1 + $0x308] sm:$0xf]
    %v2215 = vld [vmem:[%s1 + $0x30c] sm:$0xf]
    %v2216 = vld [vmem:[%s1 + $0x310] sm:$0xf]
    %v2217 = vld [vmem:[%s1 + $0x314] sm:$0xf]
    %v2218 = vld [vmem:[%s1 + $0x318] sm:$0xf]
    %v2219 = vld [vmem:[%s1 + $0x31c] sm:$0xf]
    %v2220 = vld [vmem:[%s1 + $0x320] sm:$0xf]
    %v2221 = vld [vmem:[%s1 + $0x324] sm:$0xf]
    %v2222 = vld [vmem:[%s1 + $0x328] sm:$0xf]
    %v2223 = vld [vmem:[%s1 + $0x32c] sm:$0xf]
    %v2224 = vld [vmem:[%s1 + $0x330] sm:$0xf]
    %v2225 = vld [vmem:[%s1 + $0x334] sm:$0xf]
    %v2226 = vld [vmem:[%s1 + $0x338] sm:$0xf]
    %v2227 = vld [vmem:[%s1 + $0x33c] sm:$0xf]
    %v2228 = vld [vmem:[%s1 + $0x340] sm:$0xf]
    %v2229 = vld [vmem:[%s1 + $0x344] sm:$0xf]
    %v2230 = vld [vmem:[%s1 + $0x348] sm:$0xf]
    %v2231 = vld [vmem:[%s1 + $0x34c] sm:$0xf]
    %v2232 = vld [vmem:[%s1 + $0x350] sm:$0xf]
    %v2233 = vld [vmem:[%s1 + $0x354] sm:$0xf]
    %v2234 = vld [vmem:[%s1 + $0x358] sm:$0xf]
    %v2235 = vld [vmem:[%s1 + $0x35c] sm:$0xf]
    %v2236 = vld [vmem:[%s1 + $0x360] sm:$0xf]
    %v2237 = vld [vmem:[%s1 + $0x364] sm:$0xf]
    %v2238 = vld [vmem:[%s1 + $0x368] sm:$0xf]
    %v2239 = vld [vmem:[%s1 + $0x36c] sm:$0xf]
    %v2240 = vld [vmem:[%s1 + $0x370] sm:$0xf]
    %v2241 = vld [vmem:[%s1 + $0x374] sm:$0xf]
    %v2242 = vld [vmem:[%s1 + $0x378] sm:$0xf]
    %v2243 = vld [vmem:[%s1 + $0x37c] sm:$0xf]
    %v2244 = vld [vmem:[%s1 + $0x380] sm:$0xf]
    %v2245 = vld [vmem:[%s1 + $0x384] sm:$0xf]
    %v2246 = vld [vmem:[%s1 + $0x388] sm:$0xf]
    %v2247 = vld [vmem:[%s1 + $0x38c] sm:$0xf]
    %v2248 = vld [vmem:[%s1 + $0x390] sm:$0xf]
    %v2249 = vld [vmem:[%s1 + $0x394] sm:$0xf]
    %v2250 = vld [vmem:[%s1 + $0x398] sm:$0xf]
    %v2251 = vld [vmem:[%s1 + $0x39c] sm:$0xf]
    %v2252 = vld [vmem:[%s1 + $0x3a0] sm:$0xf]
    %v2253 = vld [vmem:[%s1 + $0x3a4] sm:$0xf]
    %v2254 = vld [vmem:[%s1 + $0x3a8] sm:$0xf]
    %v2255 = vld [vmem:[%s1 + $0x3ac] sm:$0xf]
    %v2256 = vld [vmem:[%s1 + $0x3b0] sm:$0xf]
    %v2257 = vld [vmem:[%s1 + $0x3b4] sm:$0xf]
    %v2258 = vld [vmem:[%s1 + $0x3b8] sm:$0xf]
    %v2259 = vld [vmem:[%s1 + $0x3bc] sm:$0xf]
    %v2260 = vld [vmem:[%s1 + $0x3c0] sm:$0xf]
    %v2261 = vld [vmem:[%s1 + $0x3c4] sm:$0xf]
    %v2262 = vld [vmem:[%s1 + $0x3c8] sm:$0xf]
    %v2263 = vld [vmem:[%s1 + $0x3cc] sm:$0xf]
    %v2264 = vld [vmem:[%s1 + $0x3d0] sm:$0xf]
    %v2265 = vld [vmem:[%s1 + $0x3d4] sm:$0xf]
    %v2266 = vld [vmem:[%s1 + $0x3d8] sm:$0xf]
    %v2267 = vld [vmem:[%s1 + $0x3dc] sm:$0xf]
    %v2268 = vld [vmem:[%s1 + $0x3e0] sm:$0xf]
    %v2269 = vld [vmem:[%s1 + $0x3e4] sm:$0xf]
    %v2270 = vld [vmem:[%s1 + $0x3e8] sm:$0xf]
    %v2271 = vld [vmem:[%s1 + $0x3ec] sm:$0xf]
    %v2272 = vld [vmem:[%s1 + $0x3f0] sm:$0xf]
    %v2273 = vld [vmem:[%s1 + $0x3f4] sm:$0xf]
    %v2274 = vld [vmem:[%s1 + $0x3f8] sm:$0xf]
    %v2275 = vld [vmem:[%s1 + $0x3fc] sm:$0xf]
    %v2532 = vunpack.c.l.b16 %v2020
    %v2533 = vunpack.c.l.b16 %v2021
    %v2534 = vunpack.c.l.b16 %v2022
    %v2535 = vunpack.c.l.b16 %v2023
    %v2536 = vunpack.c.l.b16 %v2024
    %v2537 = vunpack.c.l.b16 %v2025
    %v2538 = vunpack.c.l.b16 %v2026
    %v2539 = vunpack.c.l.b16 %v2027
    %v2540 = vunpack.c.l.b16 %v2028
    %v2541 = vunpack.c.l.b16 %v2029
    %v2542 = vunpack.c.l.b16 %v2030
    %v2543 = vunpack.c.l.b16 %v2031
    %v2544 = vunpack.c.l.b16 %v2032
    %v2545 = vunpack.c.l.b16 %v2033
    %v2546 = vunpack.c.l.b16 %v2034
    %v2547 = vunpack.c.l.b16 %v2035
    %v2548 = vunpack.c.l.b16 %v2036
    %v2549 = vunpack.c.l.b16 %v2037
    %v2550 = vunpack.c.l.b16 %v2038
    %v2551 = vunpack.c.l.b16 %v2039
    %v2552 = vunpack.c.l.b16 %v2040
    %v2553 = vunpack.c.l.b16 %v2041
    %v2554 = vunpack.c.l.b16 %v2042
    %v2555 = vunpack.c.l.b16 %v2043
    %v2556 = vunpack.c.l.b16 %v2044
    %v2557 = vunpack.c.l.b16 %v2045
    %v2558 = vunpack.c.l.b16 %v2046
    %v2559 = vunpack.c.l.b16 %v2047
    %v2560 = vunpack.c.l.b16 %v2048
    %v2561 = vunpack.c.l.b16 %v2049
    %v2562 = vunpack.c.l.b16 %v2050
    %v2563 = vunpack.c.l.b16 %v2051
    %v2564 = vunpack.c.l.b16 %v2052
    %v2565 = vunpack.c.l.b16 %v2053
    %v2566 = vunpack.c.l.b16 %v2054
    %v2567 = vunpack.c.l.b16 %v2055
    %v2568 = vunpack.c.l.b16 %v2056
    %v2569 = vunpack.c.l.b16 %v2057
    %v2570 = vunpack.c.l.b16 %v2058
    %v2571 = vunpack.c.l.b16 %v2059
    %v2572 = vunpack.c.l.b16 %v2060
    %v2573 = vunpack.c.l.b16 %v2061
    %v2574 = vunpack.c.l.b16 %v2062
    %v2575 = vunpack.c.l.b16 %v2063
    %v2576 = vunpack.c.l.b16 %v2064
    %v2577 = vunpack.c.l.b16 %v2065
    %v2578 = vunpack.c.l.b16 %v2066
    %v2579 = vunpack.c.l.b16 %v2067
    %v2580 = vunpack.c.l.b16 %v2068
    %v2581 = vunpack.c.l.b16 %v2069
    %v2582 = vunpack.c.l.b16 %v2070
    %v2583 = vunpack.c.l.b16 %v2071
    %v2584 = vunpack.c.l.b16 %v2072
    %v2585 = vunpack.c.l.b16 %v2073
    %v2586 = vunpack.c.l.b16 %v2074
    %v2587 = vunpack.c.l.b16 %v2075
    %v2588 = vunpack.c.l.b16 %v2076
    %v2589 = vunpack.c.l.b16 %v2077
    %v2590 = vunpack.c.l.b16 %v2078
    %v2591 = vunpack.c.l.b16 %v2079
    %v2592 = vunpack.c.l.b16 %v2080
    %v2593 = vunpack.c.l.b16 %v2081
    %v2594 = vunpack.c.l.b16 %v2082
    %v2595 = vunpack.c.l.b16 %v2083
    %v2596 = vunpack.c.l.b16 %v2084
    %v2597 = vunpack.c.l.b16 %v2085
    %v2598 = vunpack.c.l.b16 %v2086
    %v2599 = vunpack.c.l.b16 %v2087
    %v2600 = vunpack.c.l.b16 %v2088
    %v2601 = vunpack.c.l.b16 %v2089
    %v2602 = vunpack.c.l.b16 %v2090
    %v2603 = vunpack.c.l.b16 %v2091
    %v2604 = vunpack.c.l.b16 %v2092
    %v2605 = vunpack.c.l.b16 %v2093
    %v2606 = vunpack.c.l.b16 %v2094
    %v2607 = vunpack.c.l.b16 %v2095
    %v2608 = vunpack.c.l.b16 %v2096
    %v2609 = vunpack.c.l.b16 %v2097
    %v2610 = vunpack.c.l.b16 %v2098
    %v2611 = vunpack.c.l.b16 %v2099
    %v2612 = vunpack.c.l.b16 %v2100
    %v2613 = vunpack.c.l.b16 %v2101
    %v2614 = vunpack.c.l.b16 %v2102
    %v2615 = vunpack.c.l.b16 %v2103
    %v2616 = vunpack.c.l.b16 %v2104
    %v2617 = vunpack.c.l.b16 %v2105
    %v2618 = vunpack.c.l.b16 %v2106
    %v2619 = vunpack.c.l.b16 %v2107
    %v2620 = vunpack.c.l.b16 %v2108
    %v2621 = vunpack.c.l.b16 %v2109
    %v2622 = vunpack.c.l.b16 %v2110
    %v2623 = vunpack.c.l.b16 %v2111
    %v2624 = vunpack.c.l.b16 %v2112
    %v2625 = vunpack.c.l.b16 %v2113
    %v2626 = vunpack.c.l.b16 %v2114
    %v2627 = vunpack.c.l.b16 %v2115
    %v2628 = vunpack.c.l.b16 %v2116
    %v2629 = vunpack.c.l.b16 %v2117
    %v2630 = vunpack.c.l.b16 %v2118
    %v2631 = vunpack.c.l.b16 %v2119
    %v2632 = vunpack.c.l.b16 %v2120
    %v2633 = vunpack.c.l.b16 %v2121
    %v2634 = vunpack.c.l.b16 %v2122
    %v2635 = vunpack.c.l.b16 %v2123
    %v2636 = vunpack.c.l.b16 %v2124
    %v2637 = vunpack.c.l.b16 %v2125
    %v2638 = vunpack.c.l.b16 %v2126
    %v2639 = vunpack.c.l.b16 %v2127
    %v2640 = vunpack.c.l.b16 %v2128
    %v2641 = vunpack.c.l.b16 %v2129
    %v2642 = vunpack.c.l.b16 %v2130
    %v2643 = vunpack.c.l.b16 %v2131
    %v2644 = vunpack.c.l.b16 %v2132
    %v2645 = vunpack.c.l.b16 %v2133
    %v2646 = vunpack.c.l.b16 %v2134
    %v2647 = vunpack.c.l.b16 %v2135
    %v2648 = vunpack.c.l.b16 %v2136
    %v2649 = vunpack.c.l.b16 %v2137
    %v2650 = vunpack.c.l.b16 %v2138
    %v2651 = vunpack.c.l.b16 %v2139
    %v2652 = vunpack.c.l.b16 %v2140
    %v2653 = vunpack.c.l.b16 %v2141
    %v2654 = vunpack.c.l.b16 %v2142
    %v2655 = vunpack.c.l.b16 %v2143
    %v2656 = vunpack.c.l.b16 %v2144
    %v2657 = vunpack.c.l.b16 %v2145
    %v2658 = vunpack.c.l.b16 %v2146
    %v2659 = vunpack.c.l.b16 %v2147
    %v2660 = vunpack.c.l.b16 %v2148
    %v2661 = vunpack.c.l.b16 %v2149
    %v2662 = vunpack.c.l.b16 %v2150
    %v2663 = vunpack.c.l.b16 %v2151
    %v2664 = vunpack.c.l.b16 %v2152
    %v2665 = vunpack.c.l.b16 %v2153
    %v2666 = vunpack.c.l.b16 %v2154
    %v2667 = vunpack.c.l.b16 %v2155
    %v2668 = vunpack.c.l.b16 %v2156
    %v2669 = vunpack.c.l.b16 %v2157
    %v2670 = vunpack.c.l.b16 %v2158
    %v2671 = vunpack.c.l.b16 %v2159
    %v2672 = vunpack.c.l.b16 %v2160
    %v2673 = vunpack.c.l.b16 %v2161
    %v2674 = vunpack.c.l.b16 %v2162
    %v2675 = vunpack.c.l.b16 %v2163
    %v2676 = vunpack.c.l.b16 %v2164
    %v2677 = vunpack.c.l.b16 %v2165
    %v2678 = vunpack.c.l.b16 %v2166
    %v2679 = vunpack.c.l.b16 %v2167
    %v2680 = vunpack.c.l.b16 %v2168
    %v2681 = vunpack.c.l.b16 %v2169
    %v2682 = vunpack.c.l.b16 %v2170
    %v2683 = vunpack.c.l.b16 %v2171
    %v2684 = vunpack.c.l.b16 %v2172
    %v2685 = vunpack.c.l.b16 %v2173
    %v2686 = vunpack.c.l.b16 %v2174
    %v2687 = vunpack.c.l.b16 %v2175
    %v2688 = vunpack.c.l.b16 %v2176
    %v2689 = vunpack.c.l.b16 %v2177
    %v2690 = vunpack.c.l.b16 %v2178
    %v2691 = vunpack.c.l.b16 %v2179
    %v2692 = vunpack.c.l.b16 %v2180
    %v2693 = vunpack.c.l.b16 %v2181
    %v2694 = vunpack.c.l.b16 %v2182
    %v2695 = vunpack.c.l.b16 %v2183
    %v2696 = vunpack.c.l.b16 %v2184
    %v2697 = vunpack.c.l.b16 %v2185
    %v2698 = vunpack.c.l.b16 %v2186
    %v2699 = vunpack.c.l.b16 %v2187
    %v2700 = vunpack.c.l.b16 %v2188
    %v2701 = vunpack.c.l.b16 %v2189
    %v2702 = vunpack.c.l.b16 %v2190
    %v2703 = vunpack.c.l.b16 %v2191
    %v2704 = vunpack.c.l.b16 %v2192
    %v2705 = vunpack.c.l.b16 %v2193
    %v2706 = vunpack.c.l.b16 %v2194
    %v2707 = vunpack.c.l.b16 %v2195
    %v2708 = vunpack.c.l.b16 %v2196
    %v2709 = vunpack.c.l.b16 %v2197
    %v2710 = vunpack.c.l.b16 %v2198
    %v2711 = vunpack.c.l.b16 %v2199
    %v2712 = vunpack.c.l.b16 %v2200
    %v2713 = vunpack.c.l.b16 %v2201
    %v2714 = vunpack.c.l.b16 %v2202
    %v2715 = vunpack.c.l.b16 %v2203
    %v2716 = vunpack.c.l.b16 %v2204
    %v2717 = vunpack.c.l.b16 %v2205
    %v2718 = vunpack.c.l.b16 %v2206
    %v2719 = vunpack.c.l.b16 %v2207
    %v2720 = vunpack.c.l.b16 %v2208
    %v2721 = vunpack.c.l.b16 %v2209
    %v2722 = vunpack.c.l.b16 %v2210
    %v2723 = vunpack.c.l.b16 %v2211
    %v2724 = vunpack.c.l.b16 %v2212
    %v2725 = vunpack.c.l.b16 %v2213
    %v2726 = vunpack.c.l.b16 %v2214
    %v2727 = vunpack.c.l.b16 %v2215
    %v2728 = vunpack.c.l.b16 %v2216
    %v2729 = vunpack.c.l.b16 %v2217
    %v2730 = vunpack.c.l.b16 %v2218
    %v2731 = vunpack.c.l.b16 %v2219
    %v2732 = vunpack.c.l.b16 %v2220
    %v2733 = vunpack.c.l.b16 %v2221
    %v2734 = vunpack.c.l.b16 %v2222
    %v2735 = vunpack.c.l.b16 %v2223
    %v2736 = vunpack.c.l.b16 %v2224
    %v2737 = vunpack.c.l.b16 %v2225
    %v2738 = vunpack.c.l.b16 %v2226
    %v2739 = vunpack.c.l.b16 %v2227
    %v2740 = vunpack.c.l.b16 %v2228
    %v2741 = vunpack.c.l.b16 %v2229
    %v2742 = vunpack.c.l.b16 %v2230
    %v2743 = vunpack.c.l.b16 %v2231
    %v2744 = vunpack.c.l.b16 %v2232
    %v2745 = vunpack.c.l.b16 %v2233
    %v2746 = vunpack.c.l.b16 %v2234
    %v2747 = vunpack.c.l.b16 %v2235
    %v2748 = vunpack.c.l.b16 %v2236
    %v2749 = vunpack.c.l.b16 %v2237
    %v2750 = vunpack.c.l.b16 %v2238
    %v2751 = vunpack.c.l.b16 %v2239
    %v2752 = vunpack.c.l.b16 %v2240
    %v2753 = vunpack.c.l.b16 %v2241
    %v2754 = vunpack.c.l.b16 %v2242
    %v2755 = vunpack.c.l.b16 %v2243
    %v2756 = vunpack.c.l.b16 %v2244
    %v2757 = vunpack.c.l.b16 %v2245
    %v2758 = vunpack.c.l.b16 %v2246
    %v2759 = vunpack.c.l.b16 %v2247
    %v2760 = vunpack.c.l.b16 %v2248
    %v2761 = vunpack.c.l.b16 %v2249
    %v2762 = vunpack.c.l.b16 %v2250
    %v2763 = vunpack.c.l.b16 %v2251
    %v2764 = vunpack.c.l.b16 %v2252
    %v2765 = vunpack.c.l.b16 %v2253
    %v2766 = vunpack.c.l.b16 %v2254
    %v2767 = vunpack.c.l.b16 %v2255
    %v2768 = vunpack.c.l.b16 %v2256
    %v2769 = vunpack.c.l.b16 %v2257
    %v2770 = vunpack.c.l.b16 %v2258
    %v2771 = vunpack.c.l.b16 %v2259
    %v2772 = vunpack.c.l.b16 %v2260
    %v2773 = vunpack.c.l.b16 %v2261
    %v2774 = vunpack.c.l.b16 %v2262
    %v2775 = vunpack.c.l.b16 %v2263
    %v2776 = vunpack.c.l.b16 %v2264
    %v2777 = vunpack.c.l.b16 %v2265
    %v2778 = vunpack.c.l.b16 %v2266
    %v2779 = vunpack.c.l.b16 %v2267
    %v2780 = vunpack.c.l.b16 %v2268
    %v2781 = vunpack.c.l.b16 %v2269
    %v2782 = vunpack.c.l.b16 %v2270
    %v2783 = vunpack.c.l.b16 %v2271
    %v2784 = vunpack.c.l.b16 %v2272
    %v2785 = vunpack.c.l.b16 %v2273
    %v2786 = vunpack.c.l.b16 %v2274
    %v2787 = vunpack.c.l.b16 %v2275
    %v2788 = vpack.c.b16 %v2533, %v2532
    %v2789 = vpack.c.b16 %v2535, %v2534
    %v2790 = vpack.c.b16 %v2537, %v2536
    %v2791 = vpack.c.b16 %v2539, %v2538
    %v2792 = vpack.c.b16 %v2541, %v2540
    %v2793 = vpack.c.b16 %v2543, %v2542
    %v2794 = vpack.c.b16 %v2545, %v2544
    %v2795 = vpack.c.b16 %v2547, %v2546
    %v2796 = vpack.c.b16 %v2549, %v2548
    %v2797 = vpack.c.b16 %v2551, %v2550
    %v2798 = vpack.c.b16 %v2553, %v2552
    %v2799 = vpack.c.b16 %v2555, %v2554
    %v2800 = vpack.c.b16 %v2557, %v2556
    %v2801 = vpack.c.b16 %v2559, %v2558
    %v2802 = vpack.c.b16 %v2561, %v2560
    %v2803 = vpack.c.b16 %v2563, %v2562
    %v2804 = vpack.c.b16 %v2565, %v2564
    %v2805 = vpack.c.b16 %v2567, %v2566
    %v2806 = vpack.c.b16 %v2569, %v2568
    %v2807 = vpack.c.b16 %v2571, %v2570
    %v2808 = vpack.c.b16 %v2573, %v2572
    %v2809 = vpack.c.b16 %v2575, %v2574
    %v2810 = vpack.c.b16 %v2577, %v2576
    %v2811 = vpack.c.b16 %v2579, %v2578
    %v2812 = vpack.c.b16 %v2581, %v2580
    %v2813 = vpack.c.b16 %v2583, %v2582
    %v2814 = vpack.c.b16 %v2585, %v2584
    %v2815 = vpack.c.b16 %v2587, %v2586
    %v2816 = vpack.c.b16 %v2589, %v2588
    %v2817 = vpack.c.b16 %v2591, %v2590
    %v2818 = vpack.c.b16 %v2593, %v2592
    %v2819 = vpack.c.b16 %v2595, %v2594
    %v2820 = vpack.c.b16 %v2597, %v2596
    %v2821 = vpack.c.b16 %v2599, %v2598
    %v2822 = vpack.c.b16 %v2601, %v2600
    %v2823 = vpack.c.b16 %v2603, %v2602
    %v2824 = vpack.c.b16 %v2605, %v2604
    %v2825 = vpack.c.b16 %v2607, %v2606
    %v2826 = vpack.c.b16 %v2609, %v2608
    %v2827 = vpack.c.b16 %v2611, %v2610
    %v2828 = vpack.c.b16 %v2613, %v2612
    %v2829 = vpack.c.b16 %v2615, %v2614
    %v2830 = vpack.c.b16 %v2617, %v2616
    %v2831 = vpack.c.b16 %v2619, %v2618
    %v2832 = vpack.c.b16 %v2621, %v2620
    %v2833 = vpack.c.b16 %v2623, %v2622
    %v2834 = vpack.c.b16 %v2625, %v2624
    %v2835 = vpack.c.b16 %v2627, %v2626
    %v2836 = vpack.c.b16 %v2629, %v2628
    %v2837 = vpack.c.b16 %v2631, %v2630
    %v2838 = vpack.c.b16 %v2633, %v2632
    %v2839 = vpack.c.b16 %v2635, %v2634
    %v2840 = vpack.c.b16 %v2637, %v2636
    %v2841 = vpack.c.b16 %v2639, %v2638
    %v2842 = vpack.c.b16 %v2641, %v2640
    %v2843 = vpack.c.b16 %v2643, %v2642
    %v2844 = vpack.c.b16 %v2645, %v2644
    %v2845 = vpack.c.b16 %v2647, %v2646
    %v2846 = vpack.c.b16 %v2649, %v2648
    %v2847 = vpack.c.b16 %v2651, %v2650
    %v2848 = vpack.c.b16 %v2653, %v2652
    %v2849 = vpack.c.b16 %v2655, %v2654
    %v2850 = vpack.c.b16 %v2657, %v2656
    %v2851 = vpack.c.b16 %v2659, %v2658
    %v2852 = vpack.c.b16 %v2661, %v2660
    %v2853 = vpack.c.b16 %v2663, %v2662
    %v2854 = vpack.c.b16 %v2665, %v2664
    %v2855 = vpack.c.b16 %v2667, %v2666
    %v2856 = vpack.c.b16 %v2669, %v2668
    %v2857 = vpack.c.b16 %v2671, %v2670
    %v2858 = vpack.c.b16 %v2673, %v2672
    %v2859 = vpack.c.b16 %v2675, %v2674
    %v2860 = vpack.c.b16 %v2677, %v2676
    %v2861 = vpack.c.b16 %v2679, %v2678
    %v2862 = vpack.c.b16 %v2681, %v2680
    %v2863 = vpack.c.b16 %v2683, %v2682
    %v2864 = vpack.c.b16 %v2685, %v2684
    %v2865 = vpack.c.b16 %v2687, %v2686
    %v2866 = vpack.c.b16 %v2689, %v2688
    %v2867 = vpack.c.b16 %v2691, %v2690
    %v2868 = vpack.c.b16 %v2693, %v2692
    %v2869 = vpack.c.b16 %v2695, %v2694
    %v2870 = vpack.c.b16 %v2697, %v2696
    %v2871 = vpack.c.b16 %v2699, %v2698
    %v2872 = vpack.c.b16 %v2701, %v2700
    %v2873 = vpack.c.b16 %v2703, %v2702
    %v2874 = vpack.c.b16 %v2705, %v2704
    %v2875 = vpack.c.b16 %v2707, %v2706
    %v2876 = vpack.c.b16 %v2709, %v2708
    %v2877 = vpack.c.b16 %v2711, %v2710
    %v2878 = vpack.c.b16 %v2713, %v2712
    %v2879 = vpack.c.b16 %v2715, %v2714
    %v2880 = vpack.c.b16 %v2717, %v2716
    %v2881 = vpack.c.b16 %v2719, %v2718
    %v2882 = vpack.c.b16 %v2721, %v2720
    %v2883 = vpack.c.b16 %v2723, %v2722
    %v2884 = vpack.c.b16 %v2725, %v2724
    %v2885 = vpack.c.b16 %v2727, %v2726
    %v2886 = vpack.c.b16 %v2729, %v2728
    %v2887 = vpack.c.b16 %v2731, %v2730
    %v2888 = vpack.c.b16 %v2733, %v2732
    %v2889 = vpack.c.b16 %v2735, %v2734
    %v2890 = vpack.c.b16 %v2737, %v2736
    %v2891 = vpack.c.b16 %v2739, %v2738
    %v2892 = vpack.c.b16 %v2741, %v2740
    %v2893 = vpack.c.b16 %v2743, %v2742
    %v2894 = vpack.c.b16 %v2745, %v2744
    %v2895 = vpack.c.b16 %v2747, %v2746
    %v2896 = vpack.c.b16 %v2749, %v2748
    %v2897 = vpack.c.b16 %v2751, %v2750
    %v2898 = vpack.c.b16 %v2753, %v2752
    %v2899 = vpack.c.b16 %v2755, %v2754
    %v2900 = vpack.c.b16 %v2757, %v2756
    %v2901 = vpack.c.b16 %v2759, %v2758
    %v2902 = vpack.c.b16 %v2761, %v2760
    %v2903 = vpack.c.b16 %v2763, %v2762
    %v2904 = vpack.c.b16 %v2765, %v2764
    %v2905 = vpack.c.b16 %v2767, %v2766
    %v2906 = vpack.c.b16 %v2769, %v2768
    %v2907 = vpack.c.b16 %v2771, %v2770
    %v2908 = vpack.c.b16 %v2773, %v2772
    %v2909 = vpack.c.b16 %v2775, %v2774
    %v2910 = vpack.c.b16 %v2777, %v2776
    %v2911 = vpack.c.b16 %v2779, %v2778
    %v2912 = vpack.c.b16 %v2781, %v2780
    %v2913 = vpack.c.b16 %v2783, %v2782
    %v2914 = vpack.c.b16 %v2785, %v2784
    %v2915 = vpack.c.b16 %v2787, %v2786
    %3044 = vmatprep.subr.bf16.mxu0 0
    %3045 = vmatpush1.bf16.msra.mxu0 %v2795
    %3046 = vmatprep.subr.bf16.mxu0 0
    %3047 = vmatpush1.bf16.msra.mxu0 %v2794
    %3048 = vmatprep.subr.bf16.mxu0 0
    %3049 = vmatpush1.bf16.msra.mxu0 %v2793
    %3050 = vmatprep.subr.bf16.mxu0 0
    %3051 = vmatpush1.bf16.msra.mxu0 %v2792
    %3052 = vmatprep.subr.bf16.mxu0 0
    %3053 = vmatpush1.bf16.msra.mxu0 %v2791
    %3054 = vmatprep.subr.bf16.mxu0 0
    %3055 = vmatpush1.bf16.msra.mxu0 %v2790
    %3056 = vmatprep.subr.bf16.mxu0 0
    %3057 = vmatpush1.bf16.msra.mxu0 %v2789
    %3058 = vmatprep.subr.bf16.mxu0 0
    %3059 = vmatpush1.bf16.msra.mxu0 %v2788
    %3060 = vmatprep.subr.bf16.mxu0 0
    %3061 = vmatpush2.bf16.msra.mxu0 %v2803
    %3062 = vmatprep.subr.bf16.mxu0 0
    %3063 = vmatpush2.bf16.msra.mxu0 %v2802
    %3064 = vmatprep.subr.bf16.mxu0 0
    %3065 = vmatpush2.bf16.msra.mxu0 %v2801
    %3066 = vmatprep.subr.bf16.mxu0 0
    %3067 = vmatpush2.bf16.msra.mxu0 %v2800
    %3068 = vmatprep.subr.bf16.mxu0 0
    %3069 = vmatpush2.bf16.msra.mxu0 %v2799
    %3070 = vmatprep.subr.bf16.mxu0 0
    %3071 = vmatpush2.bf16.msra.mxu0 %v2798
    %3072 = vmatprep.subr.bf16.mxu0 0
    %3073 = vmatpush2.bf16.msra.mxu0 %v2797
    %3074 = vmatprep.subr.bf16.mxu0 0
    %3075 = vmatpush2.bf16.msra.mxu0 %v2796
    %3076 = vmatprep.mubr.bf16.mxu0 %v1877
    %3077 = vmatmul.mubr.bf16.gmra.mxu0 %v1876
    %v3078 = vpop.f32.mrf.mxu0
    %v3079 = vadd.f32 0.0, %v3078
    %v3080 = vpop.f32.mrf.mxu0
    %v3081 = vpop.f32.mrf.mxu0
    %v3082 = vadd.f32 0.0, %v3081
    %v3083 = vpop.f32.mrf.mxu0
    %3084 = vmatprep.mubr.bf16.mxu0 %v1893
    %3085 = vmatmul.mubr.bf16.gmra.mxu0 %v1892
    %v3086 = vpop.f32.mrf.mxu0
    %v3087 = vadd.f32 0.0, %v3086
    %v3088 = vpop.f32.mrf.mxu0
    %v3089 = vpop.f32.mrf.mxu0
    %v3090 = vadd.f32 0.0, %v3089
    %v3091 = vpop.f32.mrf.mxu0
    %3092 = vmatprep.mubr.bf16.mxu0 %v1909
    %3093 = vmatmul.mubr.bf16.gmra.mxu0 %v1908
    %v3094 = vpop.f32.mrf.mxu0
    %v3095 = vadd.f32 0.0, %v3094
    %v3096 = vpop.f32.mrf.mxu0
    %v3097 = vpop.f32.mrf.mxu0
    %v3098 = vadd.f32 0.0, %v3097
    %v3099 = vpop.f32.mrf.mxu0
    %3100 = vmatprep.mubr.bf16.mxu0 %v1925
    %3101 = vmatmul.mubr.bf16.gmra.mxu0 %v1924
    %v3102 = vpop.f32.mrf.mxu0
    %v3103 = vadd.f32 0.0, %v3102
    %v3104 = vpop.f32.mrf.mxu0
    %v3105 = vpop.f32.mrf.mxu0
    %v3106 = vadd.f32 0.0, %v3105
    %v3107 = vpop.f32.mrf.mxu0
    %3108 = vmatprep.mubr.bf16.mxu0 %v1941
    %3109 = vmatmul.mubr.bf16.gmra.mxu0 %v1940
    %v3110 = vpop.f32.mrf.mxu0
    %v3111 = vadd.f32 0.0, %v3110
    %v3112 = vpop.f32.mrf.mxu0
    %v3113 = vpop.f32.mrf.mxu0
    %v3114 = vadd.f32 0.0, %v3113
    %v3115 = vpop.f32.mrf.mxu0
    %3116 = vmatprep.mubr.bf16.mxu0 %v1957
    %3117 = vmatmul.mubr.bf16.gmra.mxu0 %v1956
    %v3118 = vpop.f32.mrf.mxu0
    %v3119 = vadd.f32 0.0, %v3118
    %v3120 = vpop.f32.mrf.mxu0
    %v3121 = vpop.f32.mrf.mxu0
    %v3122 = vadd.f32 0.0, %v3121
    %v3123 = vpop.f32.mrf.mxu0
    %3124 = vmatprep.mubr.bf16.mxu0 %v1973
    %3125 = vmatmul.mubr.bf16.gmra.mxu0 %v1972
    %v3126 = vpop.f32.mrf.mxu0
    %v3127 = vadd.f32 0.0, %v3126
    %v3128 = vpop.f32.mrf.mxu0
    %v3129 = vpop.f32.mrf.mxu0
    %v3130 = vadd.f32 0.0, %v3129
    %v3131 = vpop.f32.mrf.mxu0
    %3132 = vmatprep.mubr.bf16.mxu0 %v1989
    %3133 = vmatmul.mubr.bf16.gmra.mxu0 %v1988
    %v3134 = vpop.f32.mrf.mxu0
    %v3135 = vadd.f32 0.0, %v3134
    %v3136 = vpop.f32.mrf.mxu0
    %v3137 = vpop.f32.mrf.mxu0
    %v3138 = vadd.f32 0.0, %v3137
    %v3139 = vpop.f32.mrf.mxu0
    %3140 = vdwg.mxu0
    %3141 = vmatprep.subr.bf16.mxu0 0
    %3142 = vmatpush1.bf16.msra.mxu0 %v2811
    %3143 = vmatprep.subr.bf16.mxu0 0
    %3144 = vmatpush1.bf16.msra.mxu0 %v2810
    %3145 = vmatprep.subr.bf16.mxu0 0
    %3146 = vmatpush1.bf16.msra.mxu0 %v2809
    %3147 = vmatprep.subr.bf16.mxu0 0
    %3148 = vmatpush1.bf16.msra.mxu0 %v2808
    %3149 = vmatprep.subr.bf16.mxu0 0
    %3150 = vmatpush1.bf16.msra.mxu0 %v2807
    %3151 = vmatprep.subr.bf16.mxu0 0
    %3152 = vmatpush1.bf16.msra.mxu0 %v2806
    %3153 = vmatprep.subr.bf16.mxu0 0
    %3154 = vmatpush1.bf16.msra.mxu0 %v2805
    %3155 = vmatprep.subr.bf16.mxu0 0
    %3156 = vmatpush1.bf16.msra.mxu0 %v2804
    %3157 = vmatprep.subr.bf16.mxu0 0
    %3158 = vmatpush2.bf16.msra.mxu0 %v2819
    %3159 = vmatprep.subr.bf16.mxu0 0
    %3160 = vmatpush2.bf16.msra.mxu0 %v2818
    %3161 = vmatprep.subr.bf16.mxu0 0
    %3162 = vmatpush2.bf16.msra.mxu0 %v2817
    %3163 = vmatprep.subr.bf16.mxu0 0
    %3164 = vmatpush2.bf16.msra.mxu0 %v2816
    %3165 = vmatprep.subr.bf16.mxu0 0
    %3166 = vmatpush2.bf16.msra.mxu0 %v2815
    %3167 = vmatprep.subr.bf16.mxu0 0
    %3168 = vmatpush2.bf16.msra.mxu0 %v2814
    %3169 = vmatprep.subr.bf16.mxu0 0
    %3170 = vmatpush2.bf16.msra.mxu0 %v2813
    %3171 = vmatprep.subr.bf16.mxu0 0
    %3172 = vmatpush2.bf16.msra.mxu0 %v2812
    %3173 = vmatprep.mubr.bf16.mxu0 %v1879
    %3174 = vmatmul.mubr.bf16.gmra.mxu0 %v1878
    %v3175 = vpop.f32.mrf.mxu0
    %v3176 = vadd.f32 %v3079, %v3175
    %v3177 = vpop.f32.mrf.mxu0
    %v3178 = vpop.f32.mrf.mxu0
    %v3179 = vadd.f32 %v3082, %v3178
    %v3180 = vpop.f32.mrf.mxu0
    %3181 = vmatprep.mubr.bf16.mxu0 %v1895
    %3182 = vmatmul.mubr.bf16.gmra.mxu0 %v1894
    %v3183 = vpop.f32.mrf.mxu0
    %v3184 = vadd.f32 %v3087, %v3183
    %v3185 = vpop.f32.mrf.mxu0
    %v3186 = vpop.f32.mrf.mxu0
    %v3187 = vadd.f32 %v3090, %v3186
    %v3188 = vpop.f32.mrf.mxu0
    %3189 = vmatprep.mubr.bf16.mxu0 %v1911
    %3190 = vmatmul.mubr.bf16.gmra.mxu0 %v1910
    %v3191 = vpop.f32.mrf.mxu0
    %v3192 = vadd.f32 %v3095, %v3191
    %v3193 = vpop.f32.mrf.mxu0
    %v3194 = vpop.f32.mrf.mxu0
    %v3195 = vadd.f32 %v3098, %v3194
    %v3196 = vpop.f32.mrf.mxu0
    %3197 = vmatprep.mubr.bf16.mxu0 %v1927
    %3198 = vmatmul.mubr.bf16.gmra.mxu0 %v1926
    %v3199 = vpop.f32.mrf.mxu0
    %v3200 = vadd.f32 %v3103, %v3199
    %v3201 = vpop.f32.mrf.mxu0
    %v3202 = vpop.f32.mrf.mxu0
    %v3203 = vadd.f32 %v3106, %v3202
    %v3204 = vpop.f32.mrf.mxu0
    %3205 = vmatprep.mubr.bf16.mxu0 %v1943
    %3206 = vmatmul.mubr.bf16.gmra.mxu0 %v1942
    %v3207 = vpop.f32.mrf.mxu0
    %v3208 = vadd.f32 %v3111, %v3207
    %v3209 = vpop.f32.mrf.mxu0
    %v3210 = vpop.f32.mrf.mxu0
    %v3211 = vadd.f32 %v3114, %v3210
    %v3212 = vpop.f32.mrf.mxu0
    %3213 = vmatprep.mubr.bf16.mxu0 %v1959
    %3214 = vmatmul.mubr.bf16.gmra.mxu0 %v1958
    %v3215 = vpop.f32.mrf.mxu0
    %v3216 = vadd.f32 %v3119, %v3215
    %v3217 = vpop.f32.mrf.mxu0
    %v3218 = vpop.f32.mrf.mxu0
    %v3219 = vadd.f32 %v3122, %v3218
    %v3220 = vpop.f32.mrf.mxu0
    %3221 = vmatprep.mubr.bf16.mxu0 %v1975
    %3222 = vmatmul.mubr.bf16.gmra.mxu0 %v1974
    %v3223 = vpop.f32.mrf.mxu0
    %v3224 = vadd.f32 %v3127, %v3223
    %v3225 = vpop.f32.mrf.mxu0
    %v3226 = vpop.f32.mrf.mxu0
    %v3227 = vadd.f32 %v3130, %v3226
    %v3228 = vpop.f32.mrf.mxu0
    %3229 = vmatprep.mubr.bf16.mxu0 %v1991
    %3230 = vmatmul.mubr.bf16.gmra.mxu0 %v1990
    %v3231 = vpop.f32.mrf.mxu0
    %v3232 = vadd.f32 %v3135, %v3231
    %v3233 = vpop.f32.mrf.mxu0
    %v3234 = vpop.f32.mrf.mxu0
    %v3235 = vadd.f32 %v3138, %v3234
    %v3236 = vpop.f32.mrf.mxu0
    %3237 = vdwg.mxu0
    %3238 = vmatprep.subr.bf16.mxu0 0
    %3239 = vmatpush1.bf16.msra.mxu0 %v2827
    %3240 = vmatprep.subr.bf16.mxu0 0
    %3241 = vmatpush1.bf16.msra.mxu0 %v2826
    %3242 = vmatprep.subr.bf16.mxu0 0
    %3243 = vmatpush1.bf16.msra.mxu0 %v2825
    %3244 = vmatprep.subr.bf16.mxu0 0
    %3245 = vmatpush1.bf16.msra.mxu0 %v2824
    %3246 = vmatprep.subr.bf16.mxu0 0
    %3247 = vmatpush1.bf16.msra.mxu0 %v2823
    %3248 = vmatprep.subr.bf16.mxu0 0
    %3249 = vmatpush1.bf16.msra.mxu0 %v2822
    %3250 = vmatprep.subr.bf16.mxu0 0
    %3251 = vmatpush1.bf16.msra.mxu0 %v2821
    %3252 = vmatprep.subr.bf16.mxu0 0
    %3253 = vmatpush1.bf16.msra.mxu0 %v2820
    %3254 = vmatprep.subr.bf16.mxu0 0
    %3255 = vmatpush2.bf16.msra.mxu0 %v2835
    %3256 = vmatprep.subr.bf16.mxu0 0
    %3257 = vmatpush2.bf16.msra.mxu0 %v2834
    %3258 = vmatprep.subr.bf16.mxu0 0
    %3259 = vmatpush2.bf16.msra.mxu0 %v2833
    %3260 = vmatprep.subr.bf16.mxu0 0
    %3261 = vmatpush2.bf16.msra.mxu0 %v2832
    %3262 = vmatprep.subr.bf16.mxu0 0
    %3263 = vmatpush2.bf16.msra.mxu0 %v2831
    %3264 = vmatprep.subr.bf16.mxu0 0
    %3265 = vmatpush2.bf16.msra.mxu0 %v2830
    %3266 = vmatprep.subr.bf16.mxu0 0
    %3267 = vmatpush2.bf16.msra.mxu0 %v2829
    %3268 = vmatprep.subr.bf16.mxu0 0
    %3269 = vmatpush2.bf16.msra.mxu0 %v2828
    %3270 = vmatprep.mubr.bf16.mxu0 %v1881
    %3271 = vmatmul.mubr.bf16.gmra.mxu0 %v1880
    %v3272 = vpop.f32.mrf.mxu0
    %v3273 = vadd.f32 %v3176, %v3272
    %v3274 = vpop.f32.mrf.mxu0
    %v3275 = vpop.f32.mrf.mxu0
    %v3276 = vadd.f32 %v3179, %v3275
    %v3277 = vpop.f32.mrf.mxu0
    %3278 = vmatprep.mubr.bf16.mxu0 %v1897
    %3279 = vmatmul.mubr.bf16.gmra.mxu0 %v1896
    %v3280 = vpop.f32.mrf.mxu0
    %v3281 = vadd.f32 %v3184, %v3280
    %v3282 = vpop.f32.mrf.mxu0
    %v3283 = vpop.f32.mrf.mxu0
    %v3284 = vadd.f32 %v3187, %v3283
    %v3285 = vpop.f32.mrf.mxu0
    %3286 = vmatprep.mubr.bf16.mxu0 %v1913
    %3287 = vmatmul.mubr.bf16.gmra.mxu0 %v1912
    %v3288 = vpop.f32.mrf.mxu0
    %v3289 = vadd.f32 %v3192, %v3288
    %v3290 = vpop.f32.mrf.mxu0
    %v3291 = vpop.f32.mrf.mxu0
    %v3292 = vadd.f32 %v3195, %v3291
    %v3293 = vpop.f32.mrf.mxu0
    %3294 = vmatprep.mubr.bf16.mxu0 %v1929
    %3295 = vmatmul.mubr.bf16.gmra.mxu0 %v1928
    %v3296 = vpop.f32.mrf.mxu0
    %v3297 = vadd.f32 %v3200, %v3296
    %v3298 = vpop.f32.mrf.mxu0
    %v3299 = vpop.f32.mrf.mxu0
    %v3300 = vadd.f32 %v3203, %v3299
    %v3301 = vpop.f32.mrf.mxu0
    %3302 = vmatprep.mubr.bf16.mxu0 %v1945
    %3303 = vmatmul.mubr.bf16.gmra.mxu0 %v1944
    %v3304 = vpop.f32.mrf.mxu0
    %v3305 = vadd.f32 %v3208, %v3304
    %v3306 = vpop.f32.mrf.mxu0
    %v3307 = vpop.f32.mrf.mxu0
    %v3308 = vadd.f32 %v3211, %v3307
    %v3309 = vpop.f32.mrf.mxu0
    %3310 = vmatprep.mubr.bf16.mxu0 %v1961
    %3311 = vmatmul.mubr.bf16.gmra.mxu0 %v1960
    %v3312 = vpop.f32.mrf.mxu0
    %v3313 = vadd.f32 %v3216, %v3312
    %v3314 = vpop.f32.mrf.mxu0
    %v3315 = vpop.f32.mrf.mxu0
    %v3316 = vadd.f32 %v3219, %v3315
    %v3317 = vpop.f32.mrf.mxu0
    %3318 = vmatprep.mubr.bf16.mxu0 %v1977
    %3319 = vmatmul.mubr.bf16.gmra.mxu0 %v1976
    %v3320 = vpop.f32.mrf.mxu0
    %v3321 = vadd.f32 %v3224, %v3320
    %v3322 = vpop.f32.mrf.mxu0
    %v3323 = vpop.f32.mrf.mxu0
    %v3324 = vadd.f32 %v3227, %v3323
    %v3325 = vpop.f32.mrf.mxu0
    %3326 = vmatprep.mubr.bf16.mxu0 %v1993
    %3327 = vmatmul.mubr.bf16.gmra.mxu0 %v1992
    %v3328 = vpop.f32.mrf.mxu0
    %v3329 = vadd.f32 %v3232, %v3328
    %v3330 = vpop.f32.mrf.mxu0
    %v3331 = vpop.f32.mrf.mxu0
    %v3332 = vadd.f32 %v3235, %v3331
    %v3333 = vpop.f32.mrf.mxu0
    %3334 = vdwg.mxu0
    %3335 = vmatprep.subr.bf16.mxu0 0
    %3336 = vmatpush1.bf16.msra.mxu0 %v2843
    %3337 = vmatprep.subr.bf16.mxu0 0
    %3338 = vmatpush1.bf16.msra.mxu0 %v2842
    %3339 = vmatprep.subr.bf16.mxu0 0
    %3340 = vmatpush1.bf16.msra.mxu0 %v2841
    %3341 = vmatprep.subr.bf16.mxu0 0
    %3342 = vmatpush1.bf16.msra.mxu0 %v2840
    %3343 = vmatprep.subr.bf16.mxu0 0
    %3344 = vmatpush1.bf16.msra.mxu0 %v2839
    %3345 = vmatprep.subr.bf16.mxu0 0
    %3346 = vmatpush1.bf16.msra.mxu0 %v2838
    %3347 = vmatprep.subr.bf16.mxu0 0
    %3348 = vmatpush1.bf16.msra.mxu0 %v2837
    %3349 = vmatprep.subr.bf16.mxu0 0
    %3350 = vmatpush1.bf16.msra.mxu0 %v2836
    %3351 = vmatprep.subr.bf16.mxu0 0
    %3352 = vmatpush2.bf16.msra.mxu0 %v2851
    %3353 = vmatprep.subr.bf16.mxu0 0
    %3354 = vmatpush2.bf16.msra.mxu0 %v2850
    %3355 = vmatprep.subr.bf16.mxu0 0
    %3356 = vmatpush2.bf16.msra.mxu0 %v2849
    %3357 = vmatprep.subr.bf16.mxu0 0
    %3358 = vmatpush2.bf16.msra.mxu0 %v2848
    %3359 = vmatprep.subr.bf16.mxu0 0
    %3360 = vmatpush2.bf16.msra.mxu0 %v2847
    %3361 = vmatprep.subr.bf16.mxu0 0
    %3362 = vmatpush2.bf16.msra.mxu0 %v2846
    %3363 = vmatprep.subr.bf16.mxu0 0
    %3364 = vmatpush2.bf16.msra.mxu0 %v2845
    %3365 = vmatprep.subr.bf16.mxu0 0
    %3366 = vmatpush2.bf16.msra.mxu0 %v2844
    %3367 = vmatprep.mubr.bf16.mxu0 %v1883
    %3368 = vmatmul.mubr.bf16.gmra.mxu0 %v1882
    %v3369 = vpop.f32.mrf.mxu0
    %v3370 = vadd.f32 %v3273, %v3369
    %v3371 = vpop.f32.mrf.mxu0
    %v3372 = vpop.f32.mrf.mxu0
    %v3373 = vadd.f32 %v3276, %v3372
    %v3374 = vpop.f32.mrf.mxu0
    %3375 = vmatprep.mubr.bf16.mxu0 %v1899
    %3376 = vmatmul.mubr.bf16.gmra.mxu0 %v1898
    %v3377 = vpop.f32.mrf.mxu0
    %v3378 = vadd.f32 %v3281, %v3377
    %v3379 = vpop.f32.mrf.mxu0
    %v3380 = vpop.f32.mrf.mxu0
    %v3381 = vadd.f32 %v3284, %v3380
    %v3382 = vpop.f32.mrf.mxu0
    %3383 = vmatprep.mubr.bf16.mxu0 %v1915
    %3384 = vmatmul.mubr.bf16.gmra.mxu0 %v1914
    %v3385 = vpop.f32.mrf.mxu0
    %v3386 = vadd.f32 %v3289, %v3385
    %v3387 = vpop.f32.mrf.mxu0
    %v3388 = vpop.f32.mrf.mxu0
    %v3389 = vadd.f32 %v3292, %v3388
    %v3390 = vpop.f32.mrf.mxu0
    %3391 = vmatprep.mubr.bf16.mxu0 %v1931
    %3392 = vmatmul.mubr.bf16.gmra.mxu0 %v1930
    %v3393 = vpop.f32.mrf.mxu0
    %v3394 = vadd.f32 %v3297, %v3393
    %v3395 = vpop.f32.mrf.mxu0
    %v3396 = vpop.f32.mrf.mxu0
    %v3397 = vadd.f32 %v3300, %v3396
    %v3398 = vpop.f32.mrf.mxu0
    %3399 = vmatprep.mubr.bf16.mxu0 %v1947
    %3400 = vmatmul.mubr.bf16.gmra.mxu0 %v1946
    %v3401 = vpop.f32.mrf.mxu0
    %v3402 = vadd.f32 %v3305, %v3401
    %v3403 = vpop.f32.mrf.mxu0
    %v3404 = vpop.f32.mrf.mxu0
    %v3405 = vadd.f32 %v3308, %v3404
    %v3406 = vpop.f32.mrf.mxu0
    %3407 = vmatprep.mubr.bf16.mxu0 %v1963
    %3408 = vmatmul.mubr.bf16.gmra.mxu0 %v1962
    %v3409 = vpop.f32.mrf.mxu0
    %v3410 = vadd.f32 %v3313, %v3409
    %v3411 = vpop.f32.mrf.mxu0
    %v3412 = vpop.f32.mrf.mxu0
    %v3413 = vadd.f32 %v3316, %v3412
    %v3414 = vpop.f32.mrf.mxu0
    %3415 = vmatprep.mubr.bf16.mxu0 %v1979
    %3416 = vmatmul.mubr.bf16.gmra.mxu0 %v1978
    %v3417 = vpop.f32.mrf.mxu0
    %v3418 = vadd.f32 %v3321, %v3417
    %v3419 = vpop.f32.mrf.mxu0
    %v3420 = vpop.f32.mrf.mxu0
    %v3421 = vadd.f32 %v3324, %v3420
    %v3422 = vpop.f32.mrf.mxu0
    %3423 = vmatprep.mubr.bf16.mxu0 %v1995
    %3424 = vmatmul.mubr.bf16.gmra.mxu0 %v1994
    %v3425 = vpop.f32.mrf.mxu0
    %v3426 = vadd.f32 %v3329, %v3425
    %v3427 = vpop.f32.mrf.mxu0
    %v3428 = vpop.f32.mrf.mxu0
    %v3429 = vadd.f32 %v3332, %v3428
    %v3430 = vpop.f32.mrf.mxu0
    %3431 = vdwg.mxu0
    %3432 = vmatprep.subr.bf16.mxu0 0
    %3433 = vmatpush1.bf16.msra.mxu0 %v2859
    %3434 = vmatprep.subr.bf16.mxu0 0
    %3435 = vmatpush1.bf16.msra.mxu0 %v2858
    %3436 = vmatprep.subr.bf16.mxu0 0
    %3437 = vmatpush1.bf16.msra.mxu0 %v2857
    %3438 = vmatprep.subr.bf16.mxu0 0
    %3439 = vmatpush1.bf16.msra.mxu0 %v2856
    %3440 = vmatprep.subr.bf16.mxu0 0
    %3441 = vmatpush1.bf16.msra.mxu0 %v2855
    %3442 = vmatprep.subr.bf16.mxu0 0
    %3443 = vmatpush1.bf16.msra.mxu0 %v2854
    %3444 = vmatprep.subr.bf16.mxu0 0
    %3445 = vmatpush1.bf16.msra.mxu0 %v2853
    %3446 = vmatprep.subr.bf16.mxu0 0
    %3447 = vmatpush1.bf16.msra.mxu0 %v2852
    %3448 = vmatprep.subr.bf16.mxu0 0
    %3449 = vmatpush2.bf16.msra.mxu0 %v2867
    %3450 = vmatprep.subr.bf16.mxu0 0
    %3451 = vmatpush2.bf16.msra.mxu0 %v2866
    %3452 = vmatprep.subr.bf16.mxu0 0
    %3453 = vmatpush2.bf16.msra.mxu0 %v2865
    %3454 = vmatprep.subr.bf16.mxu0 0
    %3455 = vmatpush2.bf16.msra.mxu0 %v2864
    %3456 = vmatprep.subr.bf16.mxu0 0
    %3457 = vmatpush2.bf16.msra.mxu0 %v2863
    %3458 = vmatprep.subr.bf16.mxu0 0
    %3459 = vmatpush2.bf16.msra.mxu0 %v2862
    %3460 = vmatprep.subr.bf16.mxu0 0
    %3461 = vmatpush2.bf16.msra.mxu0 %v2861
    %3462 = vmatprep.subr.bf16.mxu0 0
    %3463 = vmatpush2.bf16.msra.mxu0 %v2860
    %3464 = vmatprep.mubr.bf16.mxu0 %v1885
    %3465 = vmatmul.mubr.bf16.gmra.mxu0 %v1884
    %v3466 = vpop.f32.mrf.mxu0
    %v3467 = vadd.f32 %v3370, %v3466
    %v3468 = vpop.f32.mrf.mxu0
    %v3469 = vpop.f32.mrf.mxu0
    %v3470 = vadd.f32 %v3373, %v3469
    %v3471 = vpop.f32.mrf.mxu0
    %3472 = vmatprep.mubr.bf16.mxu0 %v1901
    %3473 = vmatmul.mubr.bf16.gmra.mxu0 %v1900
    %v3474 = vpop.f32.mrf.mxu0
    %v3475 = vadd.f32 %v3378, %v3474
    %v3476 = vpop.f32.mrf.mxu0
    %v3477 = vpop.f32.mrf.mxu0
    %v3478 = vadd.f32 %v3381, %v3477
    %v3479 = vpop.f32.mrf.mxu0
    %3480 = vmatprep.mubr.bf16.mxu0 %v1917
    %3481 = vmatmul.mubr.bf16.gmra.mxu0 %v1916
    %v3482 = vpop.f32.mrf.mxu0
    %v3483 = vadd.f32 %v3386, %v3482
    %v3484 = vpop.f32.mrf.mxu0
    %v3485 = vpop.f32.mrf.mxu0
    %v3486 = vadd.f32 %v3389, %v3485
    %v3487 = vpop.f32.mrf.mxu0
    %3488 = vmatprep.mubr.bf16.mxu0 %v1933
    %3489 = vmatmul.mubr.bf16.gmra.mxu0 %v1932
    %v3490 = vpop.f32.mrf.mxu0
    %v3491 = vadd.f32 %v3394, %v3490
    %v3492 = vpop.f32.mrf.mxu0
    %v3493 = vpop.f32.mrf.mxu0
    %v3494 = vadd.f32 %v3397, %v3493
    %v3495 = vpop.f32.mrf.mxu0
    %3496 = vmatprep.mubr.bf16.mxu0 %v1949
    %3497 = vmatmul.mubr.bf16.gmra.mxu0 %v1948
    %v3498 = vpop.f32.mrf.mxu0
    %v3499 = vadd.f32 %v3402, %v3498
    %v3500 = vpop.f32.mrf.mxu0
    %v3501 = vpop.f32.mrf.mxu0
    %v3502 = vadd.f32 %v3405, %v3501
    %v3503 = vpop.f32.mrf.mxu0
    %3504 = vmatprep.mubr.bf16.mxu0 %v1965
    %3505 = vmatmul.mubr.bf16.gmra.mxu0 %v1964
    %v3506 = vpop.f32.mrf.mxu0
    %v3507 = vadd.f32 %v3410, %v3506
    %v3508 = vpop.f32.mrf.mxu0
    %v3509 = vpop.f32.mrf.mxu0
    %v3510 = vadd.f32 %v3413, %v3509
    %v3511 = vpop.f32.mrf.mxu0
    %3512 = vmatprep.mubr.bf16.mxu0 %v1981
    %3513 = vmatmul.mubr.bf16.gmra.mxu0 %v1980
    %v3514 = vpop.f32.mrf.mxu0
    %v3515 = vadd.f32 %v3418, %v3514
    %v3516 = vpop.f32.mrf.mxu0
    %v3517 = vpop.f32.mrf.mxu0
    %v3518 = vadd.f32 %v3421, %v3517
    %v3519 = vpop.f32.mrf.mxu0
    %3520 = vmatprep.mubr.bf16.mxu0 %v1997
    %3521 = vmatmul.mubr.bf16.gmra.mxu0 %v1996
    %v3522 = vpop.f32.mrf.mxu0
    %v3523 = vadd.f32 %v3426, %v3522
    %v3524 = vpop.f32.mrf.mxu0
    %v3525 = vpop.f32.mrf.mxu0
    %v3526 = vadd.f32 %v3429, %v3525
    %v3527 = vpop.f32.mrf.mxu0
    %3528 = vdwg.mxu0
    %3529 = vmatprep.subr.bf16.mxu0 0
    %3530 = vmatpush1.bf16.msra.mxu0 %v2875
    %3531 = vmatprep.subr.bf16.mxu0 0
    %3532 = vmatpush1.bf16.msra.mxu0 %v2874
    %3533 = vmatprep.subr.bf16.mxu0 0
    %3534 = vmatpush1.bf16.msra.mxu0 %v2873
    %3535 = vmatprep.subr.bf16.mxu0 0
    %3536 = vmatpush1.bf16.msra.mxu0 %v2872
    %3537 = vmatprep.subr.bf16.mxu0 0
    %3538 = vmatpush1.bf16.msra.mxu0 %v2871
    %3539 = vmatprep.subr.bf16.mxu0 0
    %3540 = vmatpush1.bf16.msra.mxu0 %v2870
    %3541 = vmatprep.subr.bf16.mxu0 0
    %3542 = vmatpush1.bf16.msra.mxu0 %v2869
    %3543 = vmatprep.subr.bf16.mxu0 0
    %3544 = vmatpush1.bf16.msra.mxu0 %v2868
    %3545 = vmatprep.subr.bf16.mxu0 0
    %3546 = vmatpush2.bf16.msra.mxu0 %v2883
    %3547 = vmatprep.subr.bf16.mxu0 0
    %3548 = vmatpush2.bf16.msra.mxu0 %v2882
    %3549 = vmatprep.subr.bf16.mxu0 0
    %3550 = vmatpush2.bf16.msra.mxu0 %v2881
    %3551 = vmatprep.subr.bf16.mxu0 0
    %3552 = vmatpush2.bf16.msra.mxu0 %v2880
    %3553 = vmatprep.subr.bf16.mxu0 0
    %3554 = vmatpush2.bf16.msra.mxu0 %v2879
    %3555 = vmatprep.subr.bf16.mxu0 0
    %3556 = vmatpush2.bf16.msra.mxu0 %v2878
    %3557 = vmatprep.subr.bf16.mxu0 0
    %3558 = vmatpush2.bf16.msra.mxu0 %v2877
    %3559 = vmatprep.subr.bf16.mxu0 0
    %3560 = vmatpush2.bf16.msra.mxu0 %v2876
    %3561 = vmatprep.mubr.bf16.mxu0 %v1887
    %3562 = vmatmul.mubr.bf16.gmra.mxu0 %v1886
    %v3563 = vpop.f32.mrf.mxu0
    %v3564 = vadd.f32 %v3467, %v3563
    %v3565 = vpop.f32.mrf.mxu0
    %v3566 = vpop.f32.mrf.mxu0
    %v3567 = vadd.f32 %v3470, %v3566
    %v3568 = vpop.f32.mrf.mxu0
    %3569 = vmatprep.mubr.bf16.mxu0 %v1903
    %3570 = vmatmul.mubr.bf16.gmra.mxu0 %v1902
    %v3571 = vpop.f32.mrf.mxu0
    %v3572 = vadd.f32 %v3475, %v3571
    %v3573 = vpop.f32.mrf.mxu0
    %v3574 = vpop.f32.mrf.mxu0
    %v3575 = vadd.f32 %v3478, %v3574
    %v3576 = vpop.f32.mrf.mxu0
    %3577 = vmatprep.mubr.bf16.mxu0 %v1919
    %3578 = vmatmul.mubr.bf16.gmra.mxu0 %v1918
    %v3579 = vpop.f32.mrf.mxu0
    %v3580 = vadd.f32 %v3483, %v3579
    %v3581 = vpop.f32.mrf.mxu0
    %v3582 = vpop.f32.mrf.mxu0
    %v3583 = vadd.f32 %v3486, %v3582
    %v3584 = vpop.f32.mrf.mxu0
    %3585 = vmatprep.mubr.bf16.mxu0 %v1935
    %3586 = vmatmul.mubr.bf16.gmra.mxu0 %v1934
    %v3587 = vpop.f32.mrf.mxu0
    %v3588 = vadd.f32 %v3491, %v3587
    %v3589 = vpop.f32.mrf.mxu0
    %v3590 = vpop.f32.mrf.mxu0
    %v3591 = vadd.f32 %v3494, %v3590
    %v3592 = vpop.f32.mrf.mxu0
    %3593 = vmatprep.mubr.bf16.mxu0 %v1951
    %3594 = vmatmul.mubr.bf16.gmra.mxu0 %v1950
    %v3595 = vpop.f32.mrf.mxu0
    %v3596 = vadd.f32 %v3499, %v3595
    %v3597 = vpop.f32.mrf.mxu0
    %v3598 = vpop.f32.mrf.mxu0
    %v3599 = vadd.f32 %v3502, %v3598
    %v3600 = vpop.f32.mrf.mxu0
    %3601 = vmatprep.mubr.bf16.mxu0 %v1967
    %3602 = vmatmul.mubr.bf16.gmra.mxu0 %v1966
    %v3603 = vpop.f32.mrf.mxu0
    %v3604 = vadd.f32 %v3507, %v3603
    %v3605 = vpop.f32.mrf.mxu0
    %v3606 = vpop.f32.mrf.mxu0
    %v3607 = vadd.f32 %v3510, %v3606
    %v3608 = vpop.f32.mrf.mxu0
    %3609 = vmatprep.mubr.bf16.mxu0 %v1983
    %3610 = vmatmul.mubr.bf16.gmra.mxu0 %v1982
    %v3611 = vpop.f32.mrf.mxu0
    %v3612 = vadd.f32 %v3515, %v3611
    %v3613 = vpop.f32.mrf.mxu0
    %v3614 = vpop.f32.mrf.mxu0
    %v3615 = vadd.f32 %v3518, %v3614
    %v3616 = vpop.f32.mrf.mxu0
    %3617 = vmatprep.mubr.bf16.mxu0 %v1999
    %3618 = vmatmul.mubr.bf16.gmra.mxu0 %v1998
    %v3619 = vpop.f32.mrf.mxu0
    %v3620 = vadd.f32 %v3523, %v3619
    %v3621 = vpop.f32.mrf.mxu0
    %v3622 = vpop.f32.mrf.mxu0
    %v3623 = vadd.f32 %v3526, %v3622
    %v3624 = vpop.f32.mrf.mxu0
    %3625 = vdwg.mxu0
    %3626 = vmatprep.subr.bf16.mxu0 0
    %3627 = vmatpush1.bf16.msra.mxu0 %v2891
    %3628 = vmatprep.subr.bf16.mxu0 0
    %3629 = vmatpush1.bf16.msra.mxu0 %v2890
    %3630 = vmatprep.subr.bf16.mxu0 0
    %3631 = vmatpush1.bf16.msra.mxu0 %v2889
    %3632 = vmatprep.subr.bf16.mxu0 0
    %3633 = vmatpush1.bf16.msra.mxu0 %v2888
    %3634 = vmatprep.subr.bf16.mxu0 0
    %3635 = vmatpush1.bf16.msra.mxu0 %v2887
    %3636 = vmatprep.subr.bf16.mxu0 0
    %3637 = vmatpush1.bf16.msra.mxu0 %v2886
    %3638 = vmatprep.subr.bf16.mxu0 0
    %3639 = vmatpush1.bf16.msra.mxu0 %v2885
    %3640 = vmatprep.subr.bf16.mxu0 0
    %3641 = vmatpush1.bf16.msra.mxu0 %v2884
    %3642 = vmatprep.subr.bf16.mxu0 0
    %3643 = vmatpush2.bf16.msra.mxu0 %v2899
    %3644 = vmatprep.subr.bf16.mxu0 0
    %3645 = vmatpush2.bf16.msra.mxu0 %v2898
    %3646 = vmatprep.subr.bf16.mxu0 0
    %3647 = vmatpush2.bf16.msra.mxu0 %v2897
    %3648 = vmatprep.subr.bf16.mxu0 0
    %3649 = vmatpush2.bf16.msra.mxu0 %v2896
    %3650 = vmatprep.subr.bf16.mxu0 0
    %3651 = vmatpush2.bf16.msra.mxu0 %v2895
    %3652 = vmatprep.subr.bf16.mxu0 0
    %3653 = vmatpush2.bf16.msra.mxu0 %v2894
    %3654 = vmatprep.subr.bf16.mxu0 0
    %3655 = vmatpush2.bf16.msra.mxu0 %v2893
    %3656 = vmatprep.subr.bf16.mxu0 0
    %3657 = vmatpush2.bf16.msra.mxu0 %v2892
    %3658 = vmatprep.mubr.bf16.mxu0 %v1889
    %3659 = vmatmul.mubr.bf16.gmra.mxu0 %v1888
    %v3660 = vpop.f32.mrf.mxu0
    %v3661 = vadd.f32 %v3564, %v3660
    %v3662 = vpop.f32.mrf.mxu0
    %v3663 = vpop.f32.mrf.mxu0
    %v3664 = vadd.f32 %v3567, %v3663
    %v3665 = vpop.f32.mrf.mxu0
    %3666 = vmatprep.mubr.bf16.mxu0 %v1905
    %3667 = vmatmul.mubr.bf16.gmra.mxu0 %v1904
    %v3668 = vpop.f32.mrf.mxu0
    %v3669 = vadd.f32 %v3572, %v3668
    %v3670 = vpop.f32.mrf.mxu0
    %v3671 = vpop.f32.mrf.mxu0
    %v3672 = vadd.f32 %v3575, %v3671
    %v3673 = vpop.f32.mrf.mxu0
    %3674 = vmatprep.mubr.bf16.mxu0 %v1921
    %3675 = vmatmul.mubr.bf16.gmra.mxu0 %v1920
    %v3676 = vpop.f32.mrf.mxu0
    %v3677 = vadd.f32 %v3580, %v3676
    %v3678 = vpop.f32.mrf.mxu0
    %v3679 = vpop.f32.mrf.mxu0
    %v3680 = vadd.f32 %v3583, %v3679
    %v3681 = vpop.f32.mrf.mxu0
    %3682 = vmatprep.mubr.bf16.mxu0 %v1937
    %3683 = vmatmul.mubr.bf16.gmra.mxu0 %v1936
    %v3684 = vpop.f32.mrf.mxu0
    %v3685 = vadd.f32 %v3588, %v3684
    %v3686 = vpop.f32.mrf.mxu0
    %v3687 = vpop.f32.mrf.mxu0
    %v3688 = vadd.f32 %v3591, %v3687
    %v3689 = vpop.f32.mrf.mxu0
    %3690 = vmatprep.mubr.bf16.mxu0 %v1953
    %3691 = vmatmul.mubr.bf16.gmra.mxu0 %v1952
    %v3692 = vpop.f32.mrf.mxu0
    %v3693 = vadd.f32 %v3596, %v3692
    %v3694 = vpop.f32.mrf.mxu0
    %v3695 = vpop.f32.mrf.mxu0
    %v3696 = vadd.f32 %v3599, %v3695
    %v3697 = vpop.f32.mrf.mxu0
    %3698 = vmatprep.mubr.bf16.mxu0 %v1969
    %3699 = vmatmul.mubr.bf16.gmra.mxu0 %v1968
    %v3700 = vpop.f32.mrf.mxu0
    %v3701 = vadd.f32 %v3604, %v3700
    %v3702 = vpop.f32.mrf.mxu0
    %v3703 = vpop.f32.mrf.mxu0
    %v3704 = vadd.f32 %v3607, %v3703
    %v3705 = vpop.f32.mrf.mxu0
    %3706 = vmatprep.mubr.bf16.mxu0 %v1985
    %3707 = vmatmul.mubr.bf16.gmra.mxu0 %v1984
    %v3708 = vpop.f32.mrf.mxu0
    %v3709 = vadd.f32 %v3612, %v3708
    %v3710 = vpop.f32.mrf.mxu0
    %v3711 = vpop.f32.mrf.mxu0
    %v3712 = vadd.f32 %v3615, %v3711
    %v3713 = vpop.f32.mrf.mxu0
    %3714 = vmatprep.mubr.bf16.mxu0 %v2001
    %3715 = vmatmul.mubr.bf16.gmra.mxu0 %v2000
    %v3716 = vpop.f32.mrf.mxu0
    %v3717 = vadd.f32 %v3620, %v3716
    %v3718 = vpop.f32.mrf.mxu0
    %v3719 = vpop.f32.mrf.mxu0
    %v3720 = vadd.f32 %v3623, %v3719
    %v3721 = vpop.f32.mrf.mxu0
    %3722 = vdwg.mxu0
    %3723 = vmatprep.subr.bf16.mxu0 0
    %3724 = vmatpush1.bf16.msra.mxu0 %v2907
    %3725 = vmatprep.subr.bf16.mxu0 0
    %3726 = vmatpush1.bf16.msra.mxu0 %v2906
    %3727 = vmatprep.subr.bf16.mxu0 0
    %3728 = vmatpush1.bf16.msra.mxu0 %v2905
    %3729 = vmatprep.subr.bf16.mxu0 0
    %3730 = vmatpush1.bf16.msra.mxu0 %v2904
    %3731 = vmatprep.subr.bf16.mxu0 0
    %3732 = vmatpush1.bf16.msra.mxu0 %v2903
    %3733 = vmatprep.subr.bf16.mxu0 0
    %3734 = vmatpush1.bf16.msra.mxu0 %v2902
    %3735 = vmatprep.subr.bf16.mxu0 0
    %3736 = vmatpush1.bf16.msra.mxu0 %v2901
    %3737 = vmatprep.subr.bf16.mxu0 0
    %3738 = vmatpush1.bf16.msra.mxu0 %v2900
    %3739 = vmatprep.subr.bf16.mxu0 0
    %3740 = vmatpush2.bf16.msra.mxu0 %v2915
    %3741 = vmatprep.subr.bf16.mxu0 0
    %3742 = vmatpush2.bf16.msra.mxu0 %v2914
    %3743 = vmatprep.subr.bf16.mxu0 0
    %3744 = vmatpush2.bf16.msra.mxu0 %v2913
    %3745 = vmatprep.subr.bf16.mxu0 0
    %3746 = vmatpush2.bf16.msra.mxu0 %v2912
    %3747 = vmatprep.subr.bf16.mxu0 0
    %3748 = vmatpush2.bf16.msra.mxu0 %v2911
    %3749 = vmatprep.subr.bf16.mxu0 0
    %3750 = vmatpush2.bf16.msra.mxu0 %v2910
    %3751 = vmatprep.subr.bf16.mxu0 0
    %3752 = vmatpush2.bf16.msra.mxu0 %v2909
    %3753 = vmatprep.subr.bf16.mxu0 0
    %3754 = vmatpush2.bf16.msra.mxu0 %v2908
    %3755 = vmatprep.mubr.bf16.mxu0 %v1891
    %3756 = vmatmul.mubr.bf16.gmra.mxu0 %v1890
    %v3757 = vpop.f32.mrf.mxu0
    %v3758 = vadd.f32 %v3661, %v3757
    %v3759 = vpop.f32.mrf.mxu0
    %v3760 = vpop.f32.mrf.mxu0
    %v3761 = vadd.f32 %v3664, %v3760
    %v3762 = vpop.f32.mrf.mxu0
    %3763 = vmatprep.mubr.bf16.mxu0 %v1907
    %3764 = vmatmul.mubr.bf16.gmra.mxu0 %v1906
    %v3765 = vpop.f32.mrf.mxu0
    %v3766 = vadd.f32 %v3669, %v3765
    %v3767 = vpop.f32.mrf.mxu0
    %v3768 = vpop.f32.mrf.mxu0
    %v3769 = vadd.f32 %v3672, %v3768
    %v3770 = vpop.f32.mrf.mxu0
    %3771 = vmatprep.mubr.bf16.mxu0 %v1923
    %3772 = vmatmul.mubr.bf16.gmra.mxu0 %v1922
    %v3773 = vpop.f32.mrf.mxu0
    %v3774 = vadd.f32 %v3677, %v3773
    %v3775 = vpop.f32.mrf.mxu0
    %v3776 = vpop.f32.mrf.mxu0
    %v3777 = vadd.f32 %v3680, %v3776
    %v3778 = vpop.f32.mrf.mxu0
    %3779 = vmatprep.mubr.bf16.mxu0 %v1939
    %3780 = vmatmul.mubr.bf16.gmra.mxu0 %v1938
    %v3781 = vpop.f32.mrf.mxu0
    %v3782 = vadd.f32 %v3685, %v3781
    %v3783 = vpop.f32.mrf.mxu0
    %v3784 = vpop.f32.mrf.mxu0
    %v3785 = vadd.f32 %v3688, %v3784
    %v3786 = vpop.f32.mrf.mxu0
    %3787 = vmatprep.mubr.bf16.mxu0 %v1955
    %3788 = vmatmul.mubr.bf16.gmra.mxu0 %v1954
    %v3789 = vpop.f32.mrf.mxu0
    %v3790 = vadd.f32 %v3693, %v3789
    %v3791 = vpop.f32.mrf.mxu0
    %v3792 = vpop.f32.mrf.mxu0
    %v3793 = vadd.f32 %v3696, %v3792
    %v3794 = vpop.f32.mrf.mxu0
    %3795 = vmatprep.mubr.bf16.mxu0 %v1971
    %3796 = vmatmul.mubr.bf16.gmra.mxu0 %v1970
    %v3797 = vpop.f32.mrf.mxu0
    %v3798 = vadd.f32 %v3701, %v3797
    %v3799 = vpop.f32.mrf.mxu0
    %v3800 = vpop.f32.mrf.mxu0
    %v3801 = vadd.f32 %v3704, %v3800
    %v3802 = vpop.f32.mrf.mxu0
    %3803 = vmatprep.mubr.bf16.mxu0 %v1987
    %3804 = vmatmul.mubr.bf16.gmra.mxu0 %v1986
    %v3805 = vpop.f32.mrf.mxu0
    %v3806 = vadd.f32 %v3709, %v3805
    %v3807 = vpop.f32.mrf.mxu0
    %v3808 = vpop.f32.mrf.mxu0
    %v3809 = vadd.f32 %v3712, %v3808
    %v3810 = vpop.f32.mrf.mxu0
    %3811 = vmatprep.mubr.bf16.mxu0 %v2003
    %3812 = vmatmul.mubr.bf16.gmra.mxu0 %v2002
    %v3813 = vpop.f32.mrf.mxu0
    %v3814 = vadd.f32 %v3717, %v3813
    %v3815 = vpop.f32.mrf.mxu0
    %v3816 = vpop.f32.mrf.mxu0
    %v3817 = vadd.f32 %v3720, %v3816
    %v3818 = vpop.f32.mrf.mxu0
    %3819 = vdwg.mxu0
    %v3820 = vadd.f32 %v2004, %v3758
    %v3821 = vadd.f32 %v2005, %v3761
    %v3822 = vadd.f32 %v2006, %v3766
    %v3823 = vadd.f32 %v2007, %v3769
    %v3824 = vadd.f32 %v2008, %v3774
    %v3825 = vadd.f32 %v2009, %v3777
    %v3826 = vadd.f32 %v2010, %v3782
    %v3827 = vadd.f32 %v2011, %v3785
    %v3828 = vadd.f32 %v2012, %v3790
    %v3829 = vadd.f32 %v2013, %v3793
    %v3830 = vadd.f32 %v2014, %v3798
    %v3831 = vadd.f32 %v2015, %v3801
    %v3832 = vadd.f32 %v2016, %v3806
    %v3833 = vadd.f32 %v2017, %v3809
    %v3834 = vadd.f32 %v2018, %v3814
    %v3835 = vadd.f32 %v2019, %v3817
    %3836 = vst [vmem:[#allocation2] sm:$0xff] %v3820
    %3837 = vst [vmem:[#allocation2 + $0x8] sm:$0xff] %v3821
    %3838 = vst [vmem:[#allocation2 + $0x10] sm:$0xff] %v3822
    %3839 = vst [vmem:[#allocation2 + $0x18] sm:$0xff] %v3823
    %3840 = vst [vmem:[#allocation2 + $0x20] sm:$0xff] %v3824
    %3841 = vst [vmem:[#allocation2 + $0x28] sm:$0xff] %v3825
    %3842 = vst [vmem:[#allocation2 + $0x30] sm:$0xff] %v3826
    %3843 = vst [vmem:[#allocation2 + $0x38] sm:$0xff] %v3827
    %3844 = vst [vmem:[#allocation2 + $0x40] sm:$0xff] %v3828
    %3845 = vst [vmem:[#allocation2 + $0x48] sm:$0xff] %v3829
    %3846 = vst [vmem:[#allocation2 + $0x50] sm:$0xff] %v3830
    %3847 = vst [vmem:[#allocation2 + $0x58] sm:$0xff] %v3831
    %3848 = vst [vmem:[#allocation2 + $0x60] sm:$0xff] %v3832
    %3849 = vst [vmem:[#allocation2 + $0x68] sm:$0xff] %v3833
    %3850 = vst [vmem:[#allocation2 + $0x70] sm:$0xff] %v3834
    %3851 = vst [vmem:[#allocation2 + $0x78] sm:$0xff] %v3835
    // Predicated region
    $region26: #{_lambda_.9} parent=1 // pred_check
      %p3852 = pneg %p24
    $region27: #{_lambda_.9} parent=1 // pred_check_branch
      %3854 = sbr.rel (%p3852) target = $region29
    $region28: #{_lambda_.9} parent=1 // pred_region
      %v3855 = vld [vmem:[#allocation2] sm:$0xff]
      %v3856 = vld [vmem:[#allocation2 + $0x8] sm:$0xff]
      %v3857 = vld [vmem:[#allocation2 + $0x10] sm:$0xff]
      %v3858 = vld [vmem:[#allocation2 + $0x18] sm:$0xff]
      %v3859 = vld [vmem:[#allocation2 + $0x20] sm:$0xff]
      %v3860 = vld [vmem:[#allocation2 + $0x28] sm:$0xff]
      %v3861 = vld [vmem:[#allocation2 + $0x30] sm:$0xff]
      %v3862 = vld [vmem:[#allocation2 + $0x38] sm:$0xff]
      %v3863 = vld [vmem:[#allocation2 + $0x40] sm:$0xff]
      %v3864 = vld [vmem:[#allocation2 + $0x48] sm:$0xff]
      %v3865 = vld [vmem:[#allocation2 + $0x50] sm:$0xff]
      %v3866 = vld [vmem:[#allocation2 + $0x58] sm:$0xff]
      %v3867 = vld [vmem:[#allocation2 + $0x60] sm:$0xff]
      %v3868 = vld [vmem:[#allocation2 + $0x68] sm:$0xff]
      %v3869 = vld [vmem:[#allocation2 + $0x70] sm:$0xff]
      %v3870 = vld [vmem:[#allocation2 + $0x78] sm:$0xff]
      %v3871 = vld [vmem:[%s4] sm:$0x1]
      %v3873 = vlaneseq
      %v3874 = vshrl.u32 %v3873, 7
      %v3875 = vsub.s32 0, %v3874
      %v3876 = vrot.slane %v3871, %v3875
      %v3878 = vadd.f32 %v3855, %v3876
      %v3879 = vadd.f32 %v3856, %v3876
      %v3880 = vadd.f32 %v3857, %v3876
      %v3881 = vadd.f32 %v3858, %v3876
      %v3882 = vadd.f32 %v3859, %v3876
      %v3883 = vadd.f32 %v3860, %v3876
      %v3884 = vadd.f32 %v3861, %v3876
      %v3885 = vadd.f32 %v3862, %v3876
      %v3886 = vadd.f32 %v3863, %v3876
      %v3887 = vadd.f32 %v3864, %v3876
      %v3888 = vadd.f32 %v3865, %v3876
      %v3889 = vadd.f32 %v3866, %v3876
      %v3890 = vadd.f32 %v3867, %v3876
      %v3891 = vadd.f32 %v3868, %v3876
      %v3892 = vadd.f32 %v3869, %v3876
      %v3893 = vadd.f32 %v3870, %v3876
      %3894 = vst [vmem:[#allocation3] sm:$0xff] 0.0
      %3895 = vst [vmem:[%s5] sm:$0xff] %v3878
      %3896 = vst [vmem:[%s5 + $0x8] sm:$0xff] %v3879
      %3897 = vst [vmem:[%s5 + $0x10] sm:$0xff] %v3880
      %3898 = vst [vmem:[%s5 + $0x18] sm:$0xff] %v3881
      %3899 = vst [vmem:[%s5 + $0x20] sm:$0xff] %v3882
      %3900 = vst [vmem:[%s5 + $0x28] sm:$0xff] %v3883
      %3901 = vst [vmem:[%s5 + $0x30] sm:$0xff] %v3884
      %3902 = vst [vmem:[%s5 + $0x38] sm:$0xff] %v3885
      %3903 = vst [vmem:[%s5 + $0x40] sm:$0xff] %v3886
      %3904 = vst [vmem:[%s5 + $0x48] sm:$0xff] %v3887
      %3905 = vst [vmem:[%s5 + $0x50] sm:$0xff] %v3888
      %3906 = vst [vmem:[%s5 + $0x58] sm:$0xff] %v3889
      %3907 = vst [vmem:[%s5 + $0x60] sm:$0xff] %v3890
      %3908 = vst [vmem:[%s5 + $0x68] sm:$0xff] %v3891
      %3909 = vst [vmem:[%s5 + $0x70] sm:$0xff] %v3892
      %3910 = vst [vmem:[%s5 + $0x78] sm:$0xff] %v3893
    $region29: #{_lambda_.9} parent=1 // pred_fallthru
      _
    // Predicated region
    $region30: #{_lambda_.9} parent=1 // pred_check
      _
    $region31: #{_lambda_.9} parent=1 // pred_check_branch
      %3912 = sbr.rel (0) target = $region33
    $region32: #{_lambda_.9} parent=1 // pred_region
      _
    $region33: #{_lambda_.9} parent=1 // pred_fallthru
      _
    // Predicated region
    $region34: #{_lambda_.9} parent=1 // pred_check
      _
    $region35: #{_lambda_.9} parent=1 // pred_check_branch
      %3914 = sbr.rel (0) target = $region37
    $region36: #{_lambda_.9} parent=1 // pred_region
      %s3916 = ssub.s32 128, 128
      %3917 = vsyncadd [#allocation4], %s3916
      %s3919 = sshll.u32 [#allocation3], 4
      %s3920 = int_to_ptr.vmem [resolvable:$true] %s3919
      %3922 = dma.vmem_to_hbm [thread:$0]  %s3920, 128, %s6, [#allocation4]
    $region37: #{_lambda_.9} parent=1 // pred_fallthru
      _
    // Predicated region
    $region38: #{_lambda_.9} parent=1 // pred_check
      _
    $region39: #{_lambda_.9} parent=1 // pred_check_branch
      %3924 = sbr.rel (0) target = $region41
    $region40: #{_lambda_.9} parent=1 // pred_region
      _
    $region41: #{_lambda_.9} parent=1 // pred_fallthru
      _
    // Predicated region
    $region42: #{_lambda_.9} parent=1 // pred_check
      _
    $region43: #{_lambda_.9} parent=1 // pred_check_branch
      %3926 = sbr.rel (0) target = $region45
    $region44: #{_lambda_.9} parent=1 // pred_region
      %3927 = dma.done [#allocation4], 128
    $region45: #{_lambda_.9} parent=1 // pred_fallthru
      _
    %3928 = vsyncpa [#allocation4], 1

</llo_original>
